<compile_context>
chip_gen: v5e
topology: v5e:2x2
jax: 0.10.0
libtpu: 0.0.40
codegen_flags: <defaults>
</compile_context>

<pallas_src>
import numpy as np
import jax
import jax.numpy as jnp
from jax.experimental import pallas as pl
from jax.experimental.pallas import tpu as pltpu

_EPS = 1e-5


def _vmem_limit_bytes():
    """~3/4 of physical VMEM, capped at 96 MiB (v5e/v6e: 128 MiB, v7x: 64 MiB)."""
    try:
        cap = pltpu.get_tpu_info().vmem_capacity_bytes
    except Exception:  # no TPU info available: assume the smallest part (v7x)
        cap = 64 * 1024 * 1024
    return int(max(32 * 1024 * 1024, min((cap * 3) // 4, 96 * 1024 * 1024)))


def _pick_batch_block(n_imgs, hw, cin, inter, cout, vmem_budget):
    """Largest divisor of n_imgs whose per-step working set fits ~1/4 of VMEM."""
    c_all = cin + cout
    per_img = 4 * hw * (2 * cin + 2 * c_all + 9 * cout + 3 * inter)  # rough f32 bytes
    cap = max(1, (vmem_budget // 4) // max(per_img, 1))
    best = 1
    for b in range(1, n_imgs + 1):
        if n_imgs % b == 0 and b <= cap:
            best = b
    return best


def _conv_taps_mask(h, w):
    """(h*w, 9) f32 mask: tap t = ky*3+kx contributes to out-pixel p (padding=1)."""
    ys, xs = np.meshgrid(np.arange(h), np.arange(w), indexing="ij")
    ys, xs = ys.reshape(-1), xs.reshape(-1)
    cols = []
    for ky in range(3):
        for kx in range(3):
            dy, dx = ky - 1, kx - 1
            cols.append(((ys + dy >= 0) & (ys + dy < h) &
                         (xs + dx >= 0) & (xs + dx < w)).astype(np.float32))
    return np.stack(cols, axis=1)


def bottleneck_forward(x_nchw, gamma1, beta1, w1_oihw, gamma2, beta2, w2_oihw,
                       *, mxu_dtype=jnp.bfloat16, batch_block=None):
    n_imgs, cin, h, w = x_nchw.shape
    inter = w1_oihw.shape[0]
    cout = w2_oihw.shape[0]
    hw = h * w
    c_all = cin + cout
    total = float(n_imgs * hw)            # pixels per channel for batch stats

    vmem_limit = _vmem_limit_bytes()
    bq = batch_block or _pick_batch_block(n_imgs, hw, cin, inter, cout, vmem_limit)
    assert n_imgs % bq == 0, (n_imgs, bq)
    n_blocks = n_imgs // bq
    bhw = bq * hw

    # ---- wrapper-side layout plumbing (XLA): NCHW -> channels-last rows --------
    x_rows = jnp.transpose(x_nchw, (0, 2, 3, 1)).reshape(n_imgs, hw, cin)
    # conv1 1x1: (O,I,1,1) -> (I,O); cast ONCE to the MXU dtype
    w1 = jnp.transpose(w1_oihw[:, :, 0, 0], (1, 0)).astype(mxu_dtype)
    # conv2 3x3, kn2row: (O,I,3,3) -> (I, 9*O); tap t = ky*3+kx owns cols [t*O,(t+1)*O)
    w2k = jnp.transpose(w2_oihw, (1, 2, 3, 0)).reshape(inter, 9 * cout).astype(mxu_dtype)
    # per-tap zero-padding validity masks, tiled over the bq images of a block
    masks = jnp.asarray(np.tile(_conv_taps_mask(h, w), (bq, 1)))          # (bhw, 9)
    # flat-pixel shifts: out[p] += z_t[p + dy*w + dx]; wraparound is mask-killed
    shifts = [(-((ky - 1) * w + (kx - 1))) % bhw
              for ky in range(3) for kx in range(3)]

    def kernel(x_ref, g1_ref, b1_ref, w1_ref, g2_ref, b2_ref, w2_ref, mk_ref,
               o_ref,
               mean1, m2_1, scale1, shift1, mean2, m2_2, scale2, shift2):
        p = pl.program_id(0)     # phase: 0 BN1 stats, 1 BN2 stats, 2 apply + convs
        i = pl.program_id(1)     # batch-block index
        nblk = pl.num_programs(1)

        xf = x_ref[...].reshape(bhw, cin).astype(jnp.float32)

        def accumulate_stats(tile, mean_ref, m2_ref):
            """Two-pass stats inside the block + Chan/Welford cross-block combine."""
            t_mean = jnp.mean(tile, axis=0, keepdims=True)
            t_m2 = jnp.sum((tile - t_mean) ** 2, axis=0, keepdims=True)

            @pl.when(i == 0)
            def _():
                mean_ref[...] = t_mean
                m2_ref[...] = t_m2

            @pl.when(i > 0)
            def _():
                cnt_a = i.astype(jnp.float32) * float(bhw)
                cnt_b = float(bhw)
                tot = cnt_a + cnt_b
                delta = t_mean - mean_ref[...]
                mean_ref[...] = mean_ref[...] + delta * (cnt_b / tot)
                m2_ref[...] = (m2_ref[...] + t_m2
                               + delta * delta * (cnt_a * cnt_b / tot))

        def finalize_bn(mean_ref, m2_ref, gamma, beta, scale_ref, shift_ref):
            var = m2_ref[...] * (1.0 / total)          # biased variance (train mode)
            s = gamma * jax.lax.rsqrt(var + _EPS)
            scale_ref[...] = s
            shift_ref[...] = beta - mean_ref[...] * s

        def conv1_of_bn1():
            a1 = jnp.maximum(xf * scale1[...] + shift1[...], 0.0)
            return jnp.dot(a1.astype(mxu_dtype), w1_ref[...],
                           preferred_element_type=jnp.float32)          # (bhw, inter)

        # ---------------- phase 0: global BN1 batch statistics ------------------
        @pl.when(p == 0)
        def _():
            accumulate_stats(xf, mean1, m2_1)

            @pl.when(i == nblk - 1)
            def _():
                finalize_bn(mean1, m2_1, g1_ref[...], b1_ref[...], scale1, shift1)

        # ---- phase 1: global BN2 batch statistics on h1 = conv1(relu(bn1(x))) --
        @pl.when(p == 1)
        def _():
            accumulate_stats(conv1_of_bn1(), mean2, m2_2)

            @pl.when(i == nblk - 1)
            def _():
                finalize_bn(mean2, m2_2, g2_ref[...], b2_ref[...], scale2, shift2)

        # ---- phase 2: recompute h1, BN2+ReLU, kn2row 3x3 conv, fused concat ----
        # (conv1 recompute kept; caching h1 in VMEM only pays on 128-MiB parts.)
        @pl.when(p == 2)
        def _():
            h1 = conv1_of_bn1()
            a2 = jnp.maximum(h1 * scale2[...] + shift2[...], 0.0)      # (bhw, inter)

            # kn2row: ONE MXU matmul with lane-dense N = 9*cout, then 9 XLU
            # sublane rolls + boundary-mask adds (no halo scratch, no im2col).
            z = jnp.dot(a2.astype(mxu_dtype), w2_ref[...],
                        preferred_element_type=jnp.float32)            # (bhw, 9*cout)
            y = jnp.zeros((bhw, cout), jnp.float32)
            for t in range(9):
                dy, dx = t // 3 - 1, t % 3 - 1
                zt = z[:, t * cout:(t + 1) * cout]
                if (dy, dx) == (0, 0):
                    y = y + zt
                else:
                    zt = pltpu.roll(zt, shift=shifts[t], axis=0)
                    y = y + zt * mk_ref[:, t:t + 1]

            # torch.cat((x, out), 1): two direct channel-slab stores (no concat temp)
            o_ref[:, :, :cin] = x_ref[...].astype(o_ref.dtype)
            o_ref[:, :, cin:] = y.reshape(bq, hw, cout).astype(o_ref.dtype)

    grid_spec = pltpu.PrefetchScalarGridSpec(
        num_scalar_prefetch=0,
        grid=(3, n_blocks),
        in_specs=[
            pl.BlockSpec((bq, hw, cin), lambda p, i: (i, 0, 0)),        # x rows
            pl.BlockSpec((1, cin), lambda p, i: (0, 0)),                # gamma1
            pl.BlockSpec((1, cin), lambda p, i: (0, 0)),                # beta1
            pl.BlockSpec((cin, inter), lambda p, i: (0, 0)),            # w1 (mxu dtype)
            pl.BlockSpec((1, inter), lambda p, i: (0, 0)),              # gamma2
            pl.BlockSpec((1, inter), lambda p, i: (0, 0)),              # beta2
            pl.BlockSpec((inter, 9 * cout), lambda p, i: (0, 0)),       # w2 kn2row
            pl.BlockSpec((bhw, 9), lambda p, i: (0, 0)),                # tap masks
        ],
        # Phase-aware output map: phases 0/1 pin block 0 (never written back);
        # the block index only advances during phase 2 -> exactly one HBM
        # writeback per output block (was 3x, 2x of them garbage).
        out_specs=pl.BlockSpec((bq, hw, c_all),
                               lambda p, i: (jnp.where(p == 2, i, 0), 0, 0)),
        scratch_shapes=[
            pltpu.VMEM((1, cin), jnp.float32),     # mean1
            pltpu.VMEM((1, cin), jnp.float32),     # M2_1
            pltpu.VMEM((1, cin), jnp.float32),     # scale1
            pltpu.VMEM((1, cin), jnp.float32),     # shift1
            pltpu.VMEM((1, inter), jnp.float32),   # mean2
            pltpu.VMEM((1, inter), jnp.float32),   # M2_2
            pltpu.VMEM((1, inter), jnp.float32),   # scale2
            pltpu.VMEM((1, inter), jnp.float32),   # shift2
        ],
    )

    out_rows = pl.pallas_call(
        kernel,
        out_shape=jax.ShapeDtypeStruct((n_imgs, hw, c_all), jnp.float32),
        grid_spec=grid_spec,
        compiler_params=pltpu.CompilerParams(
            # Both axes stay sequential: BN batch statistics accumulate across the
            # image axis (global, PyTorch training-mode semantics).
            # TODO(synk): on v7x (2 TCs) split BN stats into per-core partials + a
            # combine phase so the image axis can be marked parallel across cores.
            dimension_semantics=("arbitrary", "arbitrary"),
            vmem_limit_bytes=vmem_limit,    # ~96 MiB on v5e/v6e, ~48 MiB on v7x
        ),
    )(x_rows, gamma1.reshape(1, cin), beta1.reshape(1, cin), w1,
      gamma2.reshape(1, inter), beta2.reshape(1, inter), w2k, masks)

    # Final NCHW layout to match the PyTorch module (pure wrapper-side plumbing).
    return jnp.transpose(out_rows.reshape(n_imgs, h, w, c_all), (0, 3, 1, 2))


def bottleneck_reference(x, gamma1, beta1, w1, gamma2, beta2, w2):
    """Pure-JAX reference matching the PyTorch training-mode forward."""
    def bn(t, g, b):
        m = t.mean(axis=(0, 2, 3), keepdims=True)
        v = ((t - m) ** 2).mean(axis=(0, 2, 3), keepdims=True)
        return (t - m) / jnp.sqrt(v + _EPS) * g.reshape(1, -1, 1, 1) \
               + b.reshape(1, -1, 1, 1)

    dn = ('NCHW', 'OIHW', 'NCHW')
    a1 = jax.nn.relu(bn(x, gamma1, beta1))
    h1 = jax.lax.conv_general_dilated(a1, w1, (1, 1), 'VALID',
                                      dimension_numbers=dn)
    a2 = jax.nn.relu(bn(h1, gamma2, beta2))
    h2 = jax.lax.conv_general_dilated(a2, w2, (1, 1), ((1, 1), (1, 1)),
                                      dimension_numbers=dn)
    return jnp.concatenate([x, h2], axis=1)


if __name__ == "__main__":
    # Module hyper-params: dim_in=4, growthRate=4 -> interChannels=16
    N, CIN, H, W = 2, 4, 16, 16
    GROWTH = 4
    INTER = 4 * GROWTH

    key = jax.random.PRNGKey(0)
    k = jax.random.split(key, 7)
    x = jax.random.normal(k[0], (N, CIN, H, W), jnp.float32)
    gamma1 = 1.0 + 0.1 * jax.random.normal(k[1], (CIN,), jnp.float32)
    beta1 = 0.1 * jax.random.normal(k[2], (CIN,), jnp.float32)
    w1 = 0.2 * jax.random.normal(k[3], (INTER, CIN, 1, 1), jnp.float32)
    gamma2 = 1.0 + 0.1 * jax.random.normal(k[4], (INTER,), jnp.float32)
    beta2 = 0.1 * jax.random.normal(k[5], (INTER,), jnp.float32)
    w2 = 0.1 * jax.random.normal(k[6], (GROWTH, INTER, 3, 3), jnp.float32)

    ref = bottleneck_reference(x, gamma1, beta1, w1, gamma2, beta2, w2)

    # f32 MXU inputs: strict check against the PyTorch-equivalent reference.
    out = jax.block_until_ready(
        bottleneck_forward(x, gamma1, beta1, w1, gamma2, beta2, w2,
                           mxu_dtype=jnp.float32))
    assert out.shape == (N, CIN + GROWTH, H, W), out.shape
    assert jnp.allclose(out, ref, rtol=1e-3, atol=1e-3), \
        float(jnp.max(jnp.abs(out - ref)))

    # Default bf16 MXU inputs (native MXU dtype; BN stats self-consistent in-kernel
    # but quantized vs. the f32 reference, hence the looser tolerance).
    out_bf16 = jax.block_until_ready(
        bottleneck_forward(x, gamma1, beta1, w1, gamma2, beta2, w2))
    assert out_bf16.shape == (N, CIN + GROWTH, H, W), out_bf16.shape
    assert jnp.allclose(out_bf16, ref, rtol=5e-2, atol=5e-2), \
        float(jnp.max(jnp.abs(out_bf16 - ref)))

    print("KERNEL_OK")
</pallas_src>

<mosaic_0001>
module attributes {stable_mosaic.version = 11 : i64} {
  func.func @kernel(%arg0: i32, %arg1: i32, %arg2: memref<2x256x4xf32, #tpu.memory_space<vmem>>, %arg3: memref<1x4xf32, #tpu.memory_space<vmem>>, %arg4: memref<1x4xf32, #tpu.memory_space<vmem>>, %arg5: memref<4x16xf32, #tpu.memory_space<vmem>>, %arg6: memref<1x16xf32, #tpu.memory_space<vmem>>, %arg7: memref<1x16xf32, #tpu.memory_space<vmem>>, %arg8: memref<16x36xf32, #tpu.memory_space<vmem>>, %arg9: memref<512x9xf32, #tpu.memory_space<vmem>>, %arg10: memref<2x256x8xf32, #tpu.memory_space<vmem>>, %arg11: memref<1x4xf32, #tpu.memory_space<vmem>>, %arg12: memref<1x4xf32, #tpu.memory_space<vmem>>, %arg13: memref<1x4xf32, #tpu.memory_space<vmem>>, %arg14: memref<1x4xf32, #tpu.memory_space<vmem>>, %arg15: memref<1x16xf32, #tpu.memory_space<vmem>>, %arg16: memref<1x16xf32, #tpu.memory_space<vmem>>, %arg17: memref<1x16xf32, #tpu.memory_space<vmem>>, %arg18: memref<1x16xf32, #tpu.memory_space<vmem>>) attributes {dimension_semantics = [#tpu.dimension_semantics<arbitrary>, #tpu.dimension_semantics<arbitrary>], iteration_bounds = array<i64: 3, 1>, scalar_prefetch = 0 : i64, scratch_operands = 8 : i64, tpu.core_type = #tpu.core_type<tc>, window_params = [{transform_indices = @transform_0, window_bounds = array<i64: 2, 256, 4>}, {pipeline_mode = #tpu.pipeline_mode<synchronous>, transform_indices = @transform_1, window_bounds = array<i64: 1, 4>}, {pipeline_mode = #tpu.pipeline_mode<synchronous>, transform_indices = @transform_2, window_bounds = array<i64: 1, 4>}, {pipeline_mode = #tpu.pipeline_mode<synchronous>, transform_indices = @transform_3, window_bounds = array<i64: 4, 16>}, {pipeline_mode = #tpu.pipeline_mode<synchronous>, transform_indices = @transform_4, window_bounds = array<i64: 1, 16>}, {pipeline_mode = #tpu.pipeline_mode<synchronous>, transform_indices = @transform_5, window_bounds = array<i64: 1, 16>}, {pipeline_mode = #tpu.pipeline_mode<synchronous>, transform_indices = @transform_6, window_bounds = array<i64: 16, 36>}, {pipeline_mode = #tpu.pipeline_mode<synchronous>, transform_indices = @transform_7, window_bounds = array<i64: 512, 9>}, {transform_indices = @transform_8, window_bounds = array<i64: 2, 256, 8>}]} {
    %c0 = arith.constant 0 : index
    %c0_0 = arith.constant 0 : index
    %c0_1 = arith.constant 0 : index
    %0 = vector.load %arg2[%c0, %c0_0, %c0_1] : memref<2x256x4xf32, #tpu.memory_space<vmem>>, vector<2x256x4xf32>
    %1 = vector.shape_cast %0 : vector<2x256x4xf32> to vector<512x4xf32>
    %c0_i32 = arith.constant 0 : i32
    %2 = arith.cmpi eq, %arg0, %c0_i32 : i32
    %3 = arith.extui %2 : i1 to i32
    %c0_i32_2 = arith.constant 0 : i32
    %4 = arith.cmpi ne, %3, %c0_i32_2 : i32
    scf.if %4 {
      %cst = arith.constant dense<0.000000e+00> : vector<4xf32>
      %11 = vector.multi_reduction <add>, %1, %cst [0] : vector<512x4xf32> to vector<4xf32>
      %12 = vector.shape_cast %11 : vector<4xf32> to vector<1x4xf32>
      %cst_5 = arith.constant 5.120000e+02 : f32
      %13 = vector.broadcast %cst_5 : f32 to vector<1x4xf32>
      %14 = arith.divf %12, %13 : vector<1x4xf32>
      %15 = vector.broadcast %14 : vector<1x4xf32> to vector<512x4xf32>
      %16 = arith.subf %1, %15 : vector<512x4xf32>
      %17 = arith.mulf %16, %16 : vector<512x4xf32>
      %cst_6 = arith.constant dense<0.000000e+00> : vector<4xf32>
      %18 = vector.multi_reduction <add>, %17, %cst_6 [0] : vector<512x4xf32> to vector<4xf32>
      %19 = vector.shape_cast %18 : vector<4xf32> to vector<1x4xf32>
      %c0_i32_7 = arith.constant 0 : i32
      %20 = arith.cmpi eq, %arg1, %c0_i32_7 : i32
      %21 = arith.extui %20 : i1 to i32
      %c0_i32_8 = arith.constant 0 : i32
      %22 = arith.cmpi ne, %21, %c0_i32_8 : i32
      scf.if %22 {
        %c0_13 = arith.constant 0 : index
        %c0_14 = arith.constant 0 : index
        %29 = vector.load %arg11[%c0_13, %c0_14] : memref<1x4xf32, #tpu.memory_space<vmem>>, vector<1x4xf32>
        tpu.vector_store %arg11[%c0_13, %c0_14], %14 {strides = array<i32>} : memref<1x4xf32, #tpu.memory_space<vmem>>, vector<1x4xf32>,
        %c0_15 = arith.constant 0 : index
        %c0_16 = arith.constant 0 : index
        %30 = vector.load %arg12[%c0_15, %c0_16] : memref<1x4xf32, #tpu.memory_space<vmem>>, vector<1x4xf32>
        tpu.vector_store %arg12[%c0_15, %c0_16], %19 {strides = array<i32>} : memref<1x4xf32, #tpu.memory_space<vmem>>, vector<1x4xf32>,
      } else {
      }
      %c0_i32_9 = arith.constant 0 : i32
      %23 = arith.cmpi sgt, %arg1, %c0_i32_9 : i32
      %24 = arith.extui %23 : i1 to i32
      %c0_i32_10 = arith.constant 0 : i32
      %25 = arith.cmpi ne, %24, %c0_i32_10 : i32
      scf.if %25 {
        %29 = arith.sitofp %arg1 : i32 to f32
        %cst_13 = arith.constant 5.120000e+02 : f32
        %30 = arith.mulf %29, %cst_13 : f32
        %cst_14 = arith.constant 5.120000e+02 : f32
        %31 = arith.addf %30, %cst_14 : f32
        %c0_15 = arith.constant 0 : index
        %c0_16 = arith.constant 0 : index
        %32 = vector.load %arg11[%c0_15, %c0_16] : memref<1x4xf32, #tpu.memory_space<vmem>>, vector<1x4xf32>
        %33 = arith.subf %14, %32 : vector<1x4xf32>
        %c0_17 = arith.constant 0 : index
        %c0_18 = arith.constant 0 : index
        %34 = vector.load %arg11[%c0_17, %c0_18] : memref<1x4xf32, #tpu.memory_space<vmem>>, vector<1x4xf32>
        %cst_19 = arith.constant 5.120000e+02 : f32
        %35 = arith.divf %cst_19, %31 : f32
        %36 = vector.broadcast %35 : f32 to vector<1x4xf32>
        %37 = arith.mulf %33, %36 : vector<1x4xf32>
        %38 = arith.addf %34, %37 : vector<1x4xf32>
        %c0_20 = arith.constant 0 : index
        %c0_21 = arith.constant 0 : index
        %39 = vector.load %arg11[%c0_20, %c0_21] : memref<1x4xf32, #tpu.memory_space<vmem>>, vector<1x4xf32>
        tpu.vector_store %arg11[%c0_20, %c0_21], %38 {strides = array<i32>} : memref<1x4xf32, #tpu.memory_space<vmem>>, vector<1x4xf32>,
        %c0_22 = arith.constant 0 : index
        %c0_23 = arith.constant 0 : index
        %40 = vector.load %arg12[%c0_22, %c0_23] : memref<1x4xf32, #tpu.memory_space<vmem>>, vector<1x4xf32>
        %41 = arith.addf %40, %19 : vector<1x4xf32>
        %42 = arith.mulf %33, %33 : vector<1x4xf32>
        %cst_24 = arith.constant 5.120000e+02 : f32
        %43 = arith.mulf %30, %cst_24 : f32
        %44 = arith.divf %43, %31 : f32
        %45 = vector.broadcast %44 : f32 to vector<1x4xf32>
        %46 = arith.mulf %42, %45 : vector<1x4xf32>
        %47 = arith.addf %41, %46 : vector<1x4xf32>
        %c0_25 = arith.constant 0 : index
        %c0_26 = arith.constant 0 : index
        %48 = vector.load %arg12[%c0_25, %c0_26] : memref<1x4xf32, #tpu.memory_space<vmem>>, vector<1x4xf32>
        tpu.vector_store %arg12[%c0_25, %c0_26], %47 {strides = array<i32>} : memref<1x4xf32, #tpu.memory_space<vmem>>, vector<1x4xf32>,
      } else {
      }
      %c0_i32_11 = arith.constant 0 : i32
      %26 = arith.cmpi eq, %arg1, %c0_i32_11 : i32
      %27 = arith.extui %26 : i1 to i32
      %c0_i32_12 = arith.constant 0 : i32
      %28 = arith.cmpi ne, %27, %c0_i32_12 : i32
      scf.if %28 {
        %c0_13 = arith.constant 0 : index
        %c0_14 = arith.constant 0 : index
        %29 = vector.load %arg3[%c0_13, %c0_14] : memref<1x4xf32, #tpu.memory_space<vmem>>, vector<1x4xf32>
        %c0_15 = arith.constant 0 : index
        %c0_16 = arith.constant 0 : index
        %30 = vector.load %arg4[%c0_15, %c0_16] : memref<1x4xf32, #tpu.memory_space<vmem>>, vector<1x4xf32>
        %c0_17 = arith.constant 0 : index
        %c0_18 = arith.constant 0 : index
        %31 = vector.load %arg12[%c0_17, %c0_18] : memref<1x4xf32, #tpu.memory_space<vmem>>, vector<1x4xf32>
        %cst_19 = arith.constant 0.001953125 : f32
        %32 = vector.broadcast %cst_19 : f32 to vector<1x4xf32>
        %33 = arith.mulf %31, %32 : vector<1x4xf32>
        %cst_20 = arith.constant 9.99999974E-6 : f32
        %34 = vector.broadcast %cst_20 : f32 to vector<1x4xf32>
        %35 = arith.addf %33, %34 : vector<1x4xf32>
        %36 = math.rsqrt %35 : vector<1x4xf32>
        %37 = arith.mulf %29, %36 : vector<1x4xf32>
        %c0_21 = arith.constant 0 : index
        %c0_22 = arith.constant 0 : index
        %38 = vector.load %arg13[%c0_21, %c0_22] : memref<1x4xf32, #tpu.memory_space<vmem>>, vector<1x4xf32>
        tpu.vector_store %arg13[%c0_21, %c0_22], %37 {strides = array<i32>} : memref<1x4xf32, #tpu.memory_space<vmem>>, vector<1x4xf32>,
        %c0_23 = arith.constant 0 : index
        %c0_24 = arith.constant 0 : index
        %39 = vector.load %arg11[%c0_23, %c0_24] : memref<1x4xf32, #tpu.memory_space<vmem>>, vector<1x4xf32>
        %40 = arith.mulf %39, %37 : vector<1x4xf32>
        %41 = arith.subf %30, %40 : vector<1x4xf32>
        %c0_25 = arith.constant 0 : index
        %c0_26 = arith.constant 0 : index
        %42 = vector.load %arg14[%c0_25, %c0_26] : memref<1x4xf32, #tpu.memory_space<vmem>>, vector<1x4xf32>
        tpu.vector_store %arg14[%c0_25, %c0_26], %41 {strides = array<i32>} : memref<1x4xf32, #tpu.memory_space<vmem>>, vector<1x4xf32>,
      } else {
      }
    } else {
    }
    %c1_i32 = arith.constant 1 : i32
    %5 = arith.cmpi eq, %arg0, %c1_i32 : i32
    %6 = arith.extui %5 : i1 to i32
    %c0_i32_3 = arith.constant 0 : i32
    %7 = arith.cmpi ne, %6, %c0_i32_3 : i32
    scf.if %7 {
      %c0_5 = arith.constant 0 : index
      %c0_6 = arith.constant 0 : index
      %11 = vector.load %arg13[%c0_5, %c0_6] : memref<1x4xf32, #tpu.memory_space<vmem>>, vector<1x4xf32>
      %12 = vector.broadcast %11 : vector<1x4xf32> to vector<512x4xf32>
      %13 = arith.mulf %1, %12 : vector<512x4xf32>
      %c0_7 = arith.constant 0 : index
      %c0_8 = arith.constant 0 : index
      %14 = vector.load %arg14[%c0_7, %c0_8] : memref<1x4xf32, #tpu.memory_space<vmem>>, vector<1x4xf32>
      %15 = vector.broadcast %14 : vector<1x4xf32> to vector<512x4xf32>
      %16 = arith.addf %13, %15 : vector<512x4xf32>
      %cst = arith.constant 0.000000e+00 : f32
      %17 = vector.broadcast %cst : f32 to vector<512x4xf32>
      %18 = arith.maximumf %16, %17 : vector<512x4xf32>
      %c0_9 = arith.constant 0 : index
      %c0_10 = arith.constant 0 : index
      %19 = vector.load %arg5[%c0_9, %c0_10] : memref<4x16xf32, #tpu.memory_space<vmem>>, vector<4x16xf32>
      %cst_11 = arith.constant dense<0.000000e+00> : vector<512x16xf32>
      %20 = tpu.matmul %18, %19, %cst_11 {dimension_numbers = #tpu.dot_dimension_numbers<[1], [0], [0], [1], [0, 0, 1, 1], [], []>} : vector<512x4xf32>, vector<4x16xf32>, vector<512x16xf32> -> vector<512x16xf32>
      %cst_12 = arith.constant dense<0.000000e+00> : vector<16xf32>
      %21 = vector.multi_reduction <add>, %20, %cst_12 [0] : vector<512x16xf32> to vector<16xf32>
      %22 = vector.shape_cast %21 : vector<16xf32> to vector<1x16xf32>
      %cst_13 = arith.constant 5.120000e+02 : f32
      %23 = vector.broadcast %cst_13 : f32 to vector<1x16xf32>
      %24 = arith.divf %22, %23 : vector<1x16xf32>
      %25 = vector.broadcast %24 : vector<1x16xf32> to vector<512x16xf32>
      %26 = arith.subf %20, %25 : vector<512x16xf32>
      %27 = arith.mulf %26, %26 : vector<512x16xf32>
      %cst_14 = arith.constant dense<0.000000e+00> : vector<16xf32>
      %28 = vector.multi_reduction <add>, %27, %cst_14 [0] : vector<512x16xf32> to vector<16xf32>
      %29 = vector.shape_cast %28 : vector<16xf32> to vector<1x16xf32>
      %c0_i32_15 = arith.constant 0 : i32
      %30 = arith.cmpi eq, %arg1, %c0_i32_15 : i32
      %31 = arith.extui %30 : i1 to i32
      %c0_i32_16 = arith.constant 0 : i32
      %32 = arith.cmpi ne, %31, %c0_i32_16 : i32
      scf.if %32 {
        %c0_21 = arith.constant 0 : index
        %c0_22 = arith.constant 0 : index
        %39 = vector.load %arg15[%c0_21, %c0_22] : memref<1x16xf32, #tpu.memory_space<vmem>>, vector<1x16xf32>
        tpu.vector_store %arg15[%c0_21, %c0_22], %24 {strides = array<i32>} : memref<1x16xf32, #tpu.memory_space<vmem>>, vector<1x16xf32>,
        %c0_23 = arith.constant 0 : index
        %c0_24 = arith.constant 0 : index
        %40 = vector.load %arg16[%c0_23, %c0_24] : memref<1x16xf32, #tpu.memory_space<vmem>>, vector<1x16xf32>
        tpu.vector_store %arg16[%c0_23, %c0_24], %29 {strides = array<i32>} : memref<1x16xf32, #tpu.memory_space<vmem>>, vector<1x16xf32>,
      } else {
      }
      %c0_i32_17 = arith.constant 0 : i32
      %33 = arith.cmpi sgt, %arg1, %c0_i32_17 : i32
      %34 = arith.extui %33 : i1 to i32
      %c0_i32_18 = arith.constant 0 : i32
      %35 = arith.cmpi ne, %34, %c0_i32_18 : i32
      scf.if %35 {
        %39 = arith.sitofp %arg1 : i32 to f32
        %cst_21 = arith.constant 5.120000e+02 : f32
        %40 = arith.mulf %39, %cst_21 : f32
        %cst_22 = arith.constant 5.120000e+02 : f32
        %41 = arith.addf %40, %cst_22 : f32
        %c0_23 = arith.constant 0 : index
        %c0_24 = arith.constant 0 : index
        %42 = vector.load %arg15[%c0_23, %c0_24] : memref<1x16xf32, #tpu.memory_space<vmem>>, vector<1x16xf32>
        %43 = arith.subf %24, %42 : vector<1x16xf32>
        %c0_25 = arith.constant 0 : index
        %c0_26 = arith.constant 0 : index
        %44 = vector.load %arg15[%c0_25, %c0_26] : memref<1x16xf32, #tpu.memory_space<vmem>>, vector<1x16xf32>
        %cst_27 = arith.constant 5.120000e+02 : f32
        %45 = arith.divf %cst_27, %41 : f32
        %46 = vector.broadcast %45 : f32 to vector<1x16xf32>
        %47 = arith.mulf %43, %46 : vector<1x16xf32>
        %48 = arith.addf %44, %47 : vector<1x16xf32>
        %c0_28 = arith.constant 0 : index
        %c0_29 = arith.constant 0 : index
        %49 = vector.load %arg15[%c0_28, %c0_29] : memref<1x16xf32, #tpu.memory_space<vmem>>, vector<1x16xf32>
        tpu.vector_store %arg15[%c0_28, %c0_29], %48 {strides = array<i32>} : memref<1x16xf32, #tpu.memory_space<vmem>>, vector<1x16xf32>,
        %c0_30 = arith.constant 0 : index
        %c0_31 = arith.constant 0 : index
        %50 = vector.load %arg16[%c0_30, %c0_31] : memref<1x16xf32, #tpu.memory_space<vmem>>, vector<1x16xf32>
        %51 = arith.addf %50, %29 : vector<1x16xf32>
        %52 = arith.mulf %43, %43 : vector<1x16xf32>
        %cst_32 = arith.constant 5.120000e+02 : f32
        %53 = arith.mulf %40, %cst_32 : f32
        %54 = arith.divf %53, %41 : f32
        %55 = vector.broadcast %54 : f32 to vector<1x16xf32>
        %56 = arith.mulf %52, %55 : vector<1x16xf32>
        %57 = arith.addf %51, %56 : vector<1x16xf32>
        %c0_33 = arith.constant 0 : index
        %c0_34 = arith.constant 0 : index
        %58 = vector.load %arg16[%c0_33, %c0_34] : memref<1x16xf32, #tpu.memory_space<vmem>>, vector<1x16xf32>
        tpu.vector_store %arg16[%c0_33, %c0_34], %57 {strides = array<i32>} : memref<1x16xf32, #tpu.memory_space<vmem>>, vector<1x16xf32>,
      } else {
      }
      %c0_i32_19 = arith.constant 0 : i32
      %36 = arith.cmpi eq, %arg1, %c0_i32_19 : i32
      %37 = arith.extui %36 : i1 to i32
      %c0_i32_20 = arith.constant 0 : i32
      %38 = arith.cmpi ne, %37, %c0_i32_20 : i32
      scf.if %38 {
        %c0_21 = arith.constant 0 : index
        %c0_22 = arith.constant 0 : index
        %39 = vector.load %arg6[%c0_21, %c0_22] : memref<1x16xf32, #tpu.memory_space<vmem>>, vector<1x16xf32>
        %c0_23 = arith.constant 0 : index
        %c0_24 = arith.constant 0 : index
        %40 = vector.load %arg7[%c0_23, %c0_24] : memref<1x16xf32, #tpu.memory_space<vmem>>, vector<1x16xf32>
        %c0_25 = arith.constant 0 : index
        %c0_26 = arith.constant 0 : index
        %41 = vector.load %arg16[%c0_25, %c0_26] : memref<1x16xf32, #tpu.memory_space<vmem>>, vector<1x16xf32>
        %cst_27 = arith.constant 0.001953125 : f32
        %42 = vector.broadcast %cst_27 : f32 to vector<1x16xf32>
        %43 = arith.mulf %41, %42 : vector<1x16xf32>
        %cst_28 = arith.constant 9.99999974E-6 : f32
        %44 = vector.broadcast %cst_28 : f32 to vector<1x16xf32>
        %45 = arith.addf %43, %44 : vector<1x16xf32>
        %46 = math.rsqrt %45 : vector<1x16xf32>
        %47 = arith.mulf %39, %46 : vector<1x16xf32>
        %c0_29 = arith.constant 0 : index
        %c0_30 = arith.constant 0 : index
        %48 = vector.load %arg17[%c0_29, %c0_30] : memref<1x16xf32, #tpu.memory_space<vmem>>, vector<1x16xf32>
        tpu.vector_store %arg17[%c0_29, %c0_30], %47 {strides = array<i32>} : memref<1x16xf32, #tpu.memory_space<vmem>>, vector<1x16xf32>,
        %c0_31 = arith.constant 0 : index
        %c0_32 = arith.constant 0 : index
        %49 = vector.load %arg15[%c0_31, %c0_32] : memref<1x16xf32, #tpu.memory_space<vmem>>, vector<1x16xf32>
        %50 = arith.mulf %49, %47 : vector<1x16xf32>
        %51 = arith.subf %40, %50 : vector<1x16xf32>
        %c0_33 = arith.constant 0 : index
        %c0_34 = arith.constant 0 : index
        %52 = vector.load %arg18[%c0_33, %c0_34] : memref<1x16xf32, #tpu.memory_space<vmem>>, vector<1x16xf32>
        tpu.vector_store %arg18[%c0_33, %c0_34], %51 {strides = array<i32>} : memref<1x16xf32, #tpu.memory_space<vmem>>, vector<1x16xf32>,
      } else {
      }
    } else {
    }
    %c2_i32 = arith.constant 2 : i32
    %8 = arith.cmpi eq, %arg0, %c2_i32 : i32
    %9 = arith.extui %8 : i1 to i32
    %c0_i32_4 = arith.constant 0 : i32
    %10 = arith.cmpi ne, %9, %c0_i32_4 : i32
    scf.if %10 {
      %c0_5 = arith.constant 0 : index
      %c0_6 = arith.constant 0 : index
      %11 = vector.load %arg13[%c0_5, %c0_6] : memref<1x4xf32, #tpu.memory_space<vmem>>, vector<1x4xf32>
      %12 = vector.broadcast %11 : vector<1x4xf32> to vector<512x4xf32>
      %13 = arith.mulf %1, %12 : vector<512x4xf32>
      %c0_7 = arith.constant 0 : index
      %c0_8 = arith.constant 0 : index
      %14 = vector.load %arg14[%c0_7, %c0_8] : memref<1x4xf32, #tpu.memory_space<vmem>>, vector<1x4xf32>
      %15 = vector.broadcast %14 : vector<1x4xf32> to vector<512x4xf32>
      %16 = arith.addf %13, %15 : vector<512x4xf32>
      %cst = arith.constant 0.000000e+00 : f32
      %17 = vector.broadcast %cst : f32 to vector<512x4xf32>
      %18 = arith.maximumf %16, %17 : vector<512x4xf32>
      %c0_9 = arith.constant 0 : index
      %c0_10 = arith.constant 0 : index
      %19 = vector.load %arg5[%c0_9, %c0_10] : memref<4x16xf32, #tpu.memory_space<vmem>>, vector<4x16xf32>
      %cst_11 = arith.constant dense<0.000000e+00> : vector<512x16xf32>
      %20 = tpu.matmul %18, %19, %cst_11 {dimension_numbers = #tpu.dot_dimension_numbers<[1], [0], [0], [1], [0, 0, 1, 1], [], []>} : vector<512x4xf32>, vector<4x16xf32>, vector<512x16xf32> -> vector<512x16xf32>
      %c0_12 = arith.constant 0 : index
      %c0_13 = arith.constant 0 : index
      %21 = vector.load %arg17[%c0_12, %c0_13] : memref<1x16xf32, #tpu.memory_space<vmem>>, vector<1x16xf32>
      %22 = vector.broadcast %21 : vector<1x16xf32> to vector<512x16xf32>
      %23 = arith.mulf %20, %22 : vector<512x16xf32>
      %c0_14 = arith.constant 0 : index
      %c0_15 = arith.constant 0 : index
      %24 = vector.load %arg18[%c0_14, %c0_15] : memref<1x16xf32, #tpu.memory_space<vmem>>, vector<1x16xf32>
      %25 = vector.broadcast %24 : vector<1x16xf32> to vector<512x16xf32>
      %26 = arith.addf %23, %25 : vector<512x16xf32>
      %cst_16 = arith.constant 0.000000e+00 : f32
      %27 = vector.broadcast %cst_16 : f32 to vector<512x16xf32>
      %28 = arith.maximumf %26, %27 : vector<512x16xf32>
      %c0_17 = arith.constant 0 : index
      %c0_18 = arith.constant 0 : index
      %29 = vector.load %arg8[%c0_17, %c0_18] : memref<16x36xf32, #tpu.memory_space<vmem>>, vector<16x36xf32>
      %cst_19 = arith.constant dense<0.000000e+00> : vector<512x36xf32>
      %30 = tpu.matmul %28, %29, %cst_19 {dimension_numbers = #tpu.dot_dimension_numbers<[1], [0], [0], [1], [0, 0, 1, 1], [], []>} : vector<512x16xf32>, vector<16x36xf32>, vector<512x36xf32> -> vector<512x36xf32>
      %cst_20 = arith.constant 0.000000e+00 : f32
      %31 = vector.broadcast %cst_20 : f32 to vector<512x4xf32>
      %32 = vector.extract_strided_slice %30 {offsets = [0, 0], sizes = [512, 4], strides = [1, 1]} : vector<512x36xf32> to vector<512x4xf32>
      %c17_i32 = arith.constant 17 : i32
      %33 = tpu.dynamic_rotate %32 by %c17_i32 dim 0 : vector<512x4xf32>, i32 -> vector<512x4xf32>
      %c0_21 = arith.constant 0 : index
      %c0_22 = arith.constant 0 : index
      %34 = vector.load %arg9[%c0_21, %c0_22] : memref<512x9xf32, #tpu.memory_space<vmem>>, vector<512x1xf32>
      %35 = vector.broadcast %34 : vector<512x1xf32> to vector<512x4xf32>
      %36 = arith.mulf %33, %35 : vector<512x4xf32>
      %37 = arith.addf %31, %36 : vector<512x4xf32>
      %38 = vector.extract_strided_slice %30 {offsets = [0, 4], sizes = [512, 4], strides = [1, 1]} : vector<512x36xf32> to vector<512x4xf32>
      %c16_i32 = arith.constant 16 : i32
      %39 = tpu.dynamic_rotate %38 by %c16_i32 dim 0 : vector<512x4xf32>, i32 -> vector<512x4xf32>
      %c0_23 = arith.constant 0 : index
      %c1 = arith.constant 1 : index
      %40 = vector.load %arg9[%c0_23, %c1] : memref<512x9xf32, #tpu.memory_space<vmem>>, vector<512x1xf32>
      %41 = vector.broadcast %40 : vector<512x1xf32> to vector<512x4xf32>
      %42 = arith.mulf %39, %41 : vector<512x4xf32>
      %43 = arith.addf %37, %42 : vector<512x4xf32>
      %44 = vector.extract_strided_slice %30 {offsets = [0, 8], sizes = [512, 4], strides = [1, 1]} : vector<512x36xf32> to vector<512x4xf32>
      %c15_i32 = arith.constant 15 : i32
      %45 = tpu.dynamic_rotate %44 by %c15_i32 dim 0 : vector<512x4xf32>, i32 -> vector<512x4xf32>
      %c0_24 = arith.constant 0 : index
      %c2 = arith.constant 2 : index
      %46 = vector.load %arg9[%c0_24, %c2] : memref<512x9xf32, #tpu.memory_space<vmem>>, vector<512x1xf32>
      %47 = vector.broadcast %46 : vector<512x1xf32> to vector<512x4xf32>
      %48 = arith.mulf %45, %47 : vector<512x4xf32>
      %49 = arith.addf %43, %48 : vector<512x4xf32>
      %50 = vector.extract_strided_slice %30 {offsets = [0, 12], sizes = [512, 4], strides = [1, 1]} : vector<512x36xf32> to vector<512x4xf32>
      %c1_i32_25 = arith.constant 1 : i32
      %51 = tpu.dynamic_rotate %50 by %c1_i32_25 dim 0 : vector<512x4xf32>, i32 -> vector<512x4xf32>
      %c0_26 = arith.constant 0 : index
      %c3 = arith.constant 3 : index
      %52 = vector.load %arg9[%c0_26, %c3] : memref<512x9xf32, #tpu.memory_space<vmem>>, vector<512x1xf32>
      %53 = vector.broadcast %52 : vector<512x1xf32> to vector<512x4xf32>
      %54 = arith.mulf %51, %53 : vector<512x4xf32>
      %55 = arith.addf %49, %54 : vector<512x4xf32>
      %56 = vector.extract_strided_slice %30 {offsets = [0, 16], sizes = [512, 4], strides = [1, 1]} : vector<512x36xf32> to vector<512x4xf32>
      %57 = arith.addf %55, %56 : vector<512x4xf32>
      %58 = vector.extract_strided_slice %30 {offsets = [0, 20], sizes = [512, 4], strides = [1, 1]} : vector<512x36xf32> to vector<512x4xf32>
      %c511_i32 = arith.constant 511 : i32
      %59 = tpu.dynamic_rotate %58 by %c511_i32 dim 0 : vector<512x4xf32>, i32 -> vector<512x4xf32>
      %c0_27 = arith.constant 0 : index
      %c5 = arith.constant 5 : index
      %60 = vector.load %arg9[%c0_27, %c5] : memref<512x9xf32, #tpu.memory_space<vmem>>, vector<512x1xf32>
      %61 = vector.broadcast %60 : vector<512x1xf32> to vector<512x4xf32>
      %62 = arith.mulf %59, %61 : vector<512x4xf32>
      %63 = arith.addf %57, %62 : vector<512x4xf32>
      %64 = vector.extract_strided_slice %30 {offsets = [0, 24], sizes = [512, 4], strides = [1, 1]} : vector<512x36xf32> to vector<512x4xf32>
      %c497_i32 = arith.constant 497 : i32
      %65 = tpu.dynamic_rotate %64 by %c497_i32 dim 0 : vector<512x4xf32>, i32 -> vector<512x4xf32>
      %c0_28 = arith.constant 0 : index
      %c6 = arith.constant 6 : index
      %66 = vector.load %arg9[%c0_28, %c6] : memref<512x9xf32, #tpu.memory_space<vmem>>, vector<512x1xf32>
      %67 = vector.broadcast %66 : vector<512x1xf32> to vector<512x4xf32>
      %68 = arith.mulf %65, %67 : vector<512x4xf32>
      %69 = arith.addf %63, %68 : vector<512x4xf32>
      %70 = vector.extract_strided_slice %30 {offsets = [0, 28], sizes = [512, 4], strides = [1, 1]} : vector<512x36xf32> to vector<512x4xf32>
      %c496_i32 = arith.constant 496 : i32
      %71 = tpu.dynamic_rotate %70 by %c496_i32 dim 0 : vector<512x4xf32>, i32 -> vector<512x4xf32>
      %c0_29 = arith.constant 0 : index
      %c7 = arith.constant 7 : index
      %72 = vector.load %arg9[%c0_29, %c7] : memref<512x9xf32, #tpu.memory_space<vmem>>, vector<512x1xf32>
      %73 = vector.broadcast %72 : vector<512x1xf32> to vector<512x4xf32>
      %74 = arith.mulf %71, %73 : vector<512x4xf32>
      %75 = arith.addf %69, %74 : vector<512x4xf32>
      %76 = vector.extract_strided_slice %30 {offsets = [0, 32], sizes = [512, 4], strides = [1, 1]} : vector<512x36xf32> to vector<512x4xf32>
      %c495_i32 = arith.constant 495 : i32
      %77 = tpu.dynamic_rotate %76 by %c495_i32 dim 0 : vector<512x4xf32>, i32 -> vector<512x4xf32>
      %c0_30 = arith.constant 0 : index
      %c8 = arith.constant 8 : index
      %78 = vector.load %arg9[%c0_30, %c8] : memref<512x9xf32, #tpu.memory_space<vmem>>, vector<512x1xf32>
      %79 = vector.broadcast %78 : vector<512x1xf32> to vector<512x4xf32>
      %80 = arith.mulf %77, %79 : vector<512x4xf32>
      %81 = arith.addf %75, %80 : vector<512x4xf32>
      %c0_31 = arith.constant 0 : index
      %c0_32 = arith.constant 0 : index
      %c0_33 = arith.constant 0 : index
      %82 = vector.load %arg2[%c0_31, %c0_32, %c0_33] : memref<2x256x4xf32, #tpu.memory_space<vmem>>, vector<2x256x4xf32>
      %c0_34 = arith.constant 0 : index
      %c0_35 = arith.constant 0 : index
      %c0_36 = arith.constant 0 : index
      %83 = vector.load %arg10[%c0_34, %c0_35, %c0_36] : memref<2x256x8xf32, #tpu.memory_space<vmem>>, vector<2x256x4xf32>
      tpu.vector_store %arg10[%c0_34, %c0_35, %c0_36], %82 {strides = array<i32>} : memref<2x256x8xf32, #tpu.memory_space<vmem>>, vector<2x256x4xf32>,
      %84 = vector.shape_cast %81 : vector<512x4xf32> to vector<2x256x4xf32>
      %c0_37 = arith.constant 0 : index
      %c0_38 = arith.constant 0 : index
      %c4 = arith.constant 4 : index
      %85 = vector.load %arg10[%c0_37, %c0_38, %c4] : memref<2x256x8xf32, #tpu.memory_space<vmem>>, vector<2x256x4xf32>
      tpu.vector_store %arg10[%c0_37, %c0_38, %c4], %84 {strides = array<i32>} : memref<2x256x8xf32, #tpu.memory_space<vmem>>, vector<2x256x4xf32>,
    } else {
    }
    return
  }
  func.func @transform_0(%arg0: i32, %arg1: i32) -> (i32, i32, i32) {
    %c0_i32 = arith.constant 0 : i32
    %c0_i32_0 = arith.constant 0 : i32
    %c0_i32_1 = arith.constant 0 : i32
    return %arg1, %c0_i32, %c0_i32_0 : i32, i32, i32
  }
  func.func @transform_1(%arg0: i32, %arg1: i32) -> (i32, i32) {
    %c0_i32 = arith.constant 0 : i32
    %c0_i32_0 = arith.constant 0 : i32
    %c0_i32_1 = arith.constant 0 : i32
    return %c0_i32, %c0_i32_0 : i32, i32
  }
  func.func @transform_2(%arg0: i32, %arg1: i32) -> (i32, i32) {
    %c0_i32 = arith.constant 0 : i32
    %c0_i32_0 = arith.constant 0 : i32
    %c0_i32_1 = arith.constant 0 : i32
    return %c0_i32, %c0_i32_0 : i32, i32
  }
  func.func @transform_3(%arg0: i32, %arg1: i32) -> (i32, i32) {
    %c0_i32 = arith.constant 0 : i32
    %c0_i32_0 = arith.constant 0 : i32
    %c0_i32_1 = arith.constant 0 : i32
    return %c0_i32, %c0_i32_0 : i32, i32
  }
  func.func @transform_4(%arg0: i32, %arg1: i32) -> (i32, i32) {
    %c0_i32 = arith.constant 0 : i32
    %c0_i32_0 = arith.constant 0 : i32
    %c0_i32_1 = arith.constant 0 : i32
    return %c0_i32, %c0_i32_0 : i32, i32
  }
  func.func @transform_5(%arg0: i32, %arg1: i32) -> (i32, i32) {
    %c0_i32 = arith.constant 0 : i32
    %c0_i32_0 = arith.constant 0 : i32
    %c0_i32_1 = arith.constant 0 : i32
    return %c0_i32, %c0_i32_0 : i32, i32
  }
  func.func @transform_6(%arg0: i32, %arg1: i32) -> (i32, i32) {
    %c0_i32 = arith.constant 0 : i32
    %c0_i32_0 = arith.constant 0 : i32
    %c0_i32_1 = arith.constant 0 : i32
    return %c0_i32, %c0_i32_0 : i32, i32
  }
  func.func @transform_7(%arg0: i32, %arg1: i32) -> (i32, i32) {
    %c0_i32 = arith.constant 0 : i32
    %c0_i32_0 = arith.constant 0 : i32
    %c0_i32_1 = arith.constant 0 : i32
    return %c0_i32, %c0_i32_0 : i32, i32
  }
  func.func @transform_8(%arg0: i32, %arg1: i32) -> (i32, i32, i32) {
    %c2_i32 = arith.constant 2 : i32
    %0 = arith.cmpi eq, %arg0, %c2_i32 : i32
    %c0_i32 = arith.constant 0 : i32
    %1 = arith.select %0, %arg1, %c0_i32 : i32
    %c0_i32_0 = arith.constant 0 : i32
    %c0_i32_1 = arith.constant 0 : i32
    %c0_i32_2 = arith.constant 0 : i32
    return %1, %c0_i32_0, %c0_i32_1 : i32, i32, i32
  }
}

</mosaic_0001>

<llo_original>
// kernel: tpu_custom_call.1
$region0: #{tpu_custom_call.1}
  #allocation0 [shape = 'u32[]', space=smem, size = 0x4, offset = 0x4, fixed_abs, tag = 'smem constant byte address 0x4 - core index']
  #allocation1 [shape = 'u32[72,128]{1,0:T(1,128)}', space=vmem, size = 0x9000, scoped, tag = 'internal scratch']
  #allocation2 [shape = 'f32[1,4]{1,0:T(1,128)}', space=vmem, size = 0x200, scoped, tag = 'scratch operand']
  #allocation3 [shape = 'f32[1,4]{1,0:T(1,128)}', space=vmem, size = 0x200, scoped, tag = 'scratch operand']
  #allocation4 [shape = 'f32[1,4]{1,0:T(1,128)}', space=vmem, size = 0x200, scoped, tag = 'scratch operand']
  #allocation5 [shape = 'f32[1,4]{1,0:T(1,128)}', space=vmem, size = 0x200, scoped, tag = 'scratch operand']
  #allocation6 [shape = 'f32[1,16]{1,0:T(1,128)}', space=vmem, size = 0x200, scoped, tag = 'scratch operand']
  #allocation7 [shape = 'f32[1,16]{1,0:T(1,128)}', space=vmem, size = 0x200, scoped, tag = 'scratch operand']
  #allocation8 [shape = 'f32[1,16]{1,0:T(1,128)}', space=vmem, size = 0x200, scoped, tag = 'scratch operand']
  #allocation9 [shape = 'f32[1,16]{1,0:T(1,128)}', space=vmem, size = 0x200, scoped, tag = 'scratch operand']
  %s0 = inlined_call_operand.vmem [shape: f32[2,256,4], index: 0, kind: input, shape index: {}]
  %s1 = inlined_call_operand.vmem [shape: f32[1,4], index: 1, kind: input, shape index: {}]
  %s2 = inlined_call_operand.vmem [shape: f32[1,4], index: 2, kind: input, shape index: {}]
  %s3 = inlined_call_operand.vmem [shape: f32[4,16], index: 3, kind: input, shape index: {}]
  %s4 = inlined_call_operand.vmem [shape: f32[1,16], index: 4, kind: input, shape index: {}]
  %s5 = inlined_call_operand.vmem [shape: f32[1,16], index: 5, kind: input, shape index: {}]
  %s6 = inlined_call_operand.vmem [shape: f32[16,36], index: 6, kind: input, shape index: {}]
  %s7 = inlined_call_operand.vmem [shape: f32[512,9], index: 7, kind: input, shape index: {}]
  %s8 = inlined_call_operand.vmem [shape: f32[2,256,8], index: 8, kind: output, shape index: {}]
  %s9 = sld [smem:[#allocation0]]
  $region101: #{tpu_custom_call.1} parent=0
    _
  %s11 = ssub.s32 1, %s9
  %s12 = scalar_select 0, %s11, %s9
  loop: start=0, step=1, limit=5
  $region2: #{tpu_custom_call.1} parent=0 // loop_pre_header
    _
  $region3: #{tpu_custom_call.1} parent=0 // loop_header
    %s14 = sphi 0, %s18
    %p15 = scmp.ge.s32.totalorder %s14, 5
    %s21 = sphi 0, %s33
    %s22 = sphi 0, %s29
    %s23 = sphi 0, %s21
    %s24 = sphi 0, %s22
    %s25 = sphi 0, %s23
    %s26 = sphi 0, %s24
    %s36 = sphi 0, %s38
    %s39 = sphi 0, %s36
    %s40 = sphi 0, %s39
    %s56 = sphi 0, %s40
    %s60 = sphi 0, %s60
    %s62 = sphi 0, %s60
    %s63 = sphi 0, %s62
    %s77 = sphi 0, %s63
    %s81 = sphi 0, %s81
    %s83 = sphi 0, %s81
    %s84 = sphi 0, %s83
    %s98 = sphi 0, %s84
    %s102 = sphi 0, %s102
    %s104 = sphi 0, %s102
    %s105 = sphi 0, %s104
    %s119 = sphi 0, %s105
    %s123 = sphi 0, %s123
    %s125 = sphi 0, %s123
    %s126 = sphi 0, %s125
    %s140 = sphi 0, %s126
    %s144 = sphi 0, %s144
    %s146 = sphi 0, %s144
    %s147 = sphi 0, %s146
    %s161 = sphi 0, %s147
    %s165 = sphi 0, %s165
    %s167 = sphi 0, %s165
    %s168 = sphi 0, %s167
    %s182 = sphi 0, %s168
    %s186 = sphi 0, %s186
    %s188 = sphi 0, %s186
    %s189 = sphi 0, %s188
    %s203 = sphi 0, %s189
    %s213 = sphi 0, %s215
    %s216 = sphi 0, %s213
    %s217 = sphi 0, %s216
    %s233 = sphi 0, %s217
  $region4: #{tpu_custom_call.1} parent=0 // loop_header_branch
    %17 = sbr.rel (%p15) target = $region8
  $region5: #{tpu_custom_call.1} parent=0 // loop_body
    %s19 = ssub.s32 %s14, 1
    %s20 = ssub.s32 %s14, 2
    %s27 = sadd.s32 1, %s22
    %p28 = scmp.ge.s32.totalorder %s27, 1
    %s29 = scalar_select %p28, 0, %s27
    %s30 = sadd.s32 1, %s21
    %s31 = scalar_select %p28, %s30, %s21
    %p32 = scmp.ge.s32.totalorder %s31, 3
    %s33 = scalar_select %p32, 0, %s31
    %s34 = ssub.s32 %s22, %s29
    %p35 = scmp.eq.s32.totalorder %s34, 0
    %s37 = sadd.s32 %s36, 1
    %s38 = scalar_select %p35, %s36, %s37
    %p41 = pneg %p35
    %p42 = scmp.eq.s32.totalorder %s14, 2
    %p43 = por %p41, %p42
    %p44 = scmp.ne.s32.totalorder %s36, %s39
    %p45 = scmp.eq.s32.totalorder %s14, 0
    %p46 = por %p44, %p45
    %p47 = scmp.ne.s32.totalorder %s36, %s39
    %p48 = scmp.eq.s32.totalorder %s19, 2
    %p49 = por %p47, %p48
    %p50 = scmp.ne.s32.totalorder %s39, %s40
    %p51 = scmp.eq.s32.totalorder %s19, 0
    %p52 = por %p50, %p51
    %p53 = scmp.ne.s32.totalorder %s39, %s40
    %p54 = scmp.eq.s32.totalorder %s20, 2
    %p55 = por %p53, %p54
    %p57 = scmp.ne.s32.totalorder %s40, %s56
    %p58 = scmp.eq.s32.totalorder %s20, 0
    %p59 = por %p57, %p58
    %s61 = sadd.s32 %s60, 1
    %p64 = scmp.eq.s32.totalorder %s14, 2
    %p65 = scmp.ne.s32.totalorder %s60, %s62
    %p66 = scmp.eq.s32.totalorder %s14, 0
    %p67 = por %p65, %p66
    %p68 = scmp.ne.s32.totalorder %s60, %s62
    %p69 = scmp.eq.s32.totalorder %s19, 2
    %p70 = por %p68, %p69
    %p71 = scmp.ne.s32.totalorder %s62, %s63
    %p72 = scmp.eq.s32.totalorder %s19, 0
    %p73 = por %p71, %p72
    %p74 = scmp.ne.s32.totalorder %s62, %s63
    %p75 = scmp.eq.s32.totalorder %s20, 2
    %p76 = por %p74, %p75
    %p78 = scmp.ne.s32.totalorder %s63, %s77
    %p79 = scmp.eq.s32.totalorder %s20, 0
    %p80 = por %p78, %p79
    %s82 = sadd.s32 %s81, 1
    %p85 = scmp.eq.s32.totalorder %s14, 2
    %p86 = scmp.ne.s32.totalorder %s81, %s83
    %p87 = scmp.eq.s32.totalorder %s14, 0
    %p88 = por %p86, %p87
    %p89 = scmp.ne.s32.totalorder %s81, %s83
    %p90 = scmp.eq.s32.totalorder %s19, 2
    %p91 = por %p89, %p90
    %p92 = scmp.ne.s32.totalorder %s83, %s84
    %p93 = scmp.eq.s32.totalorder %s19, 0
    %p94 = por %p92, %p93
    %p95 = scmp.ne.s32.totalorder %s83, %s84
    %p96 = scmp.eq.s32.totalorder %s20, 2
    %p97 = por %p95, %p96
    %p99 = scmp.ne.s32.totalorder %s84, %s98
    %p100 = scmp.eq.s32.totalorder %s20, 0
    %p101 = por %p99, %p100
    %s103 = sadd.s32 %s102, 1
    %p106 = scmp.eq.s32.totalorder %s14, 2
    %p107 = scmp.ne.s32.totalorder %s102, %s104
    %p108 = scmp.eq.s32.totalorder %s14, 0
    %p109 = por %p107, %p108
    %p110 = scmp.ne.s32.totalorder %s102, %s104
    %p111 = scmp.eq.s32.totalorder %s19, 2
    %p112 = por %p110, %p111
    %p113 = scmp.ne.s32.totalorder %s104, %s105
    %p114 = scmp.eq.s32.totalorder %s19, 0
    %p115 = por %p113, %p114
    %p116 = scmp.ne.s32.totalorder %s104, %s105
    %p117 = scmp.eq.s32.totalorder %s20, 2
    %p118 = por %p116, %p117
    %p120 = scmp.ne.s32.totalorder %s105, %s119
    %p121 = scmp.eq.s32.totalorder %s20, 0
    %p122 = por %p120, %p121
    %s124 = sadd.s32 %s123, 1
    %p127 = scmp.eq.s32.totalorder %s14, 2
    %p128 = scmp.ne.s32.totalorder %s123, %s125
    %p129 = scmp.eq.s32.totalorder %s14, 0
    %p130 = por %p128, %p129
    %p131 = scmp.ne.s32.totalorder %s123, %s125
    %p132 = scmp.eq.s32.totalorder %s19, 2
    %p133 = por %p131, %p132
    %p134 = scmp.ne.s32.totalorder %s125, %s126
    %p135 = scmp.eq.s32.totalorder %s19, 0
    %p136 = por %p134, %p135
    %p137 = scmp.ne.s32.totalorder %s125, %s126
    %p138 = scmp.eq.s32.totalorder %s20, 2
    %p139 = por %p137, %p138
    %p141 = scmp.ne.s32.totalorder %s126, %s140
    %p142 = scmp.eq.s32.totalorder %s20, 0
    %p143 = por %p141, %p142
    %s145 = sadd.s32 %s144, 1
    %p148 = scmp.eq.s32.totalorder %s14, 2
    %p149 = scmp.ne.s32.totalorder %s144, %s146
    %p150 = scmp.eq.s32.totalorder %s14, 0
    %p151 = por %p149, %p150
    %p152 = scmp.ne.s32.totalorder %s144, %s146
    %p153 = scmp.eq.s32.totalorder %s19, 2
    %p154 = por %p152, %p153
    %p155 = scmp.ne.s32.totalorder %s146, %s147
    %p156 = scmp.eq.s32.totalorder %s19, 0
    %p157 = por %p155, %p156
    %p158 = scmp.ne.s32.totalorder %s146, %s147
    %p159 = scmp.eq.s32.totalorder %s20, 2
    %p160 = por %p158, %p159
    %p162 = scmp.ne.s32.totalorder %s147, %s161
    %p163 = scmp.eq.s32.totalorder %s20, 0
    %p164 = por %p162, %p163
    %s166 = sadd.s32 %s165, 1
    %p169 = scmp.eq.s32.totalorder %s14, 2
    %p170 = scmp.ne.s32.totalorder %s165, %s167
    %p171 = scmp.eq.s32.totalorder %s14, 0
    %p172 = por %p170, %p171
    %p173 = scmp.ne.s32.totalorder %s165, %s167
    %p174 = scmp.eq.s32.totalorder %s19, 2
    %p175 = por %p173, %p174
    %p176 = scmp.ne.s32.totalorder %s167, %s168
    %p177 = scmp.eq.s32.totalorder %s19, 0
    %p178 = por %p176, %p177
    %p179 = scmp.ne.s32.totalorder %s167, %s168
    %p180 = scmp.eq.s32.totalorder %s20, 2
    %p181 = por %p179, %p180
    %p183 = scmp.ne.s32.totalorder %s168, %s182
    %p184 = scmp.eq.s32.totalorder %s20, 0
    %p185 = por %p183, %p184
    %s187 = sadd.s32 %s186, 1
    %p190 = scmp.eq.s32.totalorder %s14, 2
    %p191 = scmp.ne.s32.totalorder %s186, %s188
    %p192 = scmp.eq.s32.totalorder %s14, 0
    %p193 = por %p191, %p192
    %p194 = scmp.ne.s32.totalorder %s186, %s188
    %p195 = scmp.eq.s32.totalorder %s19, 2
    %p196 = por %p194, %p195
    %p197 = scmp.ne.s32.totalorder %s188, %s189
    %p198 = scmp.eq.s32.totalorder %s19, 0
    %p199 = por %p197, %p198
    %p200 = scmp.ne.s32.totalorder %s188, %s189
    %p201 = scmp.eq.s32.totalorder %s20, 2
    %p202 = por %p200, %p201
    %p204 = scmp.ne.s32.totalorder %s189, %s203
    %p205 = scmp.eq.s32.totalorder %s20, 0
    %p206 = por %p204, %p205
    %p207 = scmp.eq.s32.totalorder %s21, 2
    %s208 = scalar_select %p207, %s22, 0
    %p209 = scmp.eq.s32.totalorder %s33, 2
    %s210 = scalar_select %p209, %s29, 0
    %s211 = ssub.s32 %s208, %s210
    %p212 = scmp.eq.s32.totalorder %s211, 0
    %s214 = sadd.s32 %s213, 1
    %s215 = scalar_select %p212, %s213, %s214
    %p218 = pneg %p212
    %p219 = scmp.eq.s32.totalorder %s14, 2
    %p220 = por %p218, %p219
    %p221 = scmp.ne.s32.totalorder %s213, %s216
    %p222 = scmp.eq.s32.totalorder %s14, 0
    %p223 = por %p221, %p222
    %p224 = scmp.ne.s32.totalorder %s213, %s216
    %p225 = scmp.eq.s32.totalorder %s19, 2
    %p226 = por %p224, %p225
    %p227 = scmp.ne.s32.totalorder %s216, %s217
    %p228 = scmp.eq.s32.totalorder %s19, 0
    %p229 = por %p227, %p228
    %p230 = scmp.ne.s32.totalorder %s216, %s217
    %p231 = scmp.eq.s32.totalorder %s20, 2
    %p232 = por %p230, %p231
    %p234 = scmp.ne.s32.totalorder %s217, %s233
    %p235 = scmp.eq.s32.totalorder %s20, 0
    %p236 = por %p234, %p235
    %p237 = scmp.le.s32.totalorder 1, %s14
    %p238 = scmp.lt.s32.totalorder %s14, 4
    %p239 = pnand %p237, %p238
    %p240 = pneg %p239
    // Predicated region
    $region9: #{tpu_custom_call.1} parent=5 // pred_check
      _
    $region10: #{tpu_custom_call.1} parent=5 // pred_check_branch
      %242 = sbr.rel (%p239) target = $region12
    $region11: #{tpu_custom_call.1} parent=5 // pred_region
      %s243 = ssub.s32 %s14, 1
      // Predicated region
      $region13: #{tpu_custom_call.1} parent=11 // pred_check
        %p244 = pneg %p52
      $region14: #{tpu_custom_call.1} parent=11 // pred_check_branch
        %246 = sbr.rel (%p244) target = $region16
      $region15: #{tpu_custom_call.1} parent=11 // pred_region
        %s247 = smul.u32 2, %s24
        %p248 = scmp.lt.s32.totalorder %s247, 1
        %s249 = scalar_select %p248, %s247, 1
        %s250 = smul.addr %s249, 32
        %s251 = smul.addr %s250, 8
        %s252 = scalar_lea.vmem %s0, %s251
        %s253 = smul.u32 2, %s24
      $region16: #{tpu_custom_call.1} parent=11 // pred_fallthru
        _
      // Predicated region
      $region17: #{tpu_custom_call.1} parent=11 // pred_check
        %p254 = pneg %p73
      $region18: #{tpu_custom_call.1} parent=11 // pred_check_branch
        %256 = sbr.rel (%p254) target = $region20
      $region19: #{tpu_custom_call.1} parent=11 // pred_region
        _
      $region20: #{tpu_custom_call.1} parent=11 // pred_fallthru
        _
      // Predicated region
      $region21: #{tpu_custom_call.1} parent=11 // pred_check
        %p257 = pneg %p94
      $region22: #{tpu_custom_call.1} parent=11 // pred_check_branch
        %259 = sbr.rel (%p257) target = $region24
      $region23: #{tpu_custom_call.1} parent=11 // pred_region
        _
      $region24: #{tpu_custom_call.1} parent=11 // pred_fallthru
        _
      // Predicated region
      $region25: #{tpu_custom_call.1} parent=11 // pred_check
        %p260 = pneg %p115
      $region26: #{tpu_custom_call.1} parent=11 // pred_check_branch
        %262 = sbr.rel (%p260) target = $region28
      $region27: #{tpu_custom_call.1} parent=11 // pred_region
        _
      $region28: #{tpu_custom_call.1} parent=11 // pred_fallthru
        _
      // Predicated region
      $region29: #{tpu_custom_call.1} parent=11 // pred_check
        %p263 = pneg %p136
      $region30: #{tpu_custom_call.1} parent=11 // pred_check_branch
        %265 = sbr.rel (%p263) target = $region32
      $region31: #{tpu_custom_call.1} parent=11 // pred_region
        _
      $region32: #{tpu_custom_call.1} parent=11 // pred_fallthru
        _
      // Predicated region
      $region33: #{tpu_custom_call.1} parent=11 // pred_check
        %p266 = pneg %p157
      $region34: #{tpu_custom_call.1} parent=11 // pred_check_branch
        %268 = sbr.rel (%p266) target = $region36
      $region35: #{tpu_custom_call.1} parent=11 // pred_region
        _
      $region36: #{tpu_custom_call.1} parent=11 // pred_fallthru
        _
      // Predicated region
      $region37: #{tpu_custom_call.1} parent=11 // pred_check
        %p269 = pneg %p178
      $region38: #{tpu_custom_call.1} parent=11 // pred_check_branch
        %271 = sbr.rel (%p269) target = $region40
      $region39: #{tpu_custom_call.1} parent=11 // pred_region
        _
      $region40: #{tpu_custom_call.1} parent=11 // pred_fallthru
        _
      // Predicated region
      $region41: #{tpu_custom_call.1} parent=11 // pred_check
        %p272 = pneg %p199
      $region42: #{tpu_custom_call.1} parent=11 // pred_check_branch
        %274 = sbr.rel (%p272) target = $region44
      $region43: #{tpu_custom_call.1} parent=11 // pred_region
        _
      $region44: #{tpu_custom_call.1} parent=11 // pred_fallthru
        _
    $region12: #{tpu_custom_call.1} parent=5 // pred_fallthru
      _
    %p275 = scmp.lt.s32.totalorder %s14, 3
    // Predicated region
    $region45: #{tpu_custom_call.1} parent=5 // pred_check
      %p276 = pneg %p275
    $region46: #{tpu_custom_call.1} parent=5 // pred_check_branch
      %278 = sbr.rel (%p276) target = $region48
    $region47: #{tpu_custom_call.1} parent=5 // pred_region
      _
    $region48: #{tpu_custom_call.1} parent=5 // pred_fallthru
      _
    %p279 = scmp.le.s32.totalorder 1, %s14
    %p280 = scmp.lt.s32.totalorder %s14, 4
    %p281 = pnand %p279, %p280
    %p282 = pneg %p281
    // Predicated region
    $region49: #{tpu_custom_call.1} parent=5 // pred_check
      _
    $region50: #{tpu_custom_call.1} parent=5 // pred_check_branch
      %284 = sbr.rel (%p281) target = $region52
    $region51: #{tpu_custom_call.1} parent=5 // pred_region
      %s285 = ssub.s32 %s14, 1
      %s286 = smul.u32 2, %s24
      %p287 = scmp.lt.s32.totalorder %s286, 1
      %s288 = scalar_select %p287, %s286, 1
      %s289 = smul.addr %s288, 32
      %s290 = smul.addr %s289, 8
      %s291 = scalar_lea.vmem %s0, %s290
      %p292 = pneg %p52
      %p293 = pneg %p49
      %p294 = pneg %p73
      %p295 = pneg %p70
      %p296 = pneg %p94
      %p297 = pneg %p91
      %p298 = pneg %p115
      %p299 = pneg %p112
      %p300 = pneg %p136
      %p301 = pneg %p133
      %p302 = pneg %p157
      %p303 = pneg %p154
      %p304 = pneg %p178
      %p305 = pneg %p175
      %p306 = pneg %p199
      %p307 = pneg %p196
      %p308 = pneg %p229
      %p309 = pneg %p226
      %p310 = scmp.eq.s32.totalorder %s23, 2
      %s311 = scalar_select %p310, %s24, 0
      %s312 = smul.u32 2, %s311
      %p313 = scmp.lt.s32.totalorder %s312, 1
      %s314 = scalar_select %p313, %s312, 1
      %s315 = smul.addr %s314, 32
      %s316 = smul.addr %s315, 8
      %s317 = scalar_lea.vmem %s8, %s316
      %s318 = smul.u32 2, %s24
      %p319 = scmp.lt.s32.totalorder %s318, 1
      %s320 = scalar_select %p319, %s318, 1
      %s321 = smul.addr %s320, 32
      %s322 = smul.addr %s321, 8
      %s323 = scalar_lea.vmem %s0, %s322
      %s324 = smul.u32 2, %s24
      %p325 = scmp.eq.s32.totalorder %s23, 2
      %s326 = scalar_select %p325, %s24, 0
      %s327 = smul.u32 2, %s326
      %p328 = scmp.lt.s32.totalorder %s327, 1
      %s329 = scalar_select %p328, %s327, 1
      %s330 = smul.addr %s329, 32
      %s331 = smul.addr %s330, 8
      %s332 = scalar_lea.vmem %s8, %s331
      %p333 = scmp.eq.s32.totalorder %s23, 2
      %s334 = scalar_select %p333, %s24, 0
      %s335 = smul.u32 2, %s334
      %v336 = vld [vmem:[%s323] sm:$0xff]
      %v337 = vld [vmem:[%s323 + $0x8] sm:$0xff]
      %v338 = vld [vmem:[%s323 + $0x10] sm:$0xff]
      %v339 = vld [vmem:[%s323 + $0x18] sm:$0xff]
      %v340 = vld [vmem:[%s323 + $0x20] sm:$0xff]
      %v341 = vld [vmem:[%s323 + $0x28] sm:$0xff]
      %v342 = vld [vmem:[%s323 + $0x30] sm:$0xff]
      %v343 = vld [vmem:[%s323 + $0x38] sm:$0xff]
      %v344 = vld [vmem:[%s323 + $0x40] sm:$0xff]
      %v345 = vld [vmem:[%s323 + $0x48] sm:$0xff]
      %v346 = vld [vmem:[%s323 + $0x50] sm:$0xff]
      %v347 = vld [vmem:[%s323 + $0x58] sm:$0xff]
      %v348 = vld [vmem:[%s323 + $0x60] sm:$0xff]
      %v349 = vld [vmem:[%s323 + $0x68] sm:$0xff]
      %v350 = vld [vmem:[%s323 + $0x70] sm:$0xff]
      %v351 = vld [vmem:[%s323 + $0x78] sm:$0xff]
      %v352 = vld [vmem:[%s323 + $0x80] sm:$0xff]
      %v353 = vld [vmem:[%s323 + $0x88] sm:$0xff]
      %v354 = vld [vmem:[%s323 + $0x90] sm:$0xff]
      %v355 = vld [vmem:[%s323 + $0x98] sm:$0xff]
      %v356 = vld [vmem:[%s323 + $0xa0] sm:$0xff]
      %v357 = vld [vmem:[%s323 + $0xa8] sm:$0xff]
      %v358 = vld [vmem:[%s323 + $0xb0] sm:$0xff]
      %v359 = vld [vmem:[%s323 + $0xb8] sm:$0xff]
      %v360 = vld [vmem:[%s323 + $0xc0] sm:$0xff]
      %v361 = vld [vmem:[%s323 + $0xc8] sm:$0xff]
      %v362 = vld [vmem:[%s323 + $0xd0] sm:$0xff]
      %v363 = vld [vmem:[%s323 + $0xd8] sm:$0xff]
      %v364 = vld [vmem:[%s323 + $0xe0] sm:$0xff]
      %v365 = vld [vmem:[%s323 + $0xe8] sm:$0xff]
      %v366 = vld [vmem:[%s323 + $0xf0] sm:$0xff]
      %v367 = vld [vmem:[%s323 + $0xf8] sm:$0xff]
      %v368 = vld [vmem:[%s323 + $0x100] sm:$0xff]
      %v369 = vld [vmem:[%s323 + $0x108] sm:$0xff]
      %v370 = vld [vmem:[%s323 + $0x110] sm:$0xff]
      %v371 = vld [vmem:[%s323 + $0x118] sm:$0xff]
      %v372 = vld [vmem:[%s323 + $0x120] sm:$0xff]
      %v373 = vld [vmem:[%s323 + $0x128] sm:$0xff]
      %v374 = vld [vmem:[%s323 + $0x130] sm:$0xff]
      %v375 = vld [vmem:[%s323 + $0x138] sm:$0xff]
      %v376 = vld [vmem:[%s323 + $0x140] sm:$0xff]
      %v377 = vld [vmem:[%s323 + $0x148] sm:$0xff]
      %v378 = vld [vmem:[%s323 + $0x150] sm:$0xff]
      %v379 = vld [vmem:[%s323 + $0x158] sm:$0xff]
      %v380 = vld [vmem:[%s323 + $0x160] sm:$0xff]
      %v381 = vld [vmem:[%s323 + $0x168] sm:$0xff]
      %v382 = vld [vmem:[%s323 + $0x170] sm:$0xff]
      %v383 = vld [vmem:[%s323 + $0x178] sm:$0xff]
      %v384 = vld [vmem:[%s323 + $0x180] sm:$0xff]
      %v385 = vld [vmem:[%s323 + $0x188] sm:$0xff]
      %v386 = vld [vmem:[%s323 + $0x190] sm:$0xff]
      %v387 = vld [vmem:[%s323 + $0x198] sm:$0xff]
      %v388 = vld [vmem:[%s323 + $0x1a0] sm:$0xff]
      %v389 = vld [vmem:[%s323 + $0x1a8] sm:$0xff]
      %v390 = vld [vmem:[%s323 + $0x1b0] sm:$0xff]
      %v391 = vld [vmem:[%s323 + $0x1b8] sm:$0xff]
      %v392 = vld [vmem:[%s323 + $0x1c0] sm:$0xff]
      %v393 = vld [vmem:[%s323 + $0x1c8] sm:$0xff]
      %v394 = vld [vmem:[%s323 + $0x1d0] sm:$0xff]
      %v395 = vld [vmem:[%s323 + $0x1d8] sm:$0xff]
      %v396 = vld [vmem:[%s323 + $0x1e0] sm:$0xff]
      %v397 = vld [vmem:[%s323 + $0x1e8] sm:$0xff]
      %v398 = vld [vmem:[%s323 + $0x1f0] sm:$0xff]
      %v399 = vld [vmem:[%s323 + $0x1f8] sm:$0xff]
      %p400 = scmp.eq.s32.totalorder %s23, 0
      // Predicated region
      $region53: #{tpu_custom_call.1} parent=51 // pred_check
        %p401 = pneg %p400
      $region54: #{tpu_custom_call.1} parent=51 // pred_check_branch
        %403 = sbr.rel (%p401) target = $region56
      $region55: #{tpu_custom_call.1} parent=51 // pred_region
        %vm404 = vcmask 31744
        %v405 = vsel %vm404, %v336, 0.0
        %v406 = vsel %vm404, %v337, 0.0
        %v407 = vadd.f32 %v405, %v406
        %v408 = vsel %vm404, %v338, 0.0
        %v409 = vadd.f32 %v407, %v408
        %v410 = vsel %vm404, %v339, 0.0
        %v411 = vadd.f32 %v409, %v410
        %v412 = vsel %vm404, %v340, 0.0
        %v413 = vadd.f32 %v411, %v412
        %v414 = vsel %vm404, %v341, 0.0
        %v415 = vadd.f32 %v413, %v414
        %v416 = vsel %vm404, %v342, 0.0
        %v417 = vadd.f32 %v415, %v416
        %v418 = vsel %vm404, %v343, 0.0
        %v419 = vadd.f32 %v417, %v418
        %v420 = vsel %vm404, %v344, 0.0
        %v421 = vadd.f32 %v419, %v420
        %v422 = vsel %vm404, %v345, 0.0
        %v423 = vadd.f32 %v421, %v422
        %v424 = vsel %vm404, %v346, 0.0
        %v425 = vadd.f32 %v423, %v424
        %v426 = vsel %vm404, %v347, 0.0
        %v427 = vadd.f32 %v425, %v426
        %v428 = vsel %vm404, %v348, 0.0
        %v429 = vadd.f32 %v427, %v428
        %v430 = vsel %vm404, %v349, 0.0
        %v431 = vadd.f32 %v429, %v430
        %v432 = vsel %vm404, %v350, 0.0
        %v433 = vadd.f32 %v431, %v432
        %v434 = vsel %vm404, %v351, 0.0
        %v435 = vadd.f32 %v433, %v434
        %v436 = vsel %vm404, %v352, 0.0
        %v437 = vadd.f32 %v435, %v436
        %v438 = vsel %vm404, %v353, 0.0
        %v439 = vadd.f32 %v437, %v438
        %v440 = vsel %vm404, %v354, 0.0
        %v441 = vadd.f32 %v439, %v440
        %v442 = vsel %vm404, %v355, 0.0
        %v443 = vadd.f32 %v441, %v442
        %v444 = vsel %vm404, %v356, 0.0
        %v445 = vadd.f32 %v443, %v444
        %v446 = vsel %vm404, %v357, 0.0
        %v447 = vadd.f32 %v445, %v446
        %v448 = vsel %vm404, %v358, 0.0
        %v449 = vadd.f32 %v447, %v448
        %v450 = vsel %vm404, %v359, 0.0
        %v451 = vadd.f32 %v449, %v450
        %v452 = vsel %vm404, %v360, 0.0
        %v453 = vadd.f32 %v451, %v452
        %v454 = vsel %vm404, %v361, 0.0
        %v455 = vadd.f32 %v453, %v454
        %v456 = vsel %vm404, %v362, 0.0
        %v457 = vadd.f32 %v455, %v456
        %v458 = vsel %vm404, %v363, 0.0
        %v459 = vadd.f32 %v457, %v458
        %v460 = vsel %vm404, %v364, 0.0
        %v461 = vadd.f32 %v459, %v460
        %v462 = vsel %vm404, %v365, 0.0
        %v463 = vadd.f32 %v461, %v462
        %v464 = vsel %vm404, %v366, 0.0
        %v465 = vadd.f32 %v463, %v464
        %v466 = vsel %vm404, %v367, 0.0
        %v467 = vadd.f32 %v465, %v466
        %v468 = vsel %vm404, %v368, 0.0
        %v469 = vadd.f32 %v467, %v468
        %v470 = vsel %vm404, %v369, 0.0
        %v471 = vadd.f32 %v469, %v470
        %v472 = vsel %vm404, %v370, 0.0
        %v473 = vadd.f32 %v471, %v472
        %v474 = vsel %vm404, %v371, 0.0
        %v475 = vadd.f32 %v473, %v474
        %v476 = vsel %vm404, %v372, 0.0
        %v477 = vadd.f32 %v475, %v476
        %v478 = vsel %vm404, %v373, 0.0
        %v479 = vadd.f32 %v477, %v478
        %v480 = vsel %vm404, %v374, 0.0
        %v481 = vadd.f32 %v479, %v480
        %v482 = vsel %vm404, %v375, 0.0
        %v483 = vadd.f32 %v481, %v482
        %v484 = vsel %vm404, %v376, 0.0
        %v485 = vadd.f32 %v483, %v484
        %v486 = vsel %vm404, %v377, 0.0
        %v487 = vadd.f32 %v485, %v486
        %v488 = vsel %vm404, %v378, 0.0
        %v489 = vadd.f32 %v487, %v488
        %v490 = vsel %vm404, %v379, 0.0
        %v491 = vadd.f32 %v489, %v490
        %v492 = vsel %vm404, %v380, 0.0
        %v493 = vadd.f32 %v491, %v492
        %v494 = vsel %vm404, %v381, 0.0
        %v495 = vadd.f32 %v493, %v494
        %v496 = vsel %vm404, %v382, 0.0
        %v497 = vadd.f32 %v495, %v496
        %v498 = vsel %vm404, %v383, 0.0
        %v499 = vadd.f32 %v497, %v498
        %v500 = vsel %vm404, %v384, 0.0
        %v501 = vadd.f32 %v499, %v500
        %v502 = vsel %vm404, %v385, 0.0
        %v503 = vadd.f32 %v501, %v502
        %v504 = vsel %vm404, %v386, 0.0
        %v505 = vadd.f32 %v503, %v504
        %v506 = vsel %vm404, %v387, 0.0
        %v507 = vadd.f32 %v505, %v506
        %v508 = vsel %vm404, %v388, 0.0
        %v509 = vadd.f32 %v507, %v508
        %v510 = vsel %vm404, %v389, 0.0
        %v511 = vadd.f32 %v509, %v510
        %v512 = vsel %vm404, %v390, 0.0
        %v513 = vadd.f32 %v511, %v512
        %v514 = vsel %vm404, %v391, 0.0
        %v515 = vadd.f32 %v513, %v514
        %v516 = vsel %vm404, %v392, 0.0
        %v517 = vadd.f32 %v515, %v516
        %v518 = vsel %vm404, %v393, 0.0
        %v519 = vadd.f32 %v517, %v518
        %v520 = vsel %vm404, %v394, 0.0
        %v521 = vadd.f32 %v519, %v520
        %v522 = vsel %vm404, %v395, 0.0
        %v523 = vadd.f32 %v521, %v522
        %v524 = vsel %vm404, %v396, 0.0
        %v525 = vadd.f32 %v523, %v524
        %v526 = vsel %vm404, %v397, 0.0
        %v527 = vadd.f32 %v525, %v526
        %v528 = vsel %vm404, %v398, 0.0
        %v529 = vadd.f32 %v527, %v528
        %v530 = vsel %vm404, %v399, 0.0
        %v531 = vadd.f32 %v529, %v530
        %v532 = vrot.slane %v531, 4
        %v533 = vadd.f32 %v531, %v532
        %v534 = vrot.slane %v533, 2
        %v535 = vadd.f32 %v533, %v534
        %v536 = vrot.slane %v535, 1
        %v537 = vadd.f32 %v535, %v536
        %v538 = vrcp.pop 512.0
        %v539 = vmul.f32 512.0, %v538
        %v540 = vsub.f32 1.0, %v539
        %v541 = vmul.f32 %v538, %v540
        %v542 = vadd.f32 %v538, %v541
        %vm543 = vweird.f32 %v538
        %v544 = vsel %vm543, %v538, %v542
        %v545 = vmul.f32 %v537, %v544
        %v546 = vsub.f32 %v336, %v545
        %v547 = vsub.f32 %v337, %v545
        %v548 = vsub.f32 %v338, %v545
        %v549 = vsub.f32 %v339, %v545
        %v550 = vsub.f32 %v340, %v545
        %v551 = vsub.f32 %v341, %v545
        %v552 = vsub.f32 %v342, %v545
        %v553 = vsub.f32 %v343, %v545
        %v554 = vsub.f32 %v344, %v545
        %v555 = vsub.f32 %v345, %v545
        %v556 = vsub.f32 %v346, %v545
        %v557 = vsub.f32 %v347, %v545
        %v558 = vsub.f32 %v348, %v545
        %v559 = vsub.f32 %v349, %v545
        %v560 = vsub.f32 %v350, %v545
        %v561 = vsub.f32 %v351, %v545
        %v562 = vsub.f32 %v352, %v545
        %v563 = vsub.f32 %v353, %v545
        %v564 = vsub.f32 %v354, %v545
        %v565 = vsub.f32 %v355, %v545
        %v566 = vsub.f32 %v356, %v545
        %v567 = vsub.f32 %v357, %v545
        %v568 = vsub.f32 %v358, %v545
        %v569 = vsub.f32 %v359, %v545
        %v570 = vsub.f32 %v360, %v545
        %v571 = vsub.f32 %v361, %v545
        %v572 = vsub.f32 %v362, %v545
        %v573 = vsub.f32 %v363, %v545
        %v574 = vsub.f32 %v364, %v545
        %v575 = vsub.f32 %v365, %v545
        %v576 = vsub.f32 %v366, %v545
        %v577 = vsub.f32 %v367, %v545
        %v578 = vsub.f32 %v368, %v545
        %v579 = vsub.f32 %v369, %v545
        %v580 = vsub.f32 %v370, %v545
        %v581 = vsub.f32 %v371, %v545
        %v582 = vsub.f32 %v372, %v545
        %v583 = vsub.f32 %v373, %v545
        %v584 = vsub.f32 %v374, %v545
        %v585 = vsub.f32 %v375, %v545
        %v586 = vsub.f32 %v376, %v545
        %v587 = vsub.f32 %v377, %v545
        %v588 = vsub.f32 %v378, %v545
        %v589 = vsub.f32 %v379, %v545
        %v590 = vsub.f32 %v380, %v545
        %v591 = vsub.f32 %v381, %v545
        %v592 = vsub.f32 %v382, %v545
        %v593 = vsub.f32 %v383, %v545
        %v594 = vsub.f32 %v384, %v545
        %v595 = vsub.f32 %v385, %v545
        %v596 = vsub.f32 %v386, %v545
        %v597 = vsub.f32 %v387, %v545
        %v598 = vsub.f32 %v388, %v545
        %v599 = vsub.f32 %v389, %v545
        %v600 = vsub.f32 %v390, %v545
        %v601 = vsub.f32 %v391, %v545
        %v602 = vsub.f32 %v392, %v545
        %v603 = vsub.f32 %v393, %v545
        %v604 = vsub.f32 %v394, %v545
        %v605 = vsub.f32 %v395, %v545
        %v606 = vsub.f32 %v396, %v545
        %v607 = vsub.f32 %v397, %v545
        %v608 = vsub.f32 %v398, %v545
        %v609 = vsub.f32 %v399, %v545
        %v610 = vmul.f32 %v546, %v546
        %v611 = vmul.f32 %v547, %v547
        %v612 = vmul.f32 %v548, %v548
        %v613 = vmul.f32 %v549, %v549
        %v614 = vmul.f32 %v550, %v550
        %v615 = vmul.f32 %v551, %v551
        %v616 = vmul.f32 %v552, %v552
        %v617 = vmul.f32 %v553, %v553
        %v618 = vmul.f32 %v554, %v554
        %v619 = vmul.f32 %v555, %v555
        %v620 = vmul.f32 %v556, %v556
        %v621 = vmul.f32 %v557, %v557
        %v622 = vmul.f32 %v558, %v558
        %v623 = vmul.f32 %v559, %v559
        %v624 = vmul.f32 %v560, %v560
        %v625 = vmul.f32 %v561, %v561
        %v626 = vmul.f32 %v562, %v562
        %v627 = vmul.f32 %v563, %v563
        %v628 = vmul.f32 %v564, %v564
        %v629 = vmul.f32 %v565, %v565
        %v630 = vmul.f32 %v566, %v566
        %v631 = vmul.f32 %v567, %v567
        %v632 = vmul.f32 %v568, %v568
        %v633 = vmul.f32 %v569, %v569
        %v634 = vmul.f32 %v570, %v570
        %v635 = vmul.f32 %v571, %v571
        %v636 = vmul.f32 %v572, %v572
        %v637 = vmul.f32 %v573, %v573
        %v638 = vmul.f32 %v574, %v574
        %v639 = vmul.f32 %v575, %v575
        %v640 = vmul.f32 %v576, %v576
        %v641 = vmul.f32 %v577, %v577
        %v642 = vmul.f32 %v578, %v578
        %v643 = vmul.f32 %v579, %v579
        %v644 = vmul.f32 %v580, %v580
        %v645 = vmul.f32 %v581, %v581
        %v646 = vmul.f32 %v582, %v582
        %v647 = vmul.f32 %v583, %v583
        %v648 = vmul.f32 %v584, %v584
        %v649 = vmul.f32 %v585, %v585
        %v650 = vmul.f32 %v586, %v586
        %v651 = vmul.f32 %v587, %v587
        %v652 = vmul.f32 %v588, %v588
        %v653 = vmul.f32 %v589, %v589
        %v654 = vmul.f32 %v590, %v590
        %v655 = vmul.f32 %v591, %v591
        %v656 = vmul.f32 %v592, %v592
        %v657 = vmul.f32 %v593, %v593
        %v658 = vmul.f32 %v594, %v594
        %v659 = vmul.f32 %v595, %v595
        %v660 = vmul.f32 %v596, %v596
        %v661 = vmul.f32 %v597, %v597
        %v662 = vmul.f32 %v598, %v598
        %v663 = vmul.f32 %v599, %v599
        %v664 = vmul.f32 %v600, %v600
        %v665 = vmul.f32 %v601, %v601
        %v666 = vmul.f32 %v602, %v602
        %v667 = vmul.f32 %v603, %v603
        %v668 = vmul.f32 %v604, %v604
        %v669 = vmul.f32 %v605, %v605
        %v670 = vmul.f32 %v606, %v606
        %v671 = vmul.f32 %v607, %v607
        %v672 = vmul.f32 %v608, %v608
        %v673 = vmul.f32 %v609, %v609
        %v674 = vsel %vm404, %v610, 0.0
        %v675 = vsel %vm404, %v611, 0.0
        %v676 = vadd.f32 %v674, %v675
        %v677 = vsel %vm404, %v612, 0.0
        %v678 = vadd.f32 %v676, %v677
        %v679 = vsel %vm404, %v613, 0.0
        %v680 = vadd.f32 %v678, %v679
        %v681 = vsel %vm404, %v614, 0.0
        %v682 = vadd.f32 %v680, %v681
        %v683 = vsel %vm404, %v615, 0.0
        %v684 = vadd.f32 %v682, %v683
        %v685 = vsel %vm404, %v616, 0.0
        %v686 = vadd.f32 %v684, %v685
        %v687 = vsel %vm404, %v617, 0.0
        %v688 = vadd.f32 %v686, %v687
        %v689 = vsel %vm404, %v618, 0.0
        %v690 = vadd.f32 %v688, %v689
        %v691 = vsel %vm404, %v619, 0.0
        %v692 = vadd.f32 %v690, %v691
        %v693 = vsel %vm404, %v620, 0.0
        %v694 = vadd.f32 %v692, %v693
        %v695 = vsel %vm404, %v621, 0.0
        %v696 = vadd.f32 %v694, %v695
        %v697 = vsel %vm404, %v622, 0.0
        %v698 = vadd.f32 %v696, %v697
        %v699 = vsel %vm404, %v623, 0.0
        %v700 = vadd.f32 %v698, %v699
        %v701 = vsel %vm404, %v624, 0.0
        %v702 = vadd.f32 %v700, %v701
        %v703 = vsel %vm404, %v625, 0.0
        %v704 = vadd.f32 %v702, %v703
        %v705 = vsel %vm404, %v626, 0.0
        %v706 = vadd.f32 %v704, %v705
        %v707 = vsel %vm404, %v627, 0.0
        %v708 = vadd.f32 %v706, %v707
        %v709 = vsel %vm404, %v628, 0.0
        %v710 = vadd.f32 %v708, %v709
        %v711 = vsel %vm404, %v629, 0.0
        %v712 = vadd.f32 %v710, %v711
        %v713 = vsel %vm404, %v630, 0.0
        %v714 = vadd.f32 %v712, %v713
        %v715 = vsel %vm404, %v631, 0.0
        %v716 = vadd.f32 %v714, %v715
        %v717 = vsel %vm404, %v632, 0.0
        %v718 = vadd.f32 %v716, %v717
        %v719 = vsel %vm404, %v633, 0.0
        %v720 = vadd.f32 %v718, %v719
        %v721 = vsel %vm404, %v634, 0.0
        %v722 = vadd.f32 %v720, %v721
        %v723 = vsel %vm404, %v635, 0.0
        %v724 = vadd.f32 %v722, %v723
        %v725 = vsel %vm404, %v636, 0.0
        %v726 = vadd.f32 %v724, %v725
        %v727 = vsel %vm404, %v637, 0.0
        %v728 = vadd.f32 %v726, %v727
        %v729 = vsel %vm404, %v638, 0.0
        %v730 = vadd.f32 %v728, %v729
        %v731 = vsel %vm404, %v639, 0.0
        %v732 = vadd.f32 %v730, %v731
        %v733 = vsel %vm404, %v640, 0.0
        %v734 = vadd.f32 %v732, %v733
        %v735 = vsel %vm404, %v641, 0.0
        %v736 = vadd.f32 %v734, %v735
        %v737 = vsel %vm404, %v642, 0.0
        %v738 = vadd.f32 %v736, %v737
        %v739 = vsel %vm404, %v643, 0.0
        %v740 = vadd.f32 %v738, %v739
        %v741 = vsel %vm404, %v644, 0.0
        %v742 = vadd.f32 %v740, %v741
        %v743 = vsel %vm404, %v645, 0.0
        %v744 = vadd.f32 %v742, %v743
        %v745 = vsel %vm404, %v646, 0.0
        %v746 = vadd.f32 %v744, %v745
        %v747 = vsel %vm404, %v647, 0.0
        %v748 = vadd.f32 %v746, %v747
        %v749 = vsel %vm404, %v648, 0.0
        %v750 = vadd.f32 %v748, %v749
        %v751 = vsel %vm404, %v649, 0.0
        %v752 = vadd.f32 %v750, %v751
        %v753 = vsel %vm404, %v650, 0.0
        %v754 = vadd.f32 %v752, %v753
        %v755 = vsel %vm404, %v651, 0.0
        %v756 = vadd.f32 %v754, %v755
        %v757 = vsel %vm404, %v652, 0.0
        %v758 = vadd.f32 %v756, %v757
        %v759 = vsel %vm404, %v653, 0.0
        %v760 = vadd.f32 %v758, %v759
        %v761 = vsel %vm404, %v654, 0.0
        %v762 = vadd.f32 %v760, %v761
        %v763 = vsel %vm404, %v655, 0.0
        %v764 = vadd.f32 %v762, %v763
        %v765 = vsel %vm404, %v656, 0.0
        %v766 = vadd.f32 %v764, %v765
        %v767 = vsel %vm404, %v657, 0.0
        %v768 = vadd.f32 %v766, %v767
        %v769 = vsel %vm404, %v658, 0.0
        %v770 = vadd.f32 %v768, %v769
        %v771 = vsel %vm404, %v659, 0.0
        %v772 = vadd.f32 %v770, %v771
        %v773 = vsel %vm404, %v660, 0.0
        %v774 = vadd.f32 %v772, %v773
        %v775 = vsel %vm404, %v661, 0.0
        %v776 = vadd.f32 %v774, %v775
        %v777 = vsel %vm404, %v662, 0.0
        %v778 = vadd.f32 %v776, %v777
        %v779 = vsel %vm404, %v663, 0.0
        %v780 = vadd.f32 %v778, %v779
        %v781 = vsel %vm404, %v664, 0.0
        %v782 = vadd.f32 %v780, %v781
        %v783 = vsel %vm404, %v665, 0.0
        %v784 = vadd.f32 %v782, %v783
        %v785 = vsel %vm404, %v666, 0.0
        %v786 = vadd.f32 %v784, %v785
        %v787 = vsel %vm404, %v667, 0.0
        %v788 = vadd.f32 %v786, %v787
        %v789 = vsel %vm404, %v668, 0.0
        %v790 = vadd.f32 %v788, %v789
        %v791 = vsel %vm404, %v669, 0.0
        %v792 = vadd.f32 %v790, %v791
        %v793 = vsel %vm404, %v670, 0.0
        %v794 = vadd.f32 %v792, %v793
        %v795 = vsel %vm404, %v671, 0.0
        %v796 = vadd.f32 %v794, %v795
        %v797 = vsel %vm404, %v672, 0.0
        %v798 = vadd.f32 %v796, %v797
        %v799 = vsel %vm404, %v673, 0.0
        %v800 = vadd.f32 %v798, %v799
        %v801 = vrot.slane %v800, 4
        %v802 = vadd.f32 %v800, %v801
        %v803 = vrot.slane %v802, 2
        %v804 = vadd.f32 %v802, %v803
        %v805 = vrot.slane %v804, 1
        %v806 = vadd.f32 %v804, %v805
        %p807 = scmp.eq.s32.totalorder %s24, 0
        // Predicated region
        $region57: #{tpu_custom_call.1} parent=55 // pred_check
          %p808 = pneg %p807
        $region58: #{tpu_custom_call.1} parent=55 // pred_check_branch
          %810 = sbr.rel (%p808) target = $region60
        $region59: #{tpu_custom_call.1} parent=55 // pred_region
          %vm811 = vcmask 24576
          %812 = vst.msk [vmem:[#allocation2] sm:$0x1] %vm811, %v545
          %813 = vst.msk [vmem:[#allocation3] sm:$0x1] %vm811, %v806
        $region60: #{tpu_custom_call.1} parent=55 // pred_fallthru
          _
        %p814 = scmp.gt.s32.totalorder %s24, 0
        // Predicated region
        $region61: #{tpu_custom_call.1} parent=55 // pred_check
          %p815 = pneg %p814
        $region62: #{tpu_custom_call.1} parent=55 // pred_check_branch
          %817 = sbr.rel (%p815) target = $region64
        $region63: #{tpu_custom_call.1} parent=55 // pred_region
          %s818 = scvt.s32.f32 %s24
          %s819 = smul.f32 %s818, 512.0
          %s820 = sadd.f32 %s819, 512.0
          %v821 = vld [vmem:[#allocation2] sm:$0x1]
          %v822 = vsub.f32 %v545, %v821
          %v823 = vstv %s820
          %v824 = vrcp.pop %v823
          %v825 = vmul.f32 %v823, %v824
          %v826 = vsub.f32 1.0, %v825
          %v827 = vmul.f32 %v824, %v826
          %v828 = vadd.f32 %v824, %v827
          %vm829 = vweird.f32 %v823
          %vm830 = vweird.f32 %v824
          %vm831 = vmor %vm829, %vm830
          %v832 = vsel %vm831, %v824, %v828
          %v833 = vand.u32 2147483647, %v823
          %vm834 = vcmp.eq.f32.partialorder %v833, 8.507059e+37
          %v835 = vand.u32 %v823, 2147483648
          %v836 = vor.u32 1.1754944e-38, %v835
          %v837 = vsel %vm834, %v836, %v832
          %s838 = vtos %v837
          %s839 = smul.f32 512.0, %s838
          %v840 = vstv %s839
          %v841 = vmul.f32 %v822, %v840
          %v842 = vadd.f32 %v821, %v841
          %vm843 = vcmask 24576
          %844 = vst.msk [vmem:[#allocation2] sm:$0x1] %vm843, %v842
          %v845 = vld [vmem:[#allocation3] sm:$0x1]
          %v846 = vadd.f32 %v845, %v806
          %v847 = vmul.f32 %v822, %v822
          %s848 = smul.f32 %s819, 512.0
          %v849 = vstv %s820
          %v850 = vrcp.pop %v849
          %v851 = vmul.f32 %v849, %v850
          %v852 = vsub.f32 1.0, %v851
          %v853 = vmul.f32 %v850, %v852
          %v854 = vadd.f32 %v850, %v853
          %vm855 = vweird.f32 %v849
          %vm856 = vweird.f32 %v850
          %vm857 = vmor %vm855, %vm856
          %v858 = vsel %vm857, %v850, %v854
          %v859 = vand.u32 2147483647, %v849
          %vm860 = vcmp.eq.f32.partialorder %v859, 8.507059e+37
          %v861 = vand.u32 %v849, 2147483648
          %v862 = vor.u32 1.1754944e-38, %v861
          %v863 = vsel %vm860, %v862, %v858
          %s864 = vtos %v863
          %s865 = smul.f32 %s848, %s864
          %v866 = vstv %s865
          %v867 = vmul.f32 %v847, %v866
          %v868 = vadd.f32 %v846, %v867
          %869 = vst.msk [vmem:[#allocation3] sm:$0x1] %vm843, %v868
        $region64: #{tpu_custom_call.1} parent=55 // pred_fallthru
          _
        // Predicated region
        $region65: #{tpu_custom_call.1} parent=55 // pred_check
          %p870 = pneg %p807
        $region66: #{tpu_custom_call.1} parent=55 // pred_check_branch
          %872 = sbr.rel (%p870) target = $region68
        $region67: #{tpu_custom_call.1} parent=55 // pred_region
          %v873 = vld [vmem:[%s1] sm:$0x1]
          %v874 = vld [vmem:[%s2] sm:$0x1]
          %v875 = vld [vmem:[#allocation3] sm:$0x1]
          %v876 = vmul.f32 %v875, 0.001953125
          %v877 = vadd.f32 %v876, 1e-05
          %v878 = vrsqrt.pop %v877
          %v879 = vmul.f32 %v878, %v877
          %v880 = vmul.f32 %v879, %v878
          %v881 = vmul.f32 0.5, %v880
          %v882 = vsub.f32 1.5, %v881
          %v883 = vmul.f32 %v878, %v882
          %vm884 = vweird.f32 %v877
          %vm885 = vweird.f32 %v878
          %vm886 = vmor %vm884, %vm885
          %v887 = vsel %vm886, %v878, %v883
          %v888 = vmul.f32 %v873, %v887
          %vm889 = vcmask 24576
          %890 = vst.msk [vmem:[#allocation4] sm:$0x1] %vm889, %v888
          %v891 = vld [vmem:[#allocation2] sm:$0x1]
          %v892 = vmul.f32 %v891, %v888
          %v893 = vsub.f32 %v874, %v892
          %894 = vst.msk [vmem:[#allocation5] sm:$0x1] %vm889, %v893
        $region68: #{tpu_custom_call.1} parent=55 // pred_fallthru
          _
      $region56: #{tpu_custom_call.1} parent=51 // pred_fallthru
        _
      %p895 = scmp.eq.s32.totalorder %s23, 1
      // Predicated region
      $region69: #{tpu_custom_call.1} parent=51 // pred_check
        %p896 = pneg %p895
      $region70: #{tpu_custom_call.1} parent=51 // pred_check_branch
        %898 = sbr.rel (%p896) target = $region72
      $region71: #{tpu_custom_call.1} parent=51 // pred_region
        %v899 = vld [vmem:[#allocation4] sm:$0x1]
        %v901 = vperm.slane %v899, 0
        %v903 = vmul.f32 %v336, %v901
        %v904 = vmul.f32 %v337, %v901
        %v905 = vmul.f32 %v338, %v901
        %v906 = vmul.f32 %v339, %v901
        %v907 = vmul.f32 %v340, %v901
        %v908 = vmul.f32 %v341, %v901
        %v909 = vmul.f32 %v342, %v901
        %v910 = vmul.f32 %v343, %v901
        %v911 = vmul.f32 %v344, %v901
        %v912 = vmul.f32 %v345, %v901
        %v913 = vmul.f32 %v346, %v901
        %v914 = vmul.f32 %v347, %v901
        %v915 = vmul.f32 %v348, %v901
        %v916 = vmul.f32 %v349, %v901
        %v917 = vmul.f32 %v350, %v901
        %v918 = vmul.f32 %v351, %v901
        %v919 = vmul.f32 %v352, %v901
        %v920 = vmul.f32 %v353, %v901
        %v921 = vmul.f32 %v354, %v901
        %v922 = vmul.f32 %v355, %v901
        %v923 = vmul.f32 %v356, %v901
        %v924 = vmul.f32 %v357, %v901
        %v925 = vmul.f32 %v358, %v901
        %v926 = vmul.f32 %v359, %v901
        %v927 = vmul.f32 %v360, %v901
        %v928 = vmul.f32 %v361, %v901
        %v929 = vmul.f32 %v362, %v901
        %v930 = vmul.f32 %v363, %v901
        %v931 = vmul.f32 %v364, %v901
        %v932 = vmul.f32 %v365, %v901
        %v933 = vmul.f32 %v366, %v901
        %v934 = vmul.f32 %v367, %v901
        %v935 = vmul.f32 %v368, %v901
        %v936 = vmul.f32 %v369, %v901
        %v937 = vmul.f32 %v370, %v901
        %v938 = vmul.f32 %v371, %v901
        %v939 = vmul.f32 %v372, %v901
        %v940 = vmul.f32 %v373, %v901
        %v941 = vmul.f32 %v374, %v901
        %v942 = vmul.f32 %v375, %v901
        %v943 = vmul.f32 %v376, %v901
        %v944 = vmul.f32 %v377, %v901
        %v945 = vmul.f32 %v378, %v901
        %v946 = vmul.f32 %v379, %v901
        %v947 = vmul.f32 %v380, %v901
        %v948 = vmul.f32 %v381, %v901
        %v949 = vmul.f32 %v382, %v901
        %v950 = vmul.f32 %v383, %v901
        %v951 = vmul.f32 %v384, %v901
        %v952 = vmul.f32 %v385, %v901
        %v953 = vmul.f32 %v386, %v901
        %v954 = vmul.f32 %v387, %v901
        %v955 = vmul.f32 %v388, %v901
        %v956 = vmul.f32 %v389, %v901
        %v957 = vmul.f32 %v390, %v901
        %v958 = vmul.f32 %v391, %v901
        %v959 = vmul.f32 %v392, %v901
        %v960 = vmul.f32 %v393, %v901
        %v961 = vmul.f32 %v394, %v901
        %v962 = vmul.f32 %v395, %v901
        %v963 = vmul.f32 %v396, %v901
        %v964 = vmul.f32 %v397, %v901
        %v965 = vmul.f32 %v398, %v901
        %v966 = vmul.f32 %v399, %v901
        %v967 = vld [vmem:[#allocation5] sm:$0x1]
        %v969 = vperm.slane %v967, 0
        %v971 = vadd.f32 %v903, %v969
        %v972 = vadd.f32 %v904, %v969
        %v973 = vadd.f32 %v905, %v969
        %v974 = vadd.f32 %v906, %v969
        %v975 = vadd.f32 %v907, %v969
        %v976 = vadd.f32 %v908, %v969
        %v977 = vadd.f32 %v909, %v969
        %v978 = vadd.f32 %v910, %v969
        %v979 = vadd.f32 %v911, %v969
        %v980 = vadd.f32 %v912, %v969
        %v981 = vadd.f32 %v913, %v969
        %v982 = vadd.f32 %v914, %v969
        %v983 = vadd.f32 %v915, %v969
        %v984 = vadd.f32 %v916, %v969
        %v985 = vadd.f32 %v917, %v969
        %v986 = vadd.f32 %v918, %v969
        %v987 = vadd.f32 %v919, %v969
        %v988 = vadd.f32 %v920, %v969
        %v989 = vadd.f32 %v921, %v969
        %v990 = vadd.f32 %v922, %v969
        %v991 = vadd.f32 %v923, %v969
        %v992 = vadd.f32 %v924, %v969
        %v993 = vadd.f32 %v925, %v969
        %v994 = vadd.f32 %v926, %v969
        %v995 = vadd.f32 %v927, %v969
        %v996 = vadd.f32 %v928, %v969
        %v997 = vadd.f32 %v929, %v969
        %v998 = vadd.f32 %v930, %v969
        %v999 = vadd.f32 %v931, %v969
        %v1000 = vadd.f32 %v932, %v969
        %v1001 = vadd.f32 %v933, %v969
        %v1002 = vadd.f32 %v934, %v969
        %v1003 = vadd.f32 %v935, %v969
        %v1004 = vadd.f32 %v936, %v969
        %v1005 = vadd.f32 %v937, %v969
        %v1006 = vadd.f32 %v938, %v969
        %v1007 = vadd.f32 %v939, %v969
        %v1008 = vadd.f32 %v940, %v969
        %v1009 = vadd.f32 %v941, %v969
        %v1010 = vadd.f32 %v942, %v969
        %v1011 = vadd.f32 %v943, %v969
        %v1012 = vadd.f32 %v944, %v969
        %v1013 = vadd.f32 %v945, %v969
        %v1014 = vadd.f32 %v946, %v969
        %v1015 = vadd.f32 %v947, %v969
        %v1016 = vadd.f32 %v948, %v969
        %v1017 = vadd.f32 %v949, %v969
        %v1018 = vadd.f32 %v950, %v969
        %v1019 = vadd.f32 %v951, %v969
        %v1020 = vadd.f32 %v952, %v969
        %v1021 = vadd.f32 %v953, %v969
        %v1022 = vadd.f32 %v954, %v969
        %v1023 = vadd.f32 %v955, %v969
        %v1024 = vadd.f32 %v956, %v969
        %v1025 = vadd.f32 %v957, %v969
        %v1026 = vadd.f32 %v958, %v969
        %v1027 = vadd.f32 %v959, %v969
        %v1028 = vadd.f32 %v960, %v969
        %v1029 = vadd.f32 %v961, %v969
        %v1030 = vadd.f32 %v962, %v969
        %v1031 = vadd.f32 %v963, %v969
        %v1032 = vadd.f32 %v964, %v969
        %v1033 = vadd.f32 %v965, %v969
        %v1034 = vadd.f32 %v966, %v969
        %v1035 = vmax.f32 %v971, 0.0
        %v1036 = vmax.f32 %v972, 0.0
        %v1037 = vmax.f32 %v973, 0.0
        %v1038 = vmax.f32 %v974, 0.0
        %v1039 = vmax.f32 %v975, 0.0
        %v1040 = vmax.f32 %v976, 0.0
        %v1041 = vmax.f32 %v977, 0.0
        %v1042 = vmax.f32 %v978, 0.0
        %v1043 = vmax.f32 %v979, 0.0
        %v1044 = vmax.f32 %v980, 0.0
        %v1045 = vmax.f32 %v981, 0.0
        %v1046 = vmax.f32 %v982, 0.0
        %v1047 = vmax.f32 %v983, 0.0
        %v1048 = vmax.f32 %v984, 0.0
        %v1049 = vmax.f32 %v985, 0.0
        %v1050 = vmax.f32 %v986, 0.0
        %v1051 = vmax.f32 %v987, 0.0
        %v1052 = vmax.f32 %v988, 0.0
        %v1053 = vmax.f32 %v989, 0.0
        %v1054 = vmax.f32 %v990, 0.0
        %v1055 = vmax.f32 %v991, 0.0
        %v1056 = vmax.f32 %v992, 0.0
        %v1057 = vmax.f32 %v993, 0.0
        %v1058 = vmax.f32 %v994, 0.0
        %v1059 = vmax.f32 %v995, 0.0
        %v1060 = vmax.f32 %v996, 0.0
        %v1061 = vmax.f32 %v997, 0.0
        %v1062 = vmax.f32 %v998, 0.0
        %v1063 = vmax.f32 %v999, 0.0
        %v1064 = vmax.f32 %v1000, 0.0
        %v1065 = vmax.f32 %v1001, 0.0
        %v1066 = vmax.f32 %v1002, 0.0
        %v1067 = vmax.f32 %v1003, 0.0
        %v1068 = vmax.f32 %v1004, 0.0
        %v1069 = vmax.f32 %v1005, 0.0
        %v1070 = vmax.f32 %v1006, 0.0
        %v1071 = vmax.f32 %v1007, 0.0
        %v1072 = vmax.f32 %v1008, 0.0
        %v1073 = vmax.f32 %v1009, 0.0
        %v1074 = vmax.f32 %v1010, 0.0
        %v1075 = vmax.f32 %v1011, 0.0
        %v1076 = vmax.f32 %v1012, 0.0
        %v1077 = vmax.f32 %v1013, 0.0
        %v1078 = vmax.f32 %v1014, 0.0
        %v1079 = vmax.f32 %v1015, 0.0
        %v1080 = vmax.f32 %v1016, 0.0
        %v1081 = vmax.f32 %v1017, 0.0
        %v1082 = vmax.f32 %v1018, 0.0
        %v1083 = vmax.f32 %v1019, 0.0
        %v1084 = vmax.f32 %v1020, 0.0
        %v1085 = vmax.f32 %v1021, 0.0
        %v1086 = vmax.f32 %v1022, 0.0
        %v1087 = vmax.f32 %v1023, 0.0
        %v1088 = vmax.f32 %v1024, 0.0
        %v1089 = vmax.f32 %v1025, 0.0
        %v1090 = vmax.f32 %v1026, 0.0
        %v1091 = vmax.f32 %v1027, 0.0
        %v1092 = vmax.f32 %v1028, 0.0
        %v1093 = vmax.f32 %v1029, 0.0
        %v1094 = vmax.f32 %v1030, 0.0
        %v1095 = vmax.f32 %v1031, 0.0
        %v1096 = vmax.f32 %v1032, 0.0
        %v1097 = vmax.f32 %v1033, 0.0
        %v1098 = vmax.f32 %v1034, 0.0
        %v1099 = vld [vmem:[%s3] sm:$0xf]
        %vm1100 = vcmask 31744
        %v1102 = vsel %vm1100, %v1035, 0
        %v1105 = vsel %vm1100, %v1036, 0
        %v1108 = vsel %vm1100, %v1037, 0
        %v1111 = vsel %vm1100, %v1038, 0
        %v1114 = vsel %vm1100, %v1039, 0
        %v1117 = vsel %vm1100, %v1040, 0
        %v1120 = vsel %vm1100, %v1041, 0
        %v1123 = vsel %vm1100, %v1042, 0
        %v1126 = vsel %vm1100, %v1043, 0
        %v1129 = vsel %vm1100, %v1044, 0
        %v1132 = vsel %vm1100, %v1045, 0
        %v1135 = vsel %vm1100, %v1046, 0
        %v1138 = vsel %vm1100, %v1047, 0
        %v1141 = vsel %vm1100, %v1048, 0
        %v1144 = vsel %vm1100, %v1049, 0
        %v1147 = vsel %vm1100, %v1050, 0
        %v1150 = vsel %vm1100, %v1051, 0
        %v1153 = vsel %vm1100, %v1052, 0
        %v1156 = vsel %vm1100, %v1053, 0
        %v1159 = vsel %vm1100, %v1054, 0
        %v1162 = vsel %vm1100, %v1055, 0
        %v1165 = vsel %vm1100, %v1056, 0
        %v1168 = vsel %vm1100, %v1057, 0
        %v1171 = vsel %vm1100, %v1058, 0
        %v1174 = vsel %vm1100, %v1059, 0
        %v1177 = vsel %vm1100, %v1060, 0
        %v1180 = vsel %vm1100, %v1061, 0
        %v1183 = vsel %vm1100, %v1062, 0
        %v1186 = vsel %vm1100, %v1063, 0
        %v1189 = vsel %vm1100, %v1064, 0
        %v1192 = vsel %vm1100, %v1065, 0
        %v1195 = vsel %vm1100, %v1066, 0
        %v1198 = vsel %vm1100, %v1067, 0
        %v1201 = vsel %vm1100, %v1068, 0
        %v1204 = vsel %vm1100, %v1069, 0
        %v1207 = vsel %vm1100, %v1070, 0
        %v1210 = vsel %vm1100, %v1071, 0
        %v1213 = vsel %vm1100, %v1072, 0
        %v1216 = vsel %vm1100, %v1073, 0
        %v1219 = vsel %vm1100, %v1074, 0
        %v1222 = vsel %vm1100, %v1075, 0
        %v1225 = vsel %vm1100, %v1076, 0
        %v1228 = vsel %vm1100, %v1077, 0
        %v1231 = vsel %vm1100, %v1078, 0
        %v1234 = vsel %vm1100, %v1079, 0
        %v1237 = vsel %vm1100, %v1080, 0
        %v1240 = vsel %vm1100, %v1081, 0
        %v1243 = vsel %vm1100, %v1082, 0
        %v1246 = vsel %vm1100, %v1083, 0
        %v1249 = vsel %vm1100, %v1084, 0
        %v1252 = vsel %vm1100, %v1085, 0
        %v1255 = vsel %vm1100, %v1086, 0
        %v1258 = vsel %vm1100, %v1087, 0
        %v1261 = vsel %vm1100, %v1088, 0
        %v1264 = vsel %vm1100, %v1089, 0
        %v1267 = vsel %vm1100, %v1090, 0
        %v1270 = vsel %vm1100, %v1091, 0
        %v1273 = vsel %vm1100, %v1092, 0
        %v1276 = vsel %vm1100, %v1093, 0
        %v1279 = vsel %vm1100, %v1094, 0
        %v1282 = vsel %vm1100, %v1095, 0
        %v1285 = vsel %vm1100, %v1096, 0
        %v1288 = vsel %vm1100, %v1097, 0
        %v1291 = vsel %vm1100, %v1098, 0
        %vm1293 = vcmask 1043456
        %v1295 = vsel %vm1293, %v1099, 0
        %1297 = vmatpush.msra.mxu0 0.0
        %1298 = vmatpush.msra.mxu0 0.0
        %1299 = vmatpush.msra.mxu0 0.0
        %1300 = vmatpush.msra.mxu0 0.0
        %1301 = vmatpush.msra.mxu0 0.0
        %1302 = vmatpush.msra.mxu0 0.0
        %1303 = vmatpush.msra.mxu0 0.0
        %1304 = vmatpush.msra.mxu0 0.0
        %1305 = vmatpush.msra.mxu0 0.0
        %1306 = vmatpush.msra.mxu0 0.0
        %1307 = vmatpush.msra.mxu0 0.0
        %1308 = vmatpush.msra.mxu0 0.0
        %1309 = vmatpush.msra.mxu0 0.0
        %1310 = vmatpush.msra.mxu0 0.0
        %1311 = vmatpush.msra.mxu0 0.0
        %1312 = vmatpush.msra.mxu0 %v1295
        %1313 = vmatmul.f32.gmra.mxu0 %v1102
        %v1314 = vpop.f32.mrf.mxu0
        %v1315 = vadd.f32 0.0, %v1314
        %1316 = vmatmul.f32.gmra.mxu0 %v1105
        %v1317 = vpop.f32.mrf.mxu0
        %v1318 = vadd.f32 0.0, %v1317
        %1319 = vmatmul.f32.gmra.mxu0 %v1108
        %v1320 = vpop.f32.mrf.mxu0
        %v1321 = vadd.f32 0.0, %v1320
        %1322 = vmatmul.f32.gmra.mxu0 %v1111
        %v1323 = vpop.f32.mrf.mxu0
        %v1324 = vadd.f32 0.0, %v1323
        %1325 = vmatmul.f32.gmra.mxu0 %v1114
        %v1326 = vpop.f32.mrf.mxu0
        %v1327 = vadd.f32 0.0, %v1326
        %1328 = vmatmul.f32.gmra.mxu0 %v1117
        %v1329 = vpop.f32.mrf.mxu0
        %v1330 = vadd.f32 0.0, %v1329
        %1331 = vmatmul.f32.gmra.mxu0 %v1120
        %v1332 = vpop.f32.mrf.mxu0
        %v1333 = vadd.f32 0.0, %v1332
        %1334 = vmatmul.f32.gmra.mxu0 %v1123
        %v1335 = vpop.f32.mrf.mxu0
        %v1336 = vadd.f32 0.0, %v1335
        %1337 = vmatmul.f32.gmra.mxu0 %v1126
        %v1338 = vpop.f32.mrf.mxu0
        %v1339 = vadd.f32 0.0, %v1338
        %1340 = vmatmul.f32.gmra.mxu0 %v1129
        %v1341 = vpop.f32.mrf.mxu0
        %v1342 = vadd.f32 0.0, %v1341
        %1343 = vmatmul.f32.gmra.mxu0 %v1132
        %v1344 = vpop.f32.mrf.mxu0
        %v1345 = vadd.f32 0.0, %v1344
        %1346 = vmatmul.f32.gmra.mxu0 %v1135
        %v1347 = vpop.f32.mrf.mxu0
        %v1348 = vadd.f32 0.0, %v1347
        %1349 = vmatmul.f32.gmra.mxu0 %v1138
        %v1350 = vpop.f32.mrf.mxu0
        %v1351 = vadd.f32 0.0, %v1350
        %1352 = vmatmul.f32.gmra.mxu0 %v1141
        %v1353 = vpop.f32.mrf.mxu0
        %v1354 = vadd.f32 0.0, %v1353
        %1355 = vmatmul.f32.gmra.mxu0 %v1144
        %v1356 = vpop.f32.mrf.mxu0
        %v1357 = vadd.f32 0.0, %v1356
        %1358 = vmatmul.f32.gmra.mxu0 %v1147
        %v1359 = vpop.f32.mrf.mxu0
        %v1360 = vadd.f32 0.0, %v1359
        %1361 = vmatmul.f32.gmra.mxu0 %v1150
        %v1362 = vpop.f32.mrf.mxu0
        %v1363 = vadd.f32 0.0, %v1362
        %1364 = vmatmul.f32.gmra.mxu0 %v1153
        %v1365 = vpop.f32.mrf.mxu0
        %v1366 = vadd.f32 0.0, %v1365
        %1367 = vmatmul.f32.gmra.mxu0 %v1156
        %v1368 = vpop.f32.mrf.mxu0
        %v1369 = vadd.f32 0.0, %v1368
        %1370 = vmatmul.f32.gmra.mxu0 %v1159
        %v1371 = vpop.f32.mrf.mxu0
        %v1372 = vadd.f32 0.0, %v1371
        %1373 = vmatmul.f32.gmra.mxu0 %v1162
        %v1374 = vpop.f32.mrf.mxu0
        %v1375 = vadd.f32 0.0, %v1374
        %1376 = vmatmul.f32.gmra.mxu0 %v1165
        %v1377 = vpop.f32.mrf.mxu0
        %v1378 = vadd.f32 0.0, %v1377
        %1379 = vmatmul.f32.gmra.mxu0 %v1168
        %v1380 = vpop.f32.mrf.mxu0
        %v1381 = vadd.f32 0.0, %v1380
        %1382 = vmatmul.f32.gmra.mxu0 %v1171
        %v1383 = vpop.f32.mrf.mxu0
        %v1384 = vadd.f32 0.0, %v1383
        %1385 = vmatmul.f32.gmra.mxu0 %v1174
        %v1386 = vpop.f32.mrf.mxu0
        %v1387 = vadd.f32 0.0, %v1386
        %1388 = vmatmul.f32.gmra.mxu0 %v1177
        %v1389 = vpop.f32.mrf.mxu0
        %v1390 = vadd.f32 0.0, %v1389
        %1391 = vmatmul.f32.gmra.mxu0 %v1180
        %v1392 = vpop.f32.mrf.mxu0
        %v1393 = vadd.f32 0.0, %v1392
        %1394 = vmatmul.f32.gmra.mxu0 %v1183
        %v1395 = vpop.f32.mrf.mxu0
        %v1396 = vadd.f32 0.0, %v1395
        %1397 = vmatmul.f32.gmra.mxu0 %v1186
        %v1398 = vpop.f32.mrf.mxu0
        %v1399 = vadd.f32 0.0, %v1398
        %1400 = vmatmul.f32.gmra.mxu0 %v1189
        %v1401 = vpop.f32.mrf.mxu0
        %v1402 = vadd.f32 0.0, %v1401
        %1403 = vmatmul.f32.gmra.mxu0 %v1192
        %v1404 = vpop.f32.mrf.mxu0
        %v1405 = vadd.f32 0.0, %v1404
        %1406 = vmatmul.f32.gmra.mxu0 %v1195
        %v1407 = vpop.f32.mrf.mxu0
        %v1408 = vadd.f32 0.0, %v1407
        %1409 = vmatmul.f32.gmra.mxu0 %v1198
        %v1410 = vpop.f32.mrf.mxu0
        %v1411 = vadd.f32 0.0, %v1410
        %1412 = vmatmul.f32.gmra.mxu0 %v1201
        %v1413 = vpop.f32.mrf.mxu0
        %v1414 = vadd.f32 0.0, %v1413
        %1415 = vmatmul.f32.gmra.mxu0 %v1204
        %v1416 = vpop.f32.mrf.mxu0
        %v1417 = vadd.f32 0.0, %v1416
        %1418 = vmatmul.f32.gmra.mxu0 %v1207
        %v1419 = vpop.f32.mrf.mxu0
        %v1420 = vadd.f32 0.0, %v1419
        %1421 = vmatmul.f32.gmra.mxu0 %v1210
        %v1422 = vpop.f32.mrf.mxu0
        %v1423 = vadd.f32 0.0, %v1422
        %1424 = vmatmul.f32.gmra.mxu0 %v1213
        %v1425 = vpop.f32.mrf.mxu0
        %v1426 = vadd.f32 0.0, %v1425
        %1427 = vmatmul.f32.gmra.mxu0 %v1216
        %v1428 = vpop.f32.mrf.mxu0
        %v1429 = vadd.f32 0.0, %v1428
        %1430 = vmatmul.f32.gmra.mxu0 %v1219
        %v1431 = vpop.f32.mrf.mxu0
        %v1432 = vadd.f32 0.0, %v1431
        %1433 = vmatmul.f32.gmra.mxu0 %v1222
        %v1434 = vpop.f32.mrf.mxu0
        %v1435 = vadd.f32 0.0, %v1434
        %1436 = vmatmul.f32.gmra.mxu0 %v1225
        %v1437 = vpop.f32.mrf.mxu0
        %v1438 = vadd.f32 0.0, %v1437
        %1439 = vmatmul.f32.gmra.mxu0 %v1228
        %v1440 = vpop.f32.mrf.mxu0
        %v1441 = vadd.f32 0.0, %v1440
        %1442 = vmatmul.f32.gmra.mxu0 %v1231
        %v1443 = vpop.f32.mrf.mxu0
        %v1444 = vadd.f32 0.0, %v1443
        %1445 = vmatmul.f32.gmra.mxu0 %v1234
        %v1446 = vpop.f32.mrf.mxu0
        %v1447 = vadd.f32 0.0, %v1446
        %1448 = vmatmul.f32.gmra.mxu0 %v1237
        %v1449 = vpop.f32.mrf.mxu0
        %v1450 = vadd.f32 0.0, %v1449
        %1451 = vmatmul.f32.gmra.mxu0 %v1240
        %v1452 = vpop.f32.mrf.mxu0
        %v1453 = vadd.f32 0.0, %v1452
        %1454 = vmatmul.f32.gmra.mxu0 %v1243
        %v1455 = vpop.f32.mrf.mxu0
        %v1456 = vadd.f32 0.0, %v1455
        %1457 = vmatmul.f32.gmra.mxu0 %v1246
        %v1458 = vpop.f32.mrf.mxu0
        %v1459 = vadd.f32 0.0, %v1458
        %1460 = vmatmul.f32.gmra.mxu0 %v1249
        %v1461 = vpop.f32.mrf.mxu0
        %v1462 = vadd.f32 0.0, %v1461
        %1463 = vmatmul.f32.gmra.mxu0 %v1252
        %v1464 = vpop.f32.mrf.mxu0
        %v1465 = vadd.f32 0.0, %v1464
        %1466 = vmatmul.f32.gmra.mxu0 %v1255
        %v1467 = vpop.f32.mrf.mxu0
        %v1468 = vadd.f32 0.0, %v1467
        %1469 = vmatmul.f32.gmra.mxu0 %v1258
        %v1470 = vpop.f32.mrf.mxu0
        %v1471 = vadd.f32 0.0, %v1470
        %1472 = vmatmul.f32.gmra.mxu0 %v1261
        %v1473 = vpop.f32.mrf.mxu0
        %v1474 = vadd.f32 0.0, %v1473
        %1475 = vmatmul.f32.gmra.mxu0 %v1264
        %v1476 = vpop.f32.mrf.mxu0
        %v1477 = vadd.f32 0.0, %v1476
        %1478 = vmatmul.f32.gmra.mxu0 %v1267
        %v1479 = vpop.f32.mrf.mxu0
        %v1480 = vadd.f32 0.0, %v1479
        %1481 = vmatmul.f32.gmra.mxu0 %v1270
        %v1482 = vpop.f32.mrf.mxu0
        %v1483 = vadd.f32 0.0, %v1482
        %1484 = vmatmul.f32.gmra.mxu0 %v1273
        %v1485 = vpop.f32.mrf.mxu0
        %v1486 = vadd.f32 0.0, %v1485
        %1487 = vmatmul.f32.gmra.mxu0 %v1276
        %v1488 = vpop.f32.mrf.mxu0
        %v1489 = vadd.f32 0.0, %v1488
        %1490 = vmatmul.f32.gmra.mxu0 %v1279
        %v1491 = vpop.f32.mrf.mxu0
        %v1492 = vadd.f32 0.0, %v1491
        %1493 = vmatmul.f32.gmra.mxu0 %v1282
        %v1494 = vpop.f32.mrf.mxu0
        %v1495 = vadd.f32 0.0, %v1494
        %1496 = vmatmul.f32.gmra.mxu0 %v1285
        %v1497 = vpop.f32.mrf.mxu0
        %v1498 = vadd.f32 0.0, %v1497
        %1499 = vmatmul.f32.gmra.mxu0 %v1288
        %v1500 = vpop.f32.mrf.mxu0
        %v1501 = vadd.f32 0.0, %v1500
        %1502 = vmatmul.f32.gmra.mxu0 %v1291
        %v1503 = vpop.f32.mrf.mxu0
        %v1504 = vadd.f32 0.0, %v1503
        %1505 = vdwg.mxu0
        %vm1506 = vcmask 130048
        %v1507 = vsel %vm1506, %v1315, 0.0
        %v1508 = vsel %vm1506, %v1318, 0.0
        %v1509 = vadd.f32 %v1507, %v1508
        %v1510 = vsel %vm1506, %v1321, 0.0
        %v1511 = vadd.f32 %v1509, %v1510
        %v1512 = vsel %vm1506, %v1324, 0.0
        %v1513 = vadd.f32 %v1511, %v1512
        %v1514 = vsel %vm1506, %v1327, 0.0
        %v1515 = vadd.f32 %v1513, %v1514
        %v1516 = vsel %vm1506, %v1330, 0.0
        %v1517 = vadd.f32 %v1515, %v1516
        %v1518 = vsel %vm1506, %v1333, 0.0
        %v1519 = vadd.f32 %v1517, %v1518
        %v1520 = vsel %vm1506, %v1336, 0.0
        %v1521 = vadd.f32 %v1519, %v1520
        %v1522 = vsel %vm1506, %v1339, 0.0
        %v1523 = vadd.f32 %v1521, %v1522
        %v1524 = vsel %vm1506, %v1342, 0.0
        %v1525 = vadd.f32 %v1523, %v1524
        %v1526 = vsel %vm1506, %v1345, 0.0
        %v1527 = vadd.f32 %v1525, %v1526
        %v1528 = vsel %vm1506, %v1348, 0.0
        %v1529 = vadd.f32 %v1527, %v1528
        %v1530 = vsel %vm1506, %v1351, 0.0
        %v1531 = vadd.f32 %v1529, %v1530
        %v1532 = vsel %vm1506, %v1354, 0.0
        %v1533 = vadd.f32 %v1531, %v1532
        %v1534 = vsel %vm1506, %v1357, 0.0
        %v1535 = vadd.f32 %v1533, %v1534
        %v1536 = vsel %vm1506, %v1360, 0.0
        %v1537 = vadd.f32 %v1535, %v1536
        %v1538 = vsel %vm1506, %v1363, 0.0
        %v1539 = vadd.f32 %v1537, %v1538
        %v1540 = vsel %vm1506, %v1366, 0.0
        %v1541 = vadd.f32 %v1539, %v1540
        %v1542 = vsel %vm1506, %v1369, 0.0
        %v1543 = vadd.f32 %v1541, %v1542
        %v1544 = vsel %vm1506, %v1372, 0.0
        %v1545 = vadd.f32 %v1543, %v1544
        %v1546 = vsel %vm1506, %v1375, 0.0
        %v1547 = vadd.f32 %v1545, %v1546
        %v1548 = vsel %vm1506, %v1378, 0.0
        %v1549 = vadd.f32 %v1547, %v1548
        %v1550 = vsel %vm1506, %v1381, 0.0
        %v1551 = vadd.f32 %v1549, %v1550
        %v1552 = vsel %vm1506, %v1384, 0.0
        %v1553 = vadd.f32 %v1551, %v1552
        %v1554 = vsel %vm1506, %v1387, 0.0
        %v1555 = vadd.f32 %v1553, %v1554
        %v1556 = vsel %vm1506, %v1390, 0.0
        %v1557 = vadd.f32 %v1555, %v1556
        %v1558 = vsel %vm1506, %v1393, 0.0
        %v1559 = vadd.f32 %v1557, %v1558
        %v1560 = vsel %vm1506, %v1396, 0.0
        %v1561 = vadd.f32 %v1559, %v1560
        %v1562 = vsel %vm1506, %v1399, 0.0
        %v1563 = vadd.f32 %v1561, %v1562
        %v1564 = vsel %vm1506, %v1402, 0.0
        %v1565 = vadd.f32 %v1563, %v1564
        %v1566 = vsel %vm1506, %v1405, 0.0
        %v1567 = vadd.f32 %v1565, %v1566
        %v1568 = vsel %vm1506, %v1408, 0.0
        %v1569 = vadd.f32 %v1567, %v1568
        %v1570 = vsel %vm1506, %v1411, 0.0
        %v1571 = vadd.f32 %v1569, %v1570
        %v1572 = vsel %vm1506, %v1414, 0.0
        %v1573 = vadd.f32 %v1571, %v1572
        %v1574 = vsel %vm1506, %v1417, 0.0
        %v1575 = vadd.f32 %v1573, %v1574
        %v1576 = vsel %vm1506, %v1420, 0.0
        %v1577 = vadd.f32 %v1575, %v1576
        %v1578 = vsel %vm1506, %v1423, 0.0
        %v1579 = vadd.f32 %v1577, %v1578
        %v1580 = vsel %vm1506, %v1426, 0.0
        %v1581 = vadd.f32 %v1579, %v1580
        %v1582 = vsel %vm1506, %v1429, 0.0
        %v1583 = vadd.f32 %v1581, %v1582
        %v1584 = vsel %vm1506, %v1432, 0.0
        %v1585 = vadd.f32 %v1583, %v1584
        %v1586 = vsel %vm1506, %v1435, 0.0
        %v1587 = vadd.f32 %v1585, %v1586
        %v1588 = vsel %vm1506, %v1438, 0.0
        %v1589 = vadd.f32 %v1587, %v1588
        %v1590 = vsel %vm1506, %v1441, 0.0
        %v1591 = vadd.f32 %v1589, %v1590
        %v1592 = vsel %vm1506, %v1444, 0.0
        %v1593 = vadd.f32 %v1591, %v1592
        %v1594 = vsel %vm1506, %v1447, 0.0
        %v1595 = vadd.f32 %v1593, %v1594
        %v1596 = vsel %vm1506, %v1450, 0.0
        %v1597 = vadd.f32 %v1595, %v1596
        %v1598 = vsel %vm1506, %v1453, 0.0
        %v1599 = vadd.f32 %v1597, %v1598
        %v1600 = vsel %vm1506, %v1456, 0.0
        %v1601 = vadd.f32 %v1599, %v1600
        %v1602 = vsel %vm1506, %v1459, 0.0
        %v1603 = vadd.f32 %v1601, %v1602
        %v1604 = vsel %vm1506, %v1462, 0.0
        %v1605 = vadd.f32 %v1603, %v1604
        %v1606 = vsel %vm1506, %v1465, 0.0
        %v1607 = vadd.f32 %v1605, %v1606
        %v1608 = vsel %vm1506, %v1468, 0.0
        %v1609 = vadd.f32 %v1607, %v1608
        %v1610 = vsel %vm1506, %v1471, 0.0
        %v1611 = vadd.f32 %v1609, %v1610
        %v1612 = vsel %vm1506, %v1474, 0.0
        %v1613 = vadd.f32 %v1611, %v1612
        %v1614 = vsel %vm1506, %v1477, 0.0
        %v1615 = vadd.f32 %v1613, %v1614
        %v1616 = vsel %vm1506, %v1480, 0.0
        %v1617 = vadd.f32 %v1615, %v1616
        %v1618 = vsel %vm1506, %v1483, 0.0
        %v1619 = vadd.f32 %v1617, %v1618
        %v1620 = vsel %vm1506, %v1486, 0.0
        %v1621 = vadd.f32 %v1619, %v1620
        %v1622 = vsel %vm1506, %v1489, 0.0
        %v1623 = vadd.f32 %v1621, %v1622
        %v1624 = vsel %vm1506, %v1492, 0.0
        %v1625 = vadd.f32 %v1623, %v1624
        %v1626 = vsel %vm1506, %v1495, 0.0
        %v1627 = vadd.f32 %v1625, %v1626
        %v1628 = vsel %vm1506, %v1498, 0.0
        %v1629 = vadd.f32 %v1627, %v1628
        %v1630 = vsel %vm1506, %v1501, 0.0
        %v1631 = vadd.f32 %v1629, %v1630
        %v1632 = vsel %vm1506, %v1504, 0.0
        %v1633 = vadd.f32 %v1631, %v1632
        %v1634 = vrot.slane %v1633, 4
        %v1635 = vadd.f32 %v1633, %v1634
        %v1636 = vrot.slane %v1635, 2
        %v1637 = vadd.f32 %v1635, %v1636
        %v1638 = vrot.slane %v1637, 1
        %v1639 = vadd.f32 %v1637, %v1638
        %v1640 = vrcp.pop 512.0
        %v1641 = vmul.f32 512.0, %v1640
        %v1642 = vsub.f32 1.0, %v1641
        %v1643 = vmul.f32 %v1640, %v1642
        %v1644 = vadd.f32 %v1640, %v1643
        %vm1645 = vweird.f32 %v1640
        %v1646 = vsel %vm1645, %v1640, %v1644
        %v1647 = vmul.f32 %v1639, %v1646
        %v1648 = vsub.f32 %v1315, %v1647
        %v1649 = vsub.f32 %v1318, %v1647
        %v1650 = vsub.f32 %v1321, %v1647
        %v1651 = vsub.f32 %v1324, %v1647
        %v1652 = vsub.f32 %v1327, %v1647
        %v1653 = vsub.f32 %v1330, %v1647
        %v1654 = vsub.f32 %v1333, %v1647
        %v1655 = vsub.f32 %v1336, %v1647
        %v1656 = vsub.f32 %v1339, %v1647
        %v1657 = vsub.f32 %v1342, %v1647
        %v1658 = vsub.f32 %v1345, %v1647
        %v1659 = vsub.f32 %v1348, %v1647
        %v1660 = vsub.f32 %v1351, %v1647
        %v1661 = vsub.f32 %v1354, %v1647
        %v1662 = vsub.f32 %v1357, %v1647
        %v1663 = vsub.f32 %v1360, %v1647
        %v1664 = vsub.f32 %v1363, %v1647
        %v1665 = vsub.f32 %v1366, %v1647
        %v1666 = vsub.f32 %v1369, %v1647
        %v1667 = vsub.f32 %v1372, %v1647
        %v1668 = vsub.f32 %v1375, %v1647
        %v1669 = vsub.f32 %v1378, %v1647
        %v1670 = vsub.f32 %v1381, %v1647
        %v1671 = vsub.f32 %v1384, %v1647
        %v1672 = vsub.f32 %v1387, %v1647
        %v1673 = vsub.f32 %v1390, %v1647
        %v1674 = vsub.f32 %v1393, %v1647
        %v1675 = vsub.f32 %v1396, %v1647
        %v1676 = vsub.f32 %v1399, %v1647
        %v1677 = vsub.f32 %v1402, %v1647
        %v1678 = vsub.f32 %v1405, %v1647
        %v1679 = vsub.f32 %v1408, %v1647
        %v1680 = vsub.f32 %v1411, %v1647
        %v1681 = vsub.f32 %v1414, %v1647
        %v1682 = vsub.f32 %v1417, %v1647
        %v1683 = vsub.f32 %v1420, %v1647
        %v1684 = vsub.f32 %v1423, %v1647
        %v1685 = vsub.f32 %v1426, %v1647
        %v1686 = vsub.f32 %v1429, %v1647
        %v1687 = vsub.f32 %v1432, %v1647
        %v1688 = vsub.f32 %v1435, %v1647
        %v1689 = vsub.f32 %v1438, %v1647
        %v1690 = vsub.f32 %v1441, %v1647
        %v1691 = vsub.f32 %v1444, %v1647
        %v1692 = vsub.f32 %v1447, %v1647
        %v1693 = vsub.f32 %v1450, %v1647
        %v1694 = vsub.f32 %v1453, %v1647
        %v1695 = vsub.f32 %v1456, %v1647
        %v1696 = vsub.f32 %v1459, %v1647
        %v1697 = vsub.f32 %v1462, %v1647
        %v1698 = vsub.f32 %v1465, %v1647
        %v1699 = vsub.f32 %v1468, %v1647
        %v1700 = vsub.f32 %v1471, %v1647
        %v1701 = vsub.f32 %v1474, %v1647
        %v1702 = vsub.f32 %v1477, %v1647
        %v1703 = vsub.f32 %v1480, %v1647
        %v1704 = vsub.f32 %v1483, %v1647
        %v1705 = vsub.f32 %v1486, %v1647
        %v1706 = vsub.f32 %v1489, %v1647
        %v1707 = vsub.f32 %v1492, %v1647
        %v1708 = vsub.f32 %v1495, %v1647
        %v1709 = vsub.f32 %v1498, %v1647
        %v1710 = vsub.f32 %v1501, %v1647
        %v1711 = vsub.f32 %v1504, %v1647
        %v1712 = vmul.f32 %v1648, %v1648
        %v1713 = vmul.f32 %v1649, %v1649
        %v1714 = vmul.f32 %v1650, %v1650
        %v1715 = vmul.f32 %v1651, %v1651
        %v1716 = vmul.f32 %v1652, %v1652
        %v1717 = vmul.f32 %v1653, %v1653
        %v1718 = vmul.f32 %v1654, %v1654
        %v1719 = vmul.f32 %v1655, %v1655
        %v1720 = vmul.f32 %v1656, %v1656
        %v1721 = vmul.f32 %v1657, %v1657
        %v1722 = vmul.f32 %v1658, %v1658
        %v1723 = vmul.f32 %v1659, %v1659
        %v1724 = vmul.f32 %v1660, %v1660
        %v1725 = vmul.f32 %v1661, %v1661
        %v1726 = vmul.f32 %v1662, %v1662
        %v1727 = vmul.f32 %v1663, %v1663
        %v1728 = vmul.f32 %v1664, %v1664
        %v1729 = vmul.f32 %v1665, %v1665
        %v1730 = vmul.f32 %v1666, %v1666
        %v1731 = vmul.f32 %v1667, %v1667
        %v1732 = vmul.f32 %v1668, %v1668
        %v1733 = vmul.f32 %v1669, %v1669
        %v1734 = vmul.f32 %v1670, %v1670
        %v1735 = vmul.f32 %v1671, %v1671
        %v1736 = vmul.f32 %v1672, %v1672
        %v1737 = vmul.f32 %v1673, %v1673
        %v1738 = vmul.f32 %v1674, %v1674
        %v1739 = vmul.f32 %v1675, %v1675
        %v1740 = vmul.f32 %v1676, %v1676
        %v1741 = vmul.f32 %v1677, %v1677
        %v1742 = vmul.f32 %v1678, %v1678
        %v1743 = vmul.f32 %v1679, %v1679
        %v1744 = vmul.f32 %v1680, %v1680
        %v1745 = vmul.f32 %v1681, %v1681
        %v1746 = vmul.f32 %v1682, %v1682
        %v1747 = vmul.f32 %v1683, %v1683
        %v1748 = vmul.f32 %v1684, %v1684
        %v1749 = vmul.f32 %v1685, %v1685
        %v1750 = vmul.f32 %v1686, %v1686
        %v1751 = vmul.f32 %v1687, %v1687
        %v1752 = vmul.f32 %v1688, %v1688
        %v1753 = vmul.f32 %v1689, %v1689
        %v1754 = vmul.f32 %v1690, %v1690
        %v1755 = vmul.f32 %v1691, %v1691
        %v1756 = vmul.f32 %v1692, %v1692
        %v1757 = vmul.f32 %v1693, %v1693
        %v1758 = vmul.f32 %v1694, %v1694
        %v1759 = vmul.f32 %v1695, %v1695
        %v1760 = vmul.f32 %v1696, %v1696
        %v1761 = vmul.f32 %v1697, %v1697
        %v1762 = vmul.f32 %v1698, %v1698
        %v1763 = vmul.f32 %v1699, %v1699
        %v1764 = vmul.f32 %v1700, %v1700
        %v1765 = vmul.f32 %v1701, %v1701
        %v1766 = vmul.f32 %v1702, %v1702
        %v1767 = vmul.f32 %v1703, %v1703
        %v1768 = vmul.f32 %v1704, %v1704
        %v1769 = vmul.f32 %v1705, %v1705
        %v1770 = vmul.f32 %v1706, %v1706
        %v1771 = vmul.f32 %v1707, %v1707
        %v1772 = vmul.f32 %v1708, %v1708
        %v1773 = vmul.f32 %v1709, %v1709
        %v1774 = vmul.f32 %v1710, %v1710
        %v1775 = vmul.f32 %v1711, %v1711
        %v1776 = vsel %vm1506, %v1712, 0.0
        %v1777 = vsel %vm1506, %v1713, 0.0
        %v1778 = vadd.f32 %v1776, %v1777
        %v1779 = vsel %vm1506, %v1714, 0.0
        %v1780 = vadd.f32 %v1778, %v1779
        %v1781 = vsel %vm1506, %v1715, 0.0
        %v1782 = vadd.f32 %v1780, %v1781
        %v1783 = vsel %vm1506, %v1716, 0.0
        %v1784 = vadd.f32 %v1782, %v1783
        %v1785 = vsel %vm1506, %v1717, 0.0
        %v1786 = vadd.f32 %v1784, %v1785
        %v1787 = vsel %vm1506, %v1718, 0.0
        %v1788 = vadd.f32 %v1786, %v1787
        %v1789 = vsel %vm1506, %v1719, 0.0
        %v1790 = vadd.f32 %v1788, %v1789
        %v1791 = vsel %vm1506, %v1720, 0.0
        %v1792 = vadd.f32 %v1790, %v1791
        %v1793 = vsel %vm1506, %v1721, 0.0
        %v1794 = vadd.f32 %v1792, %v1793
        %v1795 = vsel %vm1506, %v1722, 0.0
        %v1796 = vadd.f32 %v1794, %v1795
        %v1797 = vsel %vm1506, %v1723, 0.0
        %v1798 = vadd.f32 %v1796, %v1797
        %v1799 = vsel %vm1506, %v1724, 0.0
        %v1800 = vadd.f32 %v1798, %v1799
        %v1801 = vsel %vm1506, %v1725, 0.0
        %v1802 = vadd.f32 %v1800, %v1801
        %v1803 = vsel %vm1506, %v1726, 0.0
        %v1804 = vadd.f32 %v1802, %v1803
        %v1805 = vsel %vm1506, %v1727, 0.0
        %v1806 = vadd.f32 %v1804, %v1805
        %v1807 = vsel %vm1506, %v1728, 0.0
        %v1808 = vadd.f32 %v1806, %v1807
        %v1809 = vsel %vm1506, %v1729, 0.0
        %v1810 = vadd.f32 %v1808, %v1809
        %v1811 = vsel %vm1506, %v1730, 0.0
        %v1812 = vadd.f32 %v1810, %v1811
        %v1813 = vsel %vm1506, %v1731, 0.0
        %v1814 = vadd.f32 %v1812, %v1813
        %v1815 = vsel %vm1506, %v1732, 0.0
        %v1816 = vadd.f32 %v1814, %v1815
        %v1817 = vsel %vm1506, %v1733, 0.0
        %v1818 = vadd.f32 %v1816, %v1817
        %v1819 = vsel %vm1506, %v1734, 0.0
        %v1820 = vadd.f32 %v1818, %v1819
        %v1821 = vsel %vm1506, %v1735, 0.0
        %v1822 = vadd.f32 %v1820, %v1821
        %v1823 = vsel %vm1506, %v1736, 0.0
        %v1824 = vadd.f32 %v1822, %v1823
        %v1825 = vsel %vm1506, %v1737, 0.0
        %v1826 = vadd.f32 %v1824, %v1825
        %v1827 = vsel %vm1506, %v1738, 0.0
        %v1828 = vadd.f32 %v1826, %v1827
        %v1829 = vsel %vm1506, %v1739, 0.0
        %v1830 = vadd.f32 %v1828, %v1829
        %v1831 = vsel %vm1506, %v1740, 0.0
        %v1832 = vadd.f32 %v1830, %v1831
        %v1833 = vsel %vm1506, %v1741, 0.0
        %v1834 = vadd.f32 %v1832, %v1833
        %v1835 = vsel %vm1506, %v1742, 0.0
        %v1836 = vadd.f32 %v1834, %v1835
        %v1837 = vsel %vm1506, %v1743, 0.0
        %v1838 = vadd.f32 %v1836, %v1837
        %v1839 = vsel %vm1506, %v1744, 0.0
        %v1840 = vadd.f32 %v1838, %v1839
        %v1841 = vsel %vm1506, %v1745, 0.0
        %v1842 = vadd.f32 %v1840, %v1841
        %v1843 = vsel %vm1506, %v1746, 0.0
        %v1844 = vadd.f32 %v1842, %v1843
        %v1845 = vsel %vm1506, %v1747, 0.0
        %v1846 = vadd.f32 %v1844, %v1845
        %v1847 = vsel %vm1506, %v1748, 0.0
        %v1848 = vadd.f32 %v1846, %v1847
        %v1849 = vsel %vm1506, %v1749, 0.0
        %v1850 = vadd.f32 %v1848, %v1849
        %v1851 = vsel %vm1506, %v1750, 0.0
        %v1852 = vadd.f32 %v1850, %v1851
        %v1853 = vsel %vm1506, %v1751, 0.0
        %v1854 = vadd.f32 %v1852, %v1853
        %v1855 = vsel %vm1506, %v1752, 0.0
        %v1856 = vadd.f32 %v1854, %v1855
        %v1857 = vsel %vm1506, %v1753, 0.0
        %v1858 = vadd.f32 %v1856, %v1857
        %v1859 = vsel %vm1506, %v1754, 0.0
        %v1860 = vadd.f32 %v1858, %v1859
        %v1861 = vsel %vm1506, %v1755, 0.0
        %v1862 = vadd.f32 %v1860, %v1861
        %v1863 = vsel %vm1506, %v1756, 0.0
        %v1864 = vadd.f32 %v1862, %v1863
        %v1865 = vsel %vm1506, %v1757, 0.0
        %v1866 = vadd.f32 %v1864, %v1865
        %v1867 = vsel %vm1506, %v1758, 0.0
        %v1868 = vadd.f32 %v1866, %v1867
        %v1869 = vsel %vm1506, %v1759, 0.0
        %v1870 = vadd.f32 %v1868, %v1869
        %v1871 = vsel %vm1506, %v1760, 0.0
        %v1872 = vadd.f32 %v1870, %v1871
        %v1873 = vsel %vm1506, %v1761, 0.0
        %v1874 = vadd.f32 %v1872, %v1873
        %v1875 = vsel %vm1506, %v1762, 0.0
        %v1876 = vadd.f32 %v1874, %v1875
        %v1877 = vsel %vm1506, %v1763, 0.0
        %v1878 = vadd.f32 %v1876, %v1877
        %v1879 = vsel %vm1506, %v1764, 0.0
        %v1880 = vadd.f32 %v1878, %v1879
        %v1881 = vsel %vm1506, %v1765, 0.0
        %v1882 = vadd.f32 %v1880, %v1881
        %v1883 = vsel %vm1506, %v1766, 0.0
        %v1884 = vadd.f32 %v1882, %v1883
        %v1885 = vsel %vm1506, %v1767, 0.0
        %v1886 = vadd.f32 %v1884, %v1885
        %v1887 = vsel %vm1506, %v1768, 0.0
        %v1888 = vadd.f32 %v1886, %v1887
        %v1889 = vsel %vm1506, %v1769, 0.0
        %v1890 = vadd.f32 %v1888, %v1889
        %v1891 = vsel %vm1506, %v1770, 0.0
        %v1892 = vadd.f32 %v1890, %v1891
        %v1893 = vsel %vm1506, %v1771, 0.0
        %v1894 = vadd.f32 %v1892, %v1893
        %v1895 = vsel %vm1506, %v1772, 0.0
        %v1896 = vadd.f32 %v1894, %v1895
        %v1897 = vsel %vm1506, %v1773, 0.0
        %v1898 = vadd.f32 %v1896, %v1897
        %v1899 = vsel %vm1506, %v1774, 0.0
        %v1900 = vadd.f32 %v1898, %v1899
        %v1901 = vsel %vm1506, %v1775, 0.0
        %v1902 = vadd.f32 %v1900, %v1901
        %v1903 = vrot.slane %v1902, 4
        %v1904 = vadd.f32 %v1902, %v1903
        %v1905 = vrot.slane %v1904, 2
        %v1906 = vadd.f32 %v1904, %v1905
        %v1907 = vrot.slane %v1906, 1
        %v1908 = vadd.f32 %v1906, %v1907
        %p1909 = scmp.eq.s32.totalorder %s24, 0
        // Predicated region
        $region73: #{tpu_custom_call.1} parent=71 // pred_check
          %p1910 = pneg %p1909
        $region74: #{tpu_custom_call.1} parent=71 // pred_check_branch
          %1912 = sbr.rel (%p1910) target = $region76
        $region75: #{tpu_custom_call.1} parent=71 // pred_region
          %vm1913 = vcmask 122880
          %1914 = vst.msk [vmem:[#allocation6] sm:$0x1] %vm1913, %v1647
          %1915 = vst.msk [vmem:[#allocation7] sm:$0x1] %vm1913, %v1908
        $region76: #{tpu_custom_call.1} parent=71 // pred_fallthru
          _
        %p1916 = scmp.gt.s32.totalorder %s24, 0
        // Predicated region
        $region77: #{tpu_custom_call.1} parent=71 // pred_check
          %p1917 = pneg %p1916
        $region78: #{tpu_custom_call.1} parent=71 // pred_check_branch
          %1919 = sbr.rel (%p1917) target = $region80
        $region79: #{tpu_custom_call.1} parent=71 // pred_region
          %s1920 = scvt.s32.f32 %s24
          %s1921 = smul.f32 %s1920, 512.0
          %s1922 = sadd.f32 %s1921, 512.0
          %v1923 = vld [vmem:[#allocation6] sm:$0x1]
          %v1924 = vsub.f32 %v1647, %v1923
          %v1925 = vstv %s1922
          %v1926 = vrcp.pop %v1925
          %v1927 = vmul.f32 %v1925, %v1926
          %v1928 = vsub.f32 1.0, %v1927
          %v1929 = vmul.f32 %v1926, %v1928
          %v1930 = vadd.f32 %v1926, %v1929
          %vm1931 = vweird.f32 %v1925
          %vm1932 = vweird.f32 %v1926
          %vm1933 = vmor %vm1931, %vm1932
          %v1934 = vsel %vm1933, %v1926, %v1930
          %v1935 = vand.u32 2147483647, %v1925
          %vm1936 = vcmp.eq.f32.partialorder %v1935, 8.507059e+37
          %v1937 = vand.u32 %v1925, 2147483648
          %v1938 = vor.u32 1.1754944e-38, %v1937
          %v1939 = vsel %vm1936, %v1938, %v1934
          %s1940 = vtos %v1939
          %s1941 = smul.f32 512.0, %s1940
          %v1942 = vstv %s1941
          %v1943 = vmul.f32 %v1924, %v1942
          %v1944 = vadd.f32 %v1923, %v1943
          %vm1945 = vcmask 122880
          %1946 = vst.msk [vmem:[#allocation6] sm:$0x1] %vm1945, %v1944
          %v1947 = vld [vmem:[#allocation7] sm:$0x1]
          %v1948 = vadd.f32 %v1947, %v1908
          %v1949 = vmul.f32 %v1924, %v1924
          %s1950 = smul.f32 %s1921, 512.0
          %v1951 = vstv %s1922
          %v1952 = vrcp.pop %v1951
          %v1953 = vmul.f32 %v1951, %v1952
          %v1954 = vsub.f32 1.0, %v1953
          %v1955 = vmul.f32 %v1952, %v1954
          %v1956 = vadd.f32 %v1952, %v1955
          %vm1957 = vweird.f32 %v1951
          %vm1958 = vweird.f32 %v1952
          %vm1959 = vmor %vm1957, %vm1958
          %v1960 = vsel %vm1959, %v1952, %v1956
          %v1961 = vand.u32 2147483647, %v1951
          %vm1962 = vcmp.eq.f32.partialorder %v1961, 8.507059e+37
          %v1963 = vand.u32 %v1951, 2147483648
          %v1964 = vor.u32 1.1754944e-38, %v1963
          %v1965 = vsel %vm1962, %v1964, %v1960
          %s1966 = vtos %v1965
          %s1967 = smul.f32 %s1950, %s1966
          %v1968 = vstv %s1967
          %v1969 = vmul.f32 %v1949, %v1968
          %v1970 = vadd.f32 %v1948, %v1969
          %1971 = vst.msk [vmem:[#allocation7] sm:$0x1] %vm1945, %v1970
        $region80: #{tpu_custom_call.1} parent=71 // pred_fallthru
          _
        // Predicated region
        $region81: #{tpu_custom_call.1} parent=71 // pred_check
          %p1972 = pneg %p1909
        $region82: #{tpu_custom_call.1} parent=71 // pred_check_branch
          %1974 = sbr.rel (%p1972) target = $region84
        $region83: #{tpu_custom_call.1} parent=71 // pred_region
          %v1975 = vld [vmem:[%s4] sm:$0x1]
          %v1976 = vld [vmem:[%s5] sm:$0x1]
          %v1977 = vld [vmem:[#allocation7] sm:$0x1]
          %v1978 = vmul.f32 %v1977, 0.001953125
          %v1979 = vadd.f32 %v1978, 1e-05
          %v1980 = vrsqrt.pop %v1979
          %v1981 = vmul.f32 %v1980, %v1979
          %v1982 = vmul.f32 %v1981, %v1980
          %v1983 = vmul.f32 0.5, %v1982
          %v1984 = vsub.f32 1.5, %v1983
          %v1985 = vmul.f32 %v1980, %v1984
          %vm1986 = vweird.f32 %v1979
          %vm1987 = vweird.f32 %v1980
          %vm1988 = vmor %vm1986, %vm1987
          %v1989 = vsel %vm1988, %v1980, %v1985
          %v1990 = vmul.f32 %v1975, %v1989
          %vm1991 = vcmask 122880
          %1992 = vst.msk [vmem:[#allocation8] sm:$0x1] %vm1991, %v1990
          %v1993 = vld [vmem:[#allocation6] sm:$0x1]
          %v1994 = vmul.f32 %v1993, %v1990
          %v1995 = vsub.f32 %v1976, %v1994
          %1996 = vst.msk [vmem:[#allocation9] sm:$0x1] %vm1991, %v1995
        $region84: #{tpu_custom_call.1} parent=71 // pred_fallthru
          _
      $region72: #{tpu_custom_call.1} parent=51 // pred_fallthru
        _
      %p1997 = scmp.eq.s32.totalorder %s23, 2
      // Predicated region
      $region85: #{tpu_custom_call.1} parent=51 // pred_check
        %p1998 = pneg %p1997
      $region86: #{tpu_custom_call.1} parent=51 // pred_check_branch
        %2000 = sbr.rel (%p1998) target = $region88
      $region87: #{tpu_custom_call.1} parent=51 // pred_region
        %v2001 = vld [vmem:[#allocation4] sm:$0x1]
        %v2003 = vperm.slane %v2001, 0
        %v2005 = vmul.f32 %v336, %v2003
        %v2006 = vmul.f32 %v337, %v2003
        %v2007 = vmul.f32 %v338, %v2003
        %v2008 = vmul.f32 %v339, %v2003
        %v2009 = vmul.f32 %v340, %v2003
        %v2010 = vmul.f32 %v341, %v2003
        %v2011 = vmul.f32 %v342, %v2003
        %v2012 = vmul.f32 %v343, %v2003
        %v2013 = vmul.f32 %v344, %v2003
        %v2014 = vmul.f32 %v345, %v2003
        %v2015 = vmul.f32 %v346, %v2003
        %v2016 = vmul.f32 %v347, %v2003
        %v2017 = vmul.f32 %v348, %v2003
        %v2018 = vmul.f32 %v349, %v2003
        %v2019 = vmul.f32 %v350, %v2003
        %v2020 = vmul.f32 %v351, %v2003
        %v2021 = vmul.f32 %v352, %v2003
        %v2022 = vmul.f32 %v353, %v2003
        %v2023 = vmul.f32 %v354, %v2003
        %v2024 = vmul.f32 %v355, %v2003
        %v2025 = vmul.f32 %v356, %v2003
        %v2026 = vmul.f32 %v357, %v2003
        %v2027 = vmul.f32 %v358, %v2003
        %v2028 = vmul.f32 %v359, %v2003
        %v2029 = vmul.f32 %v360, %v2003
        %v2030 = vmul.f32 %v361, %v2003
        %v2031 = vmul.f32 %v362, %v2003
        %v2032 = vmul.f32 %v363, %v2003
        %v2033 = vmul.f32 %v364, %v2003
        %v2034 = vmul.f32 %v365, %v2003
        %v2035 = vmul.f32 %v366, %v2003
        %v2036 = vmul.f32 %v367, %v2003
        %v2037 = vmul.f32 %v368, %v2003
        %v2038 = vmul.f32 %v369, %v2003
        %v2039 = vmul.f32 %v370, %v2003
        %v2040 = vmul.f32 %v371, %v2003
        %v2041 = vmul.f32 %v372, %v2003
        %v2042 = vmul.f32 %v373, %v2003
        %v2043 = vmul.f32 %v374, %v2003
        %v2044 = vmul.f32 %v375, %v2003
        %v2045 = vmul.f32 %v376, %v2003
        %v2046 = vmul.f32 %v377, %v2003
        %v2047 = vmul.f32 %v378, %v2003
        %v2048 = vmul.f32 %v379, %v2003
        %v2049 = vmul.f32 %v380, %v2003
        %v2050 = vmul.f32 %v381, %v2003
        %v2051 = vmul.f32 %v382, %v2003
        %v2052 = vmul.f32 %v383, %v2003
        %v2053 = vmul.f32 %v384, %v2003
        %v2054 = vmul.f32 %v385, %v2003
        %v2055 = vmul.f32 %v386, %v2003
        %v2056 = vmul.f32 %v387, %v2003
        %v2057 = vmul.f32 %v388, %v2003
        %v2058 = vmul.f32 %v389, %v2003
        %v2059 = vmul.f32 %v390, %v2003
        %v2060 = vmul.f32 %v391, %v2003
        %v2061 = vmul.f32 %v392, %v2003
        %v2062 = vmul.f32 %v393, %v2003
        %v2063 = vmul.f32 %v394, %v2003
        %v2064 = vmul.f32 %v395, %v2003
        %v2065 = vmul.f32 %v396, %v2003
        %v2066 = vmul.f32 %v397, %v2003
        %v2067 = vmul.f32 %v398, %v2003
        %v2068 = vmul.f32 %v399, %v2003
        %v2069 = vld [vmem:[#allocation5] sm:$0x1]
        %v2071 = vperm.slane %v2069, 0
        %v2073 = vadd.f32 %v2005, %v2071
        %v2074 = vadd.f32 %v2006, %v2071
        %v2075 = vadd.f32 %v2007, %v2071
        %v2076 = vadd.f32 %v2008, %v2071
        %v2077 = vadd.f32 %v2009, %v2071
        %v2078 = vadd.f32 %v2010, %v2071
        %v2079 = vadd.f32 %v2011, %v2071
        %v2080 = vadd.f32 %v2012, %v2071
        %v2081 = vadd.f32 %v2013, %v2071
        %v2082 = vadd.f32 %v2014, %v2071
        %v2083 = vadd.f32 %v2015, %v2071
        %v2084 = vadd.f32 %v2016, %v2071
        %v2085 = vadd.f32 %v2017, %v2071
        %v2086 = vadd.f32 %v2018, %v2071
        %v2087 = vadd.f32 %v2019, %v2071
        %v2088 = vadd.f32 %v2020, %v2071
        %v2089 = vadd.f32 %v2021, %v2071
        %v2090 = vadd.f32 %v2022, %v2071
        %v2091 = vadd.f32 %v2023, %v2071
        %v2092 = vadd.f32 %v2024, %v2071
        %v2093 = vadd.f32 %v2025, %v2071
        %v2094 = vadd.f32 %v2026, %v2071
        %v2095 = vadd.f32 %v2027, %v2071
        %v2096 = vadd.f32 %v2028, %v2071
        %v2097 = vadd.f32 %v2029, %v2071
        %v2098 = vadd.f32 %v2030, %v2071
        %v2099 = vadd.f32 %v2031, %v2071
        %v2100 = vadd.f32 %v2032, %v2071
        %v2101 = vadd.f32 %v2033, %v2071
        %v2102 = vadd.f32 %v2034, %v2071
        %v2103 = vadd.f32 %v2035, %v2071
        %v2104 = vadd.f32 %v2036, %v2071
        %v2105 = vadd.f32 %v2037, %v2071
        %v2106 = vadd.f32 %v2038, %v2071
        %v2107 = vadd.f32 %v2039, %v2071
        %v2108 = vadd.f32 %v2040, %v2071
        %v2109 = vadd.f32 %v2041, %v2071
        %v2110 = vadd.f32 %v2042, %v2071
        %v2111 = vadd.f32 %v2043, %v2071
        %v2112 = vadd.f32 %v2044, %v2071
        %v2113 = vadd.f32 %v2045, %v2071
        %v2114 = vadd.f32 %v2046, %v2071
        %v2115 = vadd.f32 %v2047, %v2071
        %v2116 = vadd.f32 %v2048, %v2071
        %v2117 = vadd.f32 %v2049, %v2071
        %v2118 = vadd.f32 %v2050, %v2071
        %v2119 = vadd.f32 %v2051, %v2071
        %v2120 = vadd.f32 %v2052, %v2071
        %v2121 = vadd.f32 %v2053, %v2071
        %v2122 = vadd.f32 %v2054, %v2071
        %v2123 = vadd.f32 %v2055, %v2071
        %v2124 = vadd.f32 %v2056, %v2071
        %v2125 = vadd.f32 %v2057, %v2071
        %v2126 = vadd.f32 %v2058, %v2071
        %v2127 = vadd.f32 %v2059, %v2071
        %v2128 = vadd.f32 %v2060, %v2071
        %v2129 = vadd.f32 %v2061, %v2071
        %v2130 = vadd.f32 %v2062, %v2071
        %v2131 = vadd.f32 %v2063, %v2071
        %v2132 = vadd.f32 %v2064, %v2071
        %v2133 = vadd.f32 %v2065, %v2071
        %v2134 = vadd.f32 %v2066, %v2071
        %v2135 = vadd.f32 %v2067, %v2071
        %v2136 = vadd.f32 %v2068, %v2071
        %v2137 = vmax.f32 %v2073, 0.0
        %v2138 = vmax.f32 %v2074, 0.0
        %v2139 = vmax.f32 %v2075, 0.0
        %v2140 = vmax.f32 %v2076, 0.0
        %v2141 = vmax.f32 %v2077, 0.0
        %v2142 = vmax.f32 %v2078, 0.0
        %v2143 = vmax.f32 %v2079, 0.0
        %v2144 = vmax.f32 %v2080, 0.0
        %v2145 = vmax.f32 %v2081, 0.0
        %v2146 = vmax.f32 %v2082, 0.0
        %v2147 = vmax.f32 %v2083, 0.0
        %v2148 = vmax.f32 %v2084, 0.0
        %v2149 = vmax.f32 %v2085, 0.0
        %v2150 = vmax.f32 %v2086, 0.0
        %v2151 = vmax.f32 %v2087, 0.0
        %v2152 = vmax.f32 %v2088, 0.0
        %v2153 = vmax.f32 %v2089, 0.0
        %v2154 = vmax.f32 %v2090, 0.0
        %v2155 = vmax.f32 %v2091, 0.0
        %v2156 = vmax.f32 %v2092, 0.0
        %v2157 = vmax.f32 %v2093, 0.0
        %v2158 = vmax.f32 %v2094, 0.0
        %v2159 = vmax.f32 %v2095, 0.0
        %v2160 = vmax.f32 %v2096, 0.0
        %v2161 = vmax.f32 %v2097, 0.0
        %v2162 = vmax.f32 %v2098, 0.0
        %v2163 = vmax.f32 %v2099, 0.0
        %v2164 = vmax.f32 %v2100, 0.0
        %v2165 = vmax.f32 %v2101, 0.0
        %v2166 = vmax.f32 %v2102, 0.0
        %v2167 = vmax.f32 %v2103, 0.0
        %v2168 = vmax.f32 %v2104, 0.0
        %v2169 = vmax.f32 %v2105, 0.0
        %v2170 = vmax.f32 %v2106, 0.0
        %v2171 = vmax.f32 %v2107, 0.0
        %v2172 = vmax.f32 %v2108, 0.0
        %v2173 = vmax.f32 %v2109, 0.0
        %v2174 = vmax.f32 %v2110, 0.0
        %v2175 = vmax.f32 %v2111, 0.0
        %v2176 = vmax.f32 %v2112, 0.0
        %v2177 = vmax.f32 %v2113, 0.0
        %v2178 = vmax.f32 %v2114, 0.0
        %v2179 = vmax.f32 %v2115, 0.0
        %v2180 = vmax.f32 %v2116, 0.0
        %v2181 = vmax.f32 %v2117, 0.0
        %v2182 = vmax.f32 %v2118, 0.0
        %v2183 = vmax.f32 %v2119, 0.0
        %v2184 = vmax.f32 %v2120, 0.0
        %v2185 = vmax.f32 %v2121, 0.0
        %v2186 = vmax.f32 %v2122, 0.0
        %v2187 = vmax.f32 %v2123, 0.0
        %v2188 = vmax.f32 %v2124, 0.0
        %v2189 = vmax.f32 %v2125, 0.0
        %v2190 = vmax.f32 %v2126, 0.0
        %v2191 = vmax.f32 %v2127, 0.0
        %v2192 = vmax.f32 %v2128, 0.0
        %v2193 = vmax.f32 %v2129, 0.0
        %v2194 = vmax.f32 %v2130, 0.0
        %v2195 = vmax.f32 %v2131, 0.0
        %v2196 = vmax.f32 %v2132, 0.0
        %v2197 = vmax.f32 %v2133, 0.0
        %v2198 = vmax.f32 %v2134, 0.0
        %v2199 = vmax.f32 %v2135, 0.0
        %v2200 = vmax.f32 %v2136, 0.0
        %v2201 = vld [vmem:[%s3] sm:$0xf]
        %vm2202 = vcmask 31744
        %v2204 = vsel %vm2202, %v2137, 0
        %v2207 = vsel %vm2202, %v2138, 0
        %v2210 = vsel %vm2202, %v2139, 0
        %v2213 = vsel %vm2202, %v2140, 0
        %v2216 = vsel %vm2202, %v2141, 0
        %v2219 = vsel %vm2202, %v2142, 0
        %v2222 = vsel %vm2202, %v2143, 0
        %v2225 = vsel %vm2202, %v2144, 0
        %v2228 = vsel %vm2202, %v2145, 0
        %v2231 = vsel %vm2202, %v2146, 0
        %v2234 = vsel %vm2202, %v2147, 0
        %v2237 = vsel %vm2202, %v2148, 0
        %v2240 = vsel %vm2202, %v2149, 0
        %v2243 = vsel %vm2202, %v2150, 0
        %v2246 = vsel %vm2202, %v2151, 0
        %v2249 = vsel %vm2202, %v2152, 0
        %v2252 = vsel %vm2202, %v2153, 0
        %v2255 = vsel %vm2202, %v2154, 0
        %v2258 = vsel %vm2202, %v2155, 0
        %v2261 = vsel %vm2202, %v2156, 0
        %v2264 = vsel %vm2202, %v2157, 0
        %v2267 = vsel %vm2202, %v2158, 0
        %v2270 = vsel %vm2202, %v2159, 0
        %v2273 = vsel %vm2202, %v2160, 0
        %v2276 = vsel %vm2202, %v2161, 0
        %v2279 = vsel %vm2202, %v2162, 0
        %v2282 = vsel %vm2202, %v2163, 0
        %v2285 = vsel %vm2202, %v2164, 0
        %v2288 = vsel %vm2202, %v2165, 0
        %v2291 = vsel %vm2202, %v2166, 0
        %v2294 = vsel %vm2202, %v2167, 0
        %v2297 = vsel %vm2202, %v2168, 0
        %v2300 = vsel %vm2202, %v2169, 0
        %v2303 = vsel %vm2202, %v2170, 0
        %v2306 = vsel %vm2202, %v2171, 0
        %v2309 = vsel %vm2202, %v2172, 0
        %v2312 = vsel %vm2202, %v2173, 0
        %v2315 = vsel %vm2202, %v2174, 0
        %v2318 = vsel %vm2202, %v2175, 0
        %v2321 = vsel %vm2202, %v2176, 0
        %v2324 = vsel %vm2202, %v2177, 0
        %v2327 = vsel %vm2202, %v2178, 0
        %v2330 = vsel %vm2202, %v2179, 0
        %v2333 = vsel %vm2202, %v2180, 0
        %v2336 = vsel %vm2202, %v2181, 0
        %v2339 = vsel %vm2202, %v2182, 0
        %v2342 = vsel %vm2202, %v2183, 0
        %v2345 = vsel %vm2202, %v2184, 0
        %v2348 = vsel %vm2202, %v2185, 0
        %v2351 = vsel %vm2202, %v2186, 0
        %v2354 = vsel %vm2202, %v2187, 0
        %v2357 = vsel %vm2202, %v2188, 0
        %v2360 = vsel %vm2202, %v2189, 0
        %v2363 = vsel %vm2202, %v2190, 0
        %v2366 = vsel %vm2202, %v2191, 0
        %v2369 = vsel %vm2202, %v2192, 0
        %v2372 = vsel %vm2202, %v2193, 0
        %v2375 = vsel %vm2202, %v2194, 0
        %v2378 = vsel %vm2202, %v2195, 0
        %v2381 = vsel %vm2202, %v2196, 0
        %v2384 = vsel %vm2202, %v2197, 0
        %v2387 = vsel %vm2202, %v2198, 0
        %v2390 = vsel %vm2202, %v2199, 0
        %v2393 = vsel %vm2202, %v2200, 0
        %vm2395 = vcmask 1043456
        %v2397 = vsel %vm2395, %v2201, 0
        %2399 = vmatpush.msra.mxu0 0.0
        %2400 = vmatpush.msra.mxu0 0.0
        %2401 = vmatpush.msra.mxu0 0.0
        %2402 = vmatpush.msra.mxu0 0.0
        %2403 = vmatpush.msra.mxu0 0.0
        %2404 = vmatpush.msra.mxu0 0.0
        %2405 = vmatpush.msra.mxu0 0.0
        %2406 = vmatpush.msra.mxu0 0.0
        %2407 = vmatpush.msra.mxu0 0.0
        %2408 = vmatpush.msra.mxu0 0.0
        %2409 = vmatpush.msra.mxu0 0.0
        %2410 = vmatpush.msra.mxu0 0.0
        %2411 = vmatpush.msra.mxu0 0.0
        %2412 = vmatpush.msra.mxu0 0.0
        %2413 = vmatpush.msra.mxu0 0.0
        %2414 = vmatpush.msra.mxu0 %v2397
        %2415 = vmatmul.f32.gmra.mxu0 %v2204
        %v2416 = vpop.f32.mrf.mxu0
        %v2417 = vadd.f32 0.0, %v2416
        %2418 = vmatmul.f32.gmra.mxu0 %v2207
        %v2419 = vpop.f32.mrf.mxu0
        %v2420 = vadd.f32 0.0, %v2419
        %2421 = vmatmul.f32.gmra.mxu0 %v2210
        %v2422 = vpop.f32.mrf.mxu0
        %v2423 = vadd.f32 0.0, %v2422
        %2424 = vmatmul.f32.gmra.mxu0 %v2213
        %v2425 = vpop.f32.mrf.mxu0
        %v2426 = vadd.f32 0.0, %v2425
        %2427 = vmatmul.f32.gmra.mxu0 %v2216
        %v2428 = vpop.f32.mrf.mxu0
        %v2429 = vadd.f32 0.0, %v2428
        %2430 = vmatmul.f32.gmra.mxu0 %v2219
        %v2431 = vpop.f32.mrf.mxu0
        %v2432 = vadd.f32 0.0, %v2431
        %2433 = vmatmul.f32.gmra.mxu0 %v2222
        %v2434 = vpop.f32.mrf.mxu0
        %v2435 = vadd.f32 0.0, %v2434
        %2436 = vmatmul.f32.gmra.mxu0 %v2225
        %v2437 = vpop.f32.mrf.mxu0
        %v2438 = vadd.f32 0.0, %v2437
        %2439 = vmatmul.f32.gmra.mxu0 %v2228
        %v2440 = vpop.f32.mrf.mxu0
        %v2441 = vadd.f32 0.0, %v2440
        %2442 = vmatmul.f32.gmra.mxu0 %v2231
        %v2443 = vpop.f32.mrf.mxu0
        %v2444 = vadd.f32 0.0, %v2443
        %2445 = vmatmul.f32.gmra.mxu0 %v2234
        %v2446 = vpop.f32.mrf.mxu0
        %v2447 = vadd.f32 0.0, %v2446
        %2448 = vmatmul.f32.gmra.mxu0 %v2237
        %v2449 = vpop.f32.mrf.mxu0
        %v2450 = vadd.f32 0.0, %v2449
        %2451 = vmatmul.f32.gmra.mxu0 %v2240
        %v2452 = vpop.f32.mrf.mxu0
        %v2453 = vadd.f32 0.0, %v2452
        %2454 = vmatmul.f32.gmra.mxu0 %v2243
        %v2455 = vpop.f32.mrf.mxu0
        %v2456 = vadd.f32 0.0, %v2455
        %2457 = vmatmul.f32.gmra.mxu0 %v2246
        %v2458 = vpop.f32.mrf.mxu0
        %v2459 = vadd.f32 0.0, %v2458
        %2460 = vmatmul.f32.gmra.mxu0 %v2249
        %v2461 = vpop.f32.mrf.mxu0
        %v2462 = vadd.f32 0.0, %v2461
        %2463 = vmatmul.f32.gmra.mxu0 %v2252
        %v2464 = vpop.f32.mrf.mxu0
        %v2465 = vadd.f32 0.0, %v2464
        %2466 = vmatmul.f32.gmra.mxu0 %v2255
        %v2467 = vpop.f32.mrf.mxu0
        %v2468 = vadd.f32 0.0, %v2467
        %2469 = vmatmul.f32.gmra.mxu0 %v2258
        %v2470 = vpop.f32.mrf.mxu0
        %v2471 = vadd.f32 0.0, %v2470
        %2472 = vmatmul.f32.gmra.mxu0 %v2261
        %v2473 = vpop.f32.mrf.mxu0
        %v2474 = vadd.f32 0.0, %v2473
        %2475 = vmatmul.f32.gmra.mxu0 %v2264
        %v2476 = vpop.f32.mrf.mxu0
        %v2477 = vadd.f32 0.0, %v2476
        %2478 = vmatmul.f32.gmra.mxu0 %v2267
        %v2479 = vpop.f32.mrf.mxu0
        %v2480 = vadd.f32 0.0, %v2479
        %2481 = vmatmul.f32.gmra.mxu0 %v2270
        %v2482 = vpop.f32.mrf.mxu0
        %v2483 = vadd.f32 0.0, %v2482
        %2484 = vmatmul.f32.gmra.mxu0 %v2273
        %v2485 = vpop.f32.mrf.mxu0
        %v2486 = vadd.f32 0.0, %v2485
        %2487 = vmatmul.f32.gmra.mxu0 %v2276
        %v2488 = vpop.f32.mrf.mxu0
        %v2489 = vadd.f32 0.0, %v2488
        %2490 = vmatmul.f32.gmra.mxu0 %v2279
        %v2491 = vpop.f32.mrf.mxu0
        %v2492 = vadd.f32 0.0, %v2491
        %2493 = vmatmul.f32.gmra.mxu0 %v2282
        %v2494 = vpop.f32.mrf.mxu0
        %v2495 = vadd.f32 0.0, %v2494
        %2496 = vmatmul.f32.gmra.mxu0 %v2285
        %v2497 = vpop.f32.mrf.mxu0
        %v2498 = vadd.f32 0.0, %v2497
        %2499 = vmatmul.f32.gmra.mxu0 %v2288
        %v2500 = vpop.f32.mrf.mxu0
        %v2501 = vadd.f32 0.0, %v2500
        %2502 = vmatmul.f32.gmra.mxu0 %v2291
        %v2503 = vpop.f32.mrf.mxu0
        %v2504 = vadd.f32 0.0, %v2503
        %2505 = vmatmul.f32.gmra.mxu0 %v2294
        %v2506 = vpop.f32.mrf.mxu0
        %v2507 = vadd.f32 0.0, %v2506
        %2508 = vmatmul.f32.gmra.mxu0 %v2297
        %v2509 = vpop.f32.mrf.mxu0
        %v2510 = vadd.f32 0.0, %v2509
        %2511 = vmatmul.f32.gmra.mxu0 %v2300
        %v2512 = vpop.f32.mrf.mxu0
        %v2513 = vadd.f32 0.0, %v2512
        %2514 = vmatmul.f32.gmra.mxu0 %v2303
        %v2515 = vpop.f32.mrf.mxu0
        %v2516 = vadd.f32 0.0, %v2515
        %2517 = vmatmul.f32.gmra.mxu0 %v2306
        %v2518 = vpop.f32.mrf.mxu0
        %v2519 = vadd.f32 0.0, %v2518
        %2520 = vmatmul.f32.gmra.mxu0 %v2309
        %v2521 = vpop.f32.mrf.mxu0
        %v2522 = vadd.f32 0.0, %v2521
        %2523 = vmatmul.f32.gmra.mxu0 %v2312
        %v2524 = vpop.f32.mrf.mxu0
        %v2525 = vadd.f32 0.0, %v2524
        %2526 = vmatmul.f32.gmra.mxu0 %v2315
        %v2527 = vpop.f32.mrf.mxu0
        %v2528 = vadd.f32 0.0, %v2527
        %2529 = vmatmul.f32.gmra.mxu0 %v2318
        %v2530 = vpop.f32.mrf.mxu0
        %v2531 = vadd.f32 0.0, %v2530
        %2532 = vmatmul.f32.gmra.mxu0 %v2321
        %v2533 = vpop.f32.mrf.mxu0
        %v2534 = vadd.f32 0.0, %v2533
        %2535 = vmatmul.f32.gmra.mxu0 %v2324
        %v2536 = vpop.f32.mrf.mxu0
        %v2537 = vadd.f32 0.0, %v2536
        %2538 = vmatmul.f32.gmra.mxu0 %v2327
        %v2539 = vpop.f32.mrf.mxu0
        %v2540 = vadd.f32 0.0, %v2539
        %2541 = vmatmul.f32.gmra.mxu0 %v2330
        %v2542 = vpop.f32.mrf.mxu0
        %v2543 = vadd.f32 0.0, %v2542
        %2544 = vmatmul.f32.gmra.mxu0 %v2333
        %v2545 = vpop.f32.mrf.mxu0
        %v2546 = vadd.f32 0.0, %v2545
        %2547 = vmatmul.f32.gmra.mxu0 %v2336
        %v2548 = vpop.f32.mrf.mxu0
        %v2549 = vadd.f32 0.0, %v2548
        %2550 = vmatmul.f32.gmra.mxu0 %v2339
        %v2551 = vpop.f32.mrf.mxu0
        %v2552 = vadd.f32 0.0, %v2551
        %2553 = vmatmul.f32.gmra.mxu0 %v2342
        %v2554 = vpop.f32.mrf.mxu0
        %v2555 = vadd.f32 0.0, %v2554
        %2556 = vmatmul.f32.gmra.mxu0 %v2345
        %v2557 = vpop.f32.mrf.mxu0
        %v2558 = vadd.f32 0.0, %v2557
        %2559 = vmatmul.f32.gmra.mxu0 %v2348
        %v2560 = vpop.f32.mrf.mxu0
        %v2561 = vadd.f32 0.0, %v2560
        %2562 = vmatmul.f32.gmra.mxu0 %v2351
        %v2563 = vpop.f32.mrf.mxu0
        %v2564 = vadd.f32 0.0, %v2563
        %2565 = vmatmul.f32.gmra.mxu0 %v2354
        %v2566 = vpop.f32.mrf.mxu0
        %v2567 = vadd.f32 0.0, %v2566
        %2568 = vmatmul.f32.gmra.mxu0 %v2357
        %v2569 = vpop.f32.mrf.mxu0
        %v2570 = vadd.f32 0.0, %v2569
        %2571 = vmatmul.f32.gmra.mxu0 %v2360
        %v2572 = vpop.f32.mrf.mxu0
        %v2573 = vadd.f32 0.0, %v2572
        %2574 = vmatmul.f32.gmra.mxu0 %v2363
        %v2575 = vpop.f32.mrf.mxu0
        %v2576 = vadd.f32 0.0, %v2575
        %2577 = vmatmul.f32.gmra.mxu0 %v2366
        %v2578 = vpop.f32.mrf.mxu0
        %v2579 = vadd.f32 0.0, %v2578
        %2580 = vmatmul.f32.gmra.mxu0 %v2369
        %v2581 = vpop.f32.mrf.mxu0
        %v2582 = vadd.f32 0.0, %v2581
        %2583 = vmatmul.f32.gmra.mxu0 %v2372
        %v2584 = vpop.f32.mrf.mxu0
        %v2585 = vadd.f32 0.0, %v2584
        %2586 = vmatmul.f32.gmra.mxu0 %v2375
        %v2587 = vpop.f32.mrf.mxu0
        %v2588 = vadd.f32 0.0, %v2587
        %2589 = vmatmul.f32.gmra.mxu0 %v2378
        %v2590 = vpop.f32.mrf.mxu0
        %v2591 = vadd.f32 0.0, %v2590
        %2592 = vmatmul.f32.gmra.mxu0 %v2381
        %v2593 = vpop.f32.mrf.mxu0
        %v2594 = vadd.f32 0.0, %v2593
        %2595 = vmatmul.f32.gmra.mxu0 %v2384
        %v2596 = vpop.f32.mrf.mxu0
        %v2597 = vadd.f32 0.0, %v2596
        %2598 = vmatmul.f32.gmra.mxu0 %v2387
        %v2599 = vpop.f32.mrf.mxu0
        %v2600 = vadd.f32 0.0, %v2599
        %2601 = vmatmul.f32.gmra.mxu0 %v2390
        %v2602 = vpop.f32.mrf.mxu0
        %v2603 = vadd.f32 0.0, %v2602
        %2604 = vmatmul.f32.gmra.mxu0 %v2393
        %v2605 = vpop.f32.mrf.mxu0
        %v2606 = vadd.f32 0.0, %v2605
        %2607 = vdwg.mxu0
        %v2608 = vld [vmem:[#allocation8] sm:$0x1]
        %v2610 = vperm.slane %v2608, 0
        %v2612 = vmul.f32 %v2417, %v2610
        %v2613 = vmul.f32 %v2420, %v2610
        %v2614 = vmul.f32 %v2423, %v2610
        %v2615 = vmul.f32 %v2426, %v2610
        %v2616 = vmul.f32 %v2429, %v2610
        %v2617 = vmul.f32 %v2432, %v2610
        %v2618 = vmul.f32 %v2435, %v2610
        %v2619 = vmul.f32 %v2438, %v2610
        %v2620 = vmul.f32 %v2441, %v2610
        %v2621 = vmul.f32 %v2444, %v2610
        %v2622 = vmul.f32 %v2447, %v2610
        %v2623 = vmul.f32 %v2450, %v2610
        %v2624 = vmul.f32 %v2453, %v2610
        %v2625 = vmul.f32 %v2456, %v2610
        %v2626 = vmul.f32 %v2459, %v2610
        %v2627 = vmul.f32 %v2462, %v2610
        %v2628 = vmul.f32 %v2465, %v2610
        %v2629 = vmul.f32 %v2468, %v2610
        %v2630 = vmul.f32 %v2471, %v2610
        %v2631 = vmul.f32 %v2474, %v2610
        %v2632 = vmul.f32 %v2477, %v2610
        %v2633 = vmul.f32 %v2480, %v2610
        %v2634 = vmul.f32 %v2483, %v2610
        %v2635 = vmul.f32 %v2486, %v2610
        %v2636 = vmul.f32 %v2489, %v2610
        %v2637 = vmul.f32 %v2492, %v2610
        %v2638 = vmul.f32 %v2495, %v2610
        %v2639 = vmul.f32 %v2498, %v2610
        %v2640 = vmul.f32 %v2501, %v2610
        %v2641 = vmul.f32 %v2504, %v2610
        %v2642 = vmul.f32 %v2507, %v2610
        %v2643 = vmul.f32 %v2510, %v2610
        %v2644 = vmul.f32 %v2513, %v2610
        %v2645 = vmul.f32 %v2516, %v2610
        %v2646 = vmul.f32 %v2519, %v2610
        %v2647 = vmul.f32 %v2522, %v2610
        %v2648 = vmul.f32 %v2525, %v2610
        %v2649 = vmul.f32 %v2528, %v2610
        %v2650 = vmul.f32 %v2531, %v2610
        %v2651 = vmul.f32 %v2534, %v2610
        %v2652 = vmul.f32 %v2537, %v2610
        %v2653 = vmul.f32 %v2540, %v2610
        %v2654 = vmul.f32 %v2543, %v2610
        %v2655 = vmul.f32 %v2546, %v2610
        %v2656 = vmul.f32 %v2549, %v2610
        %v2657 = vmul.f32 %v2552, %v2610
        %v2658 = vmul.f32 %v2555, %v2610
        %v2659 = vmul.f32 %v2558, %v2610
        %v2660 = vmul.f32 %v2561, %v2610
        %v2661 = vmul.f32 %v2564, %v2610
        %v2662 = vmul.f32 %v2567, %v2610
        %v2663 = vmul.f32 %v2570, %v2610
        %v2664 = vmul.f32 %v2573, %v2610
        %v2665 = vmul.f32 %v2576, %v2610
        %v2666 = vmul.f32 %v2579, %v2610
        %v2667 = vmul.f32 %v2582, %v2610
        %v2668 = vmul.f32 %v2585, %v2610
        %v2669 = vmul.f32 %v2588, %v2610
        %v2670 = vmul.f32 %v2591, %v2610
        %v2671 = vmul.f32 %v2594, %v2610
        %v2672 = vmul.f32 %v2597, %v2610
        %v2673 = vmul.f32 %v2600, %v2610
        %v2674 = vmul.f32 %v2603, %v2610
        %v2675 = vmul.f32 %v2606, %v2610
        %v2676 = vld [vmem:[#allocation9] sm:$0x1]
        %v2678 = vperm.slane %v2676, 0
        %v2680 = vadd.f32 %v2612, %v2678
        %v2681 = vadd.f32 %v2613, %v2678
        %v2682 = vadd.f32 %v2614, %v2678
        %v2683 = vadd.f32 %v2615, %v2678
        %v2684 = vadd.f32 %v2616, %v2678
        %v2685 = vadd.f32 %v2617, %v2678
        %v2686 = vadd.f32 %v2618, %v2678
        %v2687 = vadd.f32 %v2619, %v2678
        %v2688 = vadd.f32 %v2620, %v2678
        %v2689 = vadd.f32 %v2621, %v2678
        %v2690 = vadd.f32 %v2622, %v2678
        %v2691 = vadd.f32 %v2623, %v2678
        %v2692 = vadd.f32 %v2624, %v2678
        %v2693 = vadd.f32 %v2625, %v2678
        %v2694 = vadd.f32 %v2626, %v2678
        %v2695 = vadd.f32 %v2627, %v2678
        %v2696 = vadd.f32 %v2628, %v2678
        %v2697 = vadd.f32 %v2629, %v2678
        %v2698 = vadd.f32 %v2630, %v2678
        %v2699 = vadd.f32 %v2631, %v2678
        %v2700 = vadd.f32 %v2632, %v2678
        %v2701 = vadd.f32 %v2633, %v2678
        %v2702 = vadd.f32 %v2634, %v2678
        %v2703 = vadd.f32 %v2635, %v2678
        %v2704 = vadd.f32 %v2636, %v2678
        %v2705 = vadd.f32 %v2637, %v2678
        %v2706 = vadd.f32 %v2638, %v2678
        %v2707 = vadd.f32 %v2639, %v2678
        %v2708 = vadd.f32 %v2640, %v2678
        %v2709 = vadd.f32 %v2641, %v2678
        %v2710 = vadd.f32 %v2642, %v2678
        %v2711 = vadd.f32 %v2643, %v2678
        %v2712 = vadd.f32 %v2644, %v2678
        %v2713 = vadd.f32 %v2645, %v2678
        %v2714 = vadd.f32 %v2646, %v2678
        %v2715 = vadd.f32 %v2647, %v2678
        %v2716 = vadd.f32 %v2648, %v2678
        %v2717 = vadd.f32 %v2649, %v2678
        %v2718 = vadd.f32 %v2650, %v2678
        %v2719 = vadd.f32 %v2651, %v2678
        %v2720 = vadd.f32 %v2652, %v2678
        %v2721 = vadd.f32 %v2653, %v2678
        %v2722 = vadd.f32 %v2654, %v2678
        %v2723 = vadd.f32 %v2655, %v2678
        %v2724 = vadd.f32 %v2656, %v2678
        %v2725 = vadd.f32 %v2657, %v2678
        %v2726 = vadd.f32 %v2658, %v2678
        %v2727 = vadd.f32 %v2659, %v2678
        %v2728 = vadd.f32 %v2660, %v2678
        %v2729 = vadd.f32 %v2661, %v2678
        %v2730 = vadd.f32 %v2662, %v2678
        %v2731 = vadd.f32 %v2663, %v2678
        %v2732 = vadd.f32 %v2664, %v2678
        %v2733 = vadd.f32 %v2665, %v2678
        %v2734 = vadd.f32 %v2666, %v2678
        %v2735 = vadd.f32 %v2667, %v2678
        %v2736 = vadd.f32 %v2668, %v2678
        %v2737 = vadd.f32 %v2669, %v2678
        %v2738 = vadd.f32 %v2670, %v2678
        %v2739 = vadd.f32 %v2671, %v2678
        %v2740 = vadd.f32 %v2672, %v2678
        %v2741 = vadd.f32 %v2673, %v2678
        %v2742 = vadd.f32 %v2674, %v2678
        %v2743 = vadd.f32 %v2675, %v2678
        %v2744 = vmax.f32 %v2680, 0.0
        %v2745 = vmax.f32 %v2681, 0.0
        %v2746 = vmax.f32 %v2682, 0.0
        %v2747 = vmax.f32 %v2683, 0.0
        %v2748 = vmax.f32 %v2684, 0.0
        %v2749 = vmax.f32 %v2685, 0.0
        %v2750 = vmax.f32 %v2686, 0.0
        %v2751 = vmax.f32 %v2687, 0.0
        %v2752 = vmax.f32 %v2688, 0.0
        %v2753 = vmax.f32 %v2689, 0.0
        %v2754 = vmax.f32 %v2690, 0.0
        %v2755 = vmax.f32 %v2691, 0.0
        %v2756 = vmax.f32 %v2692, 0.0
        %v2757 = vmax.f32 %v2693, 0.0
        %v2758 = vmax.f32 %v2694, 0.0
        %v2759 = vmax.f32 %v2695, 0.0
        %v2760 = vmax.f32 %v2696, 0.0
        %v2761 = vmax.f32 %v2697, 0.0
        %v2762 = vmax.f32 %v2698, 0.0
        %v2763 = vmax.f32 %v2699, 0.0
        %v2764 = vmax.f32 %v2700, 0.0
        %v2765 = vmax.f32 %v2701, 0.0
        %v2766 = vmax.f32 %v2702, 0.0
        %v2767 = vmax.f32 %v2703, 0.0
        %v2768 = vmax.f32 %v2704, 0.0
        %v2769 = vmax.f32 %v2705, 0.0
        %v2770 = vmax.f32 %v2706, 0.0
        %v2771 = vmax.f32 %v2707, 0.0
        %v2772 = vmax.f32 %v2708, 0.0
        %v2773 = vmax.f32 %v2709, 0.0
        %v2774 = vmax.f32 %v2710, 0.0
        %v2775 = vmax.f32 %v2711, 0.0
        %v2776 = vmax.f32 %v2712, 0.0
        %v2777 = vmax.f32 %v2713, 0.0
        %v2778 = vmax.f32 %v2714, 0.0
        %v2779 = vmax.f32 %v2715, 0.0
        %v2780 = vmax.f32 %v2716, 0.0
        %v2781 = vmax.f32 %v2717, 0.0
        %v2782 = vmax.f32 %v2718, 0.0
        %v2783 = vmax.f32 %v2719, 0.0
        %v2784 = vmax.f32 %v2720, 0.0
        %v2785 = vmax.f32 %v2721, 0.0
        %v2786 = vmax.f32 %v2722, 0.0
        %v2787 = vmax.f32 %v2723, 0.0
        %v2788 = vmax.f32 %v2724, 0.0
        %v2789 = vmax.f32 %v2725, 0.0
        %v2790 = vmax.f32 %v2726, 0.0
        %v2791 = vmax.f32 %v2727, 0.0
        %v2792 = vmax.f32 %v2728, 0.0
        %v2793 = vmax.f32 %v2729, 0.0
        %v2794 = vmax.f32 %v2730, 0.0
        %v2795 = vmax.f32 %v2731, 0.0
        %v2796 = vmax.f32 %v2732, 0.0
        %v2797 = vmax.f32 %v2733, 0.0
        %v2798 = vmax.f32 %v2734, 0.0
        %v2799 = vmax.f32 %v2735, 0.0
        %v2800 = vmax.f32 %v2736, 0.0
        %v2801 = vmax.f32 %v2737, 0.0
        %v2802 = vmax.f32 %v2738, 0.0
        %v2803 = vmax.f32 %v2739, 0.0
        %v2804 = vmax.f32 %v2740, 0.0
        %v2805 = vmax.f32 %v2741, 0.0
        %v2806 = vmax.f32 %v2742, 0.0
        %v2807 = vmax.f32 %v2743, 0.0
        %v2808 = vld [vmem:[%s6] sm:$0xff]
        %v2809 = vld [vmem:[%s6 + $0x8] sm:$0xff]
        %vm2810 = vcmask 130048
        %v2812 = vsel %vm2810, %v2744, 0
        %v2815 = vsel %vm2810, %v2745, 0
        %v2818 = vsel %vm2810, %v2746, 0
        %v2821 = vsel %vm2810, %v2747, 0
        %v2824 = vsel %vm2810, %v2748, 0
        %v2827 = vsel %vm2810, %v2749, 0
        %v2830 = vsel %vm2810, %v2750, 0
        %v2833 = vsel %vm2810, %v2751, 0
        %v2836 = vsel %vm2810, %v2752, 0
        %v2839 = vsel %vm2810, %v2753, 0
        %v2842 = vsel %vm2810, %v2754, 0
        %v2845 = vsel %vm2810, %v2755, 0
        %v2848 = vsel %vm2810, %v2756, 0
        %v2851 = vsel %vm2810, %v2757, 0
        %v2854 = vsel %vm2810, %v2758, 0
        %v2857 = vsel %vm2810, %v2759, 0
        %v2860 = vsel %vm2810, %v2760, 0
        %v2863 = vsel %vm2810, %v2761, 0
        %v2866 = vsel %vm2810, %v2762, 0
        %v2869 = vsel %vm2810, %v2763, 0
        %v2872 = vsel %vm2810, %v2764, 0
        %v2875 = vsel %vm2810, %v2765, 0
        %v2878 = vsel %vm2810, %v2766, 0
        %v2881 = vsel %vm2810, %v2767, 0
        %v2884 = vsel %vm2810, %v2768, 0
        %v2887 = vsel %vm2810, %v2769, 0
        %v2890 = vsel %vm2810, %v2770, 0
        %v2893 = vsel %vm2810, %v2771, 0
        %v2896 = vsel %vm2810, %v2772, 0
        %v2899 = vsel %vm2810, %v2773, 0
        %v2902 = vsel %vm2810, %v2774, 0
        %v2905 = vsel %vm2810, %v2775, 0
        %v2908 = vsel %vm2810, %v2776, 0
        %v2911 = vsel %vm2810, %v2777, 0
        %v2914 = vsel %vm2810, %v2778, 0
        %v2917 = vsel %vm2810, %v2779, 0
        %v2920 = vsel %vm2810, %v2780, 0
        %v2923 = vsel %vm2810, %v2781, 0
        %v2926 = vsel %vm2810, %v2782, 0
        %v2929 = vsel %vm2810, %v2783, 0
        %v2932 = vsel %vm2810, %v2784, 0
        %v2935 = vsel %vm2810, %v2785, 0
        %v2938 = vsel %vm2810, %v2786, 0
        %v2941 = vsel %vm2810, %v2787, 0
        %v2944 = vsel %vm2810, %v2788, 0
        %v2947 = vsel %vm2810, %v2789, 0
        %v2950 = vsel %vm2810, %v2790, 0
        %v2953 = vsel %vm2810, %v2791, 0
        %v2956 = vsel %vm2810, %v2792, 0
        %v2959 = vsel %vm2810, %v2793, 0
        %v2962 = vsel %vm2810, %v2794, 0
        %v2965 = vsel %vm2810, %v2795, 0
        %v2968 = vsel %vm2810, %v2796, 0
        %v2971 = vsel %vm2810, %v2797, 0
        %v2974 = vsel %vm2810, %v2798, 0
        %v2977 = vsel %vm2810, %v2799, 0
        %v2980 = vsel %vm2810, %v2800, 0
        %v2983 = vsel %vm2810, %v2801, 0
        %v2986 = vsel %vm2810, %v2802, 0
        %v2989 = vsel %vm2810, %v2803, 0
        %v2992 = vsel %vm2810, %v2804, 0
        %v2995 = vsel %vm2810, %v2805, 0
        %v2998 = vsel %vm2810, %v2806, 0
        %v3001 = vsel %vm2810, %v2807, 0
        %3003 = vmatpush.msra.mxu0 0.0
        %3004 = vmatpush.msra.mxu0 0.0
        %3005 = vmatpush.msra.mxu0 0.0
        %3006 = vmatpush.msra.mxu0 0.0
        %3007 = vmatpush.msra.mxu0 0.0
        %3008 = vmatpush.msra.mxu0 0.0
        %3009 = vmatpush.msra.mxu0 0.0
        %3010 = vmatpush.msra.mxu0 0.0
        %3011 = vmatpush.msra.mxu0 0.0
        %3012 = vmatpush.msra.mxu0 0.0
        %3013 = vmatpush.msra.mxu0 0.0
        %3014 = vmatpush.msra.mxu0 0.0
        %3015 = vmatpush.msra.mxu0 0.0
        %3016 = vmatpush.msra.mxu0 0.0
        %3017 = vmatpush.msra.mxu0 %v2809
        %3018 = vmatpush.msra.mxu0 %v2808
        %3019 = vmatmul.f32.gmra.mxu0 %v2812
        %v3020 = vpop.f32.mrf.mxu0
        %v3021 = vadd.f32 0.0, %v3020
        %3022 = vmatmul.f32.gmra.mxu0 %v2815
        %v3023 = vpop.f32.mrf.mxu0
        %v3024 = vadd.f32 0.0, %v3023
        %3025 = vmatmul.f32.gmra.mxu0 %v2818
        %v3026 = vpop.f32.mrf.mxu0
        %v3027 = vadd.f32 0.0, %v3026
        %3028 = vmatmul.f32.gmra.mxu0 %v2821
        %v3029 = vpop.f32.mrf.mxu0
        %v3030 = vadd.f32 0.0, %v3029
        %3031 = vmatmul.f32.gmra.mxu0 %v2824
        %v3032 = vpop.f32.mrf.mxu0
        %v3033 = vadd.f32 0.0, %v3032
        %3034 = vmatmul.f32.gmra.mxu0 %v2827
        %v3035 = vpop.f32.mrf.mxu0
        %v3036 = vadd.f32 0.0, %v3035
        %3037 = vmatmul.f32.gmra.mxu0 %v2830
        %v3038 = vpop.f32.mrf.mxu0
        %v3039 = vadd.f32 0.0, %v3038
        %3040 = vmatmul.f32.gmra.mxu0 %v2833
        %v3041 = vpop.f32.mrf.mxu0
        %v3042 = vadd.f32 0.0, %v3041
        %3043 = vmatmul.f32.gmra.mxu0 %v2836
        %v3044 = vpop.f32.mrf.mxu0
        %v3045 = vadd.f32 0.0, %v3044
        %3046 = vmatmul.f32.gmra.mxu0 %v2839
        %v3047 = vpop.f32.mrf.mxu0
        %v3048 = vadd.f32 0.0, %v3047
        %3049 = vmatmul.f32.gmra.mxu0 %v2842
        %v3050 = vpop.f32.mrf.mxu0
        %v3051 = vadd.f32 0.0, %v3050
        %3052 = vmatmul.f32.gmra.mxu0 %v2845
        %v3053 = vpop.f32.mrf.mxu0
        %v3054 = vadd.f32 0.0, %v3053
        %3055 = vmatmul.f32.gmra.mxu0 %v2848
        %v3056 = vpop.f32.mrf.mxu0
        %v3057 = vadd.f32 0.0, %v3056
        %3058 = vmatmul.f32.gmra.mxu0 %v2851
        %v3059 = vpop.f32.mrf.mxu0
        %v3060 = vadd.f32 0.0, %v3059
        %3061 = vmatmul.f32.gmra.mxu0 %v2854
        %v3062 = vpop.f32.mrf.mxu0
        %v3063 = vadd.f32 0.0, %v3062
        %3064 = vmatmul.f32.gmra.mxu0 %v2857
        %v3065 = vpop.f32.mrf.mxu0
        %v3066 = vadd.f32 0.0, %v3065
        %3067 = vmatmul.f32.gmra.mxu0 %v2860
        %v3068 = vpop.f32.mrf.mxu0
        %v3069 = vadd.f32 0.0, %v3068
        %3070 = vmatmul.f32.gmra.mxu0 %v2863
        %v3071 = vpop.f32.mrf.mxu0
        %v3072 = vadd.f32 0.0, %v3071
        %3073 = vmatmul.f32.gmra.mxu0 %v2866
        %v3074 = vpop.f32.mrf.mxu0
        %v3075 = vadd.f32 0.0, %v3074
        %3076 = vmatmul.f32.gmra.mxu0 %v2869
        %v3077 = vpop.f32.mrf.mxu0
        %v3078 = vadd.f32 0.0, %v3077
        %3079 = vmatmul.f32.gmra.mxu0 %v2872
        %v3080 = vpop.f32.mrf.mxu0
        %v3081 = vadd.f32 0.0, %v3080
        %3082 = vmatmul.f32.gmra.mxu0 %v2875
        %v3083 = vpop.f32.mrf.mxu0
        %v3084 = vadd.f32 0.0, %v3083
        %3085 = vmatmul.f32.gmra.mxu0 %v2878
        %v3086 = vpop.f32.mrf.mxu0
        %v3087 = vadd.f32 0.0, %v3086
        %3088 = vmatmul.f32.gmra.mxu0 %v2881
        %v3089 = vpop.f32.mrf.mxu0
        %v3090 = vadd.f32 0.0, %v3089
        %3091 = vmatmul.f32.gmra.mxu0 %v2884
        %v3092 = vpop.f32.mrf.mxu0
        %v3093 = vadd.f32 0.0, %v3092
        %3094 = vmatmul.f32.gmra.mxu0 %v2887
        %v3095 = vpop.f32.mrf.mxu0
        %v3096 = vadd.f32 0.0, %v3095
        %3097 = vmatmul.f32.gmra.mxu0 %v2890
        %v3098 = vpop.f32.mrf.mxu0
        %v3099 = vadd.f32 0.0, %v3098
        %3100 = vmatmul.f32.gmra.mxu0 %v2893
        %v3101 = vpop.f32.mrf.mxu0
        %v3102 = vadd.f32 0.0, %v3101
        %3103 = vmatmul.f32.gmra.mxu0 %v2896
        %v3104 = vpop.f32.mrf.mxu0
        %v3105 = vadd.f32 0.0, %v3104
        %3106 = vmatmul.f32.gmra.mxu0 %v2899
        %v3107 = vpop.f32.mrf.mxu0
        %v3108 = vadd.f32 0.0, %v3107
        %3109 = vmatmul.f32.gmra.mxu0 %v2902
        %v3110 = vpop.f32.mrf.mxu0
        %v3111 = vadd.f32 0.0, %v3110
        %3112 = vmatmul.f32.gmra.mxu0 %v2905
        %v3113 = vpop.f32.mrf.mxu0
        %v3114 = vadd.f32 0.0, %v3113
        %3115 = vmatmul.f32.gmra.mxu0 %v2908
        %v3116 = vpop.f32.mrf.mxu0
        %v3117 = vadd.f32 0.0, %v3116
        %3118 = vmatmul.f32.gmra.mxu0 %v2911
        %v3119 = vpop.f32.mrf.mxu0
        %v3120 = vadd.f32 0.0, %v3119
        %3121 = vmatmul.f32.gmra.mxu0 %v2914
        %v3122 = vpop.f32.mrf.mxu0
        %v3123 = vadd.f32 0.0, %v3122
        %3124 = vmatmul.f32.gmra.mxu0 %v2917
        %v3125 = vpop.f32.mrf.mxu0
        %v3126 = vadd.f32 0.0, %v3125
        %3127 = vmatmul.f32.gmra.mxu0 %v2920
        %v3128 = vpop.f32.mrf.mxu0
        %v3129 = vadd.f32 0.0, %v3128
        %3130 = vmatmul.f32.gmra.mxu0 %v2923
        %v3131 = vpop.f32.mrf.mxu0
        %v3132 = vadd.f32 0.0, %v3131
        %3133 = vmatmul.f32.gmra.mxu0 %v2926
        %v3134 = vpop.f32.mrf.mxu0
        %v3135 = vadd.f32 0.0, %v3134
        %3136 = vmatmul.f32.gmra.mxu0 %v2929
        %v3137 = vpop.f32.mrf.mxu0
        %v3138 = vadd.f32 0.0, %v3137
        %3139 = vmatmul.f32.gmra.mxu0 %v2932
        %v3140 = vpop.f32.mrf.mxu0
        %v3141 = vadd.f32 0.0, %v3140
        %3142 = vmatmul.f32.gmra.mxu0 %v2935
        %v3143 = vpop.f32.mrf.mxu0
        %v3144 = vadd.f32 0.0, %v3143
        %3145 = vmatmul.f32.gmra.mxu0 %v2938
        %v3146 = vpop.f32.mrf.mxu0
        %v3147 = vadd.f32 0.0, %v3146
        %3148 = vmatmul.f32.gmra.mxu0 %v2941
        %v3149 = vpop.f32.mrf.mxu0
        %v3150 = vadd.f32 0.0, %v3149
        %3151 = vmatmul.f32.gmra.mxu0 %v2944
        %v3152 = vpop.f32.mrf.mxu0
        %v3153 = vadd.f32 0.0, %v3152
        %3154 = vmatmul.f32.gmra.mxu0 %v2947
        %v3155 = vpop.f32.mrf.mxu0
        %v3156 = vadd.f32 0.0, %v3155
        %3157 = vmatmul.f32.gmra.mxu0 %v2950
        %v3158 = vpop.f32.mrf.mxu0
        %v3159 = vadd.f32 0.0, %v3158
        %3160 = vmatmul.f32.gmra.mxu0 %v2953
        %v3161 = vpop.f32.mrf.mxu0
        %v3162 = vadd.f32 0.0, %v3161
        %3163 = vmatmul.f32.gmra.mxu0 %v2956
        %v3164 = vpop.f32.mrf.mxu0
        %v3165 = vadd.f32 0.0, %v3164
        %3166 = vmatmul.f32.gmra.mxu0 %v2959
        %v3167 = vpop.f32.mrf.mxu0
        %v3168 = vadd.f32 0.0, %v3167
        %3169 = vmatmul.f32.gmra.mxu0 %v2962
        %v3170 = vpop.f32.mrf.mxu0
        %v3171 = vadd.f32 0.0, %v3170
        %3172 = vmatmul.f32.gmra.mxu0 %v2965
        %v3173 = vpop.f32.mrf.mxu0
        %v3174 = vadd.f32 0.0, %v3173
        %3175 = vmatmul.f32.gmra.mxu0 %v2968
        %v3176 = vpop.f32.mrf.mxu0
        %v3177 = vadd.f32 0.0, %v3176
        %3178 = vmatmul.f32.gmra.mxu0 %v2971
        %v3179 = vpop.f32.mrf.mxu0
        %v3180 = vadd.f32 0.0, %v3179
        %3181 = vmatmul.f32.gmra.mxu0 %v2974
        %v3182 = vpop.f32.mrf.mxu0
        %v3183 = vadd.f32 0.0, %v3182
        %3184 = vmatmul.f32.gmra.mxu0 %v2977
        %v3185 = vpop.f32.mrf.mxu0
        %v3186 = vadd.f32 0.0, %v3185
        %3187 = vmatmul.f32.gmra.mxu0 %v2980
        %v3188 = vpop.f32.mrf.mxu0
        %v3189 = vadd.f32 0.0, %v3188
        %3190 = vmatmul.f32.gmra.mxu0 %v2983
        %v3191 = vpop.f32.mrf.mxu0
        %v3192 = vadd.f32 0.0, %v3191
        %3193 = vmatmul.f32.gmra.mxu0 %v2986
        %v3194 = vpop.f32.mrf.mxu0
        %v3195 = vadd.f32 0.0, %v3194
        %3196 = vmatmul.f32.gmra.mxu0 %v2989
        %v3197 = vpop.f32.mrf.mxu0
        %v3198 = vadd.f32 0.0, %v3197
        %3199 = vmatmul.f32.gmra.mxu0 %v2992
        %v3200 = vpop.f32.mrf.mxu0
        %v3201 = vadd.f32 0.0, %v3200
        %3202 = vmatmul.f32.gmra.mxu0 %v2995
        %v3203 = vpop.f32.mrf.mxu0
        %v3204 = vadd.f32 0.0, %v3203
        %3205 = vmatmul.f32.gmra.mxu0 %v2998
        %v3206 = vpop.f32.mrf.mxu0
        %v3207 = vadd.f32 0.0, %v3206
        %3208 = vmatmul.f32.gmra.mxu0 %v3001
        %v3209 = vpop.f32.mrf.mxu0
        %v3210 = vadd.f32 0.0, %v3209
        %3211 = vdwg.mxu0
        %v3212 = vrot.slane %v3021, 7
        %v3213 = vrot.slane %v3024, 7
        %v3214 = vrot.slane %v3027, 7
        %v3215 = vrot.slane %v3030, 7
        %v3216 = vrot.slane %v3033, 7
        %v3217 = vrot.slane %v3036, 7
        %v3218 = vrot.slane %v3039, 7
        %v3219 = vrot.slane %v3042, 7
        %v3220 = vrot.slane %v3045, 7
        %v3221 = vrot.slane %v3048, 7
        %v3222 = vrot.slane %v3051, 7
        %v3223 = vrot.slane %v3054, 7
        %v3224 = vrot.slane %v3057, 7
        %v3225 = vrot.slane %v3060, 7
        %v3226 = vrot.slane %v3063, 7
        %v3227 = vrot.slane %v3066, 7
        %v3228 = vrot.slane %v3069, 7
        %v3229 = vrot.slane %v3072, 7
        %v3230 = vrot.slane %v3075, 7
        %v3231 = vrot.slane %v3078, 7
        %v3232 = vrot.slane %v3081, 7
        %v3233 = vrot.slane %v3084, 7
        %v3234 = vrot.slane %v3087, 7
        %v3235 = vrot.slane %v3090, 7
        %v3236 = vrot.slane %v3093, 7
        %v3237 = vrot.slane %v3096, 7
        %v3238 = vrot.slane %v3099, 7
        %v3239 = vrot.slane %v3102, 7
        %v3240 = vrot.slane %v3105, 7
        %v3241 = vrot.slane %v3108, 7
        %v3242 = vrot.slane %v3111, 7
        %v3243 = vrot.slane %v3114, 7
        %v3244 = vrot.slane %v3117, 7
        %v3245 = vrot.slane %v3120, 7
        %v3246 = vrot.slane %v3123, 7
        %v3247 = vrot.slane %v3126, 7
        %v3248 = vrot.slane %v3129, 7
        %v3249 = vrot.slane %v3132, 7
        %v3250 = vrot.slane %v3135, 7
        %v3251 = vrot.slane %v3138, 7
        %v3252 = vrot.slane %v3141, 7
        %v3253 = vrot.slane %v3144, 7
        %v3254 = vrot.slane %v3147, 7
        %v3255 = vrot.slane %v3150, 7
        %v3256 = vrot.slane %v3153, 7
        %v3257 = vrot.slane %v3156, 7
        %v3258 = vrot.slane %v3159, 7
        %v3259 = vrot.slane %v3162, 7
        %v3260 = vrot.slane %v3165, 7
        %v3261 = vrot.slane %v3168, 7
        %v3262 = vrot.slane %v3171, 7
        %v3263 = vrot.slane %v3174, 7
        %v3264 = vrot.slane %v3177, 7
        %v3265 = vrot.slane %v3180, 7
        %v3266 = vrot.slane %v3183, 7
        %v3267 = vrot.slane %v3186, 7
        %v3268 = vrot.slane %v3189, 7
        %v3269 = vrot.slane %v3192, 7
        %v3270 = vrot.slane %v3195, 7
        %v3271 = vrot.slane %v3198, 7
        %v3272 = vrot.slane %v3201, 7
        %v3273 = vrot.slane %v3204, 7
        %v3274 = vrot.slane %v3207, 7
        %v3275 = vrot.slane %v3210, 7
        %v3276 = vlaneseq
        %v3277 = vshrl.u32 %v3276, 7
        %vm3278 = vcmp.lt.s32.totalorder %v3277, 1
        %v3279 = vsel %vm3278, %v3274, %v3275
        %v3280 = vsel %vm3278, %v3273, %v3274
        %v3281 = vsel %vm3278, %v3272, %v3273
        %v3282 = vsel %vm3278, %v3271, %v3272
        %v3283 = vsel %vm3278, %v3270, %v3271
        %v3284 = vsel %vm3278, %v3269, %v3270
        %v3285 = vsel %vm3278, %v3268, %v3269
        %v3286 = vsel %vm3278, %v3267, %v3268
        %v3287 = vsel %vm3278, %v3266, %v3267
        %v3288 = vsel %vm3278, %v3265, %v3266
        %v3289 = vsel %vm3278, %v3264, %v3265
        %v3290 = vsel %vm3278, %v3263, %v3264
        %v3291 = vsel %vm3278, %v3262, %v3263
        %v3292 = vsel %vm3278, %v3261, %v3262
        %v3293 = vsel %vm3278, %v3260, %v3261
        %v3294 = vsel %vm3278, %v3259, %v3260
        %v3295 = vsel %vm3278, %v3258, %v3259
        %v3296 = vsel %vm3278, %v3257, %v3258
        %v3297 = vsel %vm3278, %v3256, %v3257
        %v3298 = vsel %vm3278, %v3255, %v3256
        %v3299 = vsel %vm3278, %v3254, %v3255
        %v3300 = vsel %vm3278, %v3253, %v3254
        %v3301 = vsel %vm3278, %v3252, %v3253
        %v3302 = vsel %vm3278, %v3251, %v3252
        %v3303 = vsel %vm3278, %v3250, %v3251
        %v3304 = vsel %vm3278, %v3249, %v3250
        %v3305 = vsel %vm3278, %v3248, %v3249
        %v3306 = vsel %vm3278, %v3247, %v3248
        %v3307 = vsel %vm3278, %v3246, %v3247
        %v3308 = vsel %vm3278, %v3245, %v3246
        %v3309 = vsel %vm3278, %v3244, %v3245
        %v3310 = vsel %vm3278, %v3243, %v3244
        %v3311 = vsel %vm3278, %v3242, %v3243
        %v3312 = vsel %vm3278, %v3241, %v3242
        %v3313 = vsel %vm3278, %v3240, %v3241
        %v3314 = vsel %vm3278, %v3239, %v3240
        %v3315 = vsel %vm3278, %v3238, %v3239
        %v3316 = vsel %vm3278, %v3237, %v3238
        %v3317 = vsel %vm3278, %v3236, %v3237
        %v3318 = vsel %vm3278, %v3235, %v3236
        %v3319 = vsel %vm3278, %v3234, %v3235
        %v3320 = vsel %vm3278, %v3233, %v3234
        %v3321 = vsel %vm3278, %v3232, %v3233
        %v3322 = vsel %vm3278, %v3231, %v3232
        %v3323 = vsel %vm3278, %v3230, %v3231
        %v3324 = vsel %vm3278, %v3229, %v3230
        %v3325 = vsel %vm3278, %v3228, %v3229
        %v3326 = vsel %vm3278, %v3227, %v3228
        %v3327 = vsel %vm3278, %v3226, %v3227
        %v3328 = vsel %vm3278, %v3225, %v3226
        %v3329 = vsel %vm3278, %v3224, %v3225
        %v3330 = vsel %vm3278, %v3223, %v3224
        %v3331 = vsel %vm3278, %v3222, %v3223
        %v3332 = vsel %vm3278, %v3221, %v3222
        %v3333 = vsel %vm3278, %v3220, %v3221
        %v3334 = vsel %vm3278, %v3219, %v3220
        %v3335 = vsel %vm3278, %v3218, %v3219
        %v3336 = vsel %vm3278, %v3217, %v3218
        %v3337 = vsel %vm3278, %v3216, %v3217
        %v3338 = vsel %vm3278, %v3215, %v3216
        %v3339 = vsel %vm3278, %v3214, %v3215
        %v3340 = vsel %vm3278, %v3213, %v3214
        %v3341 = vsel %vm3278, %v3212, %v3213
        %v3342 = vsel %vm3278, %v3275, %v3212
        %v3343 = vld [vmem:[%s7] sm:$0xff]
        %v3344 = vld [vmem:[%s7 + $0x8] sm:$0xff]
        %v3345 = vld [vmem:[%s7 + $0x10] sm:$0xff]
        %v3346 = vld [vmem:[%s7 + $0x18] sm:$0xff]
        %v3347 = vld [vmem:[%s7 + $0x20] sm:$0xff]
        %v3348 = vld [vmem:[%s7 + $0x28] sm:$0xff]
        %v3349 = vld [vmem:[%s7 + $0x30] sm:$0xff]
        %v3350 = vld [vmem:[%s7 + $0x38] sm:$0xff]
        %v3351 = vld [vmem:[%s7 + $0x40] sm:$0xff]
        %v3352 = vld [vmem:[%s7 + $0x48] sm:$0xff]
        %v3353 = vld [vmem:[%s7 + $0x50] sm:$0xff]
        %v3354 = vld [vmem:[%s7 + $0x58] sm:$0xff]
        %v3355 = vld [vmem:[%s7 + $0x60] sm:$0xff]
        %v3356 = vld [vmem:[%s7 + $0x68] sm:$0xff]
        %v3357 = vld [vmem:[%s7 + $0x70] sm:$0xff]
        %v3358 = vld [vmem:[%s7 + $0x78] sm:$0xff]
        %v3359 = vld [vmem:[%s7 + $0x80] sm:$0xff]
        %v3360 = vld [vmem:[%s7 + $0x88] sm:$0xff]
        %v3361 = vld [vmem:[%s7 + $0x90] sm:$0xff]
        %v3362 = vld [vmem:[%s7 + $0x98] sm:$0xff]
        %v3363 = vld [vmem:[%s7 + $0xa0] sm:$0xff]
        %v3364 = vld [vmem:[%s7 + $0xa8] sm:$0xff]
        %v3365 = vld [vmem:[%s7 + $0xb0] sm:$0xff]
        %v3366 = vld [vmem:[%s7 + $0xb8] sm:$0xff]
        %v3367 = vld [vmem:[%s7 + $0xc0] sm:$0xff]
        %v3368 = vld [vmem:[%s7 + $0xc8] sm:$0xff]
        %v3369 = vld [vmem:[%s7 + $0xd0] sm:$0xff]
        %v3370 = vld [vmem:[%s7 + $0xd8] sm:$0xff]
        %v3371 = vld [vmem:[%s7 + $0xe0] sm:$0xff]
        %v3372 = vld [vmem:[%s7 + $0xe8] sm:$0xff]
        %v3373 = vld [vmem:[%s7 + $0xf0] sm:$0xff]
        %v3374 = vld [vmem:[%s7 + $0xf8] sm:$0xff]
        %v3375 = vld [vmem:[%s7 + $0x100] sm:$0xff]
        %v3376 = vld [vmem:[%s7 + $0x108] sm:$0xff]
        %v3377 = vld [vmem:[%s7 + $0x110] sm:$0xff]
        %v3378 = vld [vmem:[%s7 + $0x118] sm:$0xff]
        %v3379 = vld [vmem:[%s7 + $0x120] sm:$0xff]
        %v3380 = vld [vmem:[%s7 + $0x128] sm:$0xff]
        %v3381 = vld [vmem:[%s7 + $0x130] sm:$0xff]
        %v3382 = vld [vmem:[%s7 + $0x138] sm:$0xff]
        %v3383 = vld [vmem:[%s7 + $0x140] sm:$0xff]
        %v3384 = vld [vmem:[%s7 + $0x148] sm:$0xff]
        %v3385 = vld [vmem:[%s7 + $0x150] sm:$0xff]
        %v3386 = vld [vmem:[%s7 + $0x158] sm:$0xff]
        %v3387 = vld [vmem:[%s7 + $0x160] sm:$0xff]
        %v3388 = vld [vmem:[%s7 + $0x168] sm:$0xff]
        %v3389 = vld [vmem:[%s7 + $0x170] sm:$0xff]
        %v3390 = vld [vmem:[%s7 + $0x178] sm:$0xff]
        %v3391 = vld [vmem:[%s7 + $0x180] sm:$0xff]
        %v3392 = vld [vmem:[%s7 + $0x188] sm:$0xff]
        %v3393 = vld [vmem:[%s7 + $0x190] sm:$0xff]
        %v3394 = vld [vmem:[%s7 + $0x198] sm:$0xff]
        %v3395 = vld [vmem:[%s7 + $0x1a0] sm:$0xff]
        %v3396 = vld [vmem:[%s7 + $0x1a8] sm:$0xff]
        %v3397 = vld [vmem:[%s7 + $0x1b0] sm:$0xff]
        %v3398 = vld [vmem:[%s7 + $0x1b8] sm:$0xff]
        %v3399 = vld [vmem:[%s7 + $0x1c0] sm:$0xff]
        %v3400 = vld [vmem:[%s7 + $0x1c8] sm:$0xff]
        %v3401 = vld [vmem:[%s7 + $0x1d0] sm:$0xff]
        %v3402 = vld [vmem:[%s7 + $0x1d8] sm:$0xff]
        %v3403 = vld [vmem:[%s7 + $0x1e0] sm:$0xff]
        %v3404 = vld [vmem:[%s7 + $0x1e8] sm:$0xff]
        %v3405 = vld [vmem:[%s7 + $0x1f0] sm:$0xff]
        %v3406 = vld [vmem:[%s7 + $0x1f8] sm:$0xff]
        %3408 = vset.pattern.permute.xlu0 0
        %3409 = vperm.xlu0 %3408, %v3343
        %v3410 = vpop.permute.xlu0 %3409
        %3413 = vset.pattern.permute.xlu0 0
        %3414 = vperm.xlu0 %3413, %v3344
        %v3415 = vpop.permute.xlu0 %3414
        %3418 = vset.pattern.permute.xlu0 0
        %3419 = vperm.xlu0 %3418, %v3345
        %v3420 = vpop.permute.xlu0 %3419
        %3423 = vset.pattern.permute.xlu0 0
        %3424 = vperm.xlu0 %3423, %v3346
        %v3425 = vpop.permute.xlu0 %3424
        %3428 = vset.pattern.permute.xlu0 0
        %3429 = vperm.xlu0 %3428, %v3347
        %v3430 = vpop.permute.xlu0 %3429
        %3433 = vset.pattern.permute.xlu0 0
        %3434 = vperm.xlu0 %3433, %v3348
        %v3435 = vpop.permute.xlu0 %3434
        %3438 = vset.pattern.permute.xlu0 0
        %3439 = vperm.xlu0 %3438, %v3349
        %v3440 = vpop.permute.xlu0 %3439
        %3443 = vset.pattern.permute.xlu0 0
        %3444 = vperm.xlu0 %3443, %v3350
        %v3445 = vpop.permute.xlu0 %3444
        %3448 = vset.pattern.permute.xlu0 0
        %3449 = vperm.xlu0 %3448, %v3351
        %v3450 = vpop.permute.xlu0 %3449
        %3453 = vset.pattern.permute.xlu0 0
        %3454 = vperm.xlu0 %3453, %v3352
        %v3455 = vpop.permute.xlu0 %3454
        %3458 = vset.pattern.permute.xlu0 0
        %3459 = vperm.xlu0 %3458, %v3353
        %v3460 = vpop.permute.xlu0 %3459
        %3463 = vset.pattern.permute.xlu0 0
        %3464 = vperm.xlu0 %3463, %v3354
        %v3465 = vpop.permute.xlu0 %3464
        %3468 = vset.pattern.permute.xlu0 0
        %3469 = vperm.xlu0 %3468, %v3355
        %v3470 = vpop.permute.xlu0 %3469
        %3473 = vset.pattern.permute.xlu0 0
        %3474 = vperm.xlu0 %3473, %v3356
        %v3475 = vpop.permute.xlu0 %3474
        %3478 = vset.pattern.permute.xlu0 0
        %3479 = vperm.xlu0 %3478, %v3357
        %v3480 = vpop.permute.xlu0 %3479
        %3483 = vset.pattern.permute.xlu0 0
        %3484 = vperm.xlu0 %3483, %v3358
        %v3485 = vpop.permute.xlu0 %3484
        %3488 = vset.pattern.permute.xlu0 0
        %3489 = vperm.xlu0 %3488, %v3359
        %v3490 = vpop.permute.xlu0 %3489
        %3493 = vset.pattern.permute.xlu0 0
        %3494 = vperm.xlu0 %3493, %v3360
        %v3495 = vpop.permute.xlu0 %3494
        %3498 = vset.pattern.permute.xlu0 0
        %3499 = vperm.xlu0 %3498, %v3361
        %v3500 = vpop.permute.xlu0 %3499
        %3503 = vset.pattern.permute.xlu0 0
        %3504 = vperm.xlu0 %3503, %v3362
        %v3505 = vpop.permute.xlu0 %3504
        %3508 = vset.pattern.permute.xlu0 0
        %3509 = vperm.xlu0 %3508, %v3363
        %v3510 = vpop.permute.xlu0 %3509
        %3513 = vset.pattern.permute.xlu0 0
        %3514 = vperm.xlu0 %3513, %v3364
        %v3515 = vpop.permute.xlu0 %3514
        %3518 = vset.pattern.permute.xlu0 0
        %3519 = vperm.xlu0 %3518, %v3365
        %v3520 = vpop.permute.xlu0 %3519
        %3523 = vset.pattern.permute.xlu0 0
        %3524 = vperm.xlu0 %3523, %v3366
        %v3525 = vpop.permute.xlu0 %3524
        %3528 = vset.pattern.permute.xlu0 0
        %3529 = vperm.xlu0 %3528, %v3367
        %v3530 = vpop.permute.xlu0 %3529
        %3533 = vset.pattern.permute.xlu0 0
        %3534 = vperm.xlu0 %3533, %v3368
        %v3535 = vpop.permute.xlu0 %3534
        %3538 = vset.pattern.permute.xlu0 0
        %3539 = vperm.xlu0 %3538, %v3369
        %v3540 = vpop.permute.xlu0 %3539
        %3543 = vset.pattern.permute.xlu0 0
        %3544 = vperm.xlu0 %3543, %v3370
        %v3545 = vpop.permute.xlu0 %3544
        %3548 = vset.pattern.permute.xlu0 0
        %3549 = vperm.xlu0 %3548, %v3371
        %v3550 = vpop.permute.xlu0 %3549
        %3553 = vset.pattern.permute.xlu0 0
        %3554 = vperm.xlu0 %3553, %v3372
        %v3555 = vpop.permute.xlu0 %3554
        %3558 = vset.pattern.permute.xlu0 0
        %3559 = vperm.xlu0 %3558, %v3373
        %v3560 = vpop.permute.xlu0 %3559
        %3563 = vset.pattern.permute.xlu0 0
        %3564 = vperm.xlu0 %3563, %v3374
        %v3565 = vpop.permute.xlu0 %3564
        %3568 = vset.pattern.permute.xlu0 0
        %3569 = vperm.xlu0 %3568, %v3375
        %v3570 = vpop.permute.xlu0 %3569
        %3573 = vset.pattern.permute.xlu0 0
        %3574 = vperm.xlu0 %3573, %v3376
        %v3575 = vpop.permute.xlu0 %3574
        %3578 = vset.pattern.permute.xlu0 0
        %3579 = vperm.xlu0 %3578, %v3377
        %v3580 = vpop.permute.xlu0 %3579
        %3583 = vset.pattern.permute.xlu0 0
        %3584 = vperm.xlu0 %3583, %v3378
        %v3585 = vpop.permute.xlu0 %3584
        %3588 = vset.pattern.permute.xlu0 0
        %3589 = vperm.xlu0 %3588, %v3379
        %v3590 = vpop.permute.xlu0 %3589
        %3593 = vset.pattern.permute.xlu0 0
        %3594 = vperm.xlu0 %3593, %v3380
        %v3595 = vpop.permute.xlu0 %3594
        %3598 = vset.pattern.permute.xlu0 0
        %3599 = vperm.xlu0 %3598, %v3381
        %v3600 = vpop.permute.xlu0 %3599
        %3603 = vset.pattern.permute.xlu0 0
        %3604 = vperm.xlu0 %3603, %v3382
        %v3605 = vpop.permute.xlu0 %3604
        %3608 = vset.pattern.permute.xlu0 0
        %3609 = vperm.xlu0 %3608, %v3383
        %v3610 = vpop.permute.xlu0 %3609
        %3613 = vset.pattern.permute.xlu0 0
        %3614 = vperm.xlu0 %3613, %v3384
        %v3615 = vpop.permute.xlu0 %3614
        %3618 = vset.pattern.permute.xlu0 0
        %3619 = vperm.xlu0 %3618, %v3385
        %v3620 = vpop.permute.xlu0 %3619
        %3623 = vset.pattern.permute.xlu0 0
        %3624 = vperm.xlu0 %3623, %v3386
        %v3625 = vpop.permute.xlu0 %3624
        %3628 = vset.pattern.permute.xlu0 0
        %3629 = vperm.xlu0 %3628, %v3387
        %v3630 = vpop.permute.xlu0 %3629
        %3633 = vset.pattern.permute.xlu0 0
        %3634 = vperm.xlu0 %3633, %v3388
        %v3635 = vpop.permute.xlu0 %3634
        %3638 = vset.pattern.permute.xlu0 0
        %3639 = vperm.xlu0 %3638, %v3389
        %v3640 = vpop.permute.xlu0 %3639
        %3643 = vset.pattern.permute.xlu0 0
        %3644 = vperm.xlu0 %3643, %v3390
        %v3645 = vpop.permute.xlu0 %3644
        %3648 = vset.pattern.permute.xlu0 0
        %3649 = vperm.xlu0 %3648, %v3391
        %v3650 = vpop.permute.xlu0 %3649
        %3653 = vset.pattern.permute.xlu0 0
        %3654 = vperm.xlu0 %3653, %v3392
        %v3655 = vpop.permute.xlu0 %3654
        %3658 = vset.pattern.permute.xlu0 0
        %3659 = vperm.xlu0 %3658, %v3393
        %v3660 = vpop.permute.xlu0 %3659
        %3663 = vset.pattern.permute.xlu0 0
        %3664 = vperm.xlu0 %3663, %v3394
        %v3665 = vpop.permute.xlu0 %3664
        %3668 = vset.pattern.permute.xlu0 0
        %3669 = vperm.xlu0 %3668, %v3395
        %v3670 = vpop.permute.xlu0 %3669
        %3673 = vset.pattern.permute.xlu0 0
        %3674 = vperm.xlu0 %3673, %v3396
        %v3675 = vpop.permute.xlu0 %3674
        %3678 = vset.pattern.permute.xlu0 0
        %3679 = vperm.xlu0 %3678, %v3397
        %v3680 = vpop.permute.xlu0 %3679
        %3683 = vset.pattern.permute.xlu0 0
        %3684 = vperm.xlu0 %3683, %v3398
        %v3685 = vpop.permute.xlu0 %3684
        %3688 = vset.pattern.permute.xlu0 0
        %3689 = vperm.xlu0 %3688, %v3399
        %v3690 = vpop.permute.xlu0 %3689
        %3693 = vset.pattern.permute.xlu0 0
        %3694 = vperm.xlu0 %3693, %v3400
        %v3695 = vpop.permute.xlu0 %3694
        %3698 = vset.pattern.permute.xlu0 0
        %3699 = vperm.xlu0 %3698, %v3401
        %v3700 = vpop.permute.xlu0 %3699
        %3703 = vset.pattern.permute.xlu0 0
        %3704 = vperm.xlu0 %3703, %v3402
        %v3705 = vpop.permute.xlu0 %3704
        %3708 = vset.pattern.permute.xlu0 0
        %3709 = vperm.xlu0 %3708, %v3403
        %v3710 = vpop.permute.xlu0 %3709
        %3713 = vset.pattern.permute.xlu0 0
        %3714 = vperm.xlu0 %3713, %v3404
        %v3715 = vpop.permute.xlu0 %3714
        %3718 = vset.pattern.permute.xlu0 0
        %3719 = vperm.xlu0 %3718, %v3405
        %v3720 = vpop.permute.xlu0 %3719
        %3723 = vset.pattern.permute.xlu0 0
        %3724 = vperm.xlu0 %3723, %v3406
        %v3725 = vpop.permute.xlu0 %3724
        %v3727 = vmul.f32 %v3280, %v3410
        %v3728 = vmul.f32 %v3279, %v3415
        %v3729 = vmul.f32 %v3342, %v3420
        %v3730 = vmul.f32 %v3341, %v3425
        %v3731 = vmul.f32 %v3340, %v3430
        %v3732 = vmul.f32 %v3339, %v3435
        %v3733 = vmul.f32 %v3338, %v3440
        %v3734 = vmul.f32 %v3337, %v3445
        %v3735 = vmul.f32 %v3336, %v3450
        %v3736 = vmul.f32 %v3335, %v3455
        %v3737 = vmul.f32 %v3334, %v3460
        %v3738 = vmul.f32 %v3333, %v3465
        %v3739 = vmul.f32 %v3332, %v3470
        %v3740 = vmul.f32 %v3331, %v3475
        %v3741 = vmul.f32 %v3330, %v3480
        %v3742 = vmul.f32 %v3329, %v3485
        %v3743 = vmul.f32 %v3328, %v3490
        %v3744 = vmul.f32 %v3327, %v3495
        %v3745 = vmul.f32 %v3326, %v3500
        %v3746 = vmul.f32 %v3325, %v3505
        %v3747 = vmul.f32 %v3324, %v3510
        %v3748 = vmul.f32 %v3323, %v3515
        %v3749 = vmul.f32 %v3322, %v3520
        %v3750 = vmul.f32 %v3321, %v3525
        %v3751 = vmul.f32 %v3320, %v3530
        %v3752 = vmul.f32 %v3319, %v3535
        %v3753 = vmul.f32 %v3318, %v3540
        %v3754 = vmul.f32 %v3317, %v3545
        %v3755 = vmul.f32 %v3316, %v3550
        %v3756 = vmul.f32 %v3315, %v3555
        %v3757 = vmul.f32 %v3314, %v3560
        %v3758 = vmul.f32 %v3313, %v3565
        %v3759 = vmul.f32 %v3312, %v3570
        %v3760 = vmul.f32 %v3311, %v3575
        %v3761 = vmul.f32 %v3310, %v3580
        %v3762 = vmul.f32 %v3309, %v3585
        %v3763 = vmul.f32 %v3308, %v3590
        %v3764 = vmul.f32 %v3307, %v3595
        %v3765 = vmul.f32 %v3306, %v3600
        %v3766 = vmul.f32 %v3305, %v3605
        %v3767 = vmul.f32 %v3304, %v3610
        %v3768 = vmul.f32 %v3303, %v3615
        %v3769 = vmul.f32 %v3302, %v3620
        %v3770 = vmul.f32 %v3301, %v3625
        %v3771 = vmul.f32 %v3300, %v3630
        %v3772 = vmul.f32 %v3299, %v3635
        %v3773 = vmul.f32 %v3298, %v3640
        %v3774 = vmul.f32 %v3297, %v3645
        %v3775 = vmul.f32 %v3296, %v3650
        %v3776 = vmul.f32 %v3295, %v3655
        %v3777 = vmul.f32 %v3294, %v3660
        %v3778 = vmul.f32 %v3293, %v3665
        %v3779 = vmul.f32 %v3292, %v3670
        %v3780 = vmul.f32 %v3291, %v3675
        %v3781 = vmul.f32 %v3290, %v3680
        %v3782 = vmul.f32 %v3289, %v3685
        %v3783 = vmul.f32 %v3288, %v3690
        %v3784 = vmul.f32 %v3287, %v3695
        %v3785 = vmul.f32 %v3286, %v3700
        %v3786 = vmul.f32 %v3285, %v3705
        %v3787 = vmul.f32 %v3284, %v3710
        %v3788 = vmul.f32 %v3283, %v3715
        %v3789 = vmul.f32 %v3282, %v3720
        %v3790 = vmul.f32 %v3281, %v3725
        %v3791 = vadd.f32 %v3727, 0.0
        %v3792 = vadd.f32 %v3728, 0.0
        %v3793 = vadd.f32 %v3729, 0.0
        %v3794 = vadd.f32 %v3730, 0.0
        %v3795 = vadd.f32 %v3731, 0.0
        %v3796 = vadd.f32 %v3732, 0.0
        %v3797 = vadd.f32 %v3733, 0.0
        %v3798 = vadd.f32 %v3734, 0.0
        %v3799 = vadd.f32 %v3735, 0.0
        %v3800 = vadd.f32 %v3736, 0.0
        %v3801 = vadd.f32 %v3737, 0.0
        %v3802 = vadd.f32 %v3738, 0.0
        %v3803 = vadd.f32 %v3739, 0.0
        %v3804 = vadd.f32 %v3740, 0.0
        %v3805 = vadd.f32 %v3741, 0.0
        %v3806 = vadd.f32 %v3742, 0.0
        %v3807 = vadd.f32 %v3743, 0.0
        %v3808 = vadd.f32 %v3744, 0.0
        %v3809 = vadd.f32 %v3745, 0.0
        %v3810 = vadd.f32 %v3746, 0.0
        %v3811 = vadd.f32 %v3747, 0.0
        %v3812 = vadd.f32 %v3748, 0.0
        %v3813 = vadd.f32 %v3749, 0.0
        %v3814 = vadd.f32 %v3750, 0.0
        %v3815 = vadd.f32 %v3751, 0.0
        %v3816 = vadd.f32 %v3752, 0.0
        %v3817 = vadd.f32 %v3753, 0.0
        %v3818 = vadd.f32 %v3754, 0.0
        %v3819 = vadd.f32 %v3755, 0.0
        %v3820 = vadd.f32 %v3756, 0.0
        %v3821 = vadd.f32 %v3757, 0.0
        %v3822 = vadd.f32 %v3758, 0.0
        %v3823 = vadd.f32 %v3759, 0.0
        %v3824 = vadd.f32 %v3760, 0.0
        %v3825 = vadd.f32 %v3761, 0.0
        %v3826 = vadd.f32 %v3762, 0.0
        %v3827 = vadd.f32 %v3763, 0.0
        %v3828 = vadd.f32 %v3764, 0.0
        %v3829 = vadd.f32 %v3765, 0.0
        %v3830 = vadd.f32 %v3766, 0.0
        %v3831 = vadd.f32 %v3767, 0.0
        %v3832 = vadd.f32 %v3768, 0.0
        %v3833 = vadd.f32 %v3769, 0.0
        %v3834 = vadd.f32 %v3770, 0.0
        %v3835 = vadd.f32 %v3771, 0.0
        %v3836 = vadd.f32 %v3772, 0.0
        %v3837 = vadd.f32 %v3773, 0.0
        %v3838 = vadd.f32 %v3774, 0.0
        %v3839 = vadd.f32 %v3775, 0.0
        %v3840 = vadd.f32 %v3776, 0.0
        %v3841 = vadd.f32 %v3777, 0.0
        %v3842 = vadd.f32 %v3778, 0.0
        %v3843 = vadd.f32 %v3779, 0.0
        %v3844 = vadd.f32 %v3780, 0.0
        %v3845 = vadd.f32 %v3781, 0.0
        %v3846 = vadd.f32 %v3782, 0.0
        %v3847 = vadd.f32 %v3783, 0.0
        %v3848 = vadd.f32 %v3784, 0.0
        %v3849 = vadd.f32 %v3785, 0.0
        %v3850 = vadd.f32 %v3786, 0.0
        %v3851 = vadd.f32 %v3787, 0.0
        %v3852 = vadd.f32 %v3788, 0.0
        %v3853 = vadd.f32 %v3789, 0.0
        %v3854 = vadd.f32 %v3790, 0.0
        %3919 = vrot.lane.b32.xlu0 %v3021, 124
        %v3920 = vpop.permute.xlu0 %3919
        %3921 = vrot.lane.b32.xlu0 %v3024, 124
        %v3922 = vpop.permute.xlu0 %3921
        %3923 = vrot.lane.b32.xlu0 %v3027, 124
        %v3924 = vpop.permute.xlu0 %3923
        %3925 = vrot.lane.b32.xlu0 %v3030, 124
        %v3926 = vpop.permute.xlu0 %3925
        %3927 = vrot.lane.b32.xlu0 %v3033, 124
        %v3928 = vpop.permute.xlu0 %3927
        %3929 = vrot.lane.b32.xlu0 %v3036, 124
        %v3930 = vpop.permute.xlu0 %3929
        %3931 = vrot.lane.b32.xlu0 %v3039, 124
        %v3932 = vpop.permute.xlu0 %3931
        %3933 = vrot.lane.b32.xlu0 %v3042, 124
        %v3934 = vpop.permute.xlu0 %3933
        %3935 = vrot.lane.b32.xlu0 %v3045, 124
        %v3936 = vpop.permute.xlu0 %3935
        %3937 = vrot.lane.b32.xlu0 %v3048, 124
        %v3938 = vpop.permute.xlu0 %3937
        %3939 = vrot.lane.b32.xlu0 %v3051, 124
        %v3940 = vpop.permute.xlu0 %3939
        %3941 = vrot.lane.b32.xlu0 %v3054, 124
        %v3942 = vpop.permute.xlu0 %3941
        %3943 = vrot.lane.b32.xlu0 %v3057, 124
        %v3944 = vpop.permute.xlu0 %3943
        %3945 = vrot.lane.b32.xlu0 %v3060, 124
        %v3946 = vpop.permute.xlu0 %3945
        %3947 = vrot.lane.b32.xlu0 %v3063, 124
        %v3948 = vpop.permute.xlu0 %3947
        %3949 = vrot.lane.b32.xlu0 %v3066, 124
        %v3950 = vpop.permute.xlu0 %3949
        %3951 = vrot.lane.b32.xlu0 %v3069, 124
        %v3952 = vpop.permute.xlu0 %3951
        %3953 = vrot.lane.b32.xlu0 %v3072, 124
        %v3954 = vpop.permute.xlu0 %3953
        %3955 = vrot.lane.b32.xlu0 %v3075, 124
        %v3956 = vpop.permute.xlu0 %3955
        %3957 = vrot.lane.b32.xlu0 %v3078, 124
        %v3958 = vpop.permute.xlu0 %3957
        %3959 = vrot.lane.b32.xlu0 %v3081, 124
        %v3960 = vpop.permute.xlu0 %3959
        %3961 = vrot.lane.b32.xlu0 %v3084, 124
        %v3962 = vpop.permute.xlu0 %3961
        %3963 = vrot.lane.b32.xlu0 %v3087, 124
        %v3964 = vpop.permute.xlu0 %3963
        %3965 = vrot.lane.b32.xlu0 %v3090, 124
        %v3966 = vpop.permute.xlu0 %3965
        %3967 = vrot.lane.b32.xlu0 %v3093, 124
        %v3968 = vpop.permute.xlu0 %3967
        %3969 = vrot.lane.b32.xlu0 %v3096, 124
        %v3970 = vpop.permute.xlu0 %3969
        %3971 = vrot.lane.b32.xlu0 %v3099, 124
        %v3972 = vpop.permute.xlu0 %3971
        %3973 = vrot.lane.b32.xlu0 %v3102, 124
        %v3974 = vpop.permute.xlu0 %3973
        %3975 = vrot.lane.b32.xlu0 %v3105, 124
        %v3976 = vpop.permute.xlu0 %3975
        %3977 = vrot.lane.b32.xlu0 %v3108, 124
        %v3978 = vpop.permute.xlu0 %3977
        %3979 = vrot.lane.b32.xlu0 %v3111, 124
        %v3980 = vpop.permute.xlu0 %3979
        %3981 = vrot.lane.b32.xlu0 %v3114, 124
        %v3982 = vpop.permute.xlu0 %3981
        %3983 = vrot.lane.b32.xlu0 %v3117, 124
        %v3984 = vpop.permute.xlu0 %3983
        %3985 = vrot.lane.b32.xlu0 %v3120, 124
        %v3986 = vpop.permute.xlu0 %3985
        %3987 = vrot.lane.b32.xlu0 %v3123, 124
        %v3988 = vpop.permute.xlu0 %3987
        %3989 = vrot.lane.b32.xlu0 %v3126, 124
        %v3990 = vpop.permute.xlu0 %3989
        %3991 = vrot.lane.b32.xlu0 %v3129, 124
        %v3992 = vpop.permute.xlu0 %3991
        %3993 = vrot.lane.b32.xlu0 %v3132, 124
        %v3994 = vpop.permute.xlu0 %3993
        %3995 = vrot.lane.b32.xlu0 %v3135, 124
        %v3996 = vpop.permute.xlu0 %3995
        %3997 = vrot.lane.b32.xlu0 %v3138, 124
        %v3998 = vpop.permute.xlu0 %3997
        %3999 = vrot.lane.b32.xlu0 %v3141, 124
        %v4000 = vpop.permute.xlu0 %3999
        %4001 = vrot.lane.b32.xlu0 %v3144, 124
        %v4002 = vpop.permute.xlu0 %4001
        %4003 = vrot.lane.b32.xlu0 %v3147, 124
        %v4004 = vpop.permute.xlu0 %4003
        %4005 = vrot.lane.b32.xlu0 %v3150, 124
        %v4006 = vpop.permute.xlu0 %4005
        %4007 = vrot.lane.b32.xlu0 %v3153, 124
        %v4008 = vpop.permute.xlu0 %4007
        %4009 = vrot.lane.b32.xlu0 %v3156, 124
        %v4010 = vpop.permute.xlu0 %4009
        %4011 = vrot.lane.b32.xlu0 %v3159, 124
        %v4012 = vpop.permute.xlu0 %4011
        %4013 = vrot.lane.b32.xlu0 %v3162, 124
        %v4014 = vpop.permute.xlu0 %4013
        %4015 = vrot.lane.b32.xlu0 %v3165, 124
        %v4016 = vpop.permute.xlu0 %4015
        %4017 = vrot.lane.b32.xlu0 %v3168, 124
        %v4018 = vpop.permute.xlu0 %4017
        %4019 = vrot.lane.b32.xlu0 %v3171, 124
        %v4020 = vpop.permute.xlu0 %4019
        %4021 = vrot.lane.b32.xlu0 %v3174, 124
        %v4022 = vpop.permute.xlu0 %4021
        %4023 = vrot.lane.b32.xlu0 %v3177, 124
        %v4024 = vpop.permute.xlu0 %4023
        %4025 = vrot.lane.b32.xlu0 %v3180, 124
        %v4026 = vpop.permute.xlu0 %4025
        %4027 = vrot.lane.b32.xlu0 %v3183, 124
        %v4028 = vpop.permute.xlu0 %4027
        %4029 = vrot.lane.b32.xlu0 %v3186, 124
        %v4030 = vpop.permute.xlu0 %4029
        %4031 = vrot.lane.b32.xlu0 %v3189, 124
        %v4032 = vpop.permute.xlu0 %4031
        %4033 = vrot.lane.b32.xlu0 %v3192, 124
        %v4034 = vpop.permute.xlu0 %4033
        %4035 = vrot.lane.b32.xlu0 %v3195, 124
        %v4036 = vpop.permute.xlu0 %4035
        %4037 = vrot.lane.b32.xlu0 %v3198, 124
        %v4038 = vpop.permute.xlu0 %4037
        %4039 = vrot.lane.b32.xlu0 %v3201, 124
        %v4040 = vpop.permute.xlu0 %4039
        %4041 = vrot.lane.b32.xlu0 %v3204, 124
        %v4042 = vpop.permute.xlu0 %4041
        %4043 = vrot.lane.b32.xlu0 %v3207, 124
        %v4044 = vpop.permute.xlu0 %4043
        %4045 = vrot.lane.b32.xlu0 %v3210, 124
        %v4046 = vpop.permute.xlu0 %4045
        %4111 = vset.pattern.permute.xlu0 1
        %4112 = vperm.xlu0 %4111, %v3343
        %v4113 = vpop.permute.xlu0 %4112
        %4115 = vset.pattern.permute.xlu0 1
        %4116 = vperm.xlu0 %4115, %v3344
        %v4117 = vpop.permute.xlu0 %4116
        %4119 = vset.pattern.permute.xlu0 1
        %4120 = vperm.xlu0 %4119, %v3345
        %v4121 = vpop.permute.xlu0 %4120
        %4123 = vset.pattern.permute.xlu0 1
        %4124 = vperm.xlu0 %4123, %v3346
        %v4125 = vpop.permute.xlu0 %4124
        %4127 = vset.pattern.permute.xlu0 1
        %4128 = vperm.xlu0 %4127, %v3347
        %v4129 = vpop.permute.xlu0 %4128
        %4131 = vset.pattern.permute.xlu0 1
        %4132 = vperm.xlu0 %4131, %v3348
        %v4133 = vpop.permute.xlu0 %4132
        %4135 = vset.pattern.permute.xlu0 1
        %4136 = vperm.xlu0 %4135, %v3349
        %v4137 = vpop.permute.xlu0 %4136
        %4139 = vset.pattern.permute.xlu0 1
        %4140 = vperm.xlu0 %4139, %v3350
        %v4141 = vpop.permute.xlu0 %4140
        %4143 = vset.pattern.permute.xlu0 1
        %4144 = vperm.xlu0 %4143, %v3351
        %v4145 = vpop.permute.xlu0 %4144
        %4147 = vset.pattern.permute.xlu0 1
        %4148 = vperm.xlu0 %4147, %v3352
        %v4149 = vpop.permute.xlu0 %4148
        %4151 = vset.pattern.permute.xlu0 1
        %4152 = vperm.xlu0 %4151, %v3353
        %v4153 = vpop.permute.xlu0 %4152
        %4155 = vset.pattern.permute.xlu0 1
        %4156 = vperm.xlu0 %4155, %v3354
        %v4157 = vpop.permute.xlu0 %4156
        %4159 = vset.pattern.permute.xlu0 1
        %4160 = vperm.xlu0 %4159, %v3355
        %v4161 = vpop.permute.xlu0 %4160
        %4163 = vset.pattern.permute.xlu0 1
        %4164 = vperm.xlu0 %4163, %v3356
        %v4165 = vpop.permute.xlu0 %4164
        %4167 = vset.pattern.permute.xlu0 1
        %4168 = vperm.xlu0 %4167, %v3357
        %v4169 = vpop.permute.xlu0 %4168
        %4171 = vset.pattern.permute.xlu0 1
        %4172 = vperm.xlu0 %4171, %v3358
        %v4173 = vpop.permute.xlu0 %4172
        %4175 = vset.pattern.permute.xlu0 1
        %4176 = vperm.xlu0 %4175, %v3359
        %v4177 = vpop.permute.xlu0 %4176
        %4179 = vset.pattern.permute.xlu0 1
        %4180 = vperm.xlu0 %4179, %v3360
        %v4181 = vpop.permute.xlu0 %4180
        %4183 = vset.pattern.permute.xlu0 1
        %4184 = vperm.xlu0 %4183, %v3361
        %v4185 = vpop.permute.xlu0 %4184
        %4187 = vset.pattern.permute.xlu0 1
        %4188 = vperm.xlu0 %4187, %v3362
        %v4189 = vpop.permute.xlu0 %4188
        %4191 = vset.pattern.permute.xlu0 1
        %4192 = vperm.xlu0 %4191, %v3363
        %v4193 = vpop.permute.xlu0 %4192
        %4195 = vset.pattern.permute.xlu0 1
        %4196 = vperm.xlu0 %4195, %v3364
        %v4197 = vpop.permute.xlu0 %4196
        %4199 = vset.pattern.permute.xlu0 1
        %4200 = vperm.xlu0 %4199, %v3365
        %v4201 = vpop.permute.xlu0 %4200
        %4203 = vset.pattern.permute.xlu0 1
        %4204 = vperm.xlu0 %4203, %v3366
        %v4205 = vpop.permute.xlu0 %4204
        %4207 = vset.pattern.permute.xlu0 1
        %4208 = vperm.xlu0 %4207, %v3367
        %v4209 = vpop.permute.xlu0 %4208
        %4211 = vset.pattern.permute.xlu0 1
        %4212 = vperm.xlu0 %4211, %v3368
        %v4213 = vpop.permute.xlu0 %4212
        %4215 = vset.pattern.permute.xlu0 1
        %4216 = vperm.xlu0 %4215, %v3369
        %v4217 = vpop.permute.xlu0 %4216
        %4219 = vset.pattern.permute.xlu0 1
        %4220 = vperm.xlu0 %4219, %v3370
        %v4221 = vpop.permute.xlu0 %4220
        %4223 = vset.pattern.permute.xlu0 1
        %4224 = vperm.xlu0 %4223, %v3371
        %v4225 = vpop.permute.xlu0 %4224
        %4227 = vset.pattern.permute.xlu0 1
        %4228 = vperm.xlu0 %4227, %v3372
        %v4229 = vpop.permute.xlu0 %4228
        %4231 = vset.pattern.permute.xlu0 1
        %4232 = vperm.xlu0 %4231, %v3373
        %v4233 = vpop.permute.xlu0 %4232
        %4235 = vset.pattern.permute.xlu0 1
        %4236 = vperm.xlu0 %4235, %v3374
        %v4237 = vpop.permute.xlu0 %4236
        %4239 = vset.pattern.permute.xlu0 1
        %4240 = vperm.xlu0 %4239, %v3375
        %v4241 = vpop.permute.xlu0 %4240
        %4243 = vset.pattern.permute.xlu0 1
        %4244 = vperm.xlu0 %4243, %v3376
        %v4245 = vpop.permute.xlu0 %4244
        %4247 = vset.pattern.permute.xlu0 1
        %4248 = vperm.xlu0 %4247, %v3377
        %v4249 = vpop.permute.xlu0 %4248
        %4251 = vset.pattern.permute.xlu0 1
        %4252 = vperm.xlu0 %4251, %v3378
        %v4253 = vpop.permute.xlu0 %4252
        %4255 = vset.pattern.permute.xlu0 1
        %4256 = vperm.xlu0 %4255, %v3379
        %v4257 = vpop.permute.xlu0 %4256
        %4259 = vset.pattern.permute.xlu0 1
        %4260 = vperm.xlu0 %4259, %v3380
        %v4261 = vpop.permute.xlu0 %4260
        %4263 = vset.pattern.permute.xlu0 1
        %4264 = vperm.xlu0 %4263, %v3381
        %v4265 = vpop.permute.xlu0 %4264
        %4267 = vset.pattern.permute.xlu0 1
        %4268 = vperm.xlu0 %4267, %v3382
        %v4269 = vpop.permute.xlu0 %4268
        %4271 = vset.pattern.permute.xlu0 1
        %4272 = vperm.xlu0 %4271, %v3383
        %v4273 = vpop.permute.xlu0 %4272
        %4275 = vset.pattern.permute.xlu0 1
        %4276 = vperm.xlu0 %4275, %v3384
        %v4277 = vpop.permute.xlu0 %4276
        %4279 = vset.pattern.permute.xlu0 1
        %4280 = vperm.xlu0 %4279, %v3385
        %v4281 = vpop.permute.xlu0 %4280
        %4283 = vset.pattern.permute.xlu0 1
        %4284 = vperm.xlu0 %4283, %v3386
        %v4285 = vpop.permute.xlu0 %4284
        %4287 = vset.pattern.permute.xlu0 1
        %4288 = vperm.xlu0 %4287, %v3387
        %v4289 = vpop.permute.xlu0 %4288
        %4291 = vset.pattern.permute.xlu0 1
        %4292 = vperm.xlu0 %4291, %v3388
        %v4293 = vpop.permute.xlu0 %4292
        %4295 = vset.pattern.permute.xlu0 1
        %4296 = vperm.xlu0 %4295, %v3389
        %v4297 = vpop.permute.xlu0 %4296
        %4299 = vset.pattern.permute.xlu0 1
        %4300 = vperm.xlu0 %4299, %v3390
        %v4301 = vpop.permute.xlu0 %4300
        %4303 = vset.pattern.permute.xlu0 1
        %4304 = vperm.xlu0 %4303, %v3391
        %v4305 = vpop.permute.xlu0 %4304
        %4307 = vset.pattern.permute.xlu0 1
        %4308 = vperm.xlu0 %4307, %v3392
        %v4309 = vpop.permute.xlu0 %4308
        %4311 = vset.pattern.permute.xlu0 1
        %4312 = vperm.xlu0 %4311, %v3393
        %v4313 = vpop.permute.xlu0 %4312
        %4315 = vset.pattern.permute.xlu0 1
        %4316 = vperm.xlu0 %4315, %v3394
        %v4317 = vpop.permute.xlu0 %4316
        %4319 = vset.pattern.permute.xlu0 1
        %4320 = vperm.xlu0 %4319, %v3395
        %v4321 = vpop.permute.xlu0 %4320
        %4323 = vset.pattern.permute.xlu0 1
        %4324 = vperm.xlu0 %4323, %v3396
        %v4325 = vpop.permute.xlu0 %4324
        %4327 = vset.pattern.permute.xlu0 1
        %4328 = vperm.xlu0 %4327, %v3397
        %v4329 = vpop.permute.xlu0 %4328
        %4331 = vset.pattern.permute.xlu0 1
        %4332 = vperm.xlu0 %4331, %v3398
        %v4333 = vpop.permute.xlu0 %4332
        %4335 = vset.pattern.permute.xlu0 1
        %4336 = vperm.xlu0 %4335, %v3399
        %v4337 = vpop.permute.xlu0 %4336
        %4339 = vset.pattern.permute.xlu0 1
        %4340 = vperm.xlu0 %4339, %v3400
        %v4341 = vpop.permute.xlu0 %4340
        %4343 = vset.pattern.permute.xlu0 1
        %4344 = vperm.xlu0 %4343, %v3401
        %v4345 = vpop.permute.xlu0 %4344
        %4347 = vset.pattern.permute.xlu0 1
        %4348 = vperm.xlu0 %4347, %v3402
        %v4349 = vpop.permute.xlu0 %4348
        %4351 = vset.pattern.permute.xlu0 1
        %4352 = vperm.xlu0 %4351, %v3403
        %v4353 = vpop.permute.xlu0 %4352
        %4355 = vset.pattern.permute.xlu0 1
        %4356 = vperm.xlu0 %4355, %v3404
        %v4357 = vpop.permute.xlu0 %4356
        %4359 = vset.pattern.permute.xlu0 1
        %4360 = vperm.xlu0 %4359, %v3405
        %v4361 = vpop.permute.xlu0 %4360
        %4363 = vset.pattern.permute.xlu0 1
        %4364 = vperm.xlu0 %4363, %v3406
        %v4365 = vpop.permute.xlu0 %4364
        %v4367 = vmul.f32 %v4044, %v4113
        %v4368 = vmul.f32 %v4046, %v4117
        %v4369 = vmul.f32 %v3920, %v4121
        %v4370 = vmul.f32 %v3922, %v4125
        %v4371 = vmul.f32 %v3924, %v4129
        %v4372 = vmul.f32 %v3926, %v4133
        %v4373 = vmul.f32 %v3928, %v4137
        %v4374 = vmul.f32 %v3930, %v4141
        %v4375 = vmul.f32 %v3932, %v4145
        %v4376 = vmul.f32 %v3934, %v4149
        %v4377 = vmul.f32 %v3936, %v4153
        %v4378 = vmul.f32 %v3938, %v4157
        %v4379 = vmul.f32 %v3940, %v4161
        %v4380 = vmul.f32 %v3942, %v4165
        %v4381 = vmul.f32 %v3944, %v4169
        %v4382 = vmul.f32 %v3946, %v4173
        %v4383 = vmul.f32 %v3948, %v4177
        %v4384 = vmul.f32 %v3950, %v4181
        %v4385 = vmul.f32 %v3952, %v4185
        %v4386 = vmul.f32 %v3954, %v4189
        %v4387 = vmul.f32 %v3956, %v4193
        %v4388 = vmul.f32 %v3958, %v4197
        %v4389 = vmul.f32 %v3960, %v4201
        %v4390 = vmul.f32 %v3962, %v4205
        %v4391 = vmul.f32 %v3964, %v4209
        %v4392 = vmul.f32 %v3966, %v4213
        %v4393 = vmul.f32 %v3968, %v4217
        %v4394 = vmul.f32 %v3970, %v4221
        %v4395 = vmul.f32 %v3972, %v4225
        %v4396 = vmul.f32 %v3974, %v4229
        %v4397 = vmul.f32 %v3976, %v4233
        %v4398 = vmul.f32 %v3978, %v4237
        %v4399 = vmul.f32 %v3980, %v4241
        %v4400 = vmul.f32 %v3982, %v4245
        %v4401 = vmul.f32 %v3984, %v4249
        %v4402 = vmul.f32 %v3986, %v4253
        %v4403 = vmul.f32 %v3988, %v4257
        %v4404 = vmul.f32 %v3990, %v4261
        %v4405 = vmul.f32 %v3992, %v4265
        %v4406 = vmul.f32 %v3994, %v4269
        %v4407 = vmul.f32 %v3996, %v4273
        %v4408 = vmul.f32 %v3998, %v4277
        %v4409 = vmul.f32 %v4000, %v4281
        %v4410 = vmul.f32 %v4002, %v4285
        %v4411 = vmul.f32 %v4004, %v4289
        %v4412 = vmul.f32 %v4006, %v4293
        %v4413 = vmul.f32 %v4008, %v4297
        %v4414 = vmul.f32 %v4010, %v4301
        %v4415 = vmul.f32 %v4012, %v4305
        %v4416 = vmul.f32 %v4014, %v4309
        %v4417 = vmul.f32 %v4016, %v4313
        %v4418 = vmul.f32 %v4018, %v4317
        %v4419 = vmul.f32 %v4020, %v4321
        %v4420 = vmul.f32 %v4022, %v4325
        %v4421 = vmul.f32 %v4024, %v4329
        %v4422 = vmul.f32 %v4026, %v4333
        %v4423 = vmul.f32 %v4028, %v4337
        %v4424 = vmul.f32 %v4030, %v4341
        %v4425 = vmul.f32 %v4032, %v4345
        %v4426 = vmul.f32 %v4034, %v4349
        %v4427 = vmul.f32 %v4036, %v4353
        %v4428 = vmul.f32 %v4038, %v4357
        %v4429 = vmul.f32 %v4040, %v4361
        %v4430 = vmul.f32 %v4042, %v4365
        %v4431 = vadd.f32 %v3791, %v4367
        %v4432 = vadd.f32 %v3792, %v4368
        %v4433 = vadd.f32 %v3793, %v4369
        %v4434 = vadd.f32 %v3794, %v4370
        %v4435 = vadd.f32 %v3795, %v4371
        %v4436 = vadd.f32 %v3796, %v4372
        %v4437 = vadd.f32 %v3797, %v4373
        %v4438 = vadd.f32 %v3798, %v4374
        %v4439 = vadd.f32 %v3799, %v4375
        %v4440 = vadd.f32 %v3800, %v4376
        %v4441 = vadd.f32 %v3801, %v4377
        %v4442 = vadd.f32 %v3802, %v4378
        %v4443 = vadd.f32 %v3803, %v4379
        %v4444 = vadd.f32 %v3804, %v4380
        %v4445 = vadd.f32 %v3805, %v4381
        %v4446 = vadd.f32 %v3806, %v4382
        %v4447 = vadd.f32 %v3807, %v4383
        %v4448 = vadd.f32 %v3808, %v4384
        %v4449 = vadd.f32 %v3809, %v4385
        %v4450 = vadd.f32 %v3810, %v4386
        %v4451 = vadd.f32 %v3811, %v4387
        %v4452 = vadd.f32 %v3812, %v4388
        %v4453 = vadd.f32 %v3813, %v4389
        %v4454 = vadd.f32 %v3814, %v4390
        %v4455 = vadd.f32 %v3815, %v4391
        %v4456 = vadd.f32 %v3816, %v4392
        %v4457 = vadd.f32 %v3817, %v4393
        %v4458 = vadd.f32 %v3818, %v4394
        %v4459 = vadd.f32 %v3819, %v4395
        %v4460 = vadd.f32 %v3820, %v4396
        %v4461 = vadd.f32 %v3821, %v4397
        %v4462 = vadd.f32 %v3822, %v4398
        %v4463 = vadd.f32 %v3823, %v4399
        %v4464 = vadd.f32 %v3824, %v4400
        %v4465 = vadd.f32 %v3825, %v4401
        %v4466 = vadd.f32 %v3826, %v4402
        %v4467 = vadd.f32 %v3827, %v4403
        %v4468 = vadd.f32 %v3828, %v4404
        %v4469 = vadd.f32 %v3829, %v4405
        %v4470 = vadd.f32 %v3830, %v4406
        %v4471 = vadd.f32 %v3831, %v4407
        %v4472 = vadd.f32 %v3832, %v4408
        %v4473 = vadd.f32 %v3833, %v4409
        %v4474 = vadd.f32 %v3834, %v4410
        %v4475 = vadd.f32 %v3835, %v4411
        %v4476 = vadd.f32 %v3836, %v4412
        %v4477 = vadd.f32 %v3837, %v4413
        %v4478 = vadd.f32 %v3838, %v4414
        %v4479 = vadd.f32 %v3839, %v4415
        %v4480 = vadd.f32 %v3840, %v4416
        %v4481 = vadd.f32 %v3841, %v4417
        %v4482 = vadd.f32 %v3842, %v4418
        %v4483 = vadd.f32 %v3843, %v4419
        %v4484 = vadd.f32 %v3844, %v4420
        %v4485 = vadd.f32 %v3845, %v4421
        %v4486 = vadd.f32 %v3846, %v4422
        %v4487 = vadd.f32 %v3847, %v4423
        %v4488 = vadd.f32 %v3848, %v4424
        %v4489 = vadd.f32 %v3849, %v4425
        %v4490 = vadd.f32 %v3850, %v4426
        %v4491 = vadd.f32 %v3851, %v4427
        %v4492 = vadd.f32 %v3852, %v4428
        %v4493 = vadd.f32 %v3853, %v4429
        %v4494 = vadd.f32 %v3854, %v4430
        %4495 = vrot.lane.b32.xlu0 %v3021, 120
        %v4496 = vpop.permute.xlu0 %4495
        %4497 = vrot.lane.b32.xlu0 %v3024, 120
        %v4498 = vpop.permute.xlu0 %4497
        %4499 = vrot.lane.b32.xlu0 %v3027, 120
        %v4500 = vpop.permute.xlu0 %4499
        %4501 = vrot.lane.b32.xlu0 %v3030, 120
        %v4502 = vpop.permute.xlu0 %4501
        %4503 = vrot.lane.b32.xlu0 %v3033, 120
        %v4504 = vpop.permute.xlu0 %4503
        %4505 = vrot.lane.b32.xlu0 %v3036, 120
        %v4506 = vpop.permute.xlu0 %4505
        %4507 = vrot.lane.b32.xlu0 %v3039, 120
        %v4508 = vpop.permute.xlu0 %4507
        %4509 = vrot.lane.b32.xlu0 %v3042, 120
        %v4510 = vpop.permute.xlu0 %4509
        %4511 = vrot.lane.b32.xlu0 %v3045, 120
        %v4512 = vpop.permute.xlu0 %4511
        %4513 = vrot.lane.b32.xlu0 %v3048, 120
        %v4514 = vpop.permute.xlu0 %4513
        %4515 = vrot.lane.b32.xlu0 %v3051, 120
        %v4516 = vpop.permute.xlu0 %4515
        %4517 = vrot.lane.b32.xlu0 %v3054, 120
        %v4518 = vpop.permute.xlu0 %4517
        %4519 = vrot.lane.b32.xlu0 %v3057, 120
        %v4520 = vpop.permute.xlu0 %4519
        %4521 = vrot.lane.b32.xlu0 %v3060, 120
        %v4522 = vpop.permute.xlu0 %4521
        %4523 = vrot.lane.b32.xlu0 %v3063, 120
        %v4524 = vpop.permute.xlu0 %4523
        %4525 = vrot.lane.b32.xlu0 %v3066, 120
        %v4526 = vpop.permute.xlu0 %4525
        %4527 = vrot.lane.b32.xlu0 %v3069, 120
        %v4528 = vpop.permute.xlu0 %4527
        %4529 = vrot.lane.b32.xlu0 %v3072, 120
        %v4530 = vpop.permute.xlu0 %4529
        %4531 = vrot.lane.b32.xlu0 %v3075, 120
        %v4532 = vpop.permute.xlu0 %4531
        %4533 = vrot.lane.b32.xlu0 %v3078, 120
        %v4534 = vpop.permute.xlu0 %4533
        %4535 = vrot.lane.b32.xlu0 %v3081, 120
        %v4536 = vpop.permute.xlu0 %4535
        %4537 = vrot.lane.b32.xlu0 %v3084, 120
        %v4538 = vpop.permute.xlu0 %4537
        %4539 = vrot.lane.b32.xlu0 %v3087, 120
        %v4540 = vpop.permute.xlu0 %4539
        %4541 = vrot.lane.b32.xlu0 %v3090, 120
        %v4542 = vpop.permute.xlu0 %4541
        %4543 = vrot.lane.b32.xlu0 %v3093, 120
        %v4544 = vpop.permute.xlu0 %4543
        %4545 = vrot.lane.b32.xlu0 %v3096, 120
        %v4546 = vpop.permute.xlu0 %4545
        %4547 = vrot.lane.b32.xlu0 %v3099, 120
        %v4548 = vpop.permute.xlu0 %4547
        %4549 = vrot.lane.b32.xlu0 %v3102, 120
        %v4550 = vpop.permute.xlu0 %4549
        %4551 = vrot.lane.b32.xlu0 %v3105, 120
        %v4552 = vpop.permute.xlu0 %4551
        %4553 = vrot.lane.b32.xlu0 %v3108, 120
        %v4554 = vpop.permute.xlu0 %4553
        %4555 = vrot.lane.b32.xlu0 %v3111, 120
        %v4556 = vpop.permute.xlu0 %4555
        %4557 = vrot.lane.b32.xlu0 %v3114, 120
        %v4558 = vpop.permute.xlu0 %4557
        %4559 = vrot.lane.b32.xlu0 %v3117, 120
        %v4560 = vpop.permute.xlu0 %4559
        %4561 = vrot.lane.b32.xlu0 %v3120, 120
        %v4562 = vpop.permute.xlu0 %4561
        %4563 = vrot.lane.b32.xlu0 %v3123, 120
        %v4564 = vpop.permute.xlu0 %4563
        %4565 = vrot.lane.b32.xlu0 %v3126, 120
        %v4566 = vpop.permute.xlu0 %4565
        %4567 = vrot.lane.b32.xlu0 %v3129, 120
        %v4568 = vpop.permute.xlu0 %4567
        %4569 = vrot.lane.b32.xlu0 %v3132, 120
        %v4570 = vpop.permute.xlu0 %4569
        %4571 = vrot.lane.b32.xlu0 %v3135, 120
        %v4572 = vpop.permute.xlu0 %4571
        %4573 = vrot.lane.b32.xlu0 %v3138, 120
        %v4574 = vpop.permute.xlu0 %4573
        %4575 = vrot.lane.b32.xlu0 %v3141, 120
        %v4576 = vpop.permute.xlu0 %4575
        %4577 = vrot.lane.b32.xlu0 %v3144, 120
        %v4578 = vpop.permute.xlu0 %4577
        %4579 = vrot.lane.b32.xlu0 %v3147, 120
        %v4580 = vpop.permute.xlu0 %4579
        %4581 = vrot.lane.b32.xlu0 %v3150, 120
        %v4582 = vpop.permute.xlu0 %4581
        %4583 = vrot.lane.b32.xlu0 %v3153, 120
        %v4584 = vpop.permute.xlu0 %4583
        %4585 = vrot.lane.b32.xlu0 %v3156, 120
        %v4586 = vpop.permute.xlu0 %4585
        %4587 = vrot.lane.b32.xlu0 %v3159, 120
        %v4588 = vpop.permute.xlu0 %4587
        %4589 = vrot.lane.b32.xlu0 %v3162, 120
        %v4590 = vpop.permute.xlu0 %4589
        %4591 = vrot.lane.b32.xlu0 %v3165, 120
        %v4592 = vpop.permute.xlu0 %4591
        %4593 = vrot.lane.b32.xlu0 %v3168, 120
        %v4594 = vpop.permute.xlu0 %4593
        %4595 = vrot.lane.b32.xlu0 %v3171, 120
        %v4596 = vpop.permute.xlu0 %4595
        %4597 = vrot.lane.b32.xlu0 %v3174, 120
        %v4598 = vpop.permute.xlu0 %4597
        %4599 = vrot.lane.b32.xlu0 %v3177, 120
        %v4600 = vpop.permute.xlu0 %4599
        %4601 = vrot.lane.b32.xlu0 %v3180, 120
        %v4602 = vpop.permute.xlu0 %4601
        %4603 = vrot.lane.b32.xlu0 %v3183, 120
        %v4604 = vpop.permute.xlu0 %4603
        %4605 = vrot.lane.b32.xlu0 %v3186, 120
        %v4606 = vpop.permute.xlu0 %4605
        %4607 = vrot.lane.b32.xlu0 %v3189, 120
        %v4608 = vpop.permute.xlu0 %4607
        %4609 = vrot.lane.b32.xlu0 %v3192, 120
        %v4610 = vpop.permute.xlu0 %4609
        %4611 = vrot.lane.b32.xlu0 %v3195, 120
        %v4612 = vpop.permute.xlu0 %4611
        %4613 = vrot.lane.b32.xlu0 %v3198, 120
        %v4614 = vpop.permute.xlu0 %4613
        %4615 = vrot.lane.b32.xlu0 %v3201, 120
        %v4616 = vpop.permute.xlu0 %4615
        %4617 = vrot.lane.b32.xlu0 %v3204, 120
        %v4618 = vpop.permute.xlu0 %4617
        %4619 = vrot.lane.b32.xlu0 %v3207, 120
        %v4620 = vpop.permute.xlu0 %4619
        %4621 = vrot.lane.b32.xlu0 %v3210, 120
        %v4622 = vpop.permute.xlu0 %4621
        %v4687 = vrot.slane %v4496, 1
        %v4688 = vrot.slane %v4498, 1
        %v4689 = vrot.slane %v4500, 1
        %v4690 = vrot.slane %v4502, 1
        %v4691 = vrot.slane %v4504, 1
        %v4692 = vrot.slane %v4506, 1
        %v4693 = vrot.slane %v4508, 1
        %v4694 = vrot.slane %v4510, 1
        %v4695 = vrot.slane %v4512, 1
        %v4696 = vrot.slane %v4514, 1
        %v4697 = vrot.slane %v4516, 1
        %v4698 = vrot.slane %v4518, 1
        %v4699 = vrot.slane %v4520, 1
        %v4700 = vrot.slane %v4522, 1
        %v4701 = vrot.slane %v4524, 1
        %v4702 = vrot.slane %v4526, 1
        %v4703 = vrot.slane %v4528, 1
        %v4704 = vrot.slane %v4530, 1
        %v4705 = vrot.slane %v4532, 1
        %v4706 = vrot.slane %v4534, 1
        %v4707 = vrot.slane %v4536, 1
        %v4708 = vrot.slane %v4538, 1
        %v4709 = vrot.slane %v4540, 1
        %v4710 = vrot.slane %v4542, 1
        %v4711 = vrot.slane %v4544, 1
        %v4712 = vrot.slane %v4546, 1
        %v4713 = vrot.slane %v4548, 1
        %v4714 = vrot.slane %v4550, 1
        %v4715 = vrot.slane %v4552, 1
        %v4716 = vrot.slane %v4554, 1
        %v4717 = vrot.slane %v4556, 1
        %v4718 = vrot.slane %v4558, 1
        %v4719 = vrot.slane %v4560, 1
        %v4720 = vrot.slane %v4562, 1
        %v4721 = vrot.slane %v4564, 1
        %v4722 = vrot.slane %v4566, 1
        %v4723 = vrot.slane %v4568, 1
        %v4724 = vrot.slane %v4570, 1
        %v4725 = vrot.slane %v4572, 1
        %v4726 = vrot.slane %v4574, 1
        %v4727 = vrot.slane %v4576, 1
        %v4728 = vrot.slane %v4578, 1
        %v4729 = vrot.slane %v4580, 1
        %v4730 = vrot.slane %v4582, 1
        %v4731 = vrot.slane %v4584, 1
        %v4732 = vrot.slane %v4586, 1
        %v4733 = vrot.slane %v4588, 1
        %v4734 = vrot.slane %v4590, 1
        %v4735 = vrot.slane %v4592, 1
        %v4736 = vrot.slane %v4594, 1
        %v4737 = vrot.slane %v4596, 1
        %v4738 = vrot.slane %v4598, 1
        %v4739 = vrot.slane %v4600, 1
        %v4740 = vrot.slane %v4602, 1
        %v4741 = vrot.slane %v4604, 1
        %v4742 = vrot.slane %v4606, 1
        %v4743 = vrot.slane %v4608, 1
        %v4744 = vrot.slane %v4610, 1
        %v4745 = vrot.slane %v4612, 1
        %v4746 = vrot.slane %v4614, 1
        %v4747 = vrot.slane %v4616, 1
        %v4748 = vrot.slane %v4618, 1
        %v4749 = vrot.slane %v4620, 1
        %v4750 = vrot.slane %v4622, 1
        %vm4751 = vcmp.lt.s32.totalorder %v3277, 7
        %v4752 = vsel %vm4751, %v4749, %v4750
        %v4753 = vsel %vm4751, %v4748, %v4749
        %v4754 = vsel %vm4751, %v4747, %v4748
        %v4755 = vsel %vm4751, %v4746, %v4747
        %v4756 = vsel %vm4751, %v4745, %v4746
        %v4757 = vsel %vm4751, %v4744, %v4745
        %v4758 = vsel %vm4751, %v4743, %v4744
        %v4759 = vsel %vm4751, %v4742, %v4743
        %v4760 = vsel %vm4751, %v4741, %v4742
        %v4761 = vsel %vm4751, %v4740, %v4741
        %v4762 = vsel %vm4751, %v4739, %v4740
        %v4763 = vsel %vm4751, %v4738, %v4739
        %v4764 = vsel %vm4751, %v4737, %v4738
        %v4765 = vsel %vm4751, %v4736, %v4737
        %v4766 = vsel %vm4751, %v4735, %v4736
        %v4767 = vsel %vm4751, %v4734, %v4735
        %v4768 = vsel %vm4751, %v4733, %v4734
        %v4769 = vsel %vm4751, %v4732, %v4733
        %v4770 = vsel %vm4751, %v4731, %v4732
        %v4771 = vsel %vm4751, %v4730, %v4731
        %v4772 = vsel %vm4751, %v4729, %v4730
        %v4773 = vsel %vm4751, %v4728, %v4729
        %v4774 = vsel %vm4751, %v4727, %v4728
        %v4775 = vsel %vm4751, %v4726, %v4727
        %v4776 = vsel %vm4751, %v4725, %v4726
        %v4777 = vsel %vm4751, %v4724, %v4725
        %v4778 = vsel %vm4751, %v4723, %v4724
        %v4779 = vsel %vm4751, %v4722, %v4723
        %v4780 = vsel %vm4751, %v4721, %v4722
        %v4781 = vsel %vm4751, %v4720, %v4721
        %v4782 = vsel %vm4751, %v4719, %v4720
        %v4783 = vsel %vm4751, %v4718, %v4719
        %v4784 = vsel %vm4751, %v4717, %v4718
        %v4785 = vsel %vm4751, %v4716, %v4717
        %v4786 = vsel %vm4751, %v4715, %v4716
        %v4787 = vsel %vm4751, %v4714, %v4715
        %v4788 = vsel %vm4751, %v4713, %v4714
        %v4789 = vsel %vm4751, %v4712, %v4713
        %v4790 = vsel %vm4751, %v4711, %v4712
        %v4791 = vsel %vm4751, %v4710, %v4711
        %v4792 = vsel %vm4751, %v4709, %v4710
        %v4793 = vsel %vm4751, %v4708, %v4709
        %v4794 = vsel %vm4751, %v4707, %v4708
        %v4795 = vsel %vm4751, %v4706, %v4707
        %v4796 = vsel %vm4751, %v4705, %v4706
        %v4797 = vsel %vm4751, %v4704, %v4705
        %v4798 = vsel %vm4751, %v4703, %v4704
        %v4799 = vsel %vm4751, %v4702, %v4703
        %v4800 = vsel %vm4751, %v4701, %v4702
        %v4801 = vsel %vm4751, %v4700, %v4701
        %v4802 = vsel %vm4751, %v4699, %v4700
        %v4803 = vsel %vm4751, %v4698, %v4699
        %v4804 = vsel %vm4751, %v4697, %v4698
        %v4805 = vsel %vm4751, %v4696, %v4697
        %v4806 = vsel %vm4751, %v4695, %v4696
        %v4807 = vsel %vm4751, %v4694, %v4695
        %v4808 = vsel %vm4751, %v4693, %v4694
        %v4809 = vsel %vm4751, %v4692, %v4693
        %v4810 = vsel %vm4751, %v4691, %v4692
        %v4811 = vsel %vm4751, %v4690, %v4691
        %v4812 = vsel %vm4751, %v4689, %v4690
        %v4813 = vsel %vm4751, %v4688, %v4689
        %v4814 = vsel %vm4751, %v4687, %v4688
        %v4815 = vsel %vm4751, %v4750, %v4687
        %4816 = vset.pattern.permute.xlu0 2
        %4817 = vperm.xlu0 %4816, %v3343
        %v4818 = vpop.permute.xlu0 %4817
        %4820 = vset.pattern.permute.xlu0 2
        %4821 = vperm.xlu0 %4820, %v3344
        %v4822 = vpop.permute.xlu0 %4821
        %4824 = vset.pattern.permute.xlu0 2
        %4825 = vperm.xlu0 %4824, %v3345
        %v4826 = vpop.permute.xlu0 %4825
        %4828 = vset.pattern.permute.xlu0 2
        %4829 = vperm.xlu0 %4828, %v3346
        %v4830 = vpop.permute.xlu0 %4829
        %4832 = vset.pattern.permute.xlu0 2
        %4833 = vperm.xlu0 %4832, %v3347
        %v4834 = vpop.permute.xlu0 %4833
        %4836 = vset.pattern.permute.xlu0 2
        %4837 = vperm.xlu0 %4836, %v3348
        %v4838 = vpop.permute.xlu0 %4837
        %4840 = vset.pattern.permute.xlu0 2
        %4841 = vperm.xlu0 %4840, %v3349
        %v4842 = vpop.permute.xlu0 %4841
        %4844 = vset.pattern.permute.xlu0 2
        %4845 = vperm.xlu0 %4844, %v3350
        %v4846 = vpop.permute.xlu0 %4845
        %4848 = vset.pattern.permute.xlu0 2
        %4849 = vperm.xlu0 %4848, %v3351
        %v4850 = vpop.permute.xlu0 %4849
        %4852 = vset.pattern.permute.xlu0 2
        %4853 = vperm.xlu0 %4852, %v3352
        %v4854 = vpop.permute.xlu0 %4853
        %4856 = vset.pattern.permute.xlu0 2
        %4857 = vperm.xlu0 %4856, %v3353
        %v4858 = vpop.permute.xlu0 %4857
        %4860 = vset.pattern.permute.xlu0 2
        %4861 = vperm.xlu0 %4860, %v3354
        %v4862 = vpop.permute.xlu0 %4861
        %4864 = vset.pattern.permute.xlu0 2
        %4865 = vperm.xlu0 %4864, %v3355
        %v4866 = vpop.permute.xlu0 %4865
        %4868 = vset.pattern.permute.xlu0 2
        %4869 = vperm.xlu0 %4868, %v3356
        %v4870 = vpop.permute.xlu0 %4869
        %4872 = vset.pattern.permute.xlu0 2
        %4873 = vperm.xlu0 %4872, %v3357
        %v4874 = vpop.permute.xlu0 %4873
        %4876 = vset.pattern.permute.xlu0 2
        %4877 = vperm.xlu0 %4876, %v3358
        %v4878 = vpop.permute.xlu0 %4877
        %4880 = vset.pattern.permute.xlu0 2
        %4881 = vperm.xlu0 %4880, %v3359
        %v4882 = vpop.permute.xlu0 %4881
        %4884 = vset.pattern.permute.xlu0 2
        %4885 = vperm.xlu0 %4884, %v3360
        %v4886 = vpop.permute.xlu0 %4885
        %4888 = vset.pattern.permute.xlu0 2
        %4889 = vperm.xlu0 %4888, %v3361
        %v4890 = vpop.permute.xlu0 %4889
        %4892 = vset.pattern.permute.xlu0 2
        %4893 = vperm.xlu0 %4892, %v3362
        %v4894 = vpop.permute.xlu0 %4893
        %4896 = vset.pattern.permute.xlu0 2
        %4897 = vperm.xlu0 %4896, %v3363
        %v4898 = vpop.permute.xlu0 %4897
        %4900 = vset.pattern.permute.xlu0 2
        %4901 = vperm.xlu0 %4900, %v3364
        %v4902 = vpop.permute.xlu0 %4901
        %4904 = vset.pattern.permute.xlu0 2
        %4905 = vperm.xlu0 %4904, %v3365
        %v4906 = vpop.permute.xlu0 %4905
        %4908 = vset.pattern.permute.xlu0 2
        %4909 = vperm.xlu0 %4908, %v3366
        %v4910 = vpop.permute.xlu0 %4909
        %4912 = vset.pattern.permute.xlu0 2
        %4913 = vperm.xlu0 %4912, %v3367
        %v4914 = vpop.permute.xlu0 %4913
        %4916 = vset.pattern.permute.xlu0 2
        %4917 = vperm.xlu0 %4916, %v3368
        %v4918 = vpop.permute.xlu0 %4917
        %4920 = vset.pattern.permute.xlu0 2
        %4921 = vperm.xlu0 %4920, %v3369
        %v4922 = vpop.permute.xlu0 %4921
        %4924 = vset.pattern.permute.xlu0 2
        %4925 = vperm.xlu0 %4924, %v3370
        %v4926 = vpop.permute.xlu0 %4925
        %4928 = vset.pattern.permute.xlu0 2
        %4929 = vperm.xlu0 %4928, %v3371
        %v4930 = vpop.permute.xlu0 %4929
        %4932 = vset.pattern.permute.xlu0 2
        %4933 = vperm.xlu0 %4932, %v3372
        %v4934 = vpop.permute.xlu0 %4933
        %4936 = vset.pattern.permute.xlu0 2
        %4937 = vperm.xlu0 %4936, %v3373
        %v4938 = vpop.permute.xlu0 %4937
        %4940 = vset.pattern.permute.xlu0 2
        %4941 = vperm.xlu0 %4940, %v3374
        %v4942 = vpop.permute.xlu0 %4941
        %4944 = vset.pattern.permute.xlu0 2
        %4945 = vperm.xlu0 %4944, %v3375
        %v4946 = vpop.permute.xlu0 %4945
        %4948 = vset.pattern.permute.xlu0 2
        %4949 = vperm.xlu0 %4948, %v3376
        %v4950 = vpop.permute.xlu0 %4949
        %4952 = vset.pattern.permute.xlu0 2
        %4953 = vperm.xlu0 %4952, %v3377
        %v4954 = vpop.permute.xlu0 %4953
        %4956 = vset.pattern.permute.xlu0 2
        %4957 = vperm.xlu0 %4956, %v3378
        %v4958 = vpop.permute.xlu0 %4957
        %4960 = vset.pattern.permute.xlu0 2
        %4961 = vperm.xlu0 %4960, %v3379
        %v4962 = vpop.permute.xlu0 %4961
        %4964 = vset.pattern.permute.xlu0 2
        %4965 = vperm.xlu0 %4964, %v3380
        %v4966 = vpop.permute.xlu0 %4965
        %4968 = vset.pattern.permute.xlu0 2
        %4969 = vperm.xlu0 %4968, %v3381
        %v4970 = vpop.permute.xlu0 %4969
        %4972 = vset.pattern.permute.xlu0 2
        %4973 = vperm.xlu0 %4972, %v3382
        %v4974 = vpop.permute.xlu0 %4973
        %4976 = vset.pattern.permute.xlu0 2
        %4977 = vperm.xlu0 %4976, %v3383
        %v4978 = vpop.permute.xlu0 %4977
        %4980 = vset.pattern.permute.xlu0 2
        %4981 = vperm.xlu0 %4980, %v3384
        %v4982 = vpop.permute.xlu0 %4981
        %4984 = vset.pattern.permute.xlu0 2
        %4985 = vperm.xlu0 %4984, %v3385
        %v4986 = vpop.permute.xlu0 %4985
        %4988 = vset.pattern.permute.xlu0 2
        %4989 = vperm.xlu0 %4988, %v3386
        %v4990 = vpop.permute.xlu0 %4989
        %4992 = vset.pattern.permute.xlu0 2
        %4993 = vperm.xlu0 %4992, %v3387
        %v4994 = vpop.permute.xlu0 %4993
        %4996 = vset.pattern.permute.xlu0 2
        %4997 = vperm.xlu0 %4996, %v3388
        %v4998 = vpop.permute.xlu0 %4997
        %5000 = vset.pattern.permute.xlu0 2
        %5001 = vperm.xlu0 %5000, %v3389
        %v5002 = vpop.permute.xlu0 %5001
        %5004 = vset.pattern.permute.xlu0 2
        %5005 = vperm.xlu0 %5004, %v3390
        %v5006 = vpop.permute.xlu0 %5005
        %5008 = vset.pattern.permute.xlu0 2
        %5009 = vperm.xlu0 %5008, %v3391
        %v5010 = vpop.permute.xlu0 %5009
        %5012 = vset.pattern.permute.xlu0 2
        %5013 = vperm.xlu0 %5012, %v3392
        %v5014 = vpop.permute.xlu0 %5013
        %5016 = vset.pattern.permute.xlu0 2
        %5017 = vperm.xlu0 %5016, %v3393
        %v5018 = vpop.permute.xlu0 %5017
        %5020 = vset.pattern.permute.xlu0 2
        %5021 = vperm.xlu0 %5020, %v3394
        %v5022 = vpop.permute.xlu0 %5021
        %5024 = vset.pattern.permute.xlu0 2
        %5025 = vperm.xlu0 %5024, %v3395
        %v5026 = vpop.permute.xlu0 %5025
        %5028 = vset.pattern.permute.xlu0 2
        %5029 = vperm.xlu0 %5028, %v3396
        %v5030 = vpop.permute.xlu0 %5029
        %5032 = vset.pattern.permute.xlu0 2
        %5033 = vperm.xlu0 %5032, %v3397
        %v5034 = vpop.permute.xlu0 %5033
        %5036 = vset.pattern.permute.xlu0 2
        %5037 = vperm.xlu0 %5036, %v3398
        %v5038 = vpop.permute.xlu0 %5037
        %5040 = vset.pattern.permute.xlu0 2
        %5041 = vperm.xlu0 %5040, %v3399
        %v5042 = vpop.permute.xlu0 %5041
        %5044 = vset.pattern.permute.xlu0 2
        %5045 = vperm.xlu0 %5044, %v3400
        %v5046 = vpop.permute.xlu0 %5045
        %5048 = vset.pattern.permute.xlu0 2
        %5049 = vperm.xlu0 %5048, %v3401
        %v5050 = vpop.permute.xlu0 %5049
        %5052 = vset.pattern.permute.xlu0 2
        %5053 = vperm.xlu0 %5052, %v3402
        %v5054 = vpop.permute.xlu0 %5053
        %5056 = vset.pattern.permute.xlu0 2
        %5057 = vperm.xlu0 %5056, %v3403
        %v5058 = vpop.permute.xlu0 %5057
        %5060 = vset.pattern.permute.xlu0 2
        %5061 = vperm.xlu0 %5060, %v3404
        %v5062 = vpop.permute.xlu0 %5061
        %5064 = vset.pattern.permute.xlu0 2
        %5065 = vperm.xlu0 %5064, %v3405
        %v5066 = vpop.permute.xlu0 %5065
        %5068 = vset.pattern.permute.xlu0 2
        %5069 = vperm.xlu0 %5068, %v3406
        %v5070 = vpop.permute.xlu0 %5069
        %v5072 = vmul.f32 %v4752, %v4818
        %v5073 = vmul.f32 %v4815, %v4822
        %v5074 = vmul.f32 %v4814, %v4826
        %v5075 = vmul.f32 %v4813, %v4830
        %v5076 = vmul.f32 %v4812, %v4834
        %v5077 = vmul.f32 %v4811, %v4838
        %v5078 = vmul.f32 %v4810, %v4842
        %v5079 = vmul.f32 %v4809, %v4846
        %v5080 = vmul.f32 %v4808, %v4850
        %v5081 = vmul.f32 %v4807, %v4854
        %v5082 = vmul.f32 %v4806, %v4858
        %v5083 = vmul.f32 %v4805, %v4862
        %v5084 = vmul.f32 %v4804, %v4866
        %v5085 = vmul.f32 %v4803, %v4870
        %v5086 = vmul.f32 %v4802, %v4874
        %v5087 = vmul.f32 %v4801, %v4878
        %v5088 = vmul.f32 %v4800, %v4882
        %v5089 = vmul.f32 %v4799, %v4886
        %v5090 = vmul.f32 %v4798, %v4890
        %v5091 = vmul.f32 %v4797, %v4894
        %v5092 = vmul.f32 %v4796, %v4898
        %v5093 = vmul.f32 %v4795, %v4902
        %v5094 = vmul.f32 %v4794, %v4906
        %v5095 = vmul.f32 %v4793, %v4910
        %v5096 = vmul.f32 %v4792, %v4914
        %v5097 = vmul.f32 %v4791, %v4918
        %v5098 = vmul.f32 %v4790, %v4922
        %v5099 = vmul.f32 %v4789, %v4926
        %v5100 = vmul.f32 %v4788, %v4930
        %v5101 = vmul.f32 %v4787, %v4934
        %v5102 = vmul.f32 %v4786, %v4938
        %v5103 = vmul.f32 %v4785, %v4942
        %v5104 = vmul.f32 %v4784, %v4946
        %v5105 = vmul.f32 %v4783, %v4950
        %v5106 = vmul.f32 %v4782, %v4954
        %v5107 = vmul.f32 %v4781, %v4958
        %v5108 = vmul.f32 %v4780, %v4962
        %v5109 = vmul.f32 %v4779, %v4966
        %v5110 = vmul.f32 %v4778, %v4970
        %v5111 = vmul.f32 %v4777, %v4974
        %v5112 = vmul.f32 %v4776, %v4978
        %v5113 = vmul.f32 %v4775, %v4982
        %v5114 = vmul.f32 %v4774, %v4986
        %v5115 = vmul.f32 %v4773, %v4990
        %v5116 = vmul.f32 %v4772, %v4994
        %v5117 = vmul.f32 %v4771, %v4998
        %v5118 = vmul.f32 %v4770, %v5002
        %v5119 = vmul.f32 %v4769, %v5006
        %v5120 = vmul.f32 %v4768, %v5010
        %v5121 = vmul.f32 %v4767, %v5014
        %v5122 = vmul.f32 %v4766, %v5018
        %v5123 = vmul.f32 %v4765, %v5022
        %v5124 = vmul.f32 %v4764, %v5026
        %v5125 = vmul.f32 %v4763, %v5030
        %v5126 = vmul.f32 %v4762, %v5034
        %v5127 = vmul.f32 %v4761, %v5038
        %v5128 = vmul.f32 %v4760, %v5042
        %v5129 = vmul.f32 %v4759, %v5046
        %v5130 = vmul.f32 %v4758, %v5050
        %v5131 = vmul.f32 %v4757, %v5054
        %v5132 = vmul.f32 %v4756, %v5058
        %v5133 = vmul.f32 %v4755, %v5062
        %v5134 = vmul.f32 %v4754, %v5066
        %v5135 = vmul.f32 %v4753, %v5070
        %v5136 = vadd.f32 %v4431, %v5072
        %v5137 = vadd.f32 %v4432, %v5073
        %v5138 = vadd.f32 %v4433, %v5074
        %v5139 = vadd.f32 %v4434, %v5075
        %v5140 = vadd.f32 %v4435, %v5076
        %v5141 = vadd.f32 %v4436, %v5077
        %v5142 = vadd.f32 %v4437, %v5078
        %v5143 = vadd.f32 %v4438, %v5079
        %v5144 = vadd.f32 %v4439, %v5080
        %v5145 = vadd.f32 %v4440, %v5081
        %v5146 = vadd.f32 %v4441, %v5082
        %v5147 = vadd.f32 %v4442, %v5083
        %v5148 = vadd.f32 %v4443, %v5084
        %v5149 = vadd.f32 %v4444, %v5085
        %v5150 = vadd.f32 %v4445, %v5086
        %v5151 = vadd.f32 %v4446, %v5087
        %v5152 = vadd.f32 %v4447, %v5088
        %v5153 = vadd.f32 %v4448, %v5089
        %v5154 = vadd.f32 %v4449, %v5090
        %v5155 = vadd.f32 %v4450, %v5091
        %v5156 = vadd.f32 %v4451, %v5092
        %v5157 = vadd.f32 %v4452, %v5093
        %v5158 = vadd.f32 %v4453, %v5094
        %v5159 = vadd.f32 %v4454, %v5095
        %v5160 = vadd.f32 %v4455, %v5096
        %v5161 = vadd.f32 %v4456, %v5097
        %v5162 = vadd.f32 %v4457, %v5098
        %v5163 = vadd.f32 %v4458, %v5099
        %v5164 = vadd.f32 %v4459, %v5100
        %v5165 = vadd.f32 %v4460, %v5101
        %v5166 = vadd.f32 %v4461, %v5102
        %v5167 = vadd.f32 %v4462, %v5103
        %v5168 = vadd.f32 %v4463, %v5104
        %v5169 = vadd.f32 %v4464, %v5105
        %v5170 = vadd.f32 %v4465, %v5106
        %v5171 = vadd.f32 %v4466, %v5107
        %v5172 = vadd.f32 %v4467, %v5108
        %v5173 = vadd.f32 %v4468, %v5109
        %v5174 = vadd.f32 %v4469, %v5110
        %v5175 = vadd.f32 %v4470, %v5111
        %v5176 = vadd.f32 %v4471, %v5112
        %v5177 = vadd.f32 %v4472, %v5113
        %v5178 = vadd.f32 %v4473, %v5114
        %v5179 = vadd.f32 %v4474, %v5115
        %v5180 = vadd.f32 %v4475, %v5116
        %v5181 = vadd.f32 %v4476, %v5117
        %v5182 = vadd.f32 %v4477, %v5118
        %v5183 = vadd.f32 %v4478, %v5119
        %v5184 = vadd.f32 %v4479, %v5120
        %v5185 = vadd.f32 %v4480, %v5121
        %v5186 = vadd.f32 %v4481, %v5122
        %v5187 = vadd.f32 %v4482, %v5123
        %v5188 = vadd.f32 %v4483, %v5124
        %v5189 = vadd.f32 %v4484, %v5125
        %v5190 = vadd.f32 %v4485, %v5126
        %v5191 = vadd.f32 %v4486, %v5127
        %v5192 = vadd.f32 %v4487, %v5128
        %v5193 = vadd.f32 %v4488, %v5129
        %v5194 = vadd.f32 %v4489, %v5130
        %v5195 = vadd.f32 %v4490, %v5131
        %v5196 = vadd.f32 %v4491, %v5132
        %v5197 = vadd.f32 %v4492, %v5133
        %v5198 = vadd.f32 %v4493, %v5134
        %v5199 = vadd.f32 %v4494, %v5135
        %5200 = vrot.lane.b32.xlu0 %v3021, 116
        %v5201 = vpop.permute.xlu0 %5200
        %5202 = vrot.lane.b32.xlu0 %v3024, 116
        %v5203 = vpop.permute.xlu0 %5202
        %5204 = vrot.lane.b32.xlu0 %v3027, 116
        %v5205 = vpop.permute.xlu0 %5204
        %5206 = vrot.lane.b32.xlu0 %v3030, 116
        %v5207 = vpop.permute.xlu0 %5206
        %5208 = vrot.lane.b32.xlu0 %v3033, 116
        %v5209 = vpop.permute.xlu0 %5208
        %5210 = vrot.lane.b32.xlu0 %v3036, 116
        %v5211 = vpop.permute.xlu0 %5210
        %5212 = vrot.lane.b32.xlu0 %v3039, 116
        %v5213 = vpop.permute.xlu0 %5212
        %5214 = vrot.lane.b32.xlu0 %v3042, 116
        %v5215 = vpop.permute.xlu0 %5214
        %5216 = vrot.lane.b32.xlu0 %v3045, 116
        %v5217 = vpop.permute.xlu0 %5216
        %5218 = vrot.lane.b32.xlu0 %v3048, 116
        %v5219 = vpop.permute.xlu0 %5218
        %5220 = vrot.lane.b32.xlu0 %v3051, 116
        %v5221 = vpop.permute.xlu0 %5220
        %5222 = vrot.lane.b32.xlu0 %v3054, 116
        %v5223 = vpop.permute.xlu0 %5222
        %5224 = vrot.lane.b32.xlu0 %v3057, 116
        %v5225 = vpop.permute.xlu0 %5224
        %5226 = vrot.lane.b32.xlu0 %v3060, 116
        %v5227 = vpop.permute.xlu0 %5226
        %5228 = vrot.lane.b32.xlu0 %v3063, 116
        %v5229 = vpop.permute.xlu0 %5228
        %5230 = vrot.lane.b32.xlu0 %v3066, 116
        %v5231 = vpop.permute.xlu0 %5230
        %5232 = vrot.lane.b32.xlu0 %v3069, 116
        %v5233 = vpop.permute.xlu0 %5232
        %5234 = vrot.lane.b32.xlu0 %v3072, 116
        %v5235 = vpop.permute.xlu0 %5234
        %5236 = vrot.lane.b32.xlu0 %v3075, 116
        %v5237 = vpop.permute.xlu0 %5236
        %5238 = vrot.lane.b32.xlu0 %v3078, 116
        %v5239 = vpop.permute.xlu0 %5238
        %5240 = vrot.lane.b32.xlu0 %v3081, 116
        %v5241 = vpop.permute.xlu0 %5240
        %5242 = vrot.lane.b32.xlu0 %v3084, 116
        %v5243 = vpop.permute.xlu0 %5242
        %5244 = vrot.lane.b32.xlu0 %v3087, 116
        %v5245 = vpop.permute.xlu0 %5244
        %5246 = vrot.lane.b32.xlu0 %v3090, 116
        %v5247 = vpop.permute.xlu0 %5246
        %5248 = vrot.lane.b32.xlu0 %v3093, 116
        %v5249 = vpop.permute.xlu0 %5248
        %5250 = vrot.lane.b32.xlu0 %v3096, 116
        %v5251 = vpop.permute.xlu0 %5250
        %5252 = vrot.lane.b32.xlu0 %v3099, 116
        %v5253 = vpop.permute.xlu0 %5252
        %5254 = vrot.lane.b32.xlu0 %v3102, 116
        %v5255 = vpop.permute.xlu0 %5254
        %5256 = vrot.lane.b32.xlu0 %v3105, 116
        %v5257 = vpop.permute.xlu0 %5256
        %5258 = vrot.lane.b32.xlu0 %v3108, 116
        %v5259 = vpop.permute.xlu0 %5258
        %5260 = vrot.lane.b32.xlu0 %v3111, 116
        %v5261 = vpop.permute.xlu0 %5260
        %5262 = vrot.lane.b32.xlu0 %v3114, 116
        %v5263 = vpop.permute.xlu0 %5262
        %5264 = vrot.lane.b32.xlu0 %v3117, 116
        %v5265 = vpop.permute.xlu0 %5264
        %5266 = vrot.lane.b32.xlu0 %v3120, 116
        %v5267 = vpop.permute.xlu0 %5266
        %5268 = vrot.lane.b32.xlu0 %v3123, 116
        %v5269 = vpop.permute.xlu0 %5268
        %5270 = vrot.lane.b32.xlu0 %v3126, 116
        %v5271 = vpop.permute.xlu0 %5270
        %5272 = vrot.lane.b32.xlu0 %v3129, 116
        %v5273 = vpop.permute.xlu0 %5272
        %5274 = vrot.lane.b32.xlu0 %v3132, 116
        %v5275 = vpop.permute.xlu0 %5274
        %5276 = vrot.lane.b32.xlu0 %v3135, 116
        %v5277 = vpop.permute.xlu0 %5276
        %5278 = vrot.lane.b32.xlu0 %v3138, 116
        %v5279 = vpop.permute.xlu0 %5278
        %5280 = vrot.lane.b32.xlu0 %v3141, 116
        %v5281 = vpop.permute.xlu0 %5280
        %5282 = vrot.lane.b32.xlu0 %v3144, 116
        %v5283 = vpop.permute.xlu0 %5282
        %5284 = vrot.lane.b32.xlu0 %v3147, 116
        %v5285 = vpop.permute.xlu0 %5284
        %5286 = vrot.lane.b32.xlu0 %v3150, 116
        %v5287 = vpop.permute.xlu0 %5286
        %5288 = vrot.lane.b32.xlu0 %v3153, 116
        %v5289 = vpop.permute.xlu0 %5288
        %5290 = vrot.lane.b32.xlu0 %v3156, 116
        %v5291 = vpop.permute.xlu0 %5290
        %5292 = vrot.lane.b32.xlu0 %v3159, 116
        %v5293 = vpop.permute.xlu0 %5292
        %5294 = vrot.lane.b32.xlu0 %v3162, 116
        %v5295 = vpop.permute.xlu0 %5294
        %5296 = vrot.lane.b32.xlu0 %v3165, 116
        %v5297 = vpop.permute.xlu0 %5296
        %5298 = vrot.lane.b32.xlu0 %v3168, 116
        %v5299 = vpop.permute.xlu0 %5298
        %5300 = vrot.lane.b32.xlu0 %v3171, 116
        %v5301 = vpop.permute.xlu0 %5300
        %5302 = vrot.lane.b32.xlu0 %v3174, 116
        %v5303 = vpop.permute.xlu0 %5302
        %5304 = vrot.lane.b32.xlu0 %v3177, 116
        %v5305 = vpop.permute.xlu0 %5304
        %5306 = vrot.lane.b32.xlu0 %v3180, 116
        %v5307 = vpop.permute.xlu0 %5306
        %5308 = vrot.lane.b32.xlu0 %v3183, 116
        %v5309 = vpop.permute.xlu0 %5308
        %5310 = vrot.lane.b32.xlu0 %v3186, 116
        %v5311 = vpop.permute.xlu0 %5310
        %5312 = vrot.lane.b32.xlu0 %v3189, 116
        %v5313 = vpop.permute.xlu0 %5312
        %5314 = vrot.lane.b32.xlu0 %v3192, 116
        %v5315 = vpop.permute.xlu0 %5314
        %5316 = vrot.lane.b32.xlu0 %v3195, 116
        %v5317 = vpop.permute.xlu0 %5316
        %5318 = vrot.lane.b32.xlu0 %v3198, 116
        %v5319 = vpop.permute.xlu0 %5318
        %5320 = vrot.lane.b32.xlu0 %v3201, 116
        %v5321 = vpop.permute.xlu0 %5320
        %5322 = vrot.lane.b32.xlu0 %v3204, 116
        %v5323 = vpop.permute.xlu0 %5322
        %5324 = vrot.lane.b32.xlu0 %v3207, 116
        %v5325 = vpop.permute.xlu0 %5324
        %5326 = vrot.lane.b32.xlu0 %v3210, 116
        %v5327 = vpop.permute.xlu0 %5326
        %v5392 = vrot.slane %v5201, 7
        %v5393 = vrot.slane %v5203, 7
        %v5394 = vrot.slane %v5205, 7
        %v5395 = vrot.slane %v5207, 7
        %v5396 = vrot.slane %v5209, 7
        %v5397 = vrot.slane %v5211, 7
        %v5398 = vrot.slane %v5213, 7
        %v5399 = vrot.slane %v5215, 7
        %v5400 = vrot.slane %v5217, 7
        %v5401 = vrot.slane %v5219, 7
        %v5402 = vrot.slane %v5221, 7
        %v5403 = vrot.slane %v5223, 7
        %v5404 = vrot.slane %v5225, 7
        %v5405 = vrot.slane %v5227, 7
        %v5406 = vrot.slane %v5229, 7
        %v5407 = vrot.slane %v5231, 7
        %v5408 = vrot.slane %v5233, 7
        %v5409 = vrot.slane %v5235, 7
        %v5410 = vrot.slane %v5237, 7
        %v5411 = vrot.slane %v5239, 7
        %v5412 = vrot.slane %v5241, 7
        %v5413 = vrot.slane %v5243, 7
        %v5414 = vrot.slane %v5245, 7
        %v5415 = vrot.slane %v5247, 7
        %v5416 = vrot.slane %v5249, 7
        %v5417 = vrot.slane %v5251, 7
        %v5418 = vrot.slane %v5253, 7
        %v5419 = vrot.slane %v5255, 7
        %v5420 = vrot.slane %v5257, 7
        %v5421 = vrot.slane %v5259, 7
        %v5422 = vrot.slane %v5261, 7
        %v5423 = vrot.slane %v5263, 7
        %v5424 = vrot.slane %v5265, 7
        %v5425 = vrot.slane %v5267, 7
        %v5426 = vrot.slane %v5269, 7
        %v5427 = vrot.slane %v5271, 7
        %v5428 = vrot.slane %v5273, 7
        %v5429 = vrot.slane %v5275, 7
        %v5430 = vrot.slane %v5277, 7
        %v5431 = vrot.slane %v5279, 7
        %v5432 = vrot.slane %v5281, 7
        %v5433 = vrot.slane %v5283, 7
        %v5434 = vrot.slane %v5285, 7
        %v5435 = vrot.slane %v5287, 7
        %v5436 = vrot.slane %v5289, 7
        %v5437 = vrot.slane %v5291, 7
        %v5438 = vrot.slane %v5293, 7
        %v5439 = vrot.slane %v5295, 7
        %v5440 = vrot.slane %v5297, 7
        %v5441 = vrot.slane %v5299, 7
        %v5442 = vrot.slane %v5301, 7
        %v5443 = vrot.slane %v5303, 7
        %v5444 = vrot.slane %v5305, 7
        %v5445 = vrot.slane %v5307, 7
        %v5446 = vrot.slane %v5309, 7
        %v5447 = vrot.slane %v5311, 7
        %v5448 = vrot.slane %v5313, 7
        %v5449 = vrot.slane %v5315, 7
        %v5450 = vrot.slane %v5317, 7
        %v5451 = vrot.slane %v5319, 7
        %v5452 = vrot.slane %v5321, 7
        %v5453 = vrot.slane %v5323, 7
        %v5454 = vrot.slane %v5325, 7
        %v5455 = vrot.slane %v5327, 7
        %v5456 = vsel %vm3278, %v5454, %v5455
        %v5457 = vsel %vm3278, %v5453, %v5454
        %v5458 = vsel %vm3278, %v5452, %v5453
        %v5459 = vsel %vm3278, %v5451, %v5452
        %v5460 = vsel %vm3278, %v5450, %v5451
        %v5461 = vsel %vm3278, %v5449, %v5450
        %v5462 = vsel %vm3278, %v5448, %v5449
        %v5463 = vsel %vm3278, %v5447, %v5448
        %v5464 = vsel %vm3278, %v5446, %v5447
        %v5465 = vsel %vm3278, %v5445, %v5446
        %v5466 = vsel %vm3278, %v5444, %v5445
        %v5467 = vsel %vm3278, %v5443, %v5444
        %v5468 = vsel %vm3278, %v5442, %v5443
        %v5469 = vsel %vm3278, %v5441, %v5442
        %v5470 = vsel %vm3278, %v5440, %v5441
        %v5471 = vsel %vm3278, %v5439, %v5440
        %v5472 = vsel %vm3278, %v5438, %v5439
        %v5473 = vsel %vm3278, %v5437, %v5438
        %v5474 = vsel %vm3278, %v5436, %v5437
        %v5475 = vsel %vm3278, %v5435, %v5436
        %v5476 = vsel %vm3278, %v5434, %v5435
        %v5477 = vsel %vm3278, %v5433, %v5434
        %v5478 = vsel %vm3278, %v5432, %v5433
        %v5479 = vsel %vm3278, %v5431, %v5432
        %v5480 = vsel %vm3278, %v5430, %v5431
        %v5481 = vsel %vm3278, %v5429, %v5430
        %v5482 = vsel %vm3278, %v5428, %v5429
        %v5483 = vsel %vm3278, %v5427, %v5428
        %v5484 = vsel %vm3278, %v5426, %v5427
        %v5485 = vsel %vm3278, %v5425, %v5426
        %v5486 = vsel %vm3278, %v5424, %v5425
        %v5487 = vsel %vm3278, %v5423, %v5424
        %v5488 = vsel %vm3278, %v5422, %v5423
        %v5489 = vsel %vm3278, %v5421, %v5422
        %v5490 = vsel %vm3278, %v5420, %v5421
        %v5491 = vsel %vm3278, %v5419, %v5420
        %v5492 = vsel %vm3278, %v5418, %v5419
        %v5493 = vsel %vm3278, %v5417, %v5418
        %v5494 = vsel %vm3278, %v5416, %v5417
        %v5495 = vsel %vm3278, %v5415, %v5416
        %v5496 = vsel %vm3278, %v5414, %v5415
        %v5497 = vsel %vm3278, %v5413, %v5414
        %v5498 = vsel %vm3278, %v5412, %v5413
        %v5499 = vsel %vm3278, %v5411, %v5412
        %v5500 = vsel %vm3278, %v5410, %v5411
        %v5501 = vsel %vm3278, %v5409, %v5410
        %v5502 = vsel %vm3278, %v5408, %v5409
        %v5503 = vsel %vm3278, %v5407, %v5408
        %v5504 = vsel %vm3278, %v5406, %v5407
        %v5505 = vsel %vm3278, %v5405, %v5406
        %v5506 = vsel %vm3278, %v5404, %v5405
        %v5507 = vsel %vm3278, %v5403, %v5404
        %v5508 = vsel %vm3278, %v5402, %v5403
        %v5509 = vsel %vm3278, %v5401, %v5402
        %v5510 = vsel %vm3278, %v5400, %v5401
        %v5511 = vsel %vm3278, %v5399, %v5400
        %v5512 = vsel %vm3278, %v5398, %v5399
        %v5513 = vsel %vm3278, %v5397, %v5398
        %v5514 = vsel %vm3278, %v5396, %v5397
        %v5515 = vsel %vm3278, %v5395, %v5396
        %v5516 = vsel %vm3278, %v5394, %v5395
        %v5517 = vsel %vm3278, %v5393, %v5394
        %v5518 = vsel %vm3278, %v5392, %v5393
        %v5519 = vsel %vm3278, %v5455, %v5392
        %5520 = vset.pattern.permute.xlu0 3
        %5521 = vperm.xlu0 %5520, %v3343
        %v5522 = vpop.permute.xlu0 %5521
        %5524 = vset.pattern.permute.xlu0 3
        %5525 = vperm.xlu0 %5524, %v3344
        %v5526 = vpop.permute.xlu0 %5525
        %5528 = vset.pattern.permute.xlu0 3
        %5529 = vperm.xlu0 %5528, %v3345
        %v5530 = vpop.permute.xlu0 %5529
        %5532 = vset.pattern.permute.xlu0 3
        %5533 = vperm.xlu0 %5532, %v3346
        %v5534 = vpop.permute.xlu0 %5533
        %5536 = vset.pattern.permute.xlu0 3
        %5537 = vperm.xlu0 %5536, %v3347
        %v5538 = vpop.permute.xlu0 %5537
        %5540 = vset.pattern.permute.xlu0 3
        %5541 = vperm.xlu0 %5540, %v3348
        %v5542 = vpop.permute.xlu0 %5541
        %5544 = vset.pattern.permute.xlu0 3
        %5545 = vperm.xlu0 %5544, %v3349
        %v5546 = vpop.permute.xlu0 %5545
        %5548 = vset.pattern.permute.xlu0 3
        %5549 = vperm.xlu0 %5548, %v3350
        %v5550 = vpop.permute.xlu0 %5549
        %5552 = vset.pattern.permute.xlu0 3
        %5553 = vperm.xlu0 %5552, %v3351
        %v5554 = vpop.permute.xlu0 %5553
        %5556 = vset.pattern.permute.xlu0 3
        %5557 = vperm.xlu0 %5556, %v3352
        %v5558 = vpop.permute.xlu0 %5557
        %5560 = vset.pattern.permute.xlu0 3
        %5561 = vperm.xlu0 %5560, %v3353
        %v5562 = vpop.permute.xlu0 %5561
        %5564 = vset.pattern.permute.xlu0 3
        %5565 = vperm.xlu0 %5564, %v3354
        %v5566 = vpop.permute.xlu0 %5565
        %5568 = vset.pattern.permute.xlu0 3
        %5569 = vperm.xlu0 %5568, %v3355
        %v5570 = vpop.permute.xlu0 %5569
        %5572 = vset.pattern.permute.xlu0 3
        %5573 = vperm.xlu0 %5572, %v3356
        %v5574 = vpop.permute.xlu0 %5573
        %5576 = vset.pattern.permute.xlu0 3
        %5577 = vperm.xlu0 %5576, %v3357
        %v5578 = vpop.permute.xlu0 %5577
        %5580 = vset.pattern.permute.xlu0 3
        %5581 = vperm.xlu0 %5580, %v3358
        %v5582 = vpop.permute.xlu0 %5581
        %5584 = vset.pattern.permute.xlu0 3
        %5585 = vperm.xlu0 %5584, %v3359
        %v5586 = vpop.permute.xlu0 %5585
        %5588 = vset.pattern.permute.xlu0 3
        %5589 = vperm.xlu0 %5588, %v3360
        %v5590 = vpop.permute.xlu0 %5589
        %5592 = vset.pattern.permute.xlu0 3
        %5593 = vperm.xlu0 %5592, %v3361
        %v5594 = vpop.permute.xlu0 %5593
        %5596 = vset.pattern.permute.xlu0 3
        %5597 = vperm.xlu0 %5596, %v3362
        %v5598 = vpop.permute.xlu0 %5597
        %5600 = vset.pattern.permute.xlu0 3
        %5601 = vperm.xlu0 %5600, %v3363
        %v5602 = vpop.permute.xlu0 %5601
        %5604 = vset.pattern.permute.xlu0 3
        %5605 = vperm.xlu0 %5604, %v3364
        %v5606 = vpop.permute.xlu0 %5605
        %5608 = vset.pattern.permute.xlu0 3
        %5609 = vperm.xlu0 %5608, %v3365
        %v5610 = vpop.permute.xlu0 %5609
        %5612 = vset.pattern.permute.xlu0 3
        %5613 = vperm.xlu0 %5612, %v3366
        %v5614 = vpop.permute.xlu0 %5613
        %5616 = vset.pattern.permute.xlu0 3
        %5617 = vperm.xlu0 %5616, %v3367
        %v5618 = vpop.permute.xlu0 %5617
        %5620 = vset.pattern.permute.xlu0 3
        %5621 = vperm.xlu0 %5620, %v3368
        %v5622 = vpop.permute.xlu0 %5621
        %5624 = vset.pattern.permute.xlu0 3
        %5625 = vperm.xlu0 %5624, %v3369
        %v5626 = vpop.permute.xlu0 %5625
        %5628 = vset.pattern.permute.xlu0 3
        %5629 = vperm.xlu0 %5628, %v3370
        %v5630 = vpop.permute.xlu0 %5629
        %5632 = vset.pattern.permute.xlu0 3
        %5633 = vperm.xlu0 %5632, %v3371
        %v5634 = vpop.permute.xlu0 %5633
        %5636 = vset.pattern.permute.xlu0 3
        %5637 = vperm.xlu0 %5636, %v3372
        %v5638 = vpop.permute.xlu0 %5637
        %5640 = vset.pattern.permute.xlu0 3
        %5641 = vperm.xlu0 %5640, %v3373
        %v5642 = vpop.permute.xlu0 %5641
        %5644 = vset.pattern.permute.xlu0 3
        %5645 = vperm.xlu0 %5644, %v3374
        %v5646 = vpop.permute.xlu0 %5645
        %5648 = vset.pattern.permute.xlu0 3
        %5649 = vperm.xlu0 %5648, %v3375
        %v5650 = vpop.permute.xlu0 %5649
        %5652 = vset.pattern.permute.xlu0 3
        %5653 = vperm.xlu0 %5652, %v3376
        %v5654 = vpop.permute.xlu0 %5653
        %5656 = vset.pattern.permute.xlu0 3
        %5657 = vperm.xlu0 %5656, %v3377
        %v5658 = vpop.permute.xlu0 %5657
        %5660 = vset.pattern.permute.xlu0 3
        %5661 = vperm.xlu0 %5660, %v3378
        %v5662 = vpop.permute.xlu0 %5661
        %5664 = vset.pattern.permute.xlu0 3
        %5665 = vperm.xlu0 %5664, %v3379
        %v5666 = vpop.permute.xlu0 %5665
        %5668 = vset.pattern.permute.xlu0 3
        %5669 = vperm.xlu0 %5668, %v3380
        %v5670 = vpop.permute.xlu0 %5669
        %5672 = vset.pattern.permute.xlu0 3
        %5673 = vperm.xlu0 %5672, %v3381
        %v5674 = vpop.permute.xlu0 %5673
        %5676 = vset.pattern.permute.xlu0 3
        %5677 = vperm.xlu0 %5676, %v3382
        %v5678 = vpop.permute.xlu0 %5677
        %5680 = vset.pattern.permute.xlu0 3
        %5681 = vperm.xlu0 %5680, %v3383
        %v5682 = vpop.permute.xlu0 %5681
        %5684 = vset.pattern.permute.xlu0 3
        %5685 = vperm.xlu0 %5684, %v3384
        %v5686 = vpop.permute.xlu0 %5685
        %5688 = vset.pattern.permute.xlu0 3
        %5689 = vperm.xlu0 %5688, %v3385
        %v5690 = vpop.permute.xlu0 %5689
        %5692 = vset.pattern.permute.xlu0 3
        %5693 = vperm.xlu0 %5692, %v3386
        %v5694 = vpop.permute.xlu0 %5693
        %5696 = vset.pattern.permute.xlu0 3
        %5697 = vperm.xlu0 %5696, %v3387
        %v5698 = vpop.permute.xlu0 %5697
        %5700 = vset.pattern.permute.xlu0 3
        %5701 = vperm.xlu0 %5700, %v3388
        %v5702 = vpop.permute.xlu0 %5701
        %5704 = vset.pattern.permute.xlu0 3
        %5705 = vperm.xlu0 %5704, %v3389
        %v5706 = vpop.permute.xlu0 %5705
        %5708 = vset.pattern.permute.xlu0 3
        %5709 = vperm.xlu0 %5708, %v3390
        %v5710 = vpop.permute.xlu0 %5709
        %5712 = vset.pattern.permute.xlu0 3
        %5713 = vperm.xlu0 %5712, %v3391
        %v5714 = vpop.permute.xlu0 %5713
        %5716 = vset.pattern.permute.xlu0 3
        %5717 = vperm.xlu0 %5716, %v3392
        %v5718 = vpop.permute.xlu0 %5717
        %5720 = vset.pattern.permute.xlu0 3
        %5721 = vperm.xlu0 %5720, %v3393
        %v5722 = vpop.permute.xlu0 %5721
        %5724 = vset.pattern.permute.xlu0 3
        %5725 = vperm.xlu0 %5724, %v3394
        %v5726 = vpop.permute.xlu0 %5725
        %5728 = vset.pattern.permute.xlu0 3
        %5729 = vperm.xlu0 %5728, %v3395
        %v5730 = vpop.permute.xlu0 %5729
        %5732 = vset.pattern.permute.xlu0 3
        %5733 = vperm.xlu0 %5732, %v3396
        %v5734 = vpop.permute.xlu0 %5733
        %5736 = vset.pattern.permute.xlu0 3
        %5737 = vperm.xlu0 %5736, %v3397
        %v5738 = vpop.permute.xlu0 %5737
        %5740 = vset.pattern.permute.xlu0 3
        %5741 = vperm.xlu0 %5740, %v3398
        %v5742 = vpop.permute.xlu0 %5741
        %5744 = vset.pattern.permute.xlu0 3
        %5745 = vperm.xlu0 %5744, %v3399
        %v5746 = vpop.permute.xlu0 %5745
        %5748 = vset.pattern.permute.xlu0 3
        %5749 = vperm.xlu0 %5748, %v3400
        %v5750 = vpop.permute.xlu0 %5749
        %5752 = vset.pattern.permute.xlu0 3
        %5753 = vperm.xlu0 %5752, %v3401
        %v5754 = vpop.permute.xlu0 %5753
        %5756 = vset.pattern.permute.xlu0 3
        %5757 = vperm.xlu0 %5756, %v3402
        %v5758 = vpop.permute.xlu0 %5757
        %5760 = vset.pattern.permute.xlu0 3
        %5761 = vperm.xlu0 %5760, %v3403
        %v5762 = vpop.permute.xlu0 %5761
        %5764 = vset.pattern.permute.xlu0 3
        %5765 = vperm.xlu0 %5764, %v3404
        %v5766 = vpop.permute.xlu0 %5765
        %5768 = vset.pattern.permute.xlu0 3
        %5769 = vperm.xlu0 %5768, %v3405
        %v5770 = vpop.permute.xlu0 %5769
        %5772 = vset.pattern.permute.xlu0 3
        %5773 = vperm.xlu0 %5772, %v3406
        %v5774 = vpop.permute.xlu0 %5773
        %v5776 = vmul.f32 %v5519, %v5522
        %v5777 = vmul.f32 %v5518, %v5526
        %v5778 = vmul.f32 %v5517, %v5530
        %v5779 = vmul.f32 %v5516, %v5534
        %v5780 = vmul.f32 %v5515, %v5538
        %v5781 = vmul.f32 %v5514, %v5542
        %v5782 = vmul.f32 %v5513, %v5546
        %v5783 = vmul.f32 %v5512, %v5550
        %v5784 = vmul.f32 %v5511, %v5554
        %v5785 = vmul.f32 %v5510, %v5558
        %v5786 = vmul.f32 %v5509, %v5562
        %v5787 = vmul.f32 %v5508, %v5566
        %v5788 = vmul.f32 %v5507, %v5570
        %v5789 = vmul.f32 %v5506, %v5574
        %v5790 = vmul.f32 %v5505, %v5578
        %v5791 = vmul.f32 %v5504, %v5582
        %v5792 = vmul.f32 %v5503, %v5586
        %v5793 = vmul.f32 %v5502, %v5590
        %v5794 = vmul.f32 %v5501, %v5594
        %v5795 = vmul.f32 %v5500, %v5598
        %v5796 = vmul.f32 %v5499, %v5602
        %v5797 = vmul.f32 %v5498, %v5606
        %v5798 = vmul.f32 %v5497, %v5610
        %v5799 = vmul.f32 %v5496, %v5614
        %v5800 = vmul.f32 %v5495, %v5618
        %v5801 = vmul.f32 %v5494, %v5622
        %v5802 = vmul.f32 %v5493, %v5626
        %v5803 = vmul.f32 %v5492, %v5630
        %v5804 = vmul.f32 %v5491, %v5634
        %v5805 = vmul.f32 %v5490, %v5638
        %v5806 = vmul.f32 %v5489, %v5642
        %v5807 = vmul.f32 %v5488, %v5646
        %v5808 = vmul.f32 %v5487, %v5650
        %v5809 = vmul.f32 %v5486, %v5654
        %v5810 = vmul.f32 %v5485, %v5658
        %v5811 = vmul.f32 %v5484, %v5662
        %v5812 = vmul.f32 %v5483, %v5666
        %v5813 = vmul.f32 %v5482, %v5670
        %v5814 = vmul.f32 %v5481, %v5674
        %v5815 = vmul.f32 %v5480, %v5678
        %v5816 = vmul.f32 %v5479, %v5682
        %v5817 = vmul.f32 %v5478, %v5686
        %v5818 = vmul.f32 %v5477, %v5690
        %v5819 = vmul.f32 %v5476, %v5694
        %v5820 = vmul.f32 %v5475, %v5698
        %v5821 = vmul.f32 %v5474, %v5702
        %v5822 = vmul.f32 %v5473, %v5706
        %v5823 = vmul.f32 %v5472, %v5710
        %v5824 = vmul.f32 %v5471, %v5714
        %v5825 = vmul.f32 %v5470, %v5718
        %v5826 = vmul.f32 %v5469, %v5722
        %v5827 = vmul.f32 %v5468, %v5726
        %v5828 = vmul.f32 %v5467, %v5730
        %v5829 = vmul.f32 %v5466, %v5734
        %v5830 = vmul.f32 %v5465, %v5738
        %v5831 = vmul.f32 %v5464, %v5742
        %v5832 = vmul.f32 %v5463, %v5746
        %v5833 = vmul.f32 %v5462, %v5750
        %v5834 = vmul.f32 %v5461, %v5754
        %v5835 = vmul.f32 %v5460, %v5758
        %v5836 = vmul.f32 %v5459, %v5762
        %v5837 = vmul.f32 %v5458, %v5766
        %v5838 = vmul.f32 %v5457, %v5770
        %v5839 = vmul.f32 %v5456, %v5774
        %v5840 = vadd.f32 %v5136, %v5776
        %v5841 = vadd.f32 %v5137, %v5777
        %v5842 = vadd.f32 %v5138, %v5778
        %v5843 = vadd.f32 %v5139, %v5779
        %v5844 = vadd.f32 %v5140, %v5780
        %v5845 = vadd.f32 %v5141, %v5781
        %v5846 = vadd.f32 %v5142, %v5782
        %v5847 = vadd.f32 %v5143, %v5783
        %v5848 = vadd.f32 %v5144, %v5784
        %v5849 = vadd.f32 %v5145, %v5785
        %v5850 = vadd.f32 %v5146, %v5786
        %v5851 = vadd.f32 %v5147, %v5787
        %v5852 = vadd.f32 %v5148, %v5788
        %v5853 = vadd.f32 %v5149, %v5789
        %v5854 = vadd.f32 %v5150, %v5790
        %v5855 = vadd.f32 %v5151, %v5791
        %v5856 = vadd.f32 %v5152, %v5792
        %v5857 = vadd.f32 %v5153, %v5793
        %v5858 = vadd.f32 %v5154, %v5794
        %v5859 = vadd.f32 %v5155, %v5795
        %v5860 = vadd.f32 %v5156, %v5796
        %v5861 = vadd.f32 %v5157, %v5797
        %v5862 = vadd.f32 %v5158, %v5798
        %v5863 = vadd.f32 %v5159, %v5799
        %v5864 = vadd.f32 %v5160, %v5800
        %v5865 = vadd.f32 %v5161, %v5801
        %v5866 = vadd.f32 %v5162, %v5802
        %v5867 = vadd.f32 %v5163, %v5803
        %v5868 = vadd.f32 %v5164, %v5804
        %v5869 = vadd.f32 %v5165, %v5805
        %v5870 = vadd.f32 %v5166, %v5806
        %v5871 = vadd.f32 %v5167, %v5807
        %v5872 = vadd.f32 %v5168, %v5808
        %v5873 = vadd.f32 %v5169, %v5809
        %v5874 = vadd.f32 %v5170, %v5810
        %v5875 = vadd.f32 %v5171, %v5811
        %v5876 = vadd.f32 %v5172, %v5812
        %v5877 = vadd.f32 %v5173, %v5813
        %v5878 = vadd.f32 %v5174, %v5814
        %v5879 = vadd.f32 %v5175, %v5815
        %v5880 = vadd.f32 %v5176, %v5816
        %v5881 = vadd.f32 %v5177, %v5817
        %v5882 = vadd.f32 %v5178, %v5818
        %v5883 = vadd.f32 %v5179, %v5819
        %v5884 = vadd.f32 %v5180, %v5820
        %v5885 = vadd.f32 %v5181, %v5821
        %v5886 = vadd.f32 %v5182, %v5822
        %v5887 = vadd.f32 %v5183, %v5823
        %v5888 = vadd.f32 %v5184, %v5824
        %v5889 = vadd.f32 %v5185, %v5825
        %v5890 = vadd.f32 %v5186, %v5826
        %v5891 = vadd.f32 %v5187, %v5827
        %v5892 = vadd.f32 %v5188, %v5828
        %v5893 = vadd.f32 %v5189, %v5829
        %v5894 = vadd.f32 %v5190, %v5830
        %v5895 = vadd.f32 %v5191, %v5831
        %v5896 = vadd.f32 %v5192, %v5832
        %v5897 = vadd.f32 %v5193, %v5833
        %v5898 = vadd.f32 %v5194, %v5834
        %v5899 = vadd.f32 %v5195, %v5835
        %v5900 = vadd.f32 %v5196, %v5836
        %v5901 = vadd.f32 %v5197, %v5837
        %v5902 = vadd.f32 %v5198, %v5838
        %v5903 = vadd.f32 %v5199, %v5839
        %5904 = vrot.lane.b32.xlu0 %v3021, 112
        %v5905 = vpop.permute.xlu0 %5904
        %5906 = vrot.lane.b32.xlu0 %v3024, 112
        %v5907 = vpop.permute.xlu0 %5906
        %5908 = vrot.lane.b32.xlu0 %v3027, 112
        %v5909 = vpop.permute.xlu0 %5908
        %5910 = vrot.lane.b32.xlu0 %v3030, 112
        %v5911 = vpop.permute.xlu0 %5910
        %5912 = vrot.lane.b32.xlu0 %v3033, 112
        %v5913 = vpop.permute.xlu0 %5912
        %5914 = vrot.lane.b32.xlu0 %v3036, 112
        %v5915 = vpop.permute.xlu0 %5914
        %5916 = vrot.lane.b32.xlu0 %v3039, 112
        %v5917 = vpop.permute.xlu0 %5916
        %5918 = vrot.lane.b32.xlu0 %v3042, 112
        %v5919 = vpop.permute.xlu0 %5918
        %5920 = vrot.lane.b32.xlu0 %v3045, 112
        %v5921 = vpop.permute.xlu0 %5920
        %5922 = vrot.lane.b32.xlu0 %v3048, 112
        %v5923 = vpop.permute.xlu0 %5922
        %5924 = vrot.lane.b32.xlu0 %v3051, 112
        %v5925 = vpop.permute.xlu0 %5924
        %5926 = vrot.lane.b32.xlu0 %v3054, 112
        %v5927 = vpop.permute.xlu0 %5926
        %5928 = vrot.lane.b32.xlu0 %v3057, 112
        %v5929 = vpop.permute.xlu0 %5928
        %5930 = vrot.lane.b32.xlu0 %v3060, 112
        %v5931 = vpop.permute.xlu0 %5930
        %5932 = vrot.lane.b32.xlu0 %v3063, 112
        %v5933 = vpop.permute.xlu0 %5932
        %5934 = vrot.lane.b32.xlu0 %v3066, 112
        %v5935 = vpop.permute.xlu0 %5934
        %5936 = vrot.lane.b32.xlu0 %v3069, 112
        %v5937 = vpop.permute.xlu0 %5936
        %5938 = vrot.lane.b32.xlu0 %v3072, 112
        %v5939 = vpop.permute.xlu0 %5938
        %5940 = vrot.lane.b32.xlu0 %v3075, 112
        %v5941 = vpop.permute.xlu0 %5940
        %5942 = vrot.lane.b32.xlu0 %v3078, 112
        %v5943 = vpop.permute.xlu0 %5942
        %5944 = vrot.lane.b32.xlu0 %v3081, 112
        %v5945 = vpop.permute.xlu0 %5944
        %5946 = vrot.lane.b32.xlu0 %v3084, 112
        %v5947 = vpop.permute.xlu0 %5946
        %5948 = vrot.lane.b32.xlu0 %v3087, 112
        %v5949 = vpop.permute.xlu0 %5948
        %5950 = vrot.lane.b32.xlu0 %v3090, 112
        %v5951 = vpop.permute.xlu0 %5950
        %5952 = vrot.lane.b32.xlu0 %v3093, 112
        %v5953 = vpop.permute.xlu0 %5952
        %5954 = vrot.lane.b32.xlu0 %v3096, 112
        %v5955 = vpop.permute.xlu0 %5954
        %5956 = vrot.lane.b32.xlu0 %v3099, 112
        %v5957 = vpop.permute.xlu0 %5956
        %5958 = vrot.lane.b32.xlu0 %v3102, 112
        %v5959 = vpop.permute.xlu0 %5958
        %5960 = vrot.lane.b32.xlu0 %v3105, 112
        %v5961 = vpop.permute.xlu0 %5960
        %5962 = vrot.lane.b32.xlu0 %v3108, 112
        %v5963 = vpop.permute.xlu0 %5962
        %5964 = vrot.lane.b32.xlu0 %v3111, 112
        %v5965 = vpop.permute.xlu0 %5964
        %5966 = vrot.lane.b32.xlu0 %v3114, 112
        %v5967 = vpop.permute.xlu0 %5966
        %5968 = vrot.lane.b32.xlu0 %v3117, 112
        %v5969 = vpop.permute.xlu0 %5968
        %5970 = vrot.lane.b32.xlu0 %v3120, 112
        %v5971 = vpop.permute.xlu0 %5970
        %5972 = vrot.lane.b32.xlu0 %v3123, 112
        %v5973 = vpop.permute.xlu0 %5972
        %5974 = vrot.lane.b32.xlu0 %v3126, 112
        %v5975 = vpop.permute.xlu0 %5974
        %5976 = vrot.lane.b32.xlu0 %v3129, 112
        %v5977 = vpop.permute.xlu0 %5976
        %5978 = vrot.lane.b32.xlu0 %v3132, 112
        %v5979 = vpop.permute.xlu0 %5978
        %5980 = vrot.lane.b32.xlu0 %v3135, 112
        %v5981 = vpop.permute.xlu0 %5980
        %5982 = vrot.lane.b32.xlu0 %v3138, 112
        %v5983 = vpop.permute.xlu0 %5982
        %5984 = vrot.lane.b32.xlu0 %v3141, 112
        %v5985 = vpop.permute.xlu0 %5984
        %5986 = vrot.lane.b32.xlu0 %v3144, 112
        %v5987 = vpop.permute.xlu0 %5986
        %5988 = vrot.lane.b32.xlu0 %v3147, 112
        %v5989 = vpop.permute.xlu0 %5988
        %5990 = vrot.lane.b32.xlu0 %v3150, 112
        %v5991 = vpop.permute.xlu0 %5990
        %5992 = vrot.lane.b32.xlu0 %v3153, 112
        %v5993 = vpop.permute.xlu0 %5992
        %5994 = vrot.lane.b32.xlu0 %v3156, 112
        %v5995 = vpop.permute.xlu0 %5994
        %5996 = vrot.lane.b32.xlu0 %v3159, 112
        %v5997 = vpop.permute.xlu0 %5996
        %5998 = vrot.lane.b32.xlu0 %v3162, 112
        %v5999 = vpop.permute.xlu0 %5998
        %6000 = vrot.lane.b32.xlu0 %v3165, 112
        %v6001 = vpop.permute.xlu0 %6000
        %6002 = vrot.lane.b32.xlu0 %v3168, 112
        %v6003 = vpop.permute.xlu0 %6002
        %6004 = vrot.lane.b32.xlu0 %v3171, 112
        %v6005 = vpop.permute.xlu0 %6004
        %6006 = vrot.lane.b32.xlu0 %v3174, 112
        %v6007 = vpop.permute.xlu0 %6006
        %6008 = vrot.lane.b32.xlu0 %v3177, 112
        %v6009 = vpop.permute.xlu0 %6008
        %6010 = vrot.lane.b32.xlu0 %v3180, 112
        %v6011 = vpop.permute.xlu0 %6010
        %6012 = vrot.lane.b32.xlu0 %v3183, 112
        %v6013 = vpop.permute.xlu0 %6012
        %6014 = vrot.lane.b32.xlu0 %v3186, 112
        %v6015 = vpop.permute.xlu0 %6014
        %6016 = vrot.lane.b32.xlu0 %v3189, 112
        %v6017 = vpop.permute.xlu0 %6016
        %6018 = vrot.lane.b32.xlu0 %v3192, 112
        %v6019 = vpop.permute.xlu0 %6018
        %6020 = vrot.lane.b32.xlu0 %v3195, 112
        %v6021 = vpop.permute.xlu0 %6020
        %6022 = vrot.lane.b32.xlu0 %v3198, 112
        %v6023 = vpop.permute.xlu0 %6022
        %6024 = vrot.lane.b32.xlu0 %v3201, 112
        %v6025 = vpop.permute.xlu0 %6024
        %6026 = vrot.lane.b32.xlu0 %v3204, 112
        %v6027 = vpop.permute.xlu0 %6026
        %6028 = vrot.lane.b32.xlu0 %v3207, 112
        %v6029 = vpop.permute.xlu0 %6028
        %6030 = vrot.lane.b32.xlu0 %v3210, 112
        %v6031 = vpop.permute.xlu0 %6030
        %v6096 = vadd.f32 %v5840, %v5905
        %v6097 = vadd.f32 %v5841, %v5907
        %v6098 = vadd.f32 %v5842, %v5909
        %v6099 = vadd.f32 %v5843, %v5911
        %v6100 = vadd.f32 %v5844, %v5913
        %v6101 = vadd.f32 %v5845, %v5915
        %v6102 = vadd.f32 %v5846, %v5917
        %v6103 = vadd.f32 %v5847, %v5919
        %v6104 = vadd.f32 %v5848, %v5921
        %v6105 = vadd.f32 %v5849, %v5923
        %v6106 = vadd.f32 %v5850, %v5925
        %v6107 = vadd.f32 %v5851, %v5927
        %v6108 = vadd.f32 %v5852, %v5929
        %v6109 = vadd.f32 %v5853, %v5931
        %v6110 = vadd.f32 %v5854, %v5933
        %v6111 = vadd.f32 %v5855, %v5935
        %v6112 = vadd.f32 %v5856, %v5937
        %v6113 = vadd.f32 %v5857, %v5939
        %v6114 = vadd.f32 %v5858, %v5941
        %v6115 = vadd.f32 %v5859, %v5943
        %v6116 = vadd.f32 %v5860, %v5945
        %v6117 = vadd.f32 %v5861, %v5947
        %v6118 = vadd.f32 %v5862, %v5949
        %v6119 = vadd.f32 %v5863, %v5951
        %v6120 = vadd.f32 %v5864, %v5953
        %v6121 = vadd.f32 %v5865, %v5955
        %v6122 = vadd.f32 %v5866, %v5957
        %v6123 = vadd.f32 %v5867, %v5959
        %v6124 = vadd.f32 %v5868, %v5961
        %v6125 = vadd.f32 %v5869, %v5963
        %v6126 = vadd.f32 %v5870, %v5965
        %v6127 = vadd.f32 %v5871, %v5967
        %v6128 = vadd.f32 %v5872, %v5969
        %v6129 = vadd.f32 %v5873, %v5971
        %v6130 = vadd.f32 %v5874, %v5973
        %v6131 = vadd.f32 %v5875, %v5975
        %v6132 = vadd.f32 %v5876, %v5977
        %v6133 = vadd.f32 %v5877, %v5979
        %v6134 = vadd.f32 %v5878, %v5981
        %v6135 = vadd.f32 %v5879, %v5983
        %v6136 = vadd.f32 %v5880, %v5985
        %v6137 = vadd.f32 %v5881, %v5987
        %v6138 = vadd.f32 %v5882, %v5989
        %v6139 = vadd.f32 %v5883, %v5991
        %v6140 = vadd.f32 %v5884, %v5993
        %v6141 = vadd.f32 %v5885, %v5995
        %v6142 = vadd.f32 %v5886, %v5997
        %v6143 = vadd.f32 %v5887, %v5999
        %v6144 = vadd.f32 %v5888, %v6001
        %v6145 = vadd.f32 %v5889, %v6003
        %v6146 = vadd.f32 %v5890, %v6005
        %v6147 = vadd.f32 %v5891, %v6007
        %v6148 = vadd.f32 %v5892, %v6009
        %v6149 = vadd.f32 %v5893, %v6011
        %v6150 = vadd.f32 %v5894, %v6013
        %v6151 = vadd.f32 %v5895, %v6015
        %v6152 = vadd.f32 %v5896, %v6017
        %v6153 = vadd.f32 %v5897, %v6019
        %v6154 = vadd.f32 %v5898, %v6021
        %v6155 = vadd.f32 %v5899, %v6023
        %v6156 = vadd.f32 %v5900, %v6025
        %v6157 = vadd.f32 %v5901, %v6027
        %v6158 = vadd.f32 %v5902, %v6029
        %v6159 = vadd.f32 %v5903, %v6031
        %6160 = vrot.lane.b32.xlu0 %v3021, 108
        %v6161 = vpop.permute.xlu0 %6160
        %6162 = vrot.lane.b32.xlu0 %v3024, 108
        %v6163 = vpop.permute.xlu0 %6162
        %6164 = vrot.lane.b32.xlu0 %v3027, 108
        %v6165 = vpop.permute.xlu0 %6164
        %6166 = vrot.lane.b32.xlu0 %v3030, 108
        %v6167 = vpop.permute.xlu0 %6166
        %6168 = vrot.lane.b32.xlu0 %v3033, 108
        %v6169 = vpop.permute.xlu0 %6168
        %6170 = vrot.lane.b32.xlu0 %v3036, 108
        %v6171 = vpop.permute.xlu0 %6170
        %6172 = vrot.lane.b32.xlu0 %v3039, 108
        %v6173 = vpop.permute.xlu0 %6172
        %6174 = vrot.lane.b32.xlu0 %v3042, 108
        %v6175 = vpop.permute.xlu0 %6174
        %6176 = vrot.lane.b32.xlu0 %v3045, 108
        %v6177 = vpop.permute.xlu0 %6176
        %6178 = vrot.lane.b32.xlu0 %v3048, 108
        %v6179 = vpop.permute.xlu0 %6178
        %6180 = vrot.lane.b32.xlu0 %v3051, 108
        %v6181 = vpop.permute.xlu0 %6180
        %6182 = vrot.lane.b32.xlu0 %v3054, 108
        %v6183 = vpop.permute.xlu0 %6182
        %6184 = vrot.lane.b32.xlu0 %v3057, 108
        %v6185 = vpop.permute.xlu0 %6184
        %6186 = vrot.lane.b32.xlu0 %v3060, 108
        %v6187 = vpop.permute.xlu0 %6186
        %6188 = vrot.lane.b32.xlu0 %v3063, 108
        %v6189 = vpop.permute.xlu0 %6188
        %6190 = vrot.lane.b32.xlu0 %v3066, 108
        %v6191 = vpop.permute.xlu0 %6190
        %6192 = vrot.lane.b32.xlu0 %v3069, 108
        %v6193 = vpop.permute.xlu0 %6192
        %6194 = vrot.lane.b32.xlu0 %v3072, 108
        %v6195 = vpop.permute.xlu0 %6194
        %6196 = vrot.lane.b32.xlu0 %v3075, 108
        %v6197 = vpop.permute.xlu0 %6196
        %6198 = vrot.lane.b32.xlu0 %v3078, 108
        %v6199 = vpop.permute.xlu0 %6198
        %6200 = vrot.lane.b32.xlu0 %v3081, 108
        %v6201 = vpop.permute.xlu0 %6200
        %6202 = vrot.lane.b32.xlu0 %v3084, 108
        %v6203 = vpop.permute.xlu0 %6202
        %6204 = vrot.lane.b32.xlu0 %v3087, 108
        %v6205 = vpop.permute.xlu0 %6204
        %6206 = vrot.lane.b32.xlu0 %v3090, 108
        %v6207 = vpop.permute.xlu0 %6206
        %6208 = vrot.lane.b32.xlu0 %v3093, 108
        %v6209 = vpop.permute.xlu0 %6208
        %6210 = vrot.lane.b32.xlu0 %v3096, 108
        %v6211 = vpop.permute.xlu0 %6210
        %6212 = vrot.lane.b32.xlu0 %v3099, 108
        %v6213 = vpop.permute.xlu0 %6212
        %6214 = vrot.lane.b32.xlu0 %v3102, 108
        %v6215 = vpop.permute.xlu0 %6214
        %6216 = vrot.lane.b32.xlu0 %v3105, 108
        %v6217 = vpop.permute.xlu0 %6216
        %6218 = vrot.lane.b32.xlu0 %v3108, 108
        %v6219 = vpop.permute.xlu0 %6218
        %6220 = vrot.lane.b32.xlu0 %v3111, 108
        %v6221 = vpop.permute.xlu0 %6220
        %6222 = vrot.lane.b32.xlu0 %v3114, 108
        %v6223 = vpop.permute.xlu0 %6222
        %6224 = vrot.lane.b32.xlu0 %v3117, 108
        %v6225 = vpop.permute.xlu0 %6224
        %6226 = vrot.lane.b32.xlu0 %v3120, 108
        %v6227 = vpop.permute.xlu0 %6226
        %6228 = vrot.lane.b32.xlu0 %v3123, 108
        %v6229 = vpop.permute.xlu0 %6228
        %6230 = vrot.lane.b32.xlu0 %v3126, 108
        %v6231 = vpop.permute.xlu0 %6230
        %6232 = vrot.lane.b32.xlu0 %v3129, 108
        %v6233 = vpop.permute.xlu0 %6232
        %6234 = vrot.lane.b32.xlu0 %v3132, 108
        %v6235 = vpop.permute.xlu0 %6234
        %6236 = vrot.lane.b32.xlu0 %v3135, 108
        %v6237 = vpop.permute.xlu0 %6236
        %6238 = vrot.lane.b32.xlu0 %v3138, 108
        %v6239 = vpop.permute.xlu0 %6238
        %6240 = vrot.lane.b32.xlu0 %v3141, 108
        %v6241 = vpop.permute.xlu0 %6240
        %6242 = vrot.lane.b32.xlu0 %v3144, 108
        %v6243 = vpop.permute.xlu0 %6242
        %6244 = vrot.lane.b32.xlu0 %v3147, 108
        %v6245 = vpop.permute.xlu0 %6244
        %6246 = vrot.lane.b32.xlu0 %v3150, 108
        %v6247 = vpop.permute.xlu0 %6246
        %6248 = vrot.lane.b32.xlu0 %v3153, 108
        %v6249 = vpop.permute.xlu0 %6248
        %6250 = vrot.lane.b32.xlu0 %v3156, 108
        %v6251 = vpop.permute.xlu0 %6250
        %6252 = vrot.lane.b32.xlu0 %v3159, 108
        %v6253 = vpop.permute.xlu0 %6252
        %6254 = vrot.lane.b32.xlu0 %v3162, 108
        %v6255 = vpop.permute.xlu0 %6254
        %6256 = vrot.lane.b32.xlu0 %v3165, 108
        %v6257 = vpop.permute.xlu0 %6256
        %6258 = vrot.lane.b32.xlu0 %v3168, 108
        %v6259 = vpop.permute.xlu0 %6258
        %6260 = vrot.lane.b32.xlu0 %v3171, 108
        %v6261 = vpop.permute.xlu0 %6260
        %6262 = vrot.lane.b32.xlu0 %v3174, 108
        %v6263 = vpop.permute.xlu0 %6262
        %6264 = vrot.lane.b32.xlu0 %v3177, 108
        %v6265 = vpop.permute.xlu0 %6264
        %6266 = vrot.lane.b32.xlu0 %v3180, 108
        %v6267 = vpop.permute.xlu0 %6266
        %6268 = vrot.lane.b32.xlu0 %v3183, 108
        %v6269 = vpop.permute.xlu0 %6268
        %6270 = vrot.lane.b32.xlu0 %v3186, 108
        %v6271 = vpop.permute.xlu0 %6270
        %6272 = vrot.lane.b32.xlu0 %v3189, 108
        %v6273 = vpop.permute.xlu0 %6272
        %6274 = vrot.lane.b32.xlu0 %v3192, 108
        %v6275 = vpop.permute.xlu0 %6274
        %6276 = vrot.lane.b32.xlu0 %v3195, 108
        %v6277 = vpop.permute.xlu0 %6276
        %6278 = vrot.lane.b32.xlu0 %v3198, 108
        %v6279 = vpop.permute.xlu0 %6278
        %6280 = vrot.lane.b32.xlu0 %v3201, 108
        %v6281 = vpop.permute.xlu0 %6280
        %6282 = vrot.lane.b32.xlu0 %v3204, 108
        %v6283 = vpop.permute.xlu0 %6282
        %6284 = vrot.lane.b32.xlu0 %v3207, 108
        %v6285 = vpop.permute.xlu0 %6284
        %6286 = vrot.lane.b32.xlu0 %v3210, 108
        %v6287 = vpop.permute.xlu0 %6286
        %v6352 = vrot.slane %v6161, 1
        %v6353 = vrot.slane %v6163, 1
        %v6354 = vrot.slane %v6165, 1
        %v6355 = vrot.slane %v6167, 1
        %v6356 = vrot.slane %v6169, 1
        %v6357 = vrot.slane %v6171, 1
        %v6358 = vrot.slane %v6173, 1
        %v6359 = vrot.slane %v6175, 1
        %v6360 = vrot.slane %v6177, 1
        %v6361 = vrot.slane %v6179, 1
        %v6362 = vrot.slane %v6181, 1
        %v6363 = vrot.slane %v6183, 1
        %v6364 = vrot.slane %v6185, 1
        %v6365 = vrot.slane %v6187, 1
        %v6366 = vrot.slane %v6189, 1
        %v6367 = vrot.slane %v6191, 1
        %v6368 = vrot.slane %v6193, 1
        %v6369 = vrot.slane %v6195, 1
        %v6370 = vrot.slane %v6197, 1
        %v6371 = vrot.slane %v6199, 1
        %v6372 = vrot.slane %v6201, 1
        %v6373 = vrot.slane %v6203, 1
        %v6374 = vrot.slane %v6205, 1
        %v6375 = vrot.slane %v6207, 1
        %v6376 = vrot.slane %v6209, 1
        %v6377 = vrot.slane %v6211, 1
        %v6378 = vrot.slane %v6213, 1
        %v6379 = vrot.slane %v6215, 1
        %v6380 = vrot.slane %v6217, 1
        %v6381 = vrot.slane %v6219, 1
        %v6382 = vrot.slane %v6221, 1
        %v6383 = vrot.slane %v6223, 1
        %v6384 = vrot.slane %v6225, 1
        %v6385 = vrot.slane %v6227, 1
        %v6386 = vrot.slane %v6229, 1
        %v6387 = vrot.slane %v6231, 1
        %v6388 = vrot.slane %v6233, 1
        %v6389 = vrot.slane %v6235, 1
        %v6390 = vrot.slane %v6237, 1
        %v6391 = vrot.slane %v6239, 1
        %v6392 = vrot.slane %v6241, 1
        %v6393 = vrot.slane %v6243, 1
        %v6394 = vrot.slane %v6245, 1
        %v6395 = vrot.slane %v6247, 1
        %v6396 = vrot.slane %v6249, 1
        %v6397 = vrot.slane %v6251, 1
        %v6398 = vrot.slane %v6253, 1
        %v6399 = vrot.slane %v6255, 1
        %v6400 = vrot.slane %v6257, 1
        %v6401 = vrot.slane %v6259, 1
        %v6402 = vrot.slane %v6261, 1
        %v6403 = vrot.slane %v6263, 1
        %v6404 = vrot.slane %v6265, 1
        %v6405 = vrot.slane %v6267, 1
        %v6406 = vrot.slane %v6269, 1
        %v6407 = vrot.slane %v6271, 1
        %v6408 = vrot.slane %v6273, 1
        %v6409 = vrot.slane %v6275, 1
        %v6410 = vrot.slane %v6277, 1
        %v6411 = vrot.slane %v6279, 1
        %v6412 = vrot.slane %v6281, 1
        %v6413 = vrot.slane %v6283, 1
        %v6414 = vrot.slane %v6285, 1
        %v6415 = vrot.slane %v6287, 1
        %v6416 = vsel %vm4751, %v6414, %v6415
        %v6417 = vsel %vm4751, %v6413, %v6414
        %v6418 = vsel %vm4751, %v6412, %v6413
        %v6419 = vsel %vm4751, %v6411, %v6412
        %v6420 = vsel %vm4751, %v6410, %v6411
        %v6421 = vsel %vm4751, %v6409, %v6410
        %v6422 = vsel %vm4751, %v6408, %v6409
        %v6423 = vsel %vm4751, %v6407, %v6408
        %v6424 = vsel %vm4751, %v6406, %v6407
        %v6425 = vsel %vm4751, %v6405, %v6406
        %v6426 = vsel %vm4751, %v6404, %v6405
        %v6427 = vsel %vm4751, %v6403, %v6404
        %v6428 = vsel %vm4751, %v6402, %v6403
        %v6429 = vsel %vm4751, %v6401, %v6402
        %v6430 = vsel %vm4751, %v6400, %v6401
        %v6431 = vsel %vm4751, %v6399, %v6400
        %v6432 = vsel %vm4751, %v6398, %v6399
        %v6433 = vsel %vm4751, %v6397, %v6398
        %v6434 = vsel %vm4751, %v6396, %v6397
        %v6435 = vsel %vm4751, %v6395, %v6396
        %v6436 = vsel %vm4751, %v6394, %v6395
        %v6437 = vsel %vm4751, %v6393, %v6394
        %v6438 = vsel %vm4751, %v6392, %v6393
        %v6439 = vsel %vm4751, %v6391, %v6392
        %v6440 = vsel %vm4751, %v6390, %v6391
        %v6441 = vsel %vm4751, %v6389, %v6390
        %v6442 = vsel %vm4751, %v6388, %v6389
        %v6443 = vsel %vm4751, %v6387, %v6388
        %v6444 = vsel %vm4751, %v6386, %v6387
        %v6445 = vsel %vm4751, %v6385, %v6386
        %v6446 = vsel %vm4751, %v6384, %v6385
        %v6447 = vsel %vm4751, %v6383, %v6384
        %v6448 = vsel %vm4751, %v6382, %v6383
        %v6449 = vsel %vm4751, %v6381, %v6382
        %v6450 = vsel %vm4751, %v6380, %v6381
        %v6451 = vsel %vm4751, %v6379, %v6380
        %v6452 = vsel %vm4751, %v6378, %v6379
        %v6453 = vsel %vm4751, %v6377, %v6378
        %v6454 = vsel %vm4751, %v6376, %v6377
        %v6455 = vsel %vm4751, %v6375, %v6376
        %v6456 = vsel %vm4751, %v6374, %v6375
        %v6457 = vsel %vm4751, %v6373, %v6374
        %v6458 = vsel %vm4751, %v6372, %v6373
        %v6459 = vsel %vm4751, %v6371, %v6372
        %v6460 = vsel %vm4751, %v6370, %v6371
        %v6461 = vsel %vm4751, %v6369, %v6370
        %v6462 = vsel %vm4751, %v6368, %v6369
        %v6463 = vsel %vm4751, %v6367, %v6368
        %v6464 = vsel %vm4751, %v6366, %v6367
        %v6465 = vsel %vm4751, %v6365, %v6366
        %v6466 = vsel %vm4751, %v6364, %v6365
        %v6467 = vsel %vm4751, %v6363, %v6364
        %v6468 = vsel %vm4751, %v6362, %v6363
        %v6469 = vsel %vm4751, %v6361, %v6362
        %v6470 = vsel %vm4751, %v6360, %v6361
        %v6471 = vsel %vm4751, %v6359, %v6360
        %v6472 = vsel %vm4751, %v6358, %v6359
        %v6473 = vsel %vm4751, %v6357, %v6358
        %v6474 = vsel %vm4751, %v6356, %v6357
        %v6475 = vsel %vm4751, %v6355, %v6356
        %v6476 = vsel %vm4751, %v6354, %v6355
        %v6477 = vsel %vm4751, %v6353, %v6354
        %v6478 = vsel %vm4751, %v6352, %v6353
        %v6479 = vsel %vm4751, %v6415, %v6352
        %6480 = vset.pattern.permute.xlu0 5
        %6481 = vperm.xlu0 %6480, %v3343
        %v6482 = vpop.permute.xlu0 %6481
        %6484 = vset.pattern.permute.xlu0 5
        %6485 = vperm.xlu0 %6484, %v3344
        %v6486 = vpop.permute.xlu0 %6485
        %6488 = vset.pattern.permute.xlu0 5
        %6489 = vperm.xlu0 %6488, %v3345
        %v6490 = vpop.permute.xlu0 %6489
        %6492 = vset.pattern.permute.xlu0 5
        %6493 = vperm.xlu0 %6492, %v3346
        %v6494 = vpop.permute.xlu0 %6493
        %6496 = vset.pattern.permute.xlu0 5
        %6497 = vperm.xlu0 %6496, %v3347
        %v6498 = vpop.permute.xlu0 %6497
        %6500 = vset.pattern.permute.xlu0 5
        %6501 = vperm.xlu0 %6500, %v3348
        %v6502 = vpop.permute.xlu0 %6501
        %6504 = vset.pattern.permute.xlu0 5
        %6505 = vperm.xlu0 %6504, %v3349
        %v6506 = vpop.permute.xlu0 %6505
        %6508 = vset.pattern.permute.xlu0 5
        %6509 = vperm.xlu0 %6508, %v3350
        %v6510 = vpop.permute.xlu0 %6509
        %6512 = vset.pattern.permute.xlu0 5
        %6513 = vperm.xlu0 %6512, %v3351
        %v6514 = vpop.permute.xlu0 %6513
        %6516 = vset.pattern.permute.xlu0 5
        %6517 = vperm.xlu0 %6516, %v3352
        %v6518 = vpop.permute.xlu0 %6517
        %6520 = vset.pattern.permute.xlu0 5
        %6521 = vperm.xlu0 %6520, %v3353
        %v6522 = vpop.permute.xlu0 %6521
        %6524 = vset.pattern.permute.xlu0 5
        %6525 = vperm.xlu0 %6524, %v3354
        %v6526 = vpop.permute.xlu0 %6525
        %6528 = vset.pattern.permute.xlu0 5
        %6529 = vperm.xlu0 %6528, %v3355
        %v6530 = vpop.permute.xlu0 %6529
        %6532 = vset.pattern.permute.xlu0 5
        %6533 = vperm.xlu0 %6532, %v3356
        %v6534 = vpop.permute.xlu0 %6533
        %6536 = vset.pattern.permute.xlu0 5
        %6537 = vperm.xlu0 %6536, %v3357
        %v6538 = vpop.permute.xlu0 %6537
        %6540 = vset.pattern.permute.xlu0 5
        %6541 = vperm.xlu0 %6540, %v3358
        %v6542 = vpop.permute.xlu0 %6541
        %6544 = vset.pattern.permute.xlu0 5
        %6545 = vperm.xlu0 %6544, %v3359
        %v6546 = vpop.permute.xlu0 %6545
        %6548 = vset.pattern.permute.xlu0 5
        %6549 = vperm.xlu0 %6548, %v3360
        %v6550 = vpop.permute.xlu0 %6549
        %6552 = vset.pattern.permute.xlu0 5
        %6553 = vperm.xlu0 %6552, %v3361
        %v6554 = vpop.permute.xlu0 %6553
        %6556 = vset.pattern.permute.xlu0 5
        %6557 = vperm.xlu0 %6556, %v3362
        %v6558 = vpop.permute.xlu0 %6557
        %6560 = vset.pattern.permute.xlu0 5
        %6561 = vperm.xlu0 %6560, %v3363
        %v6562 = vpop.permute.xlu0 %6561
        %6564 = vset.pattern.permute.xlu0 5
        %6565 = vperm.xlu0 %6564, %v3364
        %v6566 = vpop.permute.xlu0 %6565
        %6568 = vset.pattern.permute.xlu0 5
        %6569 = vperm.xlu0 %6568, %v3365
        %v6570 = vpop.permute.xlu0 %6569
        %6572 = vset.pattern.permute.xlu0 5
        %6573 = vperm.xlu0 %6572, %v3366
        %v6574 = vpop.permute.xlu0 %6573
        %6576 = vset.pattern.permute.xlu0 5
        %6577 = vperm.xlu0 %6576, %v3367
        %v6578 = vpop.permute.xlu0 %6577
        %6580 = vset.pattern.permute.xlu0 5
        %6581 = vperm.xlu0 %6580, %v3368
        %v6582 = vpop.permute.xlu0 %6581
        %6584 = vset.pattern.permute.xlu0 5
        %6585 = vperm.xlu0 %6584, %v3369
        %v6586 = vpop.permute.xlu0 %6585
        %6588 = vset.pattern.permute.xlu0 5
        %6589 = vperm.xlu0 %6588, %v3370
        %v6590 = vpop.permute.xlu0 %6589
        %6592 = vset.pattern.permute.xlu0 5
        %6593 = vperm.xlu0 %6592, %v3371
        %v6594 = vpop.permute.xlu0 %6593
        %6596 = vset.pattern.permute.xlu0 5
        %6597 = vperm.xlu0 %6596, %v3372
        %v6598 = vpop.permute.xlu0 %6597
        %6600 = vset.pattern.permute.xlu0 5
        %6601 = vperm.xlu0 %6600, %v3373
        %v6602 = vpop.permute.xlu0 %6601
        %6604 = vset.pattern.permute.xlu0 5
        %6605 = vperm.xlu0 %6604, %v3374
        %v6606 = vpop.permute.xlu0 %6605
        %6608 = vset.pattern.permute.xlu0 5
        %6609 = vperm.xlu0 %6608, %v3375
        %v6610 = vpop.permute.xlu0 %6609
        %6612 = vset.pattern.permute.xlu0 5
        %6613 = vperm.xlu0 %6612, %v3376
        %v6614 = vpop.permute.xlu0 %6613
        %6616 = vset.pattern.permute.xlu0 5
        %6617 = vperm.xlu0 %6616, %v3377
        %v6618 = vpop.permute.xlu0 %6617
        %6620 = vset.pattern.permute.xlu0 5
        %6621 = vperm.xlu0 %6620, %v3378
        %v6622 = vpop.permute.xlu0 %6621
        %6624 = vset.pattern.permute.xlu0 5
        %6625 = vperm.xlu0 %6624, %v3379
        %v6626 = vpop.permute.xlu0 %6625
        %6628 = vset.pattern.permute.xlu0 5
        %6629 = vperm.xlu0 %6628, %v3380
        %v6630 = vpop.permute.xlu0 %6629
        %6632 = vset.pattern.permute.xlu0 5
        %6633 = vperm.xlu0 %6632, %v3381
        %v6634 = vpop.permute.xlu0 %6633
        %6636 = vset.pattern.permute.xlu0 5
        %6637 = vperm.xlu0 %6636, %v3382
        %v6638 = vpop.permute.xlu0 %6637
        %6640 = vset.pattern.permute.xlu0 5
        %6641 = vperm.xlu0 %6640, %v3383
        %v6642 = vpop.permute.xlu0 %6641
        %6644 = vset.pattern.permute.xlu0 5
        %6645 = vperm.xlu0 %6644, %v3384
        %v6646 = vpop.permute.xlu0 %6645
        %6648 = vset.pattern.permute.xlu0 5
        %6649 = vperm.xlu0 %6648, %v3385
        %v6650 = vpop.permute.xlu0 %6649
        %6652 = vset.pattern.permute.xlu0 5
        %6653 = vperm.xlu0 %6652, %v3386
        %v6654 = vpop.permute.xlu0 %6653
        %6656 = vset.pattern.permute.xlu0 5
        %6657 = vperm.xlu0 %6656, %v3387
        %v6658 = vpop.permute.xlu0 %6657
        %6660 = vset.pattern.permute.xlu0 5
        %6661 = vperm.xlu0 %6660, %v3388
        %v6662 = vpop.permute.xlu0 %6661
        %6664 = vset.pattern.permute.xlu0 5
        %6665 = vperm.xlu0 %6664, %v3389
        %v6666 = vpop.permute.xlu0 %6665
        %6668 = vset.pattern.permute.xlu0 5
        %6669 = vperm.xlu0 %6668, %v3390
        %v6670 = vpop.permute.xlu0 %6669
        %6672 = vset.pattern.permute.xlu0 5
        %6673 = vperm.xlu0 %6672, %v3391
        %v6674 = vpop.permute.xlu0 %6673
        %6676 = vset.pattern.permute.xlu0 5
        %6677 = vperm.xlu0 %6676, %v3392
        %v6678 = vpop.permute.xlu0 %6677
        %6680 = vset.pattern.permute.xlu0 5
        %6681 = vperm.xlu0 %6680, %v3393
        %v6682 = vpop.permute.xlu0 %6681
        %6684 = vset.pattern.permute.xlu0 5
        %6685 = vperm.xlu0 %6684, %v3394
        %v6686 = vpop.permute.xlu0 %6685
        %6688 = vset.pattern.permute.xlu0 5
        %6689 = vperm.xlu0 %6688, %v3395
        %v6690 = vpop.permute.xlu0 %6689
        %6692 = vset.pattern.permute.xlu0 5
        %6693 = vperm.xlu0 %6692, %v3396
        %v6694 = vpop.permute.xlu0 %6693
        %6696 = vset.pattern.permute.xlu0 5
        %6697 = vperm.xlu0 %6696, %v3397
        %v6698 = vpop.permute.xlu0 %6697
        %6700 = vset.pattern.permute.xlu0 5
        %6701 = vperm.xlu0 %6700, %v3398
        %v6702 = vpop.permute.xlu0 %6701
        %6704 = vset.pattern.permute.xlu0 5
        %6705 = vperm.xlu0 %6704, %v3399
        %v6706 = vpop.permute.xlu0 %6705
        %6708 = vset.pattern.permute.xlu0 5
        %6709 = vperm.xlu0 %6708, %v3400
        %v6710 = vpop.permute.xlu0 %6709
        %6712 = vset.pattern.permute.xlu0 5
        %6713 = vperm.xlu0 %6712, %v3401
        %v6714 = vpop.permute.xlu0 %6713
        %6716 = vset.pattern.permute.xlu0 5
        %6717 = vperm.xlu0 %6716, %v3402
        %v6718 = vpop.permute.xlu0 %6717
        %6720 = vset.pattern.permute.xlu0 5
        %6721 = vperm.xlu0 %6720, %v3403
        %v6722 = vpop.permute.xlu0 %6721
        %6724 = vset.pattern.permute.xlu0 5
        %6725 = vperm.xlu0 %6724, %v3404
        %v6726 = vpop.permute.xlu0 %6725
        %6728 = vset.pattern.permute.xlu0 5
        %6729 = vperm.xlu0 %6728, %v3405
        %v6730 = vpop.permute.xlu0 %6729
        %6732 = vset.pattern.permute.xlu0 5
        %6733 = vperm.xlu0 %6732, %v3406
        %v6734 = vpop.permute.xlu0 %6733
        %v6736 = vmul.f32 %v6478, %v6482
        %v6737 = vmul.f32 %v6477, %v6486
        %v6738 = vmul.f32 %v6476, %v6490
        %v6739 = vmul.f32 %v6475, %v6494
        %v6740 = vmul.f32 %v6474, %v6498
        %v6741 = vmul.f32 %v6473, %v6502
        %v6742 = vmul.f32 %v6472, %v6506
        %v6743 = vmul.f32 %v6471, %v6510
        %v6744 = vmul.f32 %v6470, %v6514
        %v6745 = vmul.f32 %v6469, %v6518
        %v6746 = vmul.f32 %v6468, %v6522
        %v6747 = vmul.f32 %v6467, %v6526
        %v6748 = vmul.f32 %v6466, %v6530
        %v6749 = vmul.f32 %v6465, %v6534
        %v6750 = vmul.f32 %v6464, %v6538
        %v6751 = vmul.f32 %v6463, %v6542
        %v6752 = vmul.f32 %v6462, %v6546
        %v6753 = vmul.f32 %v6461, %v6550
        %v6754 = vmul.f32 %v6460, %v6554
        %v6755 = vmul.f32 %v6459, %v6558
        %v6756 = vmul.f32 %v6458, %v6562
        %v6757 = vmul.f32 %v6457, %v6566
        %v6758 = vmul.f32 %v6456, %v6570
        %v6759 = vmul.f32 %v6455, %v6574
        %v6760 = vmul.f32 %v6454, %v6578
        %v6761 = vmul.f32 %v6453, %v6582
        %v6762 = vmul.f32 %v6452, %v6586
        %v6763 = vmul.f32 %v6451, %v6590
        %v6764 = vmul.f32 %v6450, %v6594
        %v6765 = vmul.f32 %v6449, %v6598
        %v6766 = vmul.f32 %v6448, %v6602
        %v6767 = vmul.f32 %v6447, %v6606
        %v6768 = vmul.f32 %v6446, %v6610
        %v6769 = vmul.f32 %v6445, %v6614
        %v6770 = vmul.f32 %v6444, %v6618
        %v6771 = vmul.f32 %v6443, %v6622
        %v6772 = vmul.f32 %v6442, %v6626
        %v6773 = vmul.f32 %v6441, %v6630
        %v6774 = vmul.f32 %v6440, %v6634
        %v6775 = vmul.f32 %v6439, %v6638
        %v6776 = vmul.f32 %v6438, %v6642
        %v6777 = vmul.f32 %v6437, %v6646
        %v6778 = vmul.f32 %v6436, %v6650
        %v6779 = vmul.f32 %v6435, %v6654
        %v6780 = vmul.f32 %v6434, %v6658
        %v6781 = vmul.f32 %v6433, %v6662
        %v6782 = vmul.f32 %v6432, %v6666
        %v6783 = vmul.f32 %v6431, %v6670
        %v6784 = vmul.f32 %v6430, %v6674
        %v6785 = vmul.f32 %v6429, %v6678
        %v6786 = vmul.f32 %v6428, %v6682
        %v6787 = vmul.f32 %v6427, %v6686
        %v6788 = vmul.f32 %v6426, %v6690
        %v6789 = vmul.f32 %v6425, %v6694
        %v6790 = vmul.f32 %v6424, %v6698
        %v6791 = vmul.f32 %v6423, %v6702
        %v6792 = vmul.f32 %v6422, %v6706
        %v6793 = vmul.f32 %v6421, %v6710
        %v6794 = vmul.f32 %v6420, %v6714
        %v6795 = vmul.f32 %v6419, %v6718
        %v6796 = vmul.f32 %v6418, %v6722
        %v6797 = vmul.f32 %v6417, %v6726
        %v6798 = vmul.f32 %v6416, %v6730
        %v6799 = vmul.f32 %v6479, %v6734
        %v6800 = vadd.f32 %v6096, %v6736
        %v6801 = vadd.f32 %v6097, %v6737
        %v6802 = vadd.f32 %v6098, %v6738
        %v6803 = vadd.f32 %v6099, %v6739
        %v6804 = vadd.f32 %v6100, %v6740
        %v6805 = vadd.f32 %v6101, %v6741
        %v6806 = vadd.f32 %v6102, %v6742
        %v6807 = vadd.f32 %v6103, %v6743
        %v6808 = vadd.f32 %v6104, %v6744
        %v6809 = vadd.f32 %v6105, %v6745
        %v6810 = vadd.f32 %v6106, %v6746
        %v6811 = vadd.f32 %v6107, %v6747
        %v6812 = vadd.f32 %v6108, %v6748
        %v6813 = vadd.f32 %v6109, %v6749
        %v6814 = vadd.f32 %v6110, %v6750
        %v6815 = vadd.f32 %v6111, %v6751
        %v6816 = vadd.f32 %v6112, %v6752
        %v6817 = vadd.f32 %v6113, %v6753
        %v6818 = vadd.f32 %v6114, %v6754
        %v6819 = vadd.f32 %v6115, %v6755
        %v6820 = vadd.f32 %v6116, %v6756
        %v6821 = vadd.f32 %v6117, %v6757
        %v6822 = vadd.f32 %v6118, %v6758
        %v6823 = vadd.f32 %v6119, %v6759
        %v6824 = vadd.f32 %v6120, %v6760
        %v6825 = vadd.f32 %v6121, %v6761
        %v6826 = vadd.f32 %v6122, %v6762
        %v6827 = vadd.f32 %v6123, %v6763
        %v6828 = vadd.f32 %v6124, %v6764
        %v6829 = vadd.f32 %v6125, %v6765
        %v6830 = vadd.f32 %v6126, %v6766
        %v6831 = vadd.f32 %v6127, %v6767
        %v6832 = vadd.f32 %v6128, %v6768
        %v6833 = vadd.f32 %v6129, %v6769
        %v6834 = vadd.f32 %v6130, %v6770
        %v6835 = vadd.f32 %v6131, %v6771
        %v6836 = vadd.f32 %v6132, %v6772
        %v6837 = vadd.f32 %v6133, %v6773
        %v6838 = vadd.f32 %v6134, %v6774
        %v6839 = vadd.f32 %v6135, %v6775
        %v6840 = vadd.f32 %v6136, %v6776
        %v6841 = vadd.f32 %v6137, %v6777
        %v6842 = vadd.f32 %v6138, %v6778
        %v6843 = vadd.f32 %v6139, %v6779
        %v6844 = vadd.f32 %v6140, %v6780
        %v6845 = vadd.f32 %v6141, %v6781
        %v6846 = vadd.f32 %v6142, %v6782
        %v6847 = vadd.f32 %v6143, %v6783
        %v6848 = vadd.f32 %v6144, %v6784
        %v6849 = vadd.f32 %v6145, %v6785
        %v6850 = vadd.f32 %v6146, %v6786
        %v6851 = vadd.f32 %v6147, %v6787
        %v6852 = vadd.f32 %v6148, %v6788
        %v6853 = vadd.f32 %v6149, %v6789
        %v6854 = vadd.f32 %v6150, %v6790
        %v6855 = vadd.f32 %v6151, %v6791
        %v6856 = vadd.f32 %v6152, %v6792
        %v6857 = vadd.f32 %v6153, %v6793
        %v6858 = vadd.f32 %v6154, %v6794
        %v6859 = vadd.f32 %v6155, %v6795
        %v6860 = vadd.f32 %v6156, %v6796
        %v6861 = vadd.f32 %v6157, %v6797
        %v6862 = vadd.f32 %v6158, %v6798
        %v6863 = vadd.f32 %v6159, %v6799
        %6864 = vrot.lane.b32.xlu0 %v3021, 104
        %v6865 = vpop.permute.xlu0 %6864
        %6866 = vrot.lane.b32.xlu0 %v3024, 104
        %v6867 = vpop.permute.xlu0 %6866
        %6868 = vrot.lane.b32.xlu0 %v3027, 104
        %v6869 = vpop.permute.xlu0 %6868
        %6870 = vrot.lane.b32.xlu0 %v3030, 104
        %v6871 = vpop.permute.xlu0 %6870
        %6872 = vrot.lane.b32.xlu0 %v3033, 104
        %v6873 = vpop.permute.xlu0 %6872
        %6874 = vrot.lane.b32.xlu0 %v3036, 104
        %v6875 = vpop.permute.xlu0 %6874
        %6876 = vrot.lane.b32.xlu0 %v3039, 104
        %v6877 = vpop.permute.xlu0 %6876
        %6878 = vrot.lane.b32.xlu0 %v3042, 104
        %v6879 = vpop.permute.xlu0 %6878
        %6880 = vrot.lane.b32.xlu0 %v3045, 104
        %v6881 = vpop.permute.xlu0 %6880
        %6882 = vrot.lane.b32.xlu0 %v3048, 104
        %v6883 = vpop.permute.xlu0 %6882
        %6884 = vrot.lane.b32.xlu0 %v3051, 104
        %v6885 = vpop.permute.xlu0 %6884
        %6886 = vrot.lane.b32.xlu0 %v3054, 104
        %v6887 = vpop.permute.xlu0 %6886
        %6888 = vrot.lane.b32.xlu0 %v3057, 104
        %v6889 = vpop.permute.xlu0 %6888
        %6890 = vrot.lane.b32.xlu0 %v3060, 104
        %v6891 = vpop.permute.xlu0 %6890
        %6892 = vrot.lane.b32.xlu0 %v3063, 104
        %v6893 = vpop.permute.xlu0 %6892
        %6894 = vrot.lane.b32.xlu0 %v3066, 104
        %v6895 = vpop.permute.xlu0 %6894
        %6896 = vrot.lane.b32.xlu0 %v3069, 104
        %v6897 = vpop.permute.xlu0 %6896
        %6898 = vrot.lane.b32.xlu0 %v3072, 104
        %v6899 = vpop.permute.xlu0 %6898
        %6900 = vrot.lane.b32.xlu0 %v3075, 104
        %v6901 = vpop.permute.xlu0 %6900
        %6902 = vrot.lane.b32.xlu0 %v3078, 104
        %v6903 = vpop.permute.xlu0 %6902
        %6904 = vrot.lane.b32.xlu0 %v3081, 104
        %v6905 = vpop.permute.xlu0 %6904
        %6906 = vrot.lane.b32.xlu0 %v3084, 104
        %v6907 = vpop.permute.xlu0 %6906
        %6908 = vrot.lane.b32.xlu0 %v3087, 104
        %v6909 = vpop.permute.xlu0 %6908
        %6910 = vrot.lane.b32.xlu0 %v3090, 104
        %v6911 = vpop.permute.xlu0 %6910
        %6912 = vrot.lane.b32.xlu0 %v3093, 104
        %v6913 = vpop.permute.xlu0 %6912
        %6914 = vrot.lane.b32.xlu0 %v3096, 104
        %v6915 = vpop.permute.xlu0 %6914
        %6916 = vrot.lane.b32.xlu0 %v3099, 104
        %v6917 = vpop.permute.xlu0 %6916
        %6918 = vrot.lane.b32.xlu0 %v3102, 104
        %v6919 = vpop.permute.xlu0 %6918
        %6920 = vrot.lane.b32.xlu0 %v3105, 104
        %v6921 = vpop.permute.xlu0 %6920
        %6922 = vrot.lane.b32.xlu0 %v3108, 104
        %v6923 = vpop.permute.xlu0 %6922
        %6924 = vrot.lane.b32.xlu0 %v3111, 104
        %v6925 = vpop.permute.xlu0 %6924
        %6926 = vrot.lane.b32.xlu0 %v3114, 104
        %v6927 = vpop.permute.xlu0 %6926
        %6928 = vrot.lane.b32.xlu0 %v3117, 104
        %v6929 = vpop.permute.xlu0 %6928
        %6930 = vrot.lane.b32.xlu0 %v3120, 104
        %v6931 = vpop.permute.xlu0 %6930
        %6932 = vrot.lane.b32.xlu0 %v3123, 104
        %v6933 = vpop.permute.xlu0 %6932
        %6934 = vrot.lane.b32.xlu0 %v3126, 104
        %v6935 = vpop.permute.xlu0 %6934
        %6936 = vrot.lane.b32.xlu0 %v3129, 104
        %v6937 = vpop.permute.xlu0 %6936
        %6938 = vrot.lane.b32.xlu0 %v3132, 104
        %v6939 = vpop.permute.xlu0 %6938
        %6940 = vrot.lane.b32.xlu0 %v3135, 104
        %v6941 = vpop.permute.xlu0 %6940
        %6942 = vrot.lane.b32.xlu0 %v3138, 104
        %v6943 = vpop.permute.xlu0 %6942
        %6944 = vrot.lane.b32.xlu0 %v3141, 104
        %v6945 = vpop.permute.xlu0 %6944
        %6946 = vrot.lane.b32.xlu0 %v3144, 104
        %v6947 = vpop.permute.xlu0 %6946
        %6948 = vrot.lane.b32.xlu0 %v3147, 104
        %v6949 = vpop.permute.xlu0 %6948
        %6950 = vrot.lane.b32.xlu0 %v3150, 104
        %v6951 = vpop.permute.xlu0 %6950
        %6952 = vrot.lane.b32.xlu0 %v3153, 104
        %v6953 = vpop.permute.xlu0 %6952
        %6954 = vrot.lane.b32.xlu0 %v3156, 104
        %v6955 = vpop.permute.xlu0 %6954
        %6956 = vrot.lane.b32.xlu0 %v3159, 104
        %v6957 = vpop.permute.xlu0 %6956
        %6958 = vrot.lane.b32.xlu0 %v3162, 104
        %v6959 = vpop.permute.xlu0 %6958
        %6960 = vrot.lane.b32.xlu0 %v3165, 104
        %v6961 = vpop.permute.xlu0 %6960
        %6962 = vrot.lane.b32.xlu0 %v3168, 104
        %v6963 = vpop.permute.xlu0 %6962
        %6964 = vrot.lane.b32.xlu0 %v3171, 104
        %v6965 = vpop.permute.xlu0 %6964
        %6966 = vrot.lane.b32.xlu0 %v3174, 104
        %v6967 = vpop.permute.xlu0 %6966
        %6968 = vrot.lane.b32.xlu0 %v3177, 104
        %v6969 = vpop.permute.xlu0 %6968
        %6970 = vrot.lane.b32.xlu0 %v3180, 104
        %v6971 = vpop.permute.xlu0 %6970
        %6972 = vrot.lane.b32.xlu0 %v3183, 104
        %v6973 = vpop.permute.xlu0 %6972
        %6974 = vrot.lane.b32.xlu0 %v3186, 104
        %v6975 = vpop.permute.xlu0 %6974
        %6976 = vrot.lane.b32.xlu0 %v3189, 104
        %v6977 = vpop.permute.xlu0 %6976
        %6978 = vrot.lane.b32.xlu0 %v3192, 104
        %v6979 = vpop.permute.xlu0 %6978
        %6980 = vrot.lane.b32.xlu0 %v3195, 104
        %v6981 = vpop.permute.xlu0 %6980
        %6982 = vrot.lane.b32.xlu0 %v3198, 104
        %v6983 = vpop.permute.xlu0 %6982
        %6984 = vrot.lane.b32.xlu0 %v3201, 104
        %v6985 = vpop.permute.xlu0 %6984
        %6986 = vrot.lane.b32.xlu0 %v3204, 104
        %v6987 = vpop.permute.xlu0 %6986
        %6988 = vrot.lane.b32.xlu0 %v3207, 104
        %v6989 = vpop.permute.xlu0 %6988
        %6990 = vrot.lane.b32.xlu0 %v3210, 104
        %v6991 = vpop.permute.xlu0 %6990
        %v7056 = vrot.slane %v6865, 7
        %v7057 = vrot.slane %v6867, 7
        %v7058 = vrot.slane %v6869, 7
        %v7059 = vrot.slane %v6871, 7
        %v7060 = vrot.slane %v6873, 7
        %v7061 = vrot.slane %v6875, 7
        %v7062 = vrot.slane %v6877, 7
        %v7063 = vrot.slane %v6879, 7
        %v7064 = vrot.slane %v6881, 7
        %v7065 = vrot.slane %v6883, 7
        %v7066 = vrot.slane %v6885, 7
        %v7067 = vrot.slane %v6887, 7
        %v7068 = vrot.slane %v6889, 7
        %v7069 = vrot.slane %v6891, 7
        %v7070 = vrot.slane %v6893, 7
        %v7071 = vrot.slane %v6895, 7
        %v7072 = vrot.slane %v6897, 7
        %v7073 = vrot.slane %v6899, 7
        %v7074 = vrot.slane %v6901, 7
        %v7075 = vrot.slane %v6903, 7
        %v7076 = vrot.slane %v6905, 7
        %v7077 = vrot.slane %v6907, 7
        %v7078 = vrot.slane %v6909, 7
        %v7079 = vrot.slane %v6911, 7
        %v7080 = vrot.slane %v6913, 7
        %v7081 = vrot.slane %v6915, 7
        %v7082 = vrot.slane %v6917, 7
        %v7083 = vrot.slane %v6919, 7
        %v7084 = vrot.slane %v6921, 7
        %v7085 = vrot.slane %v6923, 7
        %v7086 = vrot.slane %v6925, 7
        %v7087 = vrot.slane %v6927, 7
        %v7088 = vrot.slane %v6929, 7
        %v7089 = vrot.slane %v6931, 7
        %v7090 = vrot.slane %v6933, 7
        %v7091 = vrot.slane %v6935, 7
        %v7092 = vrot.slane %v6937, 7
        %v7093 = vrot.slane %v6939, 7
        %v7094 = vrot.slane %v6941, 7
        %v7095 = vrot.slane %v6943, 7
        %v7096 = vrot.slane %v6945, 7
        %v7097 = vrot.slane %v6947, 7
        %v7098 = vrot.slane %v6949, 7
        %v7099 = vrot.slane %v6951, 7
        %v7100 = vrot.slane %v6953, 7
        %v7101 = vrot.slane %v6955, 7
        %v7102 = vrot.slane %v6957, 7
        %v7103 = vrot.slane %v6959, 7
        %v7104 = vrot.slane %v6961, 7
        %v7105 = vrot.slane %v6963, 7
        %v7106 = vrot.slane %v6965, 7
        %v7107 = vrot.slane %v6967, 7
        %v7108 = vrot.slane %v6969, 7
        %v7109 = vrot.slane %v6971, 7
        %v7110 = vrot.slane %v6973, 7
        %v7111 = vrot.slane %v6975, 7
        %v7112 = vrot.slane %v6977, 7
        %v7113 = vrot.slane %v6979, 7
        %v7114 = vrot.slane %v6981, 7
        %v7115 = vrot.slane %v6983, 7
        %v7116 = vrot.slane %v6985, 7
        %v7117 = vrot.slane %v6987, 7
        %v7118 = vrot.slane %v6989, 7
        %v7119 = vrot.slane %v6991, 7
        %v7120 = vsel %vm3278, %v7118, %v7119
        %v7121 = vsel %vm3278, %v7117, %v7118
        %v7122 = vsel %vm3278, %v7116, %v7117
        %v7123 = vsel %vm3278, %v7115, %v7116
        %v7124 = vsel %vm3278, %v7114, %v7115
        %v7125 = vsel %vm3278, %v7113, %v7114
        %v7126 = vsel %vm3278, %v7112, %v7113
        %v7127 = vsel %vm3278, %v7111, %v7112
        %v7128 = vsel %vm3278, %v7110, %v7111
        %v7129 = vsel %vm3278, %v7109, %v7110
        %v7130 = vsel %vm3278, %v7108, %v7109
        %v7131 = vsel %vm3278, %v7107, %v7108
        %v7132 = vsel %vm3278, %v7106, %v7107
        %v7133 = vsel %vm3278, %v7105, %v7106
        %v7134 = vsel %vm3278, %v7104, %v7105
        %v7135 = vsel %vm3278, %v7103, %v7104
        %v7136 = vsel %vm3278, %v7102, %v7103
        %v7137 = vsel %vm3278, %v7101, %v7102
        %v7138 = vsel %vm3278, %v7100, %v7101
        %v7139 = vsel %vm3278, %v7099, %v7100
        %v7140 = vsel %vm3278, %v7098, %v7099
        %v7141 = vsel %vm3278, %v7097, %v7098
        %v7142 = vsel %vm3278, %v7096, %v7097
        %v7143 = vsel %vm3278, %v7095, %v7096
        %v7144 = vsel %vm3278, %v7094, %v7095
        %v7145 = vsel %vm3278, %v7093, %v7094
        %v7146 = vsel %vm3278, %v7092, %v7093
        %v7147 = vsel %vm3278, %v7091, %v7092
        %v7148 = vsel %vm3278, %v7090, %v7091
        %v7149 = vsel %vm3278, %v7089, %v7090
        %v7150 = vsel %vm3278, %v7088, %v7089
        %v7151 = vsel %vm3278, %v7087, %v7088
        %v7152 = vsel %vm3278, %v7086, %v7087
        %v7153 = vsel %vm3278, %v7085, %v7086
        %v7154 = vsel %vm3278, %v7084, %v7085
        %v7155 = vsel %vm3278, %v7083, %v7084
        %v7156 = vsel %vm3278, %v7082, %v7083
        %v7157 = vsel %vm3278, %v7081, %v7082
        %v7158 = vsel %vm3278, %v7080, %v7081
        %v7159 = vsel %vm3278, %v7079, %v7080
        %v7160 = vsel %vm3278, %v7078, %v7079
        %v7161 = vsel %vm3278, %v7077, %v7078
        %v7162 = vsel %vm3278, %v7076, %v7077
        %v7163 = vsel %vm3278, %v7075, %v7076
        %v7164 = vsel %vm3278, %v7074, %v7075
        %v7165 = vsel %vm3278, %v7073, %v7074
        %v7166 = vsel %vm3278, %v7072, %v7073
        %v7167 = vsel %vm3278, %v7071, %v7072
        %v7168 = vsel %vm3278, %v7070, %v7071
        %v7169 = vsel %vm3278, %v7069, %v7070
        %v7170 = vsel %vm3278, %v7068, %v7069
        %v7171 = vsel %vm3278, %v7067, %v7068
        %v7172 = vsel %vm3278, %v7066, %v7067
        %v7173 = vsel %vm3278, %v7065, %v7066
        %v7174 = vsel %vm3278, %v7064, %v7065
        %v7175 = vsel %vm3278, %v7063, %v7064
        %v7176 = vsel %vm3278, %v7062, %v7063
        %v7177 = vsel %vm3278, %v7061, %v7062
        %v7178 = vsel %vm3278, %v7060, %v7061
        %v7179 = vsel %vm3278, %v7059, %v7060
        %v7180 = vsel %vm3278, %v7058, %v7059
        %v7181 = vsel %vm3278, %v7057, %v7058
        %v7182 = vsel %vm3278, %v7056, %v7057
        %v7183 = vsel %vm3278, %v7119, %v7056
        %7184 = vset.pattern.permute.xlu0 6
        %7185 = vperm.xlu0 %7184, %v3343
        %v7186 = vpop.permute.xlu0 %7185
        %7188 = vset.pattern.permute.xlu0 6
        %7189 = vperm.xlu0 %7188, %v3344
        %v7190 = vpop.permute.xlu0 %7189
        %7192 = vset.pattern.permute.xlu0 6
        %7193 = vperm.xlu0 %7192, %v3345
        %v7194 = vpop.permute.xlu0 %7193
        %7196 = vset.pattern.permute.xlu0 6
        %7197 = vperm.xlu0 %7196, %v3346
        %v7198 = vpop.permute.xlu0 %7197
        %7200 = vset.pattern.permute.xlu0 6
        %7201 = vperm.xlu0 %7200, %v3347
        %v7202 = vpop.permute.xlu0 %7201
        %7204 = vset.pattern.permute.xlu0 6
        %7205 = vperm.xlu0 %7204, %v3348
        %v7206 = vpop.permute.xlu0 %7205
        %7208 = vset.pattern.permute.xlu0 6
        %7209 = vperm.xlu0 %7208, %v3349
        %v7210 = vpop.permute.xlu0 %7209
        %7212 = vset.pattern.permute.xlu0 6
        %7213 = vperm.xlu0 %7212, %v3350
        %v7214 = vpop.permute.xlu0 %7213
        %7216 = vset.pattern.permute.xlu0 6
        %7217 = vperm.xlu0 %7216, %v3351
        %v7218 = vpop.permute.xlu0 %7217
        %7220 = vset.pattern.permute.xlu0 6
        %7221 = vperm.xlu0 %7220, %v3352
        %v7222 = vpop.permute.xlu0 %7221
        %7224 = vset.pattern.permute.xlu0 6
        %7225 = vperm.xlu0 %7224, %v3353
        %v7226 = vpop.permute.xlu0 %7225
        %7228 = vset.pattern.permute.xlu0 6
        %7229 = vperm.xlu0 %7228, %v3354
        %v7230 = vpop.permute.xlu0 %7229
        %7232 = vset.pattern.permute.xlu0 6
        %7233 = vperm.xlu0 %7232, %v3355
        %v7234 = vpop.permute.xlu0 %7233
        %7236 = vset.pattern.permute.xlu0 6
        %7237 = vperm.xlu0 %7236, %v3356
        %v7238 = vpop.permute.xlu0 %7237
        %7240 = vset.pattern.permute.xlu0 6
        %7241 = vperm.xlu0 %7240, %v3357
        %v7242 = vpop.permute.xlu0 %7241
        %7244 = vset.pattern.permute.xlu0 6
        %7245 = vperm.xlu0 %7244, %v3358
        %v7246 = vpop.permute.xlu0 %7245
        %7248 = vset.pattern.permute.xlu0 6
        %7249 = vperm.xlu0 %7248, %v3359
        %v7250 = vpop.permute.xlu0 %7249
        %7252 = vset.pattern.permute.xlu0 6
        %7253 = vperm.xlu0 %7252, %v3360
        %v7254 = vpop.permute.xlu0 %7253
        %7256 = vset.pattern.permute.xlu0 6
        %7257 = vperm.xlu0 %7256, %v3361
        %v7258 = vpop.permute.xlu0 %7257
        %7260 = vset.pattern.permute.xlu0 6
        %7261 = vperm.xlu0 %7260, %v3362
        %v7262 = vpop.permute.xlu0 %7261
        %7264 = vset.pattern.permute.xlu0 6
        %7265 = vperm.xlu0 %7264, %v3363
        %v7266 = vpop.permute.xlu0 %7265
        %7268 = vset.pattern.permute.xlu0 6
        %7269 = vperm.xlu0 %7268, %v3364
        %v7270 = vpop.permute.xlu0 %7269
        %7272 = vset.pattern.permute.xlu0 6
        %7273 = vperm.xlu0 %7272, %v3365
        %v7274 = vpop.permute.xlu0 %7273
        %7276 = vset.pattern.permute.xlu0 6
        %7277 = vperm.xlu0 %7276, %v3366
        %v7278 = vpop.permute.xlu0 %7277
        %7280 = vset.pattern.permute.xlu0 6
        %7281 = vperm.xlu0 %7280, %v3367
        %v7282 = vpop.permute.xlu0 %7281
        %7284 = vset.pattern.permute.xlu0 6
        %7285 = vperm.xlu0 %7284, %v3368
        %v7286 = vpop.permute.xlu0 %7285
        %7288 = vset.pattern.permute.xlu0 6
        %7289 = vperm.xlu0 %7288, %v3369
        %v7290 = vpop.permute.xlu0 %7289
        %7292 = vset.pattern.permute.xlu0 6
        %7293 = vperm.xlu0 %7292, %v3370
        %v7294 = vpop.permute.xlu0 %7293
        %7296 = vset.pattern.permute.xlu0 6
        %7297 = vperm.xlu0 %7296, %v3371
        %v7298 = vpop.permute.xlu0 %7297
        %7300 = vset.pattern.permute.xlu0 6
        %7301 = vperm.xlu0 %7300, %v3372
        %v7302 = vpop.permute.xlu0 %7301
        %7304 = vset.pattern.permute.xlu0 6
        %7305 = vperm.xlu0 %7304, %v3373
        %v7306 = vpop.permute.xlu0 %7305
        %7308 = vset.pattern.permute.xlu0 6
        %7309 = vperm.xlu0 %7308, %v3374
        %v7310 = vpop.permute.xlu0 %7309
        %7312 = vset.pattern.permute.xlu0 6
        %7313 = vperm.xlu0 %7312, %v3375
        %v7314 = vpop.permute.xlu0 %7313
        %7316 = vset.pattern.permute.xlu0 6
        %7317 = vperm.xlu0 %7316, %v3376
        %v7318 = vpop.permute.xlu0 %7317
        %7320 = vset.pattern.permute.xlu0 6
        %7321 = vperm.xlu0 %7320, %v3377
        %v7322 = vpop.permute.xlu0 %7321
        %7324 = vset.pattern.permute.xlu0 6
        %7325 = vperm.xlu0 %7324, %v3378
        %v7326 = vpop.permute.xlu0 %7325
        %7328 = vset.pattern.permute.xlu0 6
        %7329 = vperm.xlu0 %7328, %v3379
        %v7330 = vpop.permute.xlu0 %7329
        %7332 = vset.pattern.permute.xlu0 6
        %7333 = vperm.xlu0 %7332, %v3380
        %v7334 = vpop.permute.xlu0 %7333
        %7336 = vset.pattern.permute.xlu0 6
        %7337 = vperm.xlu0 %7336, %v3381
        %v7338 = vpop.permute.xlu0 %7337
        %7340 = vset.pattern.permute.xlu0 6
        %7341 = vperm.xlu0 %7340, %v3382
        %v7342 = vpop.permute.xlu0 %7341
        %7344 = vset.pattern.permute.xlu0 6
        %7345 = vperm.xlu0 %7344, %v3383
        %v7346 = vpop.permute.xlu0 %7345
        %7348 = vset.pattern.permute.xlu0 6
        %7349 = vperm.xlu0 %7348, %v3384
        %v7350 = vpop.permute.xlu0 %7349
        %7352 = vset.pattern.permute.xlu0 6
        %7353 = vperm.xlu0 %7352, %v3385
        %v7354 = vpop.permute.xlu0 %7353
        %7356 = vset.pattern.permute.xlu0 6
        %7357 = vperm.xlu0 %7356, %v3386
        %v7358 = vpop.permute.xlu0 %7357
        %7360 = vset.pattern.permute.xlu0 6
        %7361 = vperm.xlu0 %7360, %v3387
        %v7362 = vpop.permute.xlu0 %7361
        %7364 = vset.pattern.permute.xlu0 6
        %7365 = vperm.xlu0 %7364, %v3388
        %v7366 = vpop.permute.xlu0 %7365
        %7368 = vset.pattern.permute.xlu0 6
        %7369 = vperm.xlu0 %7368, %v3389
        %v7370 = vpop.permute.xlu0 %7369
        %7372 = vset.pattern.permute.xlu0 6
        %7373 = vperm.xlu0 %7372, %v3390
        %v7374 = vpop.permute.xlu0 %7373
        %7376 = vset.pattern.permute.xlu0 6
        %7377 = vperm.xlu0 %7376, %v3391
        %v7378 = vpop.permute.xlu0 %7377
        %7380 = vset.pattern.permute.xlu0 6
        %7381 = vperm.xlu0 %7380, %v3392
        %v7382 = vpop.permute.xlu0 %7381
        %7384 = vset.pattern.permute.xlu0 6
        %7385 = vperm.xlu0 %7384, %v3393
        %v7386 = vpop.permute.xlu0 %7385
        %7388 = vset.pattern.permute.xlu0 6
        %7389 = vperm.xlu0 %7388, %v3394
        %v7390 = vpop.permute.xlu0 %7389
        %7392 = vset.pattern.permute.xlu0 6
        %7393 = vperm.xlu0 %7392, %v3395
        %v7394 = vpop.permute.xlu0 %7393
        %7396 = vset.pattern.permute.xlu0 6
        %7397 = vperm.xlu0 %7396, %v3396
        %v7398 = vpop.permute.xlu0 %7397
        %7400 = vset.pattern.permute.xlu0 6
        %7401 = vperm.xlu0 %7400, %v3397
        %v7402 = vpop.permute.xlu0 %7401
        %7404 = vset.pattern.permute.xlu0 6
        %7405 = vperm.xlu0 %7404, %v3398
        %v7406 = vpop.permute.xlu0 %7405
        %7408 = vset.pattern.permute.xlu0 6
        %7409 = vperm.xlu0 %7408, %v3399
        %v7410 = vpop.permute.xlu0 %7409
        %7412 = vset.pattern.permute.xlu0 6
        %7413 = vperm.xlu0 %7412, %v3400
        %v7414 = vpop.permute.xlu0 %7413
        %7416 = vset.pattern.permute.xlu0 6
        %7417 = vperm.xlu0 %7416, %v3401
        %v7418 = vpop.permute.xlu0 %7417
        %7420 = vset.pattern.permute.xlu0 6
        %7421 = vperm.xlu0 %7420, %v3402
        %v7422 = vpop.permute.xlu0 %7421
        %7424 = vset.pattern.permute.xlu0 6
        %7425 = vperm.xlu0 %7424, %v3403
        %v7426 = vpop.permute.xlu0 %7425
        %7428 = vset.pattern.permute.xlu0 6
        %7429 = vperm.xlu0 %7428, %v3404
        %v7430 = vpop.permute.xlu0 %7429
        %7432 = vset.pattern.permute.xlu0 6
        %7433 = vperm.xlu0 %7432, %v3405
        %v7434 = vpop.permute.xlu0 %7433
        %7436 = vset.pattern.permute.xlu0 6
        %7437 = vperm.xlu0 %7436, %v3406
        %v7438 = vpop.permute.xlu0 %7437
        %v7440 = vmul.f32 %v7181, %v7186
        %v7441 = vmul.f32 %v7180, %v7190
        %v7442 = vmul.f32 %v7179, %v7194
        %v7443 = vmul.f32 %v7178, %v7198
        %v7444 = vmul.f32 %v7177, %v7202
        %v7445 = vmul.f32 %v7176, %v7206
        %v7446 = vmul.f32 %v7175, %v7210
        %v7447 = vmul.f32 %v7174, %v7214
        %v7448 = vmul.f32 %v7173, %v7218
        %v7449 = vmul.f32 %v7172, %v7222
        %v7450 = vmul.f32 %v7171, %v7226
        %v7451 = vmul.f32 %v7170, %v7230
        %v7452 = vmul.f32 %v7169, %v7234
        %v7453 = vmul.f32 %v7168, %v7238
        %v7454 = vmul.f32 %v7167, %v7242
        %v7455 = vmul.f32 %v7166, %v7246
        %v7456 = vmul.f32 %v7165, %v7250
        %v7457 = vmul.f32 %v7164, %v7254
        %v7458 = vmul.f32 %v7163, %v7258
        %v7459 = vmul.f32 %v7162, %v7262
        %v7460 = vmul.f32 %v7161, %v7266
        %v7461 = vmul.f32 %v7160, %v7270
        %v7462 = vmul.f32 %v7159, %v7274
        %v7463 = vmul.f32 %v7158, %v7278
        %v7464 = vmul.f32 %v7157, %v7282
        %v7465 = vmul.f32 %v7156, %v7286
        %v7466 = vmul.f32 %v7155, %v7290
        %v7467 = vmul.f32 %v7154, %v7294
        %v7468 = vmul.f32 %v7153, %v7298
        %v7469 = vmul.f32 %v7152, %v7302
        %v7470 = vmul.f32 %v7151, %v7306
        %v7471 = vmul.f32 %v7150, %v7310
        %v7472 = vmul.f32 %v7149, %v7314
        %v7473 = vmul.f32 %v7148, %v7318
        %v7474 = vmul.f32 %v7147, %v7322
        %v7475 = vmul.f32 %v7146, %v7326
        %v7476 = vmul.f32 %v7145, %v7330
        %v7477 = vmul.f32 %v7144, %v7334
        %v7478 = vmul.f32 %v7143, %v7338
        %v7479 = vmul.f32 %v7142, %v7342
        %v7480 = vmul.f32 %v7141, %v7346
        %v7481 = vmul.f32 %v7140, %v7350
        %v7482 = vmul.f32 %v7139, %v7354
        %v7483 = vmul.f32 %v7138, %v7358
        %v7484 = vmul.f32 %v7137, %v7362
        %v7485 = vmul.f32 %v7136, %v7366
        %v7486 = vmul.f32 %v7135, %v7370
        %v7487 = vmul.f32 %v7134, %v7374
        %v7488 = vmul.f32 %v7133, %v7378
        %v7489 = vmul.f32 %v7132, %v7382
        %v7490 = vmul.f32 %v7131, %v7386
        %v7491 = vmul.f32 %v7130, %v7390
        %v7492 = vmul.f32 %v7129, %v7394
        %v7493 = vmul.f32 %v7128, %v7398
        %v7494 = vmul.f32 %v7127, %v7402
        %v7495 = vmul.f32 %v7126, %v7406
        %v7496 = vmul.f32 %v7125, %v7410
        %v7497 = vmul.f32 %v7124, %v7414
        %v7498 = vmul.f32 %v7123, %v7418
        %v7499 = vmul.f32 %v7122, %v7422
        %v7500 = vmul.f32 %v7121, %v7426
        %v7501 = vmul.f32 %v7120, %v7430
        %v7502 = vmul.f32 %v7183, %v7434
        %v7503 = vmul.f32 %v7182, %v7438
        %v7504 = vadd.f32 %v6800, %v7440
        %v7505 = vadd.f32 %v6801, %v7441
        %v7506 = vadd.f32 %v6802, %v7442
        %v7507 = vadd.f32 %v6803, %v7443
        %v7508 = vadd.f32 %v6804, %v7444
        %v7509 = vadd.f32 %v6805, %v7445
        %v7510 = vadd.f32 %v6806, %v7446
        %v7511 = vadd.f32 %v6807, %v7447
        %v7512 = vadd.f32 %v6808, %v7448
        %v7513 = vadd.f32 %v6809, %v7449
        %v7514 = vadd.f32 %v6810, %v7450
        %v7515 = vadd.f32 %v6811, %v7451
        %v7516 = vadd.f32 %v6812, %v7452
        %v7517 = vadd.f32 %v6813, %v7453
        %v7518 = vadd.f32 %v6814, %v7454
        %v7519 = vadd.f32 %v6815, %v7455
        %v7520 = vadd.f32 %v6816, %v7456
        %v7521 = vadd.f32 %v6817, %v7457
        %v7522 = vadd.f32 %v6818, %v7458
        %v7523 = vadd.f32 %v6819, %v7459
        %v7524 = vadd.f32 %v6820, %v7460
        %v7525 = vadd.f32 %v6821, %v7461
        %v7526 = vadd.f32 %v6822, %v7462
        %v7527 = vadd.f32 %v6823, %v7463
        %v7528 = vadd.f32 %v6824, %v7464
        %v7529 = vadd.f32 %v6825, %v7465
        %v7530 = vadd.f32 %v6826, %v7466
        %v7531 = vadd.f32 %v6827, %v7467
        %v7532 = vadd.f32 %v6828, %v7468
        %v7533 = vadd.f32 %v6829, %v7469
        %v7534 = vadd.f32 %v6830, %v7470
        %v7535 = vadd.f32 %v6831, %v7471
        %v7536 = vadd.f32 %v6832, %v7472
        %v7537 = vadd.f32 %v6833, %v7473
        %v7538 = vadd.f32 %v6834, %v7474
        %v7539 = vadd.f32 %v6835, %v7475
        %v7540 = vadd.f32 %v6836, %v7476
        %v7541 = vadd.f32 %v6837, %v7477
        %v7542 = vadd.f32 %v6838, %v7478
        %v7543 = vadd.f32 %v6839, %v7479
        %v7544 = vadd.f32 %v6840, %v7480
        %v7545 = vadd.f32 %v6841, %v7481
        %v7546 = vadd.f32 %v6842, %v7482
        %v7547 = vadd.f32 %v6843, %v7483
        %v7548 = vadd.f32 %v6844, %v7484
        %v7549 = vadd.f32 %v6845, %v7485
        %v7550 = vadd.f32 %v6846, %v7486
        %v7551 = vadd.f32 %v6847, %v7487
        %v7552 = vadd.f32 %v6848, %v7488
        %v7553 = vadd.f32 %v6849, %v7489
        %v7554 = vadd.f32 %v6850, %v7490
        %v7555 = vadd.f32 %v6851, %v7491
        %v7556 = vadd.f32 %v6852, %v7492
        %v7557 = vadd.f32 %v6853, %v7493
        %v7558 = vadd.f32 %v6854, %v7494
        %v7559 = vadd.f32 %v6855, %v7495
        %v7560 = vadd.f32 %v6856, %v7496
        %v7561 = vadd.f32 %v6857, %v7497
        %v7562 = vadd.f32 %v6858, %v7498
        %v7563 = vadd.f32 %v6859, %v7499
        %v7564 = vadd.f32 %v6860, %v7500
        %v7565 = vadd.f32 %v6861, %v7501
        %v7566 = vadd.f32 %v6862, %v7502
        %v7567 = vadd.f32 %v6863, %v7503
        %7568 = vrot.lane.b32.xlu0 %v3021, 100
        %v7569 = vpop.permute.xlu0 %7568
        %7570 = vrot.lane.b32.xlu0 %v3024, 100
        %v7571 = vpop.permute.xlu0 %7570
        %7572 = vrot.lane.b32.xlu0 %v3027, 100
        %v7573 = vpop.permute.xlu0 %7572
        %7574 = vrot.lane.b32.xlu0 %v3030, 100
        %v7575 = vpop.permute.xlu0 %7574
        %7576 = vrot.lane.b32.xlu0 %v3033, 100
        %v7577 = vpop.permute.xlu0 %7576
        %7578 = vrot.lane.b32.xlu0 %v3036, 100
        %v7579 = vpop.permute.xlu0 %7578
        %7580 = vrot.lane.b32.xlu0 %v3039, 100
        %v7581 = vpop.permute.xlu0 %7580
        %7582 = vrot.lane.b32.xlu0 %v3042, 100
        %v7583 = vpop.permute.xlu0 %7582
        %7584 = vrot.lane.b32.xlu0 %v3045, 100
        %v7585 = vpop.permute.xlu0 %7584
        %7586 = vrot.lane.b32.xlu0 %v3048, 100
        %v7587 = vpop.permute.xlu0 %7586
        %7588 = vrot.lane.b32.xlu0 %v3051, 100
        %v7589 = vpop.permute.xlu0 %7588
        %7590 = vrot.lane.b32.xlu0 %v3054, 100
        %v7591 = vpop.permute.xlu0 %7590
        %7592 = vrot.lane.b32.xlu0 %v3057, 100
        %v7593 = vpop.permute.xlu0 %7592
        %7594 = vrot.lane.b32.xlu0 %v3060, 100
        %v7595 = vpop.permute.xlu0 %7594
        %7596 = vrot.lane.b32.xlu0 %v3063, 100
        %v7597 = vpop.permute.xlu0 %7596
        %7598 = vrot.lane.b32.xlu0 %v3066, 100
        %v7599 = vpop.permute.xlu0 %7598
        %7600 = vrot.lane.b32.xlu0 %v3069, 100
        %v7601 = vpop.permute.xlu0 %7600
        %7602 = vrot.lane.b32.xlu0 %v3072, 100
        %v7603 = vpop.permute.xlu0 %7602
        %7604 = vrot.lane.b32.xlu0 %v3075, 100
        %v7605 = vpop.permute.xlu0 %7604
        %7606 = vrot.lane.b32.xlu0 %v3078, 100
        %v7607 = vpop.permute.xlu0 %7606
        %7608 = vrot.lane.b32.xlu0 %v3081, 100
        %v7609 = vpop.permute.xlu0 %7608
        %7610 = vrot.lane.b32.xlu0 %v3084, 100
        %v7611 = vpop.permute.xlu0 %7610
        %7612 = vrot.lane.b32.xlu0 %v3087, 100
        %v7613 = vpop.permute.xlu0 %7612
        %7614 = vrot.lane.b32.xlu0 %v3090, 100
        %v7615 = vpop.permute.xlu0 %7614
        %7616 = vrot.lane.b32.xlu0 %v3093, 100
        %v7617 = vpop.permute.xlu0 %7616
        %7618 = vrot.lane.b32.xlu0 %v3096, 100
        %v7619 = vpop.permute.xlu0 %7618
        %7620 = vrot.lane.b32.xlu0 %v3099, 100
        %v7621 = vpop.permute.xlu0 %7620
        %7622 = vrot.lane.b32.xlu0 %v3102, 100
        %v7623 = vpop.permute.xlu0 %7622
        %7624 = vrot.lane.b32.xlu0 %v3105, 100
        %v7625 = vpop.permute.xlu0 %7624
        %7626 = vrot.lane.b32.xlu0 %v3108, 100
        %v7627 = vpop.permute.xlu0 %7626
        %7628 = vrot.lane.b32.xlu0 %v3111, 100
        %v7629 = vpop.permute.xlu0 %7628
        %7630 = vrot.lane.b32.xlu0 %v3114, 100
        %v7631 = vpop.permute.xlu0 %7630
        %7632 = vrot.lane.b32.xlu0 %v3117, 100
        %v7633 = vpop.permute.xlu0 %7632
        %7634 = vrot.lane.b32.xlu0 %v3120, 100
        %v7635 = vpop.permute.xlu0 %7634
        %7636 = vrot.lane.b32.xlu0 %v3123, 100
        %v7637 = vpop.permute.xlu0 %7636
        %7638 = vrot.lane.b32.xlu0 %v3126, 100
        %v7639 = vpop.permute.xlu0 %7638
        %7640 = vrot.lane.b32.xlu0 %v3129, 100
        %v7641 = vpop.permute.xlu0 %7640
        %7642 = vrot.lane.b32.xlu0 %v3132, 100
        %v7643 = vpop.permute.xlu0 %7642
        %7644 = vrot.lane.b32.xlu0 %v3135, 100
        %v7645 = vpop.permute.xlu0 %7644
        %7646 = vrot.lane.b32.xlu0 %v3138, 100
        %v7647 = vpop.permute.xlu0 %7646
        %7648 = vrot.lane.b32.xlu0 %v3141, 100
        %v7649 = vpop.permute.xlu0 %7648
        %7650 = vrot.lane.b32.xlu0 %v3144, 100
        %v7651 = vpop.permute.xlu0 %7650
        %7652 = vrot.lane.b32.xlu0 %v3147, 100
        %v7653 = vpop.permute.xlu0 %7652
        %7654 = vrot.lane.b32.xlu0 %v3150, 100
        %v7655 = vpop.permute.xlu0 %7654
        %7656 = vrot.lane.b32.xlu0 %v3153, 100
        %v7657 = vpop.permute.xlu0 %7656
        %7658 = vrot.lane.b32.xlu0 %v3156, 100
        %v7659 = vpop.permute.xlu0 %7658
        %7660 = vrot.lane.b32.xlu0 %v3159, 100
        %v7661 = vpop.permute.xlu0 %7660
        %7662 = vrot.lane.b32.xlu0 %v3162, 100
        %v7663 = vpop.permute.xlu0 %7662
        %7664 = vrot.lane.b32.xlu0 %v3165, 100
        %v7665 = vpop.permute.xlu0 %7664
        %7666 = vrot.lane.b32.xlu0 %v3168, 100
        %v7667 = vpop.permute.xlu0 %7666
        %7668 = vrot.lane.b32.xlu0 %v3171, 100
        %v7669 = vpop.permute.xlu0 %7668
        %7670 = vrot.lane.b32.xlu0 %v3174, 100
        %v7671 = vpop.permute.xlu0 %7670
        %7672 = vrot.lane.b32.xlu0 %v3177, 100
        %v7673 = vpop.permute.xlu0 %7672
        %7674 = vrot.lane.b32.xlu0 %v3180, 100
        %v7675 = vpop.permute.xlu0 %7674
        %7676 = vrot.lane.b32.xlu0 %v3183, 100
        %v7677 = vpop.permute.xlu0 %7676
        %7678 = vrot.lane.b32.xlu0 %v3186, 100
        %v7679 = vpop.permute.xlu0 %7678
        %7680 = vrot.lane.b32.xlu0 %v3189, 100
        %v7681 = vpop.permute.xlu0 %7680
        %7682 = vrot.lane.b32.xlu0 %v3192, 100
        %v7683 = vpop.permute.xlu0 %7682
        %7684 = vrot.lane.b32.xlu0 %v3195, 100
        %v7685 = vpop.permute.xlu0 %7684
        %7686 = vrot.lane.b32.xlu0 %v3198, 100
        %v7687 = vpop.permute.xlu0 %7686
        %7688 = vrot.lane.b32.xlu0 %v3201, 100
        %v7689 = vpop.permute.xlu0 %7688
        %7690 = vrot.lane.b32.xlu0 %v3204, 100
        %v7691 = vpop.permute.xlu0 %7690
        %7692 = vrot.lane.b32.xlu0 %v3207, 100
        %v7693 = vpop.permute.xlu0 %7692
        %7694 = vrot.lane.b32.xlu0 %v3210, 100
        %v7695 = vpop.permute.xlu0 %7694
        %7760 = vset.pattern.permute.xlu0 7
        %7761 = vperm.xlu0 %7760, %v3343
        %v7762 = vpop.permute.xlu0 %7761
        %7764 = vset.pattern.permute.xlu0 7
        %7765 = vperm.xlu0 %7764, %v3344
        %v7766 = vpop.permute.xlu0 %7765
        %7768 = vset.pattern.permute.xlu0 7
        %7769 = vperm.xlu0 %7768, %v3345
        %v7770 = vpop.permute.xlu0 %7769
        %7772 = vset.pattern.permute.xlu0 7
        %7773 = vperm.xlu0 %7772, %v3346
        %v7774 = vpop.permute.xlu0 %7773
        %7776 = vset.pattern.permute.xlu0 7
        %7777 = vperm.xlu0 %7776, %v3347
        %v7778 = vpop.permute.xlu0 %7777
        %7780 = vset.pattern.permute.xlu0 7
        %7781 = vperm.xlu0 %7780, %v3348
        %v7782 = vpop.permute.xlu0 %7781
        %7784 = vset.pattern.permute.xlu0 7
        %7785 = vperm.xlu0 %7784, %v3349
        %v7786 = vpop.permute.xlu0 %7785
        %7788 = vset.pattern.permute.xlu0 7
        %7789 = vperm.xlu0 %7788, %v3350
        %v7790 = vpop.permute.xlu0 %7789
        %7792 = vset.pattern.permute.xlu0 7
        %7793 = vperm.xlu0 %7792, %v3351
        %v7794 = vpop.permute.xlu0 %7793
        %7796 = vset.pattern.permute.xlu0 7
        %7797 = vperm.xlu0 %7796, %v3352
        %v7798 = vpop.permute.xlu0 %7797
        %7800 = vset.pattern.permute.xlu0 7
        %7801 = vperm.xlu0 %7800, %v3353
        %v7802 = vpop.permute.xlu0 %7801
        %7804 = vset.pattern.permute.xlu0 7
        %7805 = vperm.xlu0 %7804, %v3354
        %v7806 = vpop.permute.xlu0 %7805
        %7808 = vset.pattern.permute.xlu0 7
        %7809 = vperm.xlu0 %7808, %v3355
        %v7810 = vpop.permute.xlu0 %7809
        %7812 = vset.pattern.permute.xlu0 7
        %7813 = vperm.xlu0 %7812, %v3356
        %v7814 = vpop.permute.xlu0 %7813
        %7816 = vset.pattern.permute.xlu0 7
        %7817 = vperm.xlu0 %7816, %v3357
        %v7818 = vpop.permute.xlu0 %7817
        %7820 = vset.pattern.permute.xlu0 7
        %7821 = vperm.xlu0 %7820, %v3358
        %v7822 = vpop.permute.xlu0 %7821
        %7824 = vset.pattern.permute.xlu0 7
        %7825 = vperm.xlu0 %7824, %v3359
        %v7826 = vpop.permute.xlu0 %7825
        %7828 = vset.pattern.permute.xlu0 7
        %7829 = vperm.xlu0 %7828, %v3360
        %v7830 = vpop.permute.xlu0 %7829
        %7832 = vset.pattern.permute.xlu0 7
        %7833 = vperm.xlu0 %7832, %v3361
        %v7834 = vpop.permute.xlu0 %7833
        %7836 = vset.pattern.permute.xlu0 7
        %7837 = vperm.xlu0 %7836, %v3362
        %v7838 = vpop.permute.xlu0 %7837
        %7840 = vset.pattern.permute.xlu0 7
        %7841 = vperm.xlu0 %7840, %v3363
        %v7842 = vpop.permute.xlu0 %7841
        %7844 = vset.pattern.permute.xlu0 7
        %7845 = vperm.xlu0 %7844, %v3364
        %v7846 = vpop.permute.xlu0 %7845
        %7848 = vset.pattern.permute.xlu0 7
        %7849 = vperm.xlu0 %7848, %v3365
        %v7850 = vpop.permute.xlu0 %7849
        %7852 = vset.pattern.permute.xlu0 7
        %7853 = vperm.xlu0 %7852, %v3366
        %v7854 = vpop.permute.xlu0 %7853
        %7856 = vset.pattern.permute.xlu0 7
        %7857 = vperm.xlu0 %7856, %v3367
        %v7858 = vpop.permute.xlu0 %7857
        %7860 = vset.pattern.permute.xlu0 7
        %7861 = vperm.xlu0 %7860, %v3368
        %v7862 = vpop.permute.xlu0 %7861
        %7864 = vset.pattern.permute.xlu0 7
        %7865 = vperm.xlu0 %7864, %v3369
        %v7866 = vpop.permute.xlu0 %7865
        %7868 = vset.pattern.permute.xlu0 7
        %7869 = vperm.xlu0 %7868, %v3370
        %v7870 = vpop.permute.xlu0 %7869
        %7872 = vset.pattern.permute.xlu0 7
        %7873 = vperm.xlu0 %7872, %v3371
        %v7874 = vpop.permute.xlu0 %7873
        %7876 = vset.pattern.permute.xlu0 7
        %7877 = vperm.xlu0 %7876, %v3372
        %v7878 = vpop.permute.xlu0 %7877
        %7880 = vset.pattern.permute.xlu0 7
        %7881 = vperm.xlu0 %7880, %v3373
        %v7882 = vpop.permute.xlu0 %7881
        %7884 = vset.pattern.permute.xlu0 7
        %7885 = vperm.xlu0 %7884, %v3374
        %v7886 = vpop.permute.xlu0 %7885
        %7888 = vset.pattern.permute.xlu0 7
        %7889 = vperm.xlu0 %7888, %v3375
        %v7890 = vpop.permute.xlu0 %7889
        %7892 = vset.pattern.permute.xlu0 7
        %7893 = vperm.xlu0 %7892, %v3376
        %v7894 = vpop.permute.xlu0 %7893
        %7896 = vset.pattern.permute.xlu0 7
        %7897 = vperm.xlu0 %7896, %v3377
        %v7898 = vpop.permute.xlu0 %7897
        %7900 = vset.pattern.permute.xlu0 7
        %7901 = vperm.xlu0 %7900, %v3378
        %v7902 = vpop.permute.xlu0 %7901
        %7904 = vset.pattern.permute.xlu0 7
        %7905 = vperm.xlu0 %7904, %v3379
        %v7906 = vpop.permute.xlu0 %7905
        %7908 = vset.pattern.permute.xlu0 7
        %7909 = vperm.xlu0 %7908, %v3380
        %v7910 = vpop.permute.xlu0 %7909
        %7912 = vset.pattern.permute.xlu0 7
        %7913 = vperm.xlu0 %7912, %v3381
        %v7914 = vpop.permute.xlu0 %7913
        %7916 = vset.pattern.permute.xlu0 7
        %7917 = vperm.xlu0 %7916, %v3382
        %v7918 = vpop.permute.xlu0 %7917
        %7920 = vset.pattern.permute.xlu0 7
        %7921 = vperm.xlu0 %7920, %v3383
        %v7922 = vpop.permute.xlu0 %7921
        %7924 = vset.pattern.permute.xlu0 7
        %7925 = vperm.xlu0 %7924, %v3384
        %v7926 = vpop.permute.xlu0 %7925
        %7928 = vset.pattern.permute.xlu0 7
        %7929 = vperm.xlu0 %7928, %v3385
        %v7930 = vpop.permute.xlu0 %7929
        %7932 = vset.pattern.permute.xlu0 7
        %7933 = vperm.xlu0 %7932, %v3386
        %v7934 = vpop.permute.xlu0 %7933
        %7936 = vset.pattern.permute.xlu0 7
        %7937 = vperm.xlu0 %7936, %v3387
        %v7938 = vpop.permute.xlu0 %7937
        %7940 = vset.pattern.permute.xlu0 7
        %7941 = vperm.xlu0 %7940, %v3388
        %v7942 = vpop.permute.xlu0 %7941
        %7944 = vset.pattern.permute.xlu0 7
        %7945 = vperm.xlu0 %7944, %v3389
        %v7946 = vpop.permute.xlu0 %7945
        %7948 = vset.pattern.permute.xlu0 7
        %7949 = vperm.xlu0 %7948, %v3390
        %v7950 = vpop.permute.xlu0 %7949
        %7952 = vset.pattern.permute.xlu0 7
        %7953 = vperm.xlu0 %7952, %v3391
        %v7954 = vpop.permute.xlu0 %7953
        %7956 = vset.pattern.permute.xlu0 7
        %7957 = vperm.xlu0 %7956, %v3392
        %v7958 = vpop.permute.xlu0 %7957
        %7960 = vset.pattern.permute.xlu0 7
        %7961 = vperm.xlu0 %7960, %v3393
        %v7962 = vpop.permute.xlu0 %7961
        %7964 = vset.pattern.permute.xlu0 7
        %7965 = vperm.xlu0 %7964, %v3394
        %v7966 = vpop.permute.xlu0 %7965
        %7968 = vset.pattern.permute.xlu0 7
        %7969 = vperm.xlu0 %7968, %v3395
        %v7970 = vpop.permute.xlu0 %7969
        %7972 = vset.pattern.permute.xlu0 7
        %7973 = vperm.xlu0 %7972, %v3396
        %v7974 = vpop.permute.xlu0 %7973
        %7976 = vset.pattern.permute.xlu0 7
        %7977 = vperm.xlu0 %7976, %v3397
        %v7978 = vpop.permute.xlu0 %7977
        %7980 = vset.pattern.permute.xlu0 7
        %7981 = vperm.xlu0 %7980, %v3398
        %v7982 = vpop.permute.xlu0 %7981
        %7984 = vset.pattern.permute.xlu0 7
        %7985 = vperm.xlu0 %7984, %v3399
        %v7986 = vpop.permute.xlu0 %7985
        %7988 = vset.pattern.permute.xlu0 7
        %7989 = vperm.xlu0 %7988, %v3400
        %v7990 = vpop.permute.xlu0 %7989
        %7992 = vset.pattern.permute.xlu0 7
        %7993 = vperm.xlu0 %7992, %v3401
        %v7994 = vpop.permute.xlu0 %7993
        %7996 = vset.pattern.permute.xlu0 7
        %7997 = vperm.xlu0 %7996, %v3402
        %v7998 = vpop.permute.xlu0 %7997
        %8000 = vset.pattern.permute.xlu0 7
        %8001 = vperm.xlu0 %8000, %v3403
        %v8002 = vpop.permute.xlu0 %8001
        %8004 = vset.pattern.permute.xlu0 7
        %8005 = vperm.xlu0 %8004, %v3404
        %v8006 = vpop.permute.xlu0 %8005
        %8008 = vset.pattern.permute.xlu0 7
        %8009 = vperm.xlu0 %8008, %v3405
        %v8010 = vpop.permute.xlu0 %8009
        %8012 = vset.pattern.permute.xlu0 7
        %8013 = vperm.xlu0 %8012, %v3406
        %v8014 = vpop.permute.xlu0 %8013
        %v8016 = vmul.f32 %v7573, %v7762
        %v8017 = vmul.f32 %v7575, %v7766
        %v8018 = vmul.f32 %v7577, %v7770
        %v8019 = vmul.f32 %v7579, %v7774
        %v8020 = vmul.f32 %v7581, %v7778
        %v8021 = vmul.f32 %v7583, %v7782
        %v8022 = vmul.f32 %v7585, %v7786
        %v8023 = vmul.f32 %v7587, %v7790
        %v8024 = vmul.f32 %v7589, %v7794
        %v8025 = vmul.f32 %v7591, %v7798
        %v8026 = vmul.f32 %v7593, %v7802
        %v8027 = vmul.f32 %v7595, %v7806
        %v8028 = vmul.f32 %v7597, %v7810
        %v8029 = vmul.f32 %v7599, %v7814
        %v8030 = vmul.f32 %v7601, %v7818
        %v8031 = vmul.f32 %v7603, %v7822
        %v8032 = vmul.f32 %v7605, %v7826
        %v8033 = vmul.f32 %v7607, %v7830
        %v8034 = vmul.f32 %v7609, %v7834
        %v8035 = vmul.f32 %v7611, %v7838
        %v8036 = vmul.f32 %v7613, %v7842
        %v8037 = vmul.f32 %v7615, %v7846
        %v8038 = vmul.f32 %v7617, %v7850
        %v8039 = vmul.f32 %v7619, %v7854
        %v8040 = vmul.f32 %v7621, %v7858
        %v8041 = vmul.f32 %v7623, %v7862
        %v8042 = vmul.f32 %v7625, %v7866
        %v8043 = vmul.f32 %v7627, %v7870
        %v8044 = vmul.f32 %v7629, %v7874
        %v8045 = vmul.f32 %v7631, %v7878
        %v8046 = vmul.f32 %v7633, %v7882
        %v8047 = vmul.f32 %v7635, %v7886
        %v8048 = vmul.f32 %v7637, %v7890
        %v8049 = vmul.f32 %v7639, %v7894
        %v8050 = vmul.f32 %v7641, %v7898
        %v8051 = vmul.f32 %v7643, %v7902
        %v8052 = vmul.f32 %v7645, %v7906
        %v8053 = vmul.f32 %v7647, %v7910
        %v8054 = vmul.f32 %v7649, %v7914
        %v8055 = vmul.f32 %v7651, %v7918
        %v8056 = vmul.f32 %v7653, %v7922
        %v8057 = vmul.f32 %v7655, %v7926
        %v8058 = vmul.f32 %v7657, %v7930
        %v8059 = vmul.f32 %v7659, %v7934
        %v8060 = vmul.f32 %v7661, %v7938
        %v8061 = vmul.f32 %v7663, %v7942
        %v8062 = vmul.f32 %v7665, %v7946
        %v8063 = vmul.f32 %v7667, %v7950
        %v8064 = vmul.f32 %v7669, %v7954
        %v8065 = vmul.f32 %v7671, %v7958
        %v8066 = vmul.f32 %v7673, %v7962
        %v8067 = vmul.f32 %v7675, %v7966
        %v8068 = vmul.f32 %v7677, %v7970
        %v8069 = vmul.f32 %v7679, %v7974
        %v8070 = vmul.f32 %v7681, %v7978
        %v8071 = vmul.f32 %v7683, %v7982
        %v8072 = vmul.f32 %v7685, %v7986
        %v8073 = vmul.f32 %v7687, %v7990
        %v8074 = vmul.f32 %v7689, %v7994
        %v8075 = vmul.f32 %v7691, %v7998
        %v8076 = vmul.f32 %v7693, %v8002
        %v8077 = vmul.f32 %v7695, %v8006
        %v8078 = vmul.f32 %v7569, %v8010
        %v8079 = vmul.f32 %v7571, %v8014
        %v8080 = vadd.f32 %v7504, %v8016
        %v8081 = vadd.f32 %v7505, %v8017
        %v8082 = vadd.f32 %v7506, %v8018
        %v8083 = vadd.f32 %v7507, %v8019
        %v8084 = vadd.f32 %v7508, %v8020
        %v8085 = vadd.f32 %v7509, %v8021
        %v8086 = vadd.f32 %v7510, %v8022
        %v8087 = vadd.f32 %v7511, %v8023
        %v8088 = vadd.f32 %v7512, %v8024
        %v8089 = vadd.f32 %v7513, %v8025
        %v8090 = vadd.f32 %v7514, %v8026
        %v8091 = vadd.f32 %v7515, %v8027
        %v8092 = vadd.f32 %v7516, %v8028
        %v8093 = vadd.f32 %v7517, %v8029
        %v8094 = vadd.f32 %v7518, %v8030
        %v8095 = vadd.f32 %v7519, %v8031
        %v8096 = vadd.f32 %v7520, %v8032
        %v8097 = vadd.f32 %v7521, %v8033
        %v8098 = vadd.f32 %v7522, %v8034
        %v8099 = vadd.f32 %v7523, %v8035
        %v8100 = vadd.f32 %v7524, %v8036
        %v8101 = vadd.f32 %v7525, %v8037
        %v8102 = vadd.f32 %v7526, %v8038
        %v8103 = vadd.f32 %v7527, %v8039
        %v8104 = vadd.f32 %v7528, %v8040
        %v8105 = vadd.f32 %v7529, %v8041
        %v8106 = vadd.f32 %v7530, %v8042
        %v8107 = vadd.f32 %v7531, %v8043
        %v8108 = vadd.f32 %v7532, %v8044
        %v8109 = vadd.f32 %v7533, %v8045
        %v8110 = vadd.f32 %v7534, %v8046
        %v8111 = vadd.f32 %v7535, %v8047
        %v8112 = vadd.f32 %v7536, %v8048
        %v8113 = vadd.f32 %v7537, %v8049
        %v8114 = vadd.f32 %v7538, %v8050
        %v8115 = vadd.f32 %v7539, %v8051
        %v8116 = vadd.f32 %v7540, %v8052
        %v8117 = vadd.f32 %v7541, %v8053
        %v8118 = vadd.f32 %v7542, %v8054
        %v8119 = vadd.f32 %v7543, %v8055
        %v8120 = vadd.f32 %v7544, %v8056
        %v8121 = vadd.f32 %v7545, %v8057
        %v8122 = vadd.f32 %v7546, %v8058
        %v8123 = vadd.f32 %v7547, %v8059
        %v8124 = vadd.f32 %v7548, %v8060
        %v8125 = vadd.f32 %v7549, %v8061
        %v8126 = vadd.f32 %v7550, %v8062
        %v8127 = vadd.f32 %v7551, %v8063
        %v8128 = vadd.f32 %v7552, %v8064
        %v8129 = vadd.f32 %v7553, %v8065
        %v8130 = vadd.f32 %v7554, %v8066
        %v8131 = vadd.f32 %v7555, %v8067
        %v8132 = vadd.f32 %v7556, %v8068
        %v8133 = vadd.f32 %v7557, %v8069
        %v8134 = vadd.f32 %v7558, %v8070
        %v8135 = vadd.f32 %v7559, %v8071
        %v8136 = vadd.f32 %v7560, %v8072
        %v8137 = vadd.f32 %v7561, %v8073
        %v8138 = vadd.f32 %v7562, %v8074
        %v8139 = vadd.f32 %v7563, %v8075
        %v8140 = vadd.f32 %v7564, %v8076
        %v8141 = vadd.f32 %v7565, %v8077
        %v8142 = vadd.f32 %v7566, %v8078
        %v8143 = vadd.f32 %v7567, %v8079
        %8144 = vrot.lane.b32.xlu0 %v3021, 96
        %v8145 = vpop.permute.xlu0 %8144
        %8146 = vrot.lane.b32.xlu0 %v3024, 96
        %v8147 = vpop.permute.xlu0 %8146
        %8148 = vrot.lane.b32.xlu0 %v3027, 96
        %v8149 = vpop.permute.xlu0 %8148
        %8150 = vrot.lane.b32.xlu0 %v3030, 96
        %v8151 = vpop.permute.xlu0 %8150
        %8152 = vrot.lane.b32.xlu0 %v3033, 96
        %v8153 = vpop.permute.xlu0 %8152
        %8154 = vrot.lane.b32.xlu0 %v3036, 96
        %v8155 = vpop.permute.xlu0 %8154
        %8156 = vrot.lane.b32.xlu0 %v3039, 96
        %v8157 = vpop.permute.xlu0 %8156
        %8158 = vrot.lane.b32.xlu0 %v3042, 96
        %v8159 = vpop.permute.xlu0 %8158
        %8160 = vrot.lane.b32.xlu0 %v3045, 96
        %v8161 = vpop.permute.xlu0 %8160
        %8162 = vrot.lane.b32.xlu0 %v3048, 96
        %v8163 = vpop.permute.xlu0 %8162
        %8164 = vrot.lane.b32.xlu0 %v3051, 96
        %v8165 = vpop.permute.xlu0 %8164
        %8166 = vrot.lane.b32.xlu0 %v3054, 96
        %v8167 = vpop.permute.xlu0 %8166
        %8168 = vrot.lane.b32.xlu0 %v3057, 96
        %v8169 = vpop.permute.xlu0 %8168
        %8170 = vrot.lane.b32.xlu0 %v3060, 96
        %v8171 = vpop.permute.xlu0 %8170
        %8172 = vrot.lane.b32.xlu0 %v3063, 96
        %v8173 = vpop.permute.xlu0 %8172
        %8174 = vrot.lane.b32.xlu0 %v3066, 96
        %v8175 = vpop.permute.xlu0 %8174
        %8176 = vrot.lane.b32.xlu0 %v3069, 96
        %v8177 = vpop.permute.xlu0 %8176
        %8178 = vrot.lane.b32.xlu0 %v3072, 96
        %v8179 = vpop.permute.xlu0 %8178
        %8180 = vrot.lane.b32.xlu0 %v3075, 96
        %v8181 = vpop.permute.xlu0 %8180
        %8182 = vrot.lane.b32.xlu0 %v3078, 96
        %v8183 = vpop.permute.xlu0 %8182
        %8184 = vrot.lane.b32.xlu0 %v3081, 96
        %v8185 = vpop.permute.xlu0 %8184
        %8186 = vrot.lane.b32.xlu0 %v3084, 96
        %v8187 = vpop.permute.xlu0 %8186
        %8188 = vrot.lane.b32.xlu0 %v3087, 96
        %v8189 = vpop.permute.xlu0 %8188
        %8190 = vrot.lane.b32.xlu0 %v3090, 96
        %v8191 = vpop.permute.xlu0 %8190
        %8192 = vrot.lane.b32.xlu0 %v3093, 96
        %v8193 = vpop.permute.xlu0 %8192
        %8194 = vrot.lane.b32.xlu0 %v3096, 96
        %v8195 = vpop.permute.xlu0 %8194
        %8196 = vrot.lane.b32.xlu0 %v3099, 96
        %v8197 = vpop.permute.xlu0 %8196
        %8198 = vrot.lane.b32.xlu0 %v3102, 96
        %v8199 = vpop.permute.xlu0 %8198
        %8200 = vrot.lane.b32.xlu0 %v3105, 96
        %v8201 = vpop.permute.xlu0 %8200
        %8202 = vrot.lane.b32.xlu0 %v3108, 96
        %v8203 = vpop.permute.xlu0 %8202
        %8204 = vrot.lane.b32.xlu0 %v3111, 96
        %v8205 = vpop.permute.xlu0 %8204
        %8206 = vrot.lane.b32.xlu0 %v3114, 96
        %v8207 = vpop.permute.xlu0 %8206
        %8208 = vrot.lane.b32.xlu0 %v3117, 96
        %v8209 = vpop.permute.xlu0 %8208
        %8210 = vrot.lane.b32.xlu0 %v3120, 96
        %v8211 = vpop.permute.xlu0 %8210
        %8212 = vrot.lane.b32.xlu0 %v3123, 96
        %v8213 = vpop.permute.xlu0 %8212
        %8214 = vrot.lane.b32.xlu0 %v3126, 96
        %v8215 = vpop.permute.xlu0 %8214
        %8216 = vrot.lane.b32.xlu0 %v3129, 96
        %v8217 = vpop.permute.xlu0 %8216
        %8218 = vrot.lane.b32.xlu0 %v3132, 96
        %v8219 = vpop.permute.xlu0 %8218
        %8220 = vrot.lane.b32.xlu0 %v3135, 96
        %v8221 = vpop.permute.xlu0 %8220
        %8222 = vrot.lane.b32.xlu0 %v3138, 96
        %v8223 = vpop.permute.xlu0 %8222
        %8224 = vrot.lane.b32.xlu0 %v3141, 96
        %v8225 = vpop.permute.xlu0 %8224
        %8226 = vrot.lane.b32.xlu0 %v3144, 96
        %v8227 = vpop.permute.xlu0 %8226
        %8228 = vrot.lane.b32.xlu0 %v3147, 96
        %v8229 = vpop.permute.xlu0 %8228
        %8230 = vrot.lane.b32.xlu0 %v3150, 96
        %v8231 = vpop.permute.xlu0 %8230
        %8232 = vrot.lane.b32.xlu0 %v3153, 96
        %v8233 = vpop.permute.xlu0 %8232
        %8234 = vrot.lane.b32.xlu0 %v3156, 96
        %v8235 = vpop.permute.xlu0 %8234
        %8236 = vrot.lane.b32.xlu0 %v3159, 96
        %v8237 = vpop.permute.xlu0 %8236
        %8238 = vrot.lane.b32.xlu0 %v3162, 96
        %v8239 = vpop.permute.xlu0 %8238
        %8240 = vrot.lane.b32.xlu0 %v3165, 96
        %v8241 = vpop.permute.xlu0 %8240
        %8242 = vrot.lane.b32.xlu0 %v3168, 96
        %v8243 = vpop.permute.xlu0 %8242
        %8244 = vrot.lane.b32.xlu0 %v3171, 96
        %v8245 = vpop.permute.xlu0 %8244
        %8246 = vrot.lane.b32.xlu0 %v3174, 96
        %v8247 = vpop.permute.xlu0 %8246
        %8248 = vrot.lane.b32.xlu0 %v3177, 96
        %v8249 = vpop.permute.xlu0 %8248
        %8250 = vrot.lane.b32.xlu0 %v3180, 96
        %v8251 = vpop.permute.xlu0 %8250
        %8252 = vrot.lane.b32.xlu0 %v3183, 96
        %v8253 = vpop.permute.xlu0 %8252
        %8254 = vrot.lane.b32.xlu0 %v3186, 96
        %v8255 = vpop.permute.xlu0 %8254
        %8256 = vrot.lane.b32.xlu0 %v3189, 96
        %v8257 = vpop.permute.xlu0 %8256
        %8258 = vrot.lane.b32.xlu0 %v3192, 96
        %v8259 = vpop.permute.xlu0 %8258
        %8260 = vrot.lane.b32.xlu0 %v3195, 96
        %v8261 = vpop.permute.xlu0 %8260
        %8262 = vrot.lane.b32.xlu0 %v3198, 96
        %v8263 = vpop.permute.xlu0 %8262
        %8264 = vrot.lane.b32.xlu0 %v3201, 96
        %v8265 = vpop.permute.xlu0 %8264
        %8266 = vrot.lane.b32.xlu0 %v3204, 96
        %v8267 = vpop.permute.xlu0 %8266
        %8268 = vrot.lane.b32.xlu0 %v3207, 96
        %v8269 = vpop.permute.xlu0 %8268
        %8270 = vrot.lane.b32.xlu0 %v3210, 96
        %v8271 = vpop.permute.xlu0 %8270
        %v8336 = vrot.slane %v8145, 1
        %v8337 = vrot.slane %v8147, 1
        %v8338 = vrot.slane %v8149, 1
        %v8339 = vrot.slane %v8151, 1
        %v8340 = vrot.slane %v8153, 1
        %v8341 = vrot.slane %v8155, 1
        %v8342 = vrot.slane %v8157, 1
        %v8343 = vrot.slane %v8159, 1
        %v8344 = vrot.slane %v8161, 1
        %v8345 = vrot.slane %v8163, 1
        %v8346 = vrot.slane %v8165, 1
        %v8347 = vrot.slane %v8167, 1
        %v8348 = vrot.slane %v8169, 1
        %v8349 = vrot.slane %v8171, 1
        %v8350 = vrot.slane %v8173, 1
        %v8351 = vrot.slane %v8175, 1
        %v8352 = vrot.slane %v8177, 1
        %v8353 = vrot.slane %v8179, 1
        %v8354 = vrot.slane %v8181, 1
        %v8355 = vrot.slane %v8183, 1
        %v8356 = vrot.slane %v8185, 1
        %v8357 = vrot.slane %v8187, 1
        %v8358 = vrot.slane %v8189, 1
        %v8359 = vrot.slane %v8191, 1
        %v8360 = vrot.slane %v8193, 1
        %v8361 = vrot.slane %v8195, 1
        %v8362 = vrot.slane %v8197, 1
        %v8363 = vrot.slane %v8199, 1
        %v8364 = vrot.slane %v8201, 1
        %v8365 = vrot.slane %v8203, 1
        %v8366 = vrot.slane %v8205, 1
        %v8367 = vrot.slane %v8207, 1
        %v8368 = vrot.slane %v8209, 1
        %v8369 = vrot.slane %v8211, 1
        %v8370 = vrot.slane %v8213, 1
        %v8371 = vrot.slane %v8215, 1
        %v8372 = vrot.slane %v8217, 1
        %v8373 = vrot.slane %v8219, 1
        %v8374 = vrot.slane %v8221, 1
        %v8375 = vrot.slane %v8223, 1
        %v8376 = vrot.slane %v8225, 1
        %v8377 = vrot.slane %v8227, 1
        %v8378 = vrot.slane %v8229, 1
        %v8379 = vrot.slane %v8231, 1
        %v8380 = vrot.slane %v8233, 1
        %v8381 = vrot.slane %v8235, 1
        %v8382 = vrot.slane %v8237, 1
        %v8383 = vrot.slane %v8239, 1
        %v8384 = vrot.slane %v8241, 1
        %v8385 = vrot.slane %v8243, 1
        %v8386 = vrot.slane %v8245, 1
        %v8387 = vrot.slane %v8247, 1
        %v8388 = vrot.slane %v8249, 1
        %v8389 = vrot.slane %v8251, 1
        %v8390 = vrot.slane %v8253, 1
        %v8391 = vrot.slane %v8255, 1
        %v8392 = vrot.slane %v8257, 1
        %v8393 = vrot.slane %v8259, 1
        %v8394 = vrot.slane %v8261, 1
        %v8395 = vrot.slane %v8263, 1
        %v8396 = vrot.slane %v8265, 1
        %v8397 = vrot.slane %v8267, 1
        %v8398 = vrot.slane %v8269, 1
        %v8399 = vrot.slane %v8271, 1
        %v8400 = vsel %vm4751, %v8398, %v8399
        %v8401 = vsel %vm4751, %v8397, %v8398
        %v8402 = vsel %vm4751, %v8396, %v8397
        %v8403 = vsel %vm4751, %v8395, %v8396
        %v8404 = vsel %vm4751, %v8394, %v8395
        %v8405 = vsel %vm4751, %v8393, %v8394
        %v8406 = vsel %vm4751, %v8392, %v8393
        %v8407 = vsel %vm4751, %v8391, %v8392
        %v8408 = vsel %vm4751, %v8390, %v8391
        %v8409 = vsel %vm4751, %v8389, %v8390
        %v8410 = vsel %vm4751, %v8388, %v8389
        %v8411 = vsel %vm4751, %v8387, %v8388
        %v8412 = vsel %vm4751, %v8386, %v8387
        %v8413 = vsel %vm4751, %v8385, %v8386
        %v8414 = vsel %vm4751, %v8384, %v8385
        %v8415 = vsel %vm4751, %v8383, %v8384
        %v8416 = vsel %vm4751, %v8382, %v8383
        %v8417 = vsel %vm4751, %v8381, %v8382
        %v8418 = vsel %vm4751, %v8380, %v8381
        %v8419 = vsel %vm4751, %v8379, %v8380
        %v8420 = vsel %vm4751, %v8378, %v8379
        %v8421 = vsel %vm4751, %v8377, %v8378
        %v8422 = vsel %vm4751, %v8376, %v8377
        %v8423 = vsel %vm4751, %v8375, %v8376
        %v8424 = vsel %vm4751, %v8374, %v8375
        %v8425 = vsel %vm4751, %v8373, %v8374
        %v8426 = vsel %vm4751, %v8372, %v8373
        %v8427 = vsel %vm4751, %v8371, %v8372
        %v8428 = vsel %vm4751, %v8370, %v8371
        %v8429 = vsel %vm4751, %v8369, %v8370
        %v8430 = vsel %vm4751, %v8368, %v8369
        %v8431 = vsel %vm4751, %v8367, %v8368
        %v8432 = vsel %vm4751, %v8366, %v8367
        %v8433 = vsel %vm4751, %v8365, %v8366
        %v8434 = vsel %vm4751, %v8364, %v8365
        %v8435 = vsel %vm4751, %v8363, %v8364
        %v8436 = vsel %vm4751, %v8362, %v8363
        %v8437 = vsel %vm4751, %v8361, %v8362
        %v8438 = vsel %vm4751, %v8360, %v8361
        %v8439 = vsel %vm4751, %v8359, %v8360
        %v8440 = vsel %vm4751, %v8358, %v8359
        %v8441 = vsel %vm4751, %v8357, %v8358
        %v8442 = vsel %vm4751, %v8356, %v8357
        %v8443 = vsel %vm4751, %v8355, %v8356
        %v8444 = vsel %vm4751, %v8354, %v8355
        %v8445 = vsel %vm4751, %v8353, %v8354
        %v8446 = vsel %vm4751, %v8352, %v8353
        %v8447 = vsel %vm4751, %v8351, %v8352
        %v8448 = vsel %vm4751, %v8350, %v8351
        %v8449 = vsel %vm4751, %v8349, %v8350
        %v8450 = vsel %vm4751, %v8348, %v8349
        %v8451 = vsel %vm4751, %v8347, %v8348
        %v8452 = vsel %vm4751, %v8346, %v8347
        %v8453 = vsel %vm4751, %v8345, %v8346
        %v8454 = vsel %vm4751, %v8344, %v8345
        %v8455 = vsel %vm4751, %v8343, %v8344
        %v8456 = vsel %vm4751, %v8342, %v8343
        %v8457 = vsel %vm4751, %v8341, %v8342
        %v8458 = vsel %vm4751, %v8340, %v8341
        %v8459 = vsel %vm4751, %v8339, %v8340
        %v8460 = vsel %vm4751, %v8338, %v8339
        %v8461 = vsel %vm4751, %v8337, %v8338
        %v8462 = vsel %vm4751, %v8336, %v8337
        %v8463 = vsel %vm4751, %v8399, %v8336
        %8464 = vset.pattern.permute.xlu0 8
        %8465 = vperm.xlu0 %8464, %v3343
        %v8466 = vpop.permute.xlu0 %8465
        %8468 = vset.pattern.permute.xlu0 8
        %8469 = vperm.xlu0 %8468, %v3344
        %v8470 = vpop.permute.xlu0 %8469
        %8472 = vset.pattern.permute.xlu0 8
        %8473 = vperm.xlu0 %8472, %v3345
        %v8474 = vpop.permute.xlu0 %8473
        %8476 = vset.pattern.permute.xlu0 8
        %8477 = vperm.xlu0 %8476, %v3346
        %v8478 = vpop.permute.xlu0 %8477
        %8480 = vset.pattern.permute.xlu0 8
        %8481 = vperm.xlu0 %8480, %v3347
        %v8482 = vpop.permute.xlu0 %8481
        %8484 = vset.pattern.permute.xlu0 8
        %8485 = vperm.xlu0 %8484, %v3348
        %v8486 = vpop.permute.xlu0 %8485
        %8488 = vset.pattern.permute.xlu0 8
        %8489 = vperm.xlu0 %8488, %v3349
        %v8490 = vpop.permute.xlu0 %8489
        %8492 = vset.pattern.permute.xlu0 8
        %8493 = vperm.xlu0 %8492, %v3350
        %v8494 = vpop.permute.xlu0 %8493
        %8496 = vset.pattern.permute.xlu0 8
        %8497 = vperm.xlu0 %8496, %v3351
        %v8498 = vpop.permute.xlu0 %8497
        %8500 = vset.pattern.permute.xlu0 8
        %8501 = vperm.xlu0 %8500, %v3352
        %v8502 = vpop.permute.xlu0 %8501
        %8504 = vset.pattern.permute.xlu0 8
        %8505 = vperm.xlu0 %8504, %v3353
        %v8506 = vpop.permute.xlu0 %8505
        %8508 = vset.pattern.permute.xlu0 8
        %8509 = vperm.xlu0 %8508, %v3354
        %v8510 = vpop.permute.xlu0 %8509
        %8512 = vset.pattern.permute.xlu0 8
        %8513 = vperm.xlu0 %8512, %v3355
        %v8514 = vpop.permute.xlu0 %8513
        %8516 = vset.pattern.permute.xlu0 8
        %8517 = vperm.xlu0 %8516, %v3356
        %v8518 = vpop.permute.xlu0 %8517
        %8520 = vset.pattern.permute.xlu0 8
        %8521 = vperm.xlu0 %8520, %v3357
        %v8522 = vpop.permute.xlu0 %8521
        %8524 = vset.pattern.permute.xlu0 8
        %8525 = vperm.xlu0 %8524, %v3358
        %v8526 = vpop.permute.xlu0 %8525
        %8528 = vset.pattern.permute.xlu0 8
        %8529 = vperm.xlu0 %8528, %v3359
        %v8530 = vpop.permute.xlu0 %8529
        %8532 = vset.pattern.permute.xlu0 8
        %8533 = vperm.xlu0 %8532, %v3360
        %v8534 = vpop.permute.xlu0 %8533
        %8536 = vset.pattern.permute.xlu0 8
        %8537 = vperm.xlu0 %8536, %v3361
        %v8538 = vpop.permute.xlu0 %8537
        %8540 = vset.pattern.permute.xlu0 8
        %8541 = vperm.xlu0 %8540, %v3362
        %v8542 = vpop.permute.xlu0 %8541
        %8544 = vset.pattern.permute.xlu0 8
        %8545 = vperm.xlu0 %8544, %v3363
        %v8546 = vpop.permute.xlu0 %8545
        %8548 = vset.pattern.permute.xlu0 8
        %8549 = vperm.xlu0 %8548, %v3364
        %v8550 = vpop.permute.xlu0 %8549
        %8552 = vset.pattern.permute.xlu0 8
        %8553 = vperm.xlu0 %8552, %v3365
        %v8554 = vpop.permute.xlu0 %8553
        %8556 = vset.pattern.permute.xlu0 8
        %8557 = vperm.xlu0 %8556, %v3366
        %v8558 = vpop.permute.xlu0 %8557
        %8560 = vset.pattern.permute.xlu0 8
        %8561 = vperm.xlu0 %8560, %v3367
        %v8562 = vpop.permute.xlu0 %8561
        %8564 = vset.pattern.permute.xlu0 8
        %8565 = vperm.xlu0 %8564, %v3368
        %v8566 = vpop.permute.xlu0 %8565
        %8568 = vset.pattern.permute.xlu0 8
        %8569 = vperm.xlu0 %8568, %v3369
        %v8570 = vpop.permute.xlu0 %8569
        %8572 = vset.pattern.permute.xlu0 8
        %8573 = vperm.xlu0 %8572, %v3370
        %v8574 = vpop.permute.xlu0 %8573
        %8576 = vset.pattern.permute.xlu0 8
        %8577 = vperm.xlu0 %8576, %v3371
        %v8578 = vpop.permute.xlu0 %8577
        %8580 = vset.pattern.permute.xlu0 8
        %8581 = vperm.xlu0 %8580, %v3372
        %v8582 = vpop.permute.xlu0 %8581
        %8584 = vset.pattern.permute.xlu0 8
        %8585 = vperm.xlu0 %8584, %v3373
        %v8586 = vpop.permute.xlu0 %8585
        %8588 = vset.pattern.permute.xlu0 8
        %8589 = vperm.xlu0 %8588, %v3374
        %v8590 = vpop.permute.xlu0 %8589
        %8592 = vset.pattern.permute.xlu0 8
        %8593 = vperm.xlu0 %8592, %v3375
        %v8594 = vpop.permute.xlu0 %8593
        %8596 = vset.pattern.permute.xlu0 8
        %8597 = vperm.xlu0 %8596, %v3376
        %v8598 = vpop.permute.xlu0 %8597
        %8600 = vset.pattern.permute.xlu0 8
        %8601 = vperm.xlu0 %8600, %v3377
        %v8602 = vpop.permute.xlu0 %8601
        %8604 = vset.pattern.permute.xlu0 8
        %8605 = vperm.xlu0 %8604, %v3378
        %v8606 = vpop.permute.xlu0 %8605
        %8608 = vset.pattern.permute.xlu0 8
        %8609 = vperm.xlu0 %8608, %v3379
        %v8610 = vpop.permute.xlu0 %8609
        %8612 = vset.pattern.permute.xlu0 8
        %8613 = vperm.xlu0 %8612, %v3380
        %v8614 = vpop.permute.xlu0 %8613
        %8616 = vset.pattern.permute.xlu0 8
        %8617 = vperm.xlu0 %8616, %v3381
        %v8618 = vpop.permute.xlu0 %8617
        %8620 = vset.pattern.permute.xlu0 8
        %8621 = vperm.xlu0 %8620, %v3382
        %v8622 = vpop.permute.xlu0 %8621
        %8624 = vset.pattern.permute.xlu0 8
        %8625 = vperm.xlu0 %8624, %v3383
        %v8626 = vpop.permute.xlu0 %8625
        %8628 = vset.pattern.permute.xlu0 8
        %8629 = vperm.xlu0 %8628, %v3384
        %v8630 = vpop.permute.xlu0 %8629
        %8632 = vset.pattern.permute.xlu0 8
        %8633 = vperm.xlu0 %8632, %v3385
        %v8634 = vpop.permute.xlu0 %8633
        %8636 = vset.pattern.permute.xlu0 8
        %8637 = vperm.xlu0 %8636, %v3386
        %v8638 = vpop.permute.xlu0 %8637
        %8640 = vset.pattern.permute.xlu0 8
        %8641 = vperm.xlu0 %8640, %v3387
        %v8642 = vpop.permute.xlu0 %8641
        %8644 = vset.pattern.permute.xlu0 8
        %8645 = vperm.xlu0 %8644, %v3388
        %v8646 = vpop.permute.xlu0 %8645
        %8648 = vset.pattern.permute.xlu0 8
        %8649 = vperm.xlu0 %8648, %v3389
        %v8650 = vpop.permute.xlu0 %8649
        %8652 = vset.pattern.permute.xlu0 8
        %8653 = vperm.xlu0 %8652, %v3390
        %v8654 = vpop.permute.xlu0 %8653
        %8656 = vset.pattern.permute.xlu0 8
        %8657 = vperm.xlu0 %8656, %v3391
        %v8658 = vpop.permute.xlu0 %8657
        %8660 = vset.pattern.permute.xlu0 8
        %8661 = vperm.xlu0 %8660, %v3392
        %v8662 = vpop.permute.xlu0 %8661
        %8664 = vset.pattern.permute.xlu0 8
        %8665 = vperm.xlu0 %8664, %v3393
        %v8666 = vpop.permute.xlu0 %8665
        %8668 = vset.pattern.permute.xlu0 8
        %8669 = vperm.xlu0 %8668, %v3394
        %v8670 = vpop.permute.xlu0 %8669
        %8672 = vset.pattern.permute.xlu0 8
        %8673 = vperm.xlu0 %8672, %v3395
        %v8674 = vpop.permute.xlu0 %8673
        %8676 = vset.pattern.permute.xlu0 8
        %8677 = vperm.xlu0 %8676, %v3396
        %v8678 = vpop.permute.xlu0 %8677
        %8680 = vset.pattern.permute.xlu0 8
        %8681 = vperm.xlu0 %8680, %v3397
        %v8682 = vpop.permute.xlu0 %8681
        %8684 = vset.pattern.permute.xlu0 8
        %8685 = vperm.xlu0 %8684, %v3398
        %v8686 = vpop.permute.xlu0 %8685
        %8688 = vset.pattern.permute.xlu0 8
        %8689 = vperm.xlu0 %8688, %v3399
        %v8690 = vpop.permute.xlu0 %8689
        %8692 = vset.pattern.permute.xlu0 8
        %8693 = vperm.xlu0 %8692, %v3400
        %v8694 = vpop.permute.xlu0 %8693
        %8696 = vset.pattern.permute.xlu0 8
        %8697 = vperm.xlu0 %8696, %v3401
        %v8698 = vpop.permute.xlu0 %8697
        %8700 = vset.pattern.permute.xlu0 8
        %8701 = vperm.xlu0 %8700, %v3402
        %v8702 = vpop.permute.xlu0 %8701
        %8704 = vset.pattern.permute.xlu0 8
        %8705 = vperm.xlu0 %8704, %v3403
        %v8706 = vpop.permute.xlu0 %8705
        %8708 = vset.pattern.permute.xlu0 8
        %8709 = vperm.xlu0 %8708, %v3404
        %v8710 = vpop.permute.xlu0 %8709
        %8712 = vset.pattern.permute.xlu0 8
        %8713 = vperm.xlu0 %8712, %v3405
        %v8714 = vpop.permute.xlu0 %8713
        %8716 = vset.pattern.permute.xlu0 8
        %8717 = vperm.xlu0 %8716, %v3406
        %v8718 = vpop.permute.xlu0 %8717
        %v8720 = vmul.f32 %v8460, %v8466
        %v8721 = vmul.f32 %v8459, %v8470
        %v8722 = vmul.f32 %v8458, %v8474
        %v8723 = vmul.f32 %v8457, %v8478
        %v8724 = vmul.f32 %v8456, %v8482
        %v8725 = vmul.f32 %v8455, %v8486
        %v8726 = vmul.f32 %v8454, %v8490
        %v8727 = vmul.f32 %v8453, %v8494
        %v8728 = vmul.f32 %v8452, %v8498
        %v8729 = vmul.f32 %v8451, %v8502
        %v8730 = vmul.f32 %v8450, %v8506
        %v8731 = vmul.f32 %v8449, %v8510
        %v8732 = vmul.f32 %v8448, %v8514
        %v8733 = vmul.f32 %v8447, %v8518
        %v8734 = vmul.f32 %v8446, %v8522
        %v8735 = vmul.f32 %v8445, %v8526
        %v8736 = vmul.f32 %v8444, %v8530
        %v8737 = vmul.f32 %v8443, %v8534
        %v8738 = vmul.f32 %v8442, %v8538
        %v8739 = vmul.f32 %v8441, %v8542
        %v8740 = vmul.f32 %v8440, %v8546
        %v8741 = vmul.f32 %v8439, %v8550
        %v8742 = vmul.f32 %v8438, %v8554
        %v8743 = vmul.f32 %v8437, %v8558
        %v8744 = vmul.f32 %v8436, %v8562
        %v8745 = vmul.f32 %v8435, %v8566
        %v8746 = vmul.f32 %v8434, %v8570
        %v8747 = vmul.f32 %v8433, %v8574
        %v8748 = vmul.f32 %v8432, %v8578
        %v8749 = vmul.f32 %v8431, %v8582
        %v8750 = vmul.f32 %v8430, %v8586
        %v8751 = vmul.f32 %v8429, %v8590
        %v8752 = vmul.f32 %v8428, %v8594
        %v8753 = vmul.f32 %v8427, %v8598
        %v8754 = vmul.f32 %v8426, %v8602
        %v8755 = vmul.f32 %v8425, %v8606
        %v8756 = vmul.f32 %v8424, %v8610
        %v8757 = vmul.f32 %v8423, %v8614
        %v8758 = vmul.f32 %v8422, %v8618
        %v8759 = vmul.f32 %v8421, %v8622
        %v8760 = vmul.f32 %v8420, %v8626
        %v8761 = vmul.f32 %v8419, %v8630
        %v8762 = vmul.f32 %v8418, %v8634
        %v8763 = vmul.f32 %v8417, %v8638
        %v8764 = vmul.f32 %v8416, %v8642
        %v8765 = vmul.f32 %v8415, %v8646
        %v8766 = vmul.f32 %v8414, %v8650
        %v8767 = vmul.f32 %v8413, %v8654
        %v8768 = vmul.f32 %v8412, %v8658
        %v8769 = vmul.f32 %v8411, %v8662
        %v8770 = vmul.f32 %v8410, %v8666
        %v8771 = vmul.f32 %v8409, %v8670
        %v8772 = vmul.f32 %v8408, %v8674
        %v8773 = vmul.f32 %v8407, %v8678
        %v8774 = vmul.f32 %v8406, %v8682
        %v8775 = vmul.f32 %v8405, %v8686
        %v8776 = vmul.f32 %v8404, %v8690
        %v8777 = vmul.f32 %v8403, %v8694
        %v8778 = vmul.f32 %v8402, %v8698
        %v8779 = vmul.f32 %v8401, %v8702
        %v8780 = vmul.f32 %v8400, %v8706
        %v8781 = vmul.f32 %v8463, %v8710
        %v8782 = vmul.f32 %v8462, %v8714
        %v8783 = vmul.f32 %v8461, %v8718
        %v8784 = vadd.f32 %v8080, %v8720
        %v8785 = vadd.f32 %v8081, %v8721
        %v8786 = vadd.f32 %v8082, %v8722
        %v8787 = vadd.f32 %v8083, %v8723
        %v8788 = vadd.f32 %v8084, %v8724
        %v8789 = vadd.f32 %v8085, %v8725
        %v8790 = vadd.f32 %v8086, %v8726
        %v8791 = vadd.f32 %v8087, %v8727
        %v8792 = vadd.f32 %v8088, %v8728
        %v8793 = vadd.f32 %v8089, %v8729
        %v8794 = vadd.f32 %v8090, %v8730
        %v8795 = vadd.f32 %v8091, %v8731
        %v8796 = vadd.f32 %v8092, %v8732
        %v8797 = vadd.f32 %v8093, %v8733
        %v8798 = vadd.f32 %v8094, %v8734
        %v8799 = vadd.f32 %v8095, %v8735
        %v8800 = vadd.f32 %v8096, %v8736
        %v8801 = vadd.f32 %v8097, %v8737
        %v8802 = vadd.f32 %v8098, %v8738
        %v8803 = vadd.f32 %v8099, %v8739
        %v8804 = vadd.f32 %v8100, %v8740
        %v8805 = vadd.f32 %v8101, %v8741
        %v8806 = vadd.f32 %v8102, %v8742
        %v8807 = vadd.f32 %v8103, %v8743
        %v8808 = vadd.f32 %v8104, %v8744
        %v8809 = vadd.f32 %v8105, %v8745
        %v8810 = vadd.f32 %v8106, %v8746
        %v8811 = vadd.f32 %v8107, %v8747
        %v8812 = vadd.f32 %v8108, %v8748
        %v8813 = vadd.f32 %v8109, %v8749
        %v8814 = vadd.f32 %v8110, %v8750
        %v8815 = vadd.f32 %v8111, %v8751
        %v8816 = vadd.f32 %v8112, %v8752
        %v8817 = vadd.f32 %v8113, %v8753
        %v8818 = vadd.f32 %v8114, %v8754
        %v8819 = vadd.f32 %v8115, %v8755
        %v8820 = vadd.f32 %v8116, %v8756
        %v8821 = vadd.f32 %v8117, %v8757
        %v8822 = vadd.f32 %v8118, %v8758
        %v8823 = vadd.f32 %v8119, %v8759
        %v8824 = vadd.f32 %v8120, %v8760
        %v8825 = vadd.f32 %v8121, %v8761
        %v8826 = vadd.f32 %v8122, %v8762
        %v8827 = vadd.f32 %v8123, %v8763
        %v8828 = vadd.f32 %v8124, %v8764
        %v8829 = vadd.f32 %v8125, %v8765
        %v8830 = vadd.f32 %v8126, %v8766
        %v8831 = vadd.f32 %v8127, %v8767
        %v8832 = vadd.f32 %v8128, %v8768
        %v8833 = vadd.f32 %v8129, %v8769
        %v8834 = vadd.f32 %v8130, %v8770
        %v8835 = vadd.f32 %v8131, %v8771
        %v8836 = vadd.f32 %v8132, %v8772
        %v8837 = vadd.f32 %v8133, %v8773
        %v8838 = vadd.f32 %v8134, %v8774
        %v8839 = vadd.f32 %v8135, %v8775
        %v8840 = vadd.f32 %v8136, %v8776
        %v8841 = vadd.f32 %v8137, %v8777
        %v8842 = vadd.f32 %v8138, %v8778
        %v8843 = vadd.f32 %v8139, %v8779
        %v8844 = vadd.f32 %v8140, %v8780
        %v8845 = vadd.f32 %v8141, %v8781
        %v8846 = vadd.f32 %v8142, %v8782
        %v8847 = vadd.f32 %v8143, %v8783
        %v8848 = vld [vmem:[%s323] sm:$0xff]
        %v8849 = vld [vmem:[%s323 + $0x8] sm:$0xff]
        %v8850 = vld [vmem:[%s323 + $0x10] sm:$0xff]
        %v8851 = vld [vmem:[%s323 + $0x18] sm:$0xff]
        %v8852 = vld [vmem:[%s323 + $0x20] sm:$0xff]
        %v8853 = vld [vmem:[%s323 + $0x28] sm:$0xff]
        %v8854 = vld [vmem:[%s323 + $0x30] sm:$0xff]
        %v8855 = vld [vmem:[%s323 + $0x38] sm:$0xff]
        %v8856 = vld [vmem:[%s323 + $0x40] sm:$0xff]
        %v8857 = vld [vmem:[%s323 + $0x48] sm:$0xff]
        %v8858 = vld [vmem:[%s323 + $0x50] sm:$0xff]
        %v8859 = vld [vmem:[%s323 + $0x58] sm:$0xff]
        %v8860 = vld [vmem:[%s323 + $0x60] sm:$0xff]
        %v8861 = vld [vmem:[%s323 + $0x68] sm:$0xff]
        %v8862 = vld [vmem:[%s323 + $0x70] sm:$0xff]
        %v8863 = vld [vmem:[%s323 + $0x78] sm:$0xff]
        %v8864 = vld [vmem:[%s323 + $0x80] sm:$0xff]
        %v8865 = vld [vmem:[%s323 + $0x88] sm:$0xff]
        %v8866 = vld [vmem:[%s323 + $0x90] sm:$0xff]
        %v8867 = vld [vmem:[%s323 + $0x98] sm:$0xff]
        %v8868 = vld [vmem:[%s323 + $0xa0] sm:$0xff]
        %v8869 = vld [vmem:[%s323 + $0xa8] sm:$0xff]
        %v8870 = vld [vmem:[%s323 + $0xb0] sm:$0xff]
        %v8871 = vld [vmem:[%s323 + $0xb8] sm:$0xff]
        %v8872 = vld [vmem:[%s323 + $0xc0] sm:$0xff]
        %v8873 = vld [vmem:[%s323 + $0xc8] sm:$0xff]
        %v8874 = vld [vmem:[%s323 + $0xd0] sm:$0xff]
        %v8875 = vld [vmem:[%s323 + $0xd8] sm:$0xff]
        %v8876 = vld [vmem:[%s323 + $0xe0] sm:$0xff]
        %v8877 = vld [vmem:[%s323 + $0xe8] sm:$0xff]
        %v8878 = vld [vmem:[%s323 + $0xf0] sm:$0xff]
        %v8879 = vld [vmem:[%s323 + $0xf8] sm:$0xff]
        %v8880 = vld [vmem:[%s323 + $0x100] sm:$0xff]
        %v8881 = vld [vmem:[%s323 + $0x108] sm:$0xff]
        %v8882 = vld [vmem:[%s323 + $0x110] sm:$0xff]
        %v8883 = vld [vmem:[%s323 + $0x118] sm:$0xff]
        %v8884 = vld [vmem:[%s323 + $0x120] sm:$0xff]
        %v8885 = vld [vmem:[%s323 + $0x128] sm:$0xff]
        %v8886 = vld [vmem:[%s323 + $0x130] sm:$0xff]
        %v8887 = vld [vmem:[%s323 + $0x138] sm:$0xff]
        %v8888 = vld [vmem:[%s323 + $0x140] sm:$0xff]
        %v8889 = vld [vmem:[%s323 + $0x148] sm:$0xff]
        %v8890 = vld [vmem:[%s323 + $0x150] sm:$0xff]
        %v8891 = vld [vmem:[%s323 + $0x158] sm:$0xff]
        %v8892 = vld [vmem:[%s323 + $0x160] sm:$0xff]
        %v8893 = vld [vmem:[%s323 + $0x168] sm:$0xff]
        %v8894 = vld [vmem:[%s323 + $0x170] sm:$0xff]
        %v8895 = vld [vmem:[%s323 + $0x178] sm:$0xff]
        %v8896 = vld [vmem:[%s323 + $0x180] sm:$0xff]
        %v8897 = vld [vmem:[%s323 + $0x188] sm:$0xff]
        %v8898 = vld [vmem:[%s323 + $0x190] sm:$0xff]
        %v8899 = vld [vmem:[%s323 + $0x198] sm:$0xff]
        %v8900 = vld [vmem:[%s323 + $0x1a0] sm:$0xff]
        %v8901 = vld [vmem:[%s323 + $0x1a8] sm:$0xff]
        %v8902 = vld [vmem:[%s323 + $0x1b0] sm:$0xff]
        %v8903 = vld [vmem:[%s323 + $0x1b8] sm:$0xff]
        %v8904 = vld [vmem:[%s323 + $0x1c0] sm:$0xff]
        %v8905 = vld [vmem:[%s323 + $0x1c8] sm:$0xff]
        %v8906 = vld [vmem:[%s323 + $0x1d0] sm:$0xff]
        %v8907 = vld [vmem:[%s323 + $0x1d8] sm:$0xff]
        %v8908 = vld [vmem:[%s323 + $0x1e0] sm:$0xff]
        %v8909 = vld [vmem:[%s323 + $0x1e8] sm:$0xff]
        %v8910 = vld [vmem:[%s323 + $0x1f0] sm:$0xff]
        %v8911 = vld [vmem:[%s323 + $0x1f8] sm:$0xff]
        %8912 = vst.msk [vmem:[%s332] sm:$0xff] %vm2202, %v8848
        %8913 = vst.msk [vmem:[%s332 + $0x8] sm:$0xff] %vm2202, %v8849
        %8914 = vst.msk [vmem:[%s332 + $0x10] sm:$0xff] %vm2202, %v8850
        %8915 = vst.msk [vmem:[%s332 + $0x18] sm:$0xff] %vm2202, %v8851
        %8916 = vst.msk [vmem:[%s332 + $0x20] sm:$0xff] %vm2202, %v8852
        %8917 = vst.msk [vmem:[%s332 + $0x28] sm:$0xff] %vm2202, %v8853
        %8918 = vst.msk [vmem:[%s332 + $0x30] sm:$0xff] %vm2202, %v8854
        %8919 = vst.msk [vmem:[%s332 + $0x38] sm:$0xff] %vm2202, %v8855
        %8920 = vst.msk [vmem:[%s332 + $0x40] sm:$0xff] %vm2202, %v8856
        %8921 = vst.msk [vmem:[%s332 + $0x48] sm:$0xff] %vm2202, %v8857
        %8922 = vst.msk [vmem:[%s332 + $0x50] sm:$0xff] %vm2202, %v8858
        %8923 = vst.msk [vmem:[%s332 + $0x58] sm:$0xff] %vm2202, %v8859
        %8924 = vst.msk [vmem:[%s332 + $0x60] sm:$0xff] %vm2202, %v8860
        %8925 = vst.msk [vmem:[%s332 + $0x68] sm:$0xff] %vm2202, %v8861
        %8926 = vst.msk [vmem:[%s332 + $0x70] sm:$0xff] %vm2202, %v8862
        %8927 = vst.msk [vmem:[%s332 + $0x78] sm:$0xff] %vm2202, %v8863
        %8928 = vst.msk [vmem:[%s332 + $0x80] sm:$0xff] %vm2202, %v8864
        %8929 = vst.msk [vmem:[%s332 + $0x88] sm:$0xff] %vm2202, %v8865
        %8930 = vst.msk [vmem:[%s332 + $0x90] sm:$0xff] %vm2202, %v8866
        %8931 = vst.msk [vmem:[%s332 + $0x98] sm:$0xff] %vm2202, %v8867
        %8932 = vst.msk [vmem:[%s332 + $0xa0] sm:$0xff] %vm2202, %v8868
        %8933 = vst.msk [vmem:[%s332 + $0xa8] sm:$0xff] %vm2202, %v8869
        %8934 = vst.msk [vmem:[%s332 + $0xb0] sm:$0xff] %vm2202, %v8870
        %8935 = vst.msk [vmem:[%s332 + $0xb8] sm:$0xff] %vm2202, %v8871
        %8936 = vst.msk [vmem:[%s332 + $0xc0] sm:$0xff] %vm2202, %v8872
        %8937 = vst.msk [vmem:[%s332 + $0xc8] sm:$0xff] %vm2202, %v8873
        %8938 = vst.msk [vmem:[%s332 + $0xd0] sm:$0xff] %vm2202, %v8874
        %8939 = vst.msk [vmem:[%s332 + $0xd8] sm:$0xff] %vm2202, %v8875
        %8940 = vst.msk [vmem:[%s332 + $0xe0] sm:$0xff] %vm2202, %v8876
        %8941 = vst.msk [vmem:[%s332 + $0xe8] sm:$0xff] %vm2202, %v8877
        %8942 = vst.msk [vmem:[%s332 + $0xf0] sm:$0xff] %vm2202, %v8878
        %8943 = vst.msk [vmem:[%s332 + $0xf8] sm:$0xff] %vm2202, %v8879
        %8944 = vst.msk [vmem:[%s332 + $0x100] sm:$0xff] %vm2202, %v8880
        %8945 = vst.msk [vmem:[%s332 + $0x108] sm:$0xff] %vm2202, %v8881
        %8946 = vst.msk [vmem:[%s332 + $0x110] sm:$0xff] %vm2202, %v8882
        %8947 = vst.msk [vmem:[%s332 + $0x118] sm:$0xff] %vm2202, %v8883
        %8948 = vst.msk [vmem:[%s332 + $0x120] sm:$0xff] %vm2202, %v8884
        %8949 = vst.msk [vmem:[%s332 + $0x128] sm:$0xff] %vm2202, %v8885
        %8950 = vst.msk [vmem:[%s332 + $0x130] sm:$0xff] %vm2202, %v8886
        %8951 = vst.msk [vmem:[%s332 + $0x138] sm:$0xff] %vm2202, %v8887
        %8952 = vst.msk [vmem:[%s332 + $0x140] sm:$0xff] %vm2202, %v8888
        %8953 = vst.msk [vmem:[%s332 + $0x148] sm:$0xff] %vm2202, %v8889
        %8954 = vst.msk [vmem:[%s332 + $0x150] sm:$0xff] %vm2202, %v8890
        %8955 = vst.msk [vmem:[%s332 + $0x158] sm:$0xff] %vm2202, %v8891
        %8956 = vst.msk [vmem:[%s332 + $0x160] sm:$0xff] %vm2202, %v8892
        %8957 = vst.msk [vmem:[%s332 + $0x168] sm:$0xff] %vm2202, %v8893
        %8958 = vst.msk [vmem:[%s332 + $0x170] sm:$0xff] %vm2202, %v8894
        %8959 = vst.msk [vmem:[%s332 + $0x178] sm:$0xff] %vm2202, %v8895
        %8960 = vst.msk [vmem:[%s332 + $0x180] sm:$0xff] %vm2202, %v8896
        %8961 = vst.msk [vmem:[%s332 + $0x188] sm:$0xff] %vm2202, %v8897
        %8962 = vst.msk [vmem:[%s332 + $0x190] sm:$0xff] %vm2202, %v8898
        %8963 = vst.msk [vmem:[%s332 + $0x198] sm:$0xff] %vm2202, %v8899
        %8964 = vst.msk [vmem:[%s332 + $0x1a0] sm:$0xff] %vm2202, %v8900
        %8965 = vst.msk [vmem:[%s332 + $0x1a8] sm:$0xff] %vm2202, %v8901
        %8966 = vst.msk [vmem:[%s332 + $0x1b0] sm:$0xff] %vm2202, %v8902
        %8967 = vst.msk [vmem:[%s332 + $0x1b8] sm:$0xff] %vm2202, %v8903
        %8968 = vst.msk [vmem:[%s332 + $0x1c0] sm:$0xff] %vm2202, %v8904
        %8969 = vst.msk [vmem:[%s332 + $0x1c8] sm:$0xff] %vm2202, %v8905
        %8970 = vst.msk [vmem:[%s332 + $0x1d0] sm:$0xff] %vm2202, %v8906
        %8971 = vst.msk [vmem:[%s332 + $0x1d8] sm:$0xff] %vm2202, %v8907
        %8972 = vst.msk [vmem:[%s332 + $0x1e0] sm:$0xff] %vm2202, %v8908
        %8973 = vst.msk [vmem:[%s332 + $0x1e8] sm:$0xff] %vm2202, %v8909
        %8974 = vst.msk [vmem:[%s332 + $0x1f0] sm:$0xff] %vm2202, %v8910
        %8975 = vst.msk [vmem:[%s332 + $0x1f8] sm:$0xff] %vm2202, %v8911
        %9040 = vrot.lane.b32.xlu0 %v8784, 4
        %v9041 = vpop.permute.xlu0 %9040
        %9042 = vrot.lane.b32.xlu0 %v8785, 4
        %v9043 = vpop.permute.xlu0 %9042
        %9044 = vrot.lane.b32.xlu0 %v8786, 4
        %v9045 = vpop.permute.xlu0 %9044
        %9046 = vrot.lane.b32.xlu0 %v8787, 4
        %v9047 = vpop.permute.xlu0 %9046
        %9048 = vrot.lane.b32.xlu0 %v8788, 4
        %v9049 = vpop.permute.xlu0 %9048
        %9050 = vrot.lane.b32.xlu0 %v8789, 4
        %v9051 = vpop.permute.xlu0 %9050
        %9052 = vrot.lane.b32.xlu0 %v8790, 4
        %v9053 = vpop.permute.xlu0 %9052
        %9054 = vrot.lane.b32.xlu0 %v8791, 4
        %v9055 = vpop.permute.xlu0 %9054
        %9056 = vrot.lane.b32.xlu0 %v8792, 4
        %v9057 = vpop.permute.xlu0 %9056
        %9058 = vrot.lane.b32.xlu0 %v8793, 4
        %v9059 = vpop.permute.xlu0 %9058
        %9060 = vrot.lane.b32.xlu0 %v8794, 4
        %v9061 = vpop.permute.xlu0 %9060
        %9062 = vrot.lane.b32.xlu0 %v8795, 4
        %v9063 = vpop.permute.xlu0 %9062
        %9064 = vrot.lane.b32.xlu0 %v8796, 4
        %v9065 = vpop.permute.xlu0 %9064
        %9066 = vrot.lane.b32.xlu0 %v8797, 4
        %v9067 = vpop.permute.xlu0 %9066
        %9068 = vrot.lane.b32.xlu0 %v8798, 4
        %v9069 = vpop.permute.xlu0 %9068
        %9070 = vrot.lane.b32.xlu0 %v8799, 4
        %v9071 = vpop.permute.xlu0 %9070
        %9072 = vrot.lane.b32.xlu0 %v8800, 4
        %v9073 = vpop.permute.xlu0 %9072
        %9074 = vrot.lane.b32.xlu0 %v8801, 4
        %v9075 = vpop.permute.xlu0 %9074
        %9076 = vrot.lane.b32.xlu0 %v8802, 4
        %v9077 = vpop.permute.xlu0 %9076
        %9078 = vrot.lane.b32.xlu0 %v8803, 4
        %v9079 = vpop.permute.xlu0 %9078
        %9080 = vrot.lane.b32.xlu0 %v8804, 4
        %v9081 = vpop.permute.xlu0 %9080
        %9082 = vrot.lane.b32.xlu0 %v8805, 4
        %v9083 = vpop.permute.xlu0 %9082
        %9084 = vrot.lane.b32.xlu0 %v8806, 4
        %v9085 = vpop.permute.xlu0 %9084
        %9086 = vrot.lane.b32.xlu0 %v8807, 4
        %v9087 = vpop.permute.xlu0 %9086
        %9088 = vrot.lane.b32.xlu0 %v8808, 4
        %v9089 = vpop.permute.xlu0 %9088
        %9090 = vrot.lane.b32.xlu0 %v8809, 4
        %v9091 = vpop.permute.xlu0 %9090
        %9092 = vrot.lane.b32.xlu0 %v8810, 4
        %v9093 = vpop.permute.xlu0 %9092
        %9094 = vrot.lane.b32.xlu0 %v8811, 4
        %v9095 = vpop.permute.xlu0 %9094
        %9096 = vrot.lane.b32.xlu0 %v8812, 4
        %v9097 = vpop.permute.xlu0 %9096
        %9098 = vrot.lane.b32.xlu0 %v8813, 4
        %v9099 = vpop.permute.xlu0 %9098
        %9100 = vrot.lane.b32.xlu0 %v8814, 4
        %v9101 = vpop.permute.xlu0 %9100
        %9102 = vrot.lane.b32.xlu0 %v8815, 4
        %v9103 = vpop.permute.xlu0 %9102
        %9104 = vrot.lane.b32.xlu0 %v8816, 4
        %v9105 = vpop.permute.xlu0 %9104
        %9106 = vrot.lane.b32.xlu0 %v8817, 4
        %v9107 = vpop.permute.xlu0 %9106
        %9108 = vrot.lane.b32.xlu0 %v8818, 4
        %v9109 = vpop.permute.xlu0 %9108
        %9110 = vrot.lane.b32.xlu0 %v8819, 4
        %v9111 = vpop.permute.xlu0 %9110
        %9112 = vrot.lane.b32.xlu0 %v8820, 4
        %v9113 = vpop.permute.xlu0 %9112
        %9114 = vrot.lane.b32.xlu0 %v8821, 4
        %v9115 = vpop.permute.xlu0 %9114
        %9116 = vrot.lane.b32.xlu0 %v8822, 4
        %v9117 = vpop.permute.xlu0 %9116
        %9118 = vrot.lane.b32.xlu0 %v8823, 4
        %v9119 = vpop.permute.xlu0 %9118
        %9120 = vrot.lane.b32.xlu0 %v8824, 4
        %v9121 = vpop.permute.xlu0 %9120
        %9122 = vrot.lane.b32.xlu0 %v8825, 4
        %v9123 = vpop.permute.xlu0 %9122
        %9124 = vrot.lane.b32.xlu0 %v8826, 4
        %v9125 = vpop.permute.xlu0 %9124
        %9126 = vrot.lane.b32.xlu0 %v8827, 4
        %v9127 = vpop.permute.xlu0 %9126
        %9128 = vrot.lane.b32.xlu0 %v8828, 4
        %v9129 = vpop.permute.xlu0 %9128
        %9130 = vrot.lane.b32.xlu0 %v8829, 4
        %v9131 = vpop.permute.xlu0 %9130
        %9132 = vrot.lane.b32.xlu0 %v8830, 4
        %v9133 = vpop.permute.xlu0 %9132
        %9134 = vrot.lane.b32.xlu0 %v8831, 4
        %v9135 = vpop.permute.xlu0 %9134
        %9136 = vrot.lane.b32.xlu0 %v8832, 4
        %v9137 = vpop.permute.xlu0 %9136
        %9138 = vrot.lane.b32.xlu0 %v8833, 4
        %v9139 = vpop.permute.xlu0 %9138
        %9140 = vrot.lane.b32.xlu0 %v8834, 4
        %v9141 = vpop.permute.xlu0 %9140
        %9142 = vrot.lane.b32.xlu0 %v8835, 4
        %v9143 = vpop.permute.xlu0 %9142
        %9144 = vrot.lane.b32.xlu0 %v8836, 4
        %v9145 = vpop.permute.xlu0 %9144
        %9146 = vrot.lane.b32.xlu0 %v8837, 4
        %v9147 = vpop.permute.xlu0 %9146
        %9148 = vrot.lane.b32.xlu0 %v8838, 4
        %v9149 = vpop.permute.xlu0 %9148
        %9150 = vrot.lane.b32.xlu0 %v8839, 4
        %v9151 = vpop.permute.xlu0 %9150
        %9152 = vrot.lane.b32.xlu0 %v8840, 4
        %v9153 = vpop.permute.xlu0 %9152
        %9154 = vrot.lane.b32.xlu0 %v8841, 4
        %v9155 = vpop.permute.xlu0 %9154
        %9156 = vrot.lane.b32.xlu0 %v8842, 4
        %v9157 = vpop.permute.xlu0 %9156
        %9158 = vrot.lane.b32.xlu0 %v8843, 4
        %v9159 = vpop.permute.xlu0 %9158
        %9160 = vrot.lane.b32.xlu0 %v8844, 4
        %v9161 = vpop.permute.xlu0 %9160
        %9162 = vrot.lane.b32.xlu0 %v8845, 4
        %v9163 = vpop.permute.xlu0 %9162
        %9164 = vrot.lane.b32.xlu0 %v8846, 4
        %v9165 = vpop.permute.xlu0 %9164
        %9166 = vrot.lane.b32.xlu0 %v8847, 4
        %v9167 = vpop.permute.xlu0 %9166
        %vm9232 = vcmask 64544
        %9233 = vst.msk [vmem:[%s332] sm:$0xff] %vm9232, %v9041
        %9234 = vst.msk [vmem:[%s332 + $0x8] sm:$0xff] %vm9232, %v9043
        %9235 = vst.msk [vmem:[%s332 + $0x10] sm:$0xff] %vm9232, %v9045
        %9236 = vst.msk [vmem:[%s332 + $0x18] sm:$0xff] %vm9232, %v9047
        %9237 = vst.msk [vmem:[%s332 + $0x20] sm:$0xff] %vm9232, %v9049
        %9238 = vst.msk [vmem:[%s332 + $0x28] sm:$0xff] %vm9232, %v9051
        %9239 = vst.msk [vmem:[%s332 + $0x30] sm:$0xff] %vm9232, %v9053
        %9240 = vst.msk [vmem:[%s332 + $0x38] sm:$0xff] %vm9232, %v9055
        %9241 = vst.msk [vmem:[%s332 + $0x40] sm:$0xff] %vm9232, %v9057
        %9242 = vst.msk [vmem:[%s332 + $0x48] sm:$0xff] %vm9232, %v9059
        %9243 = vst.msk [vmem:[%s332 + $0x50] sm:$0xff] %vm9232, %v9061
        %9244 = vst.msk [vmem:[%s332 + $0x58] sm:$0xff] %vm9232, %v9063
        %9245 = vst.msk [vmem:[%s332 + $0x60] sm:$0xff] %vm9232, %v9065
        %9246 = vst.msk [vmem:[%s332 + $0x68] sm:$0xff] %vm9232, %v9067
        %9247 = vst.msk [vmem:[%s332 + $0x70] sm:$0xff] %vm9232, %v9069
        %9248 = vst.msk [vmem:[%s332 + $0x78] sm:$0xff] %vm9232, %v9071
        %9249 = vst.msk [vmem:[%s332 + $0x80] sm:$0xff] %vm9232, %v9073
        %9250 = vst.msk [vmem:[%s332 + $0x88] sm:$0xff] %vm9232, %v9075
        %9251 = vst.msk [vmem:[%s332 + $0x90] sm:$0xff] %vm9232, %v9077
        %9252 = vst.msk [vmem:[%s332 + $0x98] sm:$0xff] %vm9232, %v9079
        %9253 = vst.msk [vmem:[%s332 + $0xa0] sm:$0xff] %vm9232, %v9081
        %9254 = vst.msk [vmem:[%s332 + $0xa8] sm:$0xff] %vm9232, %v9083
        %9255 = vst.msk [vmem:[%s332 + $0xb0] sm:$0xff] %vm9232, %v9085
        %9256 = vst.msk [vmem:[%s332 + $0xb8] sm:$0xff] %vm9232, %v9087
        %9257 = vst.msk [vmem:[%s332 + $0xc0] sm:$0xff] %vm9232, %v9089
        %9258 = vst.msk [vmem:[%s332 + $0xc8] sm:$0xff] %vm9232, %v9091
        %9259 = vst.msk [vmem:[%s332 + $0xd0] sm:$0xff] %vm9232, %v9093
        %9260 = vst.msk [vmem:[%s332 + $0xd8] sm:$0xff] %vm9232, %v9095
        %9261 = vst.msk [vmem:[%s332 + $0xe0] sm:$0xff] %vm9232, %v9097
        %9262 = vst.msk [vmem:[%s332 + $0xe8] sm:$0xff] %vm9232, %v9099
        %9263 = vst.msk [vmem:[%s332 + $0xf0] sm:$0xff] %vm9232, %v9101
        %9264 = vst.msk [vmem:[%s332 + $0xf8] sm:$0xff] %vm9232, %v9103
        %9265 = vst.msk [vmem:[%s332 + $0x100] sm:$0xff] %vm9232, %v9105
        %9266 = vst.msk [vmem:[%s332 + $0x108] sm:$0xff] %vm9232, %v9107
        %9267 = vst.msk [vmem:[%s332 + $0x110] sm:$0xff] %vm9232, %v9109
        %9268 = vst.msk [vmem:[%s332 + $0x118] sm:$0xff] %vm9232, %v9111
        %9269 = vst.msk [vmem:[%s332 + $0x120] sm:$0xff] %vm9232, %v9113
        %9270 = vst.msk [vmem:[%s332 + $0x128] sm:$0xff] %vm9232, %v9115
        %9271 = vst.msk [vmem:[%s332 + $0x130] sm:$0xff] %vm9232, %v9117
        %9272 = vst.msk [vmem:[%s332 + $0x138] sm:$0xff] %vm9232, %v9119
        %9273 = vst.msk [vmem:[%s332 + $0x140] sm:$0xff] %vm9232, %v9121
        %9274 = vst.msk [vmem:[%s332 + $0x148] sm:$0xff] %vm9232, %v9123
        %9275 = vst.msk [vmem:[%s332 + $0x150] sm:$0xff] %vm9232, %v9125
        %9276 = vst.msk [vmem:[%s332 + $0x158] sm:$0xff] %vm9232, %v9127
        %9277 = vst.msk [vmem:[%s332 + $0x160] sm:$0xff] %vm9232, %v9129
        %9278 = vst.msk [vmem:[%s332 + $0x168] sm:$0xff] %vm9232, %v9131
        %9279 = vst.msk [vmem:[%s332 + $0x170] sm:$0xff] %vm9232, %v9133
        %9280 = vst.msk [vmem:[%s332 + $0x178] sm:$0xff] %vm9232, %v9135
        %9281 = vst.msk [vmem:[%s332 + $0x180] sm:$0xff] %vm9232, %v9137
        %9282 = vst.msk [vmem:[%s332 + $0x188] sm:$0xff] %vm9232, %v9139
        %9283 = vst.msk [vmem:[%s332 + $0x190] sm:$0xff] %vm9232, %v9141
        %9284 = vst.msk [vmem:[%s332 + $0x198] sm:$0xff] %vm9232, %v9143
        %9285 = vst.msk [vmem:[%s332 + $0x1a0] sm:$0xff] %vm9232, %v9145
        %9286 = vst.msk [vmem:[%s332 + $0x1a8] sm:$0xff] %vm9232, %v9147
        %9287 = vst.msk [vmem:[%s332 + $0x1b0] sm:$0xff] %vm9232, %v9149
        %9288 = vst.msk [vmem:[%s332 + $0x1b8] sm:$0xff] %vm9232, %v9151
        %9289 = vst.msk [vmem:[%s332 + $0x1c0] sm:$0xff] %vm9232, %v9153
        %9290 = vst.msk [vmem:[%s332 + $0x1c8] sm:$0xff] %vm9232, %v9155
        %9291 = vst.msk [vmem:[%s332 + $0x1d0] sm:$0xff] %vm9232, %v9157
        %9292 = vst.msk [vmem:[%s332 + $0x1d8] sm:$0xff] %vm9232, %v9159
        %9293 = vst.msk [vmem:[%s332 + $0x1e0] sm:$0xff] %vm9232, %v9161
        %9294 = vst.msk [vmem:[%s332 + $0x1e8] sm:$0xff] %vm9232, %v9163
        %9295 = vst.msk [vmem:[%s332 + $0x1f0] sm:$0xff] %vm9232, %v9165
        %9296 = vst.msk [vmem:[%s332 + $0x1f8] sm:$0xff] %vm9232, %v9167
      $region88: #{tpu_custom_call.1} parent=51 // pred_fallthru
        _
      %p9297 = scmp.eq.s32.totalorder %s23, 2
      %s9298 = scalar_select %p9297, %s24, 0
      %s9299 = smul.u32 2, %s9298
      %p9300 = scmp.lt.s32.totalorder %s9299, 1
      %s9301 = scalar_select %p9300, %s9299, 1
      %s9302 = smul.addr %s9301, 32
      %s9303 = smul.addr %s9302, 8
      %s9304 = scalar_lea.vmem %s8, %s9303
      // Predicated region
      $region89: #{tpu_custom_call.1} parent=51 // pred_check
        %p9305 = pneg %p226
      $region90: #{tpu_custom_call.1} parent=51 // pred_check_branch
        %9307 = sbr.rel (%p9305) target = $region92
      $region91: #{tpu_custom_call.1} parent=51 // pred_region
        %p9308 = scmp.eq.s32.totalorder %s23, 2
        %s9309 = scalar_select %p9308, %s24, 0
        %s9310 = smul.u32 2, %s9309
      $region92: #{tpu_custom_call.1} parent=51 // pred_fallthru
        _
    $region52: #{tpu_custom_call.1} parent=5 // pred_fallthru
      _
    %p9311 = scmp.le.s32.totalorder 2, %s14
    // Predicated region
    $region93: #{tpu_custom_call.1} parent=5 // pred_check
      %p9312 = pneg %p9311
    $region94: #{tpu_custom_call.1} parent=5 // pred_check_branch
      %9314 = sbr.rel (%p9312) target = $region96
    $region95: #{tpu_custom_call.1} parent=5 // pred_region
      %s9315 = ssub.s32 %s14, 2
      // Predicated region
      $region97: #{tpu_custom_call.1} parent=95 // pred_check
        %p9316 = pneg %p232
      $region98: #{tpu_custom_call.1} parent=95 // pred_check_branch
        %9318 = sbr.rel (%p9316) target = $region100
      $region99: #{tpu_custom_call.1} parent=95 // pred_region
        %p9319 = scmp.eq.s32.totalorder %s25, 2
        %s9320 = scalar_select %p9319, %s26, 0
        %s9321 = smul.u32 2, %s9320
        %p9322 = scmp.lt.s32.totalorder %s9321, 1
        %s9323 = scalar_select %p9322, %s9321, 1
        %s9324 = smul.addr %s9323, 32
        %s9325 = smul.addr %s9324, 8
        %s9326 = scalar_lea.vmem %s8, %s9325
      $region100: #{tpu_custom_call.1} parent=95 // pred_fallthru
        _
    $region96: #{tpu_custom_call.1} parent=5 // pred_fallthru
      _
  $region6: #{tpu_custom_call.1} parent=0 // loop_footer
    %s18 = sadd.s32 1, %s14
  $region7: #{tpu_custom_call.1} parent=0 // loop_footer_branch
    %13 = sbr.rel target = $region3
  $region8: #{tpu_custom_call.1} parent=0 // loop_exit
    _

</llo_original>
